<compile_context>
chip_gen: v5e
topology: v5e:2x2
jax: 0.10.0
libtpu: 0.0.40
codegen_flags: <defaults>
</compile_context>

<pallas_src>
import jax
import jax.numpy as jnp
from jax.experimental import pallas as pl
from jax.experimental.pallas import tpu as pltpu

_TAPS = [(kh, kw) for kh in range(3) for kw in range(3)]
_CPAD = 128      # lane-dense channel padding used throughout the kernel
_WC3 = 8         # conv3 is computed 8 columns wide (>= its true 4 columns)


# ----------------------------------------------------------------------------
# Fused kernel: whole forward pass, everything VMEM-resident.
# ----------------------------------------------------------------------------
def _net_kernel(x_ref, w1_ref, b1_ref, w2_ref, b2_ref, w3_ref, b3_ref,
                fw1_ref, fb1_ref, fw2_ref, fb2_ref, fw3_ref, fb3_ref,
                o_ref, a1_ref, a2_ref, feat_ref):
    f32, bf16 = jnp.float32, jnp.bfloat16
    N = x_ref.shape[0]
    H = x_ref.shape[1] - 2            # 16
    W = x_ref.shape[2] - 2            # 16
    C = _CPAD

    # Padded activation scratches: their zero borders implement conv padding=1.
    a1_ref[...] = jnp.zeros_like(a1_ref)
    a2_ref[...] = jnp.zeros_like(a2_ref)

    def conv_relu(load_tap, w_ref, b_ref, m):
        """9 shifted matmuls (bf16 operands, f32 accum) + bias + ReLU."""
        acc = jnp.zeros((m, C), f32)
        for t, (kh, kw) in enumerate(_TAPS):
            lhs = load_tap(kh, kw).astype(bf16)                    # (m, 128)
            acc = acc + jnp.dot(lhs, w_ref[t], preferred_element_type=f32)
        return jnp.maximum(acc + b_ref[...], 0.0)                  # (m, 128) f32

    def pool_store(y, ho, wcols, wo, dst_ref, row0, col0):
        """2x2/stride-2 max pool of y (rows ordered (n, h, x)) -> dst window."""
        y = y.reshape(N, ho, 2, wcols, C)
        v = jnp.maximum(y[:, :, 0], y[:, :, 1])                    # (N, ho, wcols, C)
        for j in range(wo):
            p = jnp.maximum(v[:, :, 2 * j:2 * j + 1, :],
                            v[:, :, 2 * j + 1:2 * j + 2, :])       # (N, ho, 1, C)
            dst_ref[:, row0:row0 + ho, col0 + j:col0 + j + 1, :] = p

    # --- block 1: conv1 (16x16) + ReLU + pool -> interior of a1 (8x8) ---------
    y1 = conv_relu(
        lambda kh, kw: x_ref[:, kh:kh + H, kw:kw + W, :].reshape(N * H * W, C),
        w1_ref, b1_ref, N * H * W)
    pool_store(y1, H // 2, W, W // 2, a1_ref, 1, 1)

    # --- block 2: conv2 (8x8) + ReLU + pool -> interior of a2 (4x4) -----------
    H1, W1 = H // 2, W // 2
    y2 = conv_relu(
        lambda kh, kw: a1_ref[:, kh:kh + H1, kw:kw + W1, :].reshape(N * H1 * W1, C),
        w2_ref, b2_ref, N * H1 * W1)
    pool_store(y2, H1 // 2, W1, W1 // 2, a2_ref, 1, 1)

    # --- block 3: conv3 (4x4, computed 8 cols wide) + ReLU + pool -> feat -----
    H2, W2 = H1 // 2, W1 // 2                                      # 4, 4
    y3 = conv_relu(
        lambda kh, kw: a2_ref[:, kh:kh + H2, kw:kw + _WC3, :].reshape(N * H2 * _WC3, C),
        w3_ref, b3_ref, N * H2 * _WC3)
    pool_store(y3, H2 // 2, _WC3, W2 // 2, feat_ref, 0, 0)          # feat: (N,2,2,128)

    # --- flatten (NCHW order folded into fw1 layout) + fc1/fc2/fc3 ------------
    acc = jnp.zeros((N, fw1_ref.shape[2]), f32)
    for r in range(H2 // 2):
        for w in range(W2 // 2):
            lhs = feat_ref[:, r, w, :].astype(bf16)                 # (N, 128)
            acc = acc + jnp.dot(lhs, fw1_ref[r * (W2 // 2) + w],
                                preferred_element_type=f32)
    x1 = jnp.maximum(acc + fb1_ref[...], 0.0)                       # (N, 256)
    x2 = jnp.maximum(
        jnp.dot(x1.astype(bf16), fw2_ref[...], preferred_element_type=f32)
        + fb2_ref[...], 0.0)                                        # (N, 128)
    y = (jnp.dot(x2.astype(bf16), fw3_ref[...], preferred_element_type=f32)
         + fb3_ref[...])                                            # (N, 128), col 0 real
    o_ref[...] = y[:, 0:1]


# ----------------------------------------------------------------------------
# One-time weight layout conversion (runs once, outside the jitted forward).
# ----------------------------------------------------------------------------
def prepare_params(params):
    bf16 = jnp.bfloat16

    def conv_taps(w):                                   # torch OIHW -> (9, 128, 128) bf16
        cout, cin = w.shape[0], w.shape[1]
        wt = jnp.transpose(w, (2, 3, 1, 0)).reshape(9, cin, cout)
        return jnp.pad(wt, ((0, 0), (0, _CPAD - cin), (0, _CPAD - cout))).astype(bf16)

    def bias_row(b, n_pad):                             # (n,) -> (1, n_pad) f32
        return jnp.pad(b, (0, n_pad - b.shape[0])).reshape(1, n_pad).astype(jnp.float32)

    fc1_w = params["fc1_w"]                             # (256, 512), features = c*4 + h*2 + w
    no, nf = fc1_w.shape
    assert nf == 128 * 2 * 2, "kernel assumes 16x16 spatial input"
    fw1 = (fc1_w.reshape(no, 128, 2, 2).transpose(2, 3, 1, 0)       # (h, w, c, o)
           .reshape(4, 128, no).astype(bf16))
    fw2 = params["fc2_w"].T.astype(bf16)                            # (256, 128)
    fw3 = jnp.pad(params["fc3_w"].T, ((0, 0), (0, _CPAD - 1))).astype(bf16)  # (128, 128)

    return {
        "w1": conv_taps(params["conv1_w"]), "b1": bias_row(params["conv1_b"], _CPAD),
        "w2": conv_taps(params["conv2_w"]), "b2": bias_row(params["conv2_b"], _CPAD),
        "w3": conv_taps(params["conv3_w"]), "b3": bias_row(params["conv3_b"], _CPAD),
        "fw1": fw1, "fb1": bias_row(params["fc1_b"], 256),
        "fw2": fw2, "fb2": bias_row(params["fc2_b"], _CPAD),
        "fw3": fw3, "fb3": bias_row(params["fc3_b"], _CPAD),
    }


# ----------------------------------------------------------------------------
# Forward pass: tiny XLA prep of x (3 KiB), then one fused pallas_call.
# ----------------------------------------------------------------------------
def net_forward(prepared, x_nchw):
    n, c, h, w = x_nchw.shape
    assert (h, w) == (16, 16) and c <= _CPAD
    x = jnp.transpose(x_nchw, (0, 2, 3, 1)).astype(jnp.float32)     # NHWC
    x = jnp.pad(x, ((0, 0), (1, 1), (1, 1), (0, _CPAD - c)))        # (n, 18, 18, 128)

    return pl.pallas_call(
        _net_kernel,
        out_shape=jax.ShapeDtypeStruct((n, 1), jnp.float32),
        scratch_shapes=[
            pltpu.VMEM((n, h // 2 + 2, w // 2 + 2, _CPAD), jnp.float32),  # pooled1, padded
            pltpu.VMEM((n, h // 4 + 2, _WC3 + 2, _CPAD), jnp.float32),    # pooled2, padded+wide
            pltpu.VMEM((n, 2, 2, _CPAD), jnp.float32),                    # pooled3 (flatten feats)
        ],
    )(x,
      prepared["w1"], prepared["b1"], prepared["w2"], prepared["b2"],
      prepared["w3"], prepared["b3"], prepared["fw1"], prepared["fb1"],
      prepared["fw2"], prepared["fb2"], prepared["fw3"], prepared["fb3"])


# ----------------------------------------------------------------------------
# Deterministic torch-convention parameters.
# ----------------------------------------------------------------------------
def init_params(key, input_size=(3, 16, 16)):
    cin, h, w = input_size
    ks = jax.random.split(key, 12)

    def rnd(k, shape, s):
        return s * jax.random.normal(k, shape, dtype=jnp.float32)

    flat = 128 * (h // 8) * (w // 8)
    return {
        "conv1_w": rnd(ks[0], (32, cin, 3, 3), 0.10), "conv1_b": rnd(ks[1], (32,), 0.10),
        "conv2_w": rnd(ks[2], (64, 32, 3, 3), 0.05),  "conv2_b": rnd(ks[3], (64,), 0.05),
        "conv3_w": rnd(ks[4], (128, 64, 3, 3), 0.05), "conv3_b": rnd(ks[5], (128,), 0.05),
        "fc1_w": rnd(ks[6], (256, flat), 0.02),       "fc1_b": rnd(ks[7], (256,), 0.02),
        "fc2_w": rnd(ks[8], (128, 256), 0.05),        "fc2_b": rnd(ks[9], (128,), 0.05),
        "fc3_w": rnd(ks[10], (1, 128), 0.05),         "fc3_b": rnd(ks[11], (1,), 0.05),
    }


if __name__ == "__main__":
    key = jax.random.PRNGKey(0)
    k_param, k_input = jax.random.split(key)

    input_size = (3, 16, 16)                   # (C, H, W): fc1 in-features = 512
    params = init_params(k_param, input_size)
    prepared = prepare_params(params)          # one-time layout conversion, outside jit
    x = jax.random.normal(k_input, (2,) + input_size, dtype=jnp.float32)

    fwd = jax.jit(net_forward)
    out = jax.block_until_ready(fwd(prepared, x))
    assert out.shape == (2, 1) and out.dtype == jnp.float32
    print("KERNEL_OK")
</pallas_src>

<mosaic_0001>
module attributes {stable_mosaic.version = 11 : i64} {
  func.func @_net_kernel(%arg0: memref<2x18x18x128xf32, #tpu.memory_space<vmem>>, %arg1: memref<9x128x128xbf16, #tpu.memory_space<vmem>>, %arg2: memref<1x128xf32, #tpu.memory_space<vmem>>, %arg3: memref<9x128x128xbf16, #tpu.memory_space<vmem>>, %arg4: memref<1x128xf32, #tpu.memory_space<vmem>>, %arg5: memref<9x128x128xbf16, #tpu.memory_space<vmem>>, %arg6: memref<1x128xf32, #tpu.memory_space<vmem>>, %arg7: memref<4x128x256xbf16, #tpu.memory_space<vmem>>, %arg8: memref<1x256xf32, #tpu.memory_space<vmem>>, %arg9: memref<256x128xbf16, #tpu.memory_space<vmem>>, %arg10: memref<1x128xf32, #tpu.memory_space<vmem>>, %arg11: memref<128x128xbf16, #tpu.memory_space<vmem>>, %arg12: memref<1x128xf32, #tpu.memory_space<vmem>>, %arg13: memref<2x1xf32, #tpu.memory_space<vmem>>, %arg14: memref<2x10x10x128xf32, #tpu.memory_space<vmem>>, %arg15: memref<2x6x10x128xf32, #tpu.memory_space<vmem>>, %arg16: memref<2x2x2x128xf32, #tpu.memory_space<vmem>>) attributes {dimension_semantics = [], scalar_prefetch = 0 : i64, scratch_operands = 3 : i64, tpu.core_type = #tpu.core_type<tc>} {
    %cst = arith.constant 0.000000e+00 : f32
    %0 = vector.broadcast %cst : f32 to vector<2x10x10x128xf32>
    %c0 = arith.constant 0 : index
    %c0_0 = arith.constant 0 : index
    %c0_1 = arith.constant 0 : index
    %c0_2 = arith.constant 0 : index
    %1 = vector.load %arg14[%c0, %c0_0, %c0_1, %c0_2] : memref<2x10x10x128xf32, #tpu.memory_space<vmem>>, vector<2x10x10x128xf32>
    tpu.vector_store %arg14[%c0, %c0_0, %c0_1, %c0_2], %0 {strides = array<i32>} : memref<2x10x10x128xf32, #tpu.memory_space<vmem>>, vector<2x10x10x128xf32>,
    %cst_3 = arith.constant 0.000000e+00 : f32
    %2 = vector.broadcast %cst_3 : f32 to vector<2x6x10x128xf32>
    %c0_4 = arith.constant 0 : index
    %c0_5 = arith.constant 0 : index
    %c0_6 = arith.constant 0 : index
    %c0_7 = arith.constant 0 : index
    %3 = vector.load %arg15[%c0_4, %c0_5, %c0_6, %c0_7] : memref<2x6x10x128xf32, #tpu.memory_space<vmem>>, vector<2x6x10x128xf32>
    tpu.vector_store %arg15[%c0_4, %c0_5, %c0_6, %c0_7], %2 {strides = array<i32>} : memref<2x6x10x128xf32, #tpu.memory_space<vmem>>, vector<2x6x10x128xf32>,
    %cst_8 = arith.constant 0.000000e+00 : f32
    %4 = vector.broadcast %cst_8 : f32 to vector<512x128xf32>
    %c0_9 = arith.constant 0 : index
    %c0_10 = arith.constant 0 : index
    %c0_11 = arith.constant 0 : index
    %c0_12 = arith.constant 0 : index
    %5 = vector.load %arg0[%c0_9, %c0_10, %c0_11, %c0_12] : memref<2x18x18x128xf32, #tpu.memory_space<vmem>>, vector<2x16x16x128xf32>
    %6 = vector.shape_cast %5 : vector<2x16x16x128xf32> to vector<512x128xf32>
    %7 = arith.truncf %6 : vector<512x128xf32> to vector<512x128xbf16>
    %c0_13 = arith.constant 0 : index
    %c0_14 = arith.constant 0 : index
    %c0_15 = arith.constant 0 : index
    %8 = vector.load %arg1[%c0_13, %c0_14, %c0_15] : memref<9x128x128xbf16, #tpu.memory_space<vmem>>, vector<1x128x128xbf16>
    %9 = vector.shape_cast %8 : vector<1x128x128xbf16> to vector<128x128xbf16>
    %cst_16 = arith.constant dense<0.000000e+00> : vector<512x128xf32>
    %10 = tpu.matmul %7, %9, %cst_16 {dimension_numbers = #tpu.dot_dimension_numbers<[1], [0], [0], [1], [0, 0, 1, 1], [], []>} : vector<512x128xbf16>, vector<128x128xbf16>, vector<512x128xf32> -> vector<512x128xf32>
    %11 = arith.addf %4, %10 : vector<512x128xf32>
    %c0_17 = arith.constant 0 : index
    %c0_18 = arith.constant 0 : index
    %c1 = arith.constant 1 : index
    %c0_19 = arith.constant 0 : index
    %12 = vector.load %arg0[%c0_17, %c0_18, %c1, %c0_19] : memref<2x18x18x128xf32, #tpu.memory_space<vmem>>, vector<2x16x16x128xf32>
    %13 = vector.shape_cast %12 : vector<2x16x16x128xf32> to vector<512x128xf32>
    %14 = arith.truncf %13 : vector<512x128xf32> to vector<512x128xbf16>
    %c1_20 = arith.constant 1 : index
    %c0_21 = arith.constant 0 : index
    %c0_22 = arith.constant 0 : index
    %15 = vector.load %arg1[%c1_20, %c0_21, %c0_22] : memref<9x128x128xbf16, #tpu.memory_space<vmem>>, vector<1x128x128xbf16>
    %16 = vector.shape_cast %15 : vector<1x128x128xbf16> to vector<128x128xbf16>
    %cst_23 = arith.constant dense<0.000000e+00> : vector<512x128xf32>
    %17 = tpu.matmul %14, %16, %cst_23 {dimension_numbers = #tpu.dot_dimension_numbers<[1], [0], [0], [1], [0, 0, 1, 1], [], []>} : vector<512x128xbf16>, vector<128x128xbf16>, vector<512x128xf32> -> vector<512x128xf32>
    %18 = arith.addf %11, %17 : vector<512x128xf32>
    %c0_24 = arith.constant 0 : index
    %c0_25 = arith.constant 0 : index
    %c2 = arith.constant 2 : index
    %c0_26 = arith.constant 0 : index
    %19 = vector.load %arg0[%c0_24, %c0_25, %c2, %c0_26] : memref<2x18x18x128xf32, #tpu.memory_space<vmem>>, vector<2x16x16x128xf32>
    %20 = vector.shape_cast %19 : vector<2x16x16x128xf32> to vector<512x128xf32>
    %21 = arith.truncf %20 : vector<512x128xf32> to vector<512x128xbf16>
    %c2_27 = arith.constant 2 : index
    %c0_28 = arith.constant 0 : index
    %c0_29 = arith.constant 0 : index
    %22 = vector.load %arg1[%c2_27, %c0_28, %c0_29] : memref<9x128x128xbf16, #tpu.memory_space<vmem>>, vector<1x128x128xbf16>
    %23 = vector.shape_cast %22 : vector<1x128x128xbf16> to vector<128x128xbf16>
    %cst_30 = arith.constant dense<0.000000e+00> : vector<512x128xf32>
    %24 = tpu.matmul %21, %23, %cst_30 {dimension_numbers = #tpu.dot_dimension_numbers<[1], [0], [0], [1], [0, 0, 1, 1], [], []>} : vector<512x128xbf16>, vector<128x128xbf16>, vector<512x128xf32> -> vector<512x128xf32>
    %25 = arith.addf %18, %24 : vector<512x128xf32>
    %c0_31 = arith.constant 0 : index
    %c1_32 = arith.constant 1 : index
    %c0_33 = arith.constant 0 : index
    %c0_34 = arith.constant 0 : index
    %26 = vector.load %arg0[%c0_31, %c1_32, %c0_33, %c0_34] : memref<2x18x18x128xf32, #tpu.memory_space<vmem>>, vector<2x16x16x128xf32>
    %27 = vector.shape_cast %26 : vector<2x16x16x128xf32> to vector<512x128xf32>
    %28 = arith.truncf %27 : vector<512x128xf32> to vector<512x128xbf16>
    %c3 = arith.constant 3 : index
    %c0_35 = arith.constant 0 : index
    %c0_36 = arith.constant 0 : index
    %29 = vector.load %arg1[%c3, %c0_35, %c0_36] : memref<9x128x128xbf16, #tpu.memory_space<vmem>>, vector<1x128x128xbf16>
    %30 = vector.shape_cast %29 : vector<1x128x128xbf16> to vector<128x128xbf16>
    %cst_37 = arith.constant dense<0.000000e+00> : vector<512x128xf32>
    %31 = tpu.matmul %28, %30, %cst_37 {dimension_numbers = #tpu.dot_dimension_numbers<[1], [0], [0], [1], [0, 0, 1, 1], [], []>} : vector<512x128xbf16>, vector<128x128xbf16>, vector<512x128xf32> -> vector<512x128xf32>
    %32 = arith.addf %25, %31 : vector<512x128xf32>
    %c0_38 = arith.constant 0 : index
    %c1_39 = arith.constant 1 : index
    %c1_40 = arith.constant 1 : index
    %c0_41 = arith.constant 0 : index
    %33 = vector.load %arg0[%c0_38, %c1_39, %c1_40, %c0_41] : memref<2x18x18x128xf32, #tpu.memory_space<vmem>>, vector<2x16x16x128xf32>
    %34 = vector.shape_cast %33 : vector<2x16x16x128xf32> to vector<512x128xf32>
    %35 = arith.truncf %34 : vector<512x128xf32> to vector<512x128xbf16>
    %c4 = arith.constant 4 : index
    %c0_42 = arith.constant 0 : index
    %c0_43 = arith.constant 0 : index
    %36 = vector.load %arg1[%c4, %c0_42, %c0_43] : memref<9x128x128xbf16, #tpu.memory_space<vmem>>, vector<1x128x128xbf16>
    %37 = vector.shape_cast %36 : vector<1x128x128xbf16> to vector<128x128xbf16>
    %cst_44 = arith.constant dense<0.000000e+00> : vector<512x128xf32>
    %38 = tpu.matmul %35, %37, %cst_44 {dimension_numbers = #tpu.dot_dimension_numbers<[1], [0], [0], [1], [0, 0, 1, 1], [], []>} : vector<512x128xbf16>, vector<128x128xbf16>, vector<512x128xf32> -> vector<512x128xf32>
    %39 = arith.addf %32, %38 : vector<512x128xf32>
    %c0_45 = arith.constant 0 : index
    %c1_46 = arith.constant 1 : index
    %c2_47 = arith.constant 2 : index
    %c0_48 = arith.constant 0 : index
    %40 = vector.load %arg0[%c0_45, %c1_46, %c2_47, %c0_48] : memref<2x18x18x128xf32, #tpu.memory_space<vmem>>, vector<2x16x16x128xf32>
    %41 = vector.shape_cast %40 : vector<2x16x16x128xf32> to vector<512x128xf32>
    %42 = arith.truncf %41 : vector<512x128xf32> to vector<512x128xbf16>
    %c5 = arith.constant 5 : index
    %c0_49 = arith.constant 0 : index
    %c0_50 = arith.constant 0 : index
    %43 = vector.load %arg1[%c5, %c0_49, %c0_50] : memref<9x128x128xbf16, #tpu.memory_space<vmem>>, vector<1x128x128xbf16>
    %44 = vector.shape_cast %43 : vector<1x128x128xbf16> to vector<128x128xbf16>
    %cst_51 = arith.constant dense<0.000000e+00> : vector<512x128xf32>
    %45 = tpu.matmul %42, %44, %cst_51 {dimension_numbers = #tpu.dot_dimension_numbers<[1], [0], [0], [1], [0, 0, 1, 1], [], []>} : vector<512x128xbf16>, vector<128x128xbf16>, vector<512x128xf32> -> vector<512x128xf32>
    %46 = arith.addf %39, %45 : vector<512x128xf32>
    %c0_52 = arith.constant 0 : index
    %c2_53 = arith.constant 2 : index
    %c0_54 = arith.constant 0 : index
    %c0_55 = arith.constant 0 : index
    %47 = vector.load %arg0[%c0_52, %c2_53, %c0_54, %c0_55] : memref<2x18x18x128xf32, #tpu.memory_space<vmem>>, vector<2x16x16x128xf32>
    %48 = vector.shape_cast %47 : vector<2x16x16x128xf32> to vector<512x128xf32>
    %49 = arith.truncf %48 : vector<512x128xf32> to vector<512x128xbf16>
    %c6 = arith.constant 6 : index
    %c0_56 = arith.constant 0 : index
    %c0_57 = arith.constant 0 : index
    %50 = vector.load %arg1[%c6, %c0_56, %c0_57] : memref<9x128x128xbf16, #tpu.memory_space<vmem>>, vector<1x128x128xbf16>
    %51 = vector.shape_cast %50 : vector<1x128x128xbf16> to vector<128x128xbf16>
    %cst_58 = arith.constant dense<0.000000e+00> : vector<512x128xf32>
    %52 = tpu.matmul %49, %51, %cst_58 {dimension_numbers = #tpu.dot_dimension_numbers<[1], [0], [0], [1], [0, 0, 1, 1], [], []>} : vector<512x128xbf16>, vector<128x128xbf16>, vector<512x128xf32> -> vector<512x128xf32>
    %53 = arith.addf %46, %52 : vector<512x128xf32>
    %c0_59 = arith.constant 0 : index
    %c2_60 = arith.constant 2 : index
    %c1_61 = arith.constant 1 : index
    %c0_62 = arith.constant 0 : index
    %54 = vector.load %arg0[%c0_59, %c2_60, %c1_61, %c0_62] : memref<2x18x18x128xf32, #tpu.memory_space<vmem>>, vector<2x16x16x128xf32>
    %55 = vector.shape_cast %54 : vector<2x16x16x128xf32> to vector<512x128xf32>
    %56 = arith.truncf %55 : vector<512x128xf32> to vector<512x128xbf16>
    %c7 = arith.constant 7 : index
    %c0_63 = arith.constant 0 : index
    %c0_64 = arith.constant 0 : index
    %57 = vector.load %arg1[%c7, %c0_63, %c0_64] : memref<9x128x128xbf16, #tpu.memory_space<vmem>>, vector<1x128x128xbf16>
    %58 = vector.shape_cast %57 : vector<1x128x128xbf16> to vector<128x128xbf16>
    %cst_65 = arith.constant dense<0.000000e+00> : vector<512x128xf32>
    %59 = tpu.matmul %56, %58, %cst_65 {dimension_numbers = #tpu.dot_dimension_numbers<[1], [0], [0], [1], [0, 0, 1, 1], [], []>} : vector<512x128xbf16>, vector<128x128xbf16>, vector<512x128xf32> -> vector<512x128xf32>
    %60 = arith.addf %53, %59 : vector<512x128xf32>
    %c0_66 = arith.constant 0 : index
    %c2_67 = arith.constant 2 : index
    %c2_68 = arith.constant 2 : index
    %c0_69 = arith.constant 0 : index
    %61 = vector.load %arg0[%c0_66, %c2_67, %c2_68, %c0_69] : memref<2x18x18x128xf32, #tpu.memory_space<vmem>>, vector<2x16x16x128xf32>
    %62 = vector.shape_cast %61 : vector<2x16x16x128xf32> to vector<512x128xf32>
    %63 = arith.truncf %62 : vector<512x128xf32> to vector<512x128xbf16>
    %c8 = arith.constant 8 : index
    %c0_70 = arith.constant 0 : index
    %c0_71 = arith.constant 0 : index
    %64 = vector.load %arg1[%c8, %c0_70, %c0_71] : memref<9x128x128xbf16, #tpu.memory_space<vmem>>, vector<1x128x128xbf16>
    %65 = vector.shape_cast %64 : vector<1x128x128xbf16> to vector<128x128xbf16>
    %cst_72 = arith.constant dense<0.000000e+00> : vector<512x128xf32>
    %66 = tpu.matmul %63, %65, %cst_72 {dimension_numbers = #tpu.dot_dimension_numbers<[1], [0], [0], [1], [0, 0, 1, 1], [], []>} : vector<512x128xbf16>, vector<128x128xbf16>, vector<512x128xf32> -> vector<512x128xf32>
    %67 = arith.addf %60, %66 : vector<512x128xf32>
    %c0_73 = arith.constant 0 : index
    %c0_74 = arith.constant 0 : index
    %68 = vector.load %arg2[%c0_73, %c0_74] : memref<1x128xf32, #tpu.memory_space<vmem>>, vector<1x128xf32>
    %69 = vector.broadcast %68 : vector<1x128xf32> to vector<512x128xf32>
    %70 = arith.addf %67, %69 : vector<512x128xf32>
    %cst_75 = arith.constant 0.000000e+00 : f32
    %71 = vector.broadcast %cst_75 : f32 to vector<512x128xf32>
    %72 = arith.maximumf %70, %71 : vector<512x128xf32>
    %73 = vector.shape_cast %72 : vector<512x128xf32> to vector<2x8x2x16x128xf32>
    %74 = vector.extract_strided_slice %73 {offsets = [0, 0, 0, 0, 0], sizes = [2, 8, 1, 16, 128], strides = [1, 1, 1, 1, 1]} : vector<2x8x2x16x128xf32> to vector<2x8x1x16x128xf32>
    %75 = vector.shape_cast %74 : vector<2x8x1x16x128xf32> to vector<2x8x16x128xf32>
    %76 = vector.extract_strided_slice %73 {offsets = [0, 0, 1, 0, 0], sizes = [2, 8, 1, 16, 128], strides = [1, 1, 1, 1, 1]} : vector<2x8x2x16x128xf32> to vector<2x8x1x16x128xf32>
    %77 = vector.shape_cast %76 : vector<2x8x1x16x128xf32> to vector<2x8x16x128xf32>
    %78 = arith.maximumf %75, %77 : vector<2x8x16x128xf32>
    %79 = vector.extract_strided_slice %78 {offsets = [0, 0, 0, 0], sizes = [2, 8, 1, 128], strides = [1, 1, 1, 1]} : vector<2x8x16x128xf32> to vector<2x8x1x128xf32>
    %80 = vector.extract_strided_slice %78 {offsets = [0, 0, 1, 0], sizes = [2, 8, 1, 128], strides = [1, 1, 1, 1]} : vector<2x8x16x128xf32> to vector<2x8x1x128xf32>
    %81 = arith.maximumf %79, %80 : vector<2x8x1x128xf32>
    %c0_76 = arith.constant 0 : index
    %c1_77 = arith.constant 1 : index
    %c1_78 = arith.constant 1 : index
    %c0_79 = arith.constant 0 : index
    %82 = vector.load %arg14[%c0_76, %c1_77, %c1_78, %c0_79] : memref<2x10x10x128xf32, #tpu.memory_space<vmem>>, vector<2x8x1x128xf32>
    tpu.vector_store %arg14[%c0_76, %c1_77, %c1_78, %c0_79], %81 {strides = array<i32>} : memref<2x10x10x128xf32, #tpu.memory_space<vmem>>, vector<2x8x1x128xf32>,
    %83 = vector.extract_strided_slice %78 {offsets = [0, 0, 2, 0], sizes = [2, 8, 1, 128], strides = [1, 1, 1, 1]} : vector<2x8x16x128xf32> to vector<2x8x1x128xf32>
    %84 = vector.extract_strided_slice %78 {offsets = [0, 0, 3, 0], sizes = [2, 8, 1, 128], strides = [1, 1, 1, 1]} : vector<2x8x16x128xf32> to vector<2x8x1x128xf32>
    %85 = arith.maximumf %83, %84 : vector<2x8x1x128xf32>
    %c0_80 = arith.constant 0 : index
    %c1_81 = arith.constant 1 : index
    %c2_82 = arith.constant 2 : index
    %c0_83 = arith.constant 0 : index
    %86 = vector.load %arg14[%c0_80, %c1_81, %c2_82, %c0_83] : memref<2x10x10x128xf32, #tpu.memory_space<vmem>>, vector<2x8x1x128xf32>
    tpu.vector_store %arg14[%c0_80, %c1_81, %c2_82, %c0_83], %85 {strides = array<i32>} : memref<2x10x10x128xf32, #tpu.memory_space<vmem>>, vector<2x8x1x128xf32>,
    %87 = vector.extract_strided_slice %78 {offsets = [0, 0, 4, 0], sizes = [2, 8, 1, 128], strides = [1, 1, 1, 1]} : vector<2x8x16x128xf32> to vector<2x8x1x128xf32>
    %88 = vector.extract_strided_slice %78 {offsets = [0, 0, 5, 0], sizes = [2, 8, 1, 128], strides = [1, 1, 1, 1]} : vector<2x8x16x128xf32> to vector<2x8x1x128xf32>
    %89 = arith.maximumf %87, %88 : vector<2x8x1x128xf32>
    %c0_84 = arith.constant 0 : index
    %c1_85 = arith.constant 1 : index
    %c3_86 = arith.constant 3 : index
    %c0_87 = arith.constant 0 : index
    %90 = vector.load %arg14[%c0_84, %c1_85, %c3_86, %c0_87] : memref<2x10x10x128xf32, #tpu.memory_space<vmem>>, vector<2x8x1x128xf32>
    tpu.vector_store %arg14[%c0_84, %c1_85, %c3_86, %c0_87], %89 {strides = array<i32>} : memref<2x10x10x128xf32, #tpu.memory_space<vmem>>, vector<2x8x1x128xf32>,
    %91 = vector.extract_strided_slice %78 {offsets = [0, 0, 6, 0], sizes = [2, 8, 1, 128], strides = [1, 1, 1, 1]} : vector<2x8x16x128xf32> to vector<2x8x1x128xf32>
    %92 = vector.extract_strided_slice %78 {offsets = [0, 0, 7, 0], sizes = [2, 8, 1, 128], strides = [1, 1, 1, 1]} : vector<2x8x16x128xf32> to vector<2x8x1x128xf32>
    %93 = arith.maximumf %91, %92 : vector<2x8x1x128xf32>
    %c0_88 = arith.constant 0 : index
    %c1_89 = arith.constant 1 : index
    %c4_90 = arith.constant 4 : index
    %c0_91 = arith.constant 0 : index
    %94 = vector.load %arg14[%c0_88, %c1_89, %c4_90, %c0_91] : memref<2x10x10x128xf32, #tpu.memory_space<vmem>>, vector<2x8x1x128xf32>
    tpu.vector_store %arg14[%c0_88, %c1_89, %c4_90, %c0_91], %93 {strides = array<i32>} : memref<2x10x10x128xf32, #tpu.memory_space<vmem>>, vector<2x8x1x128xf32>,
    %95 = vector.extract_strided_slice %78 {offsets = [0, 0, 8, 0], sizes = [2, 8, 1, 128], strides = [1, 1, 1, 1]} : vector<2x8x16x128xf32> to vector<2x8x1x128xf32>
    %96 = vector.extract_strided_slice %78 {offsets = [0, 0, 9, 0], sizes = [2, 8, 1, 128], strides = [1, 1, 1, 1]} : vector<2x8x16x128xf32> to vector<2x8x1x128xf32>
    %97 = arith.maximumf %95, %96 : vector<2x8x1x128xf32>
    %c0_92 = arith.constant 0 : index
    %c1_93 = arith.constant 1 : index
    %c5_94 = arith.constant 5 : index
    %c0_95 = arith.constant 0 : index
    %98 = vector.load %arg14[%c0_92, %c1_93, %c5_94, %c0_95] : memref<2x10x10x128xf32, #tpu.memory_space<vmem>>, vector<2x8x1x128xf32>
    tpu.vector_store %arg14[%c0_92, %c1_93, %c5_94, %c0_95], %97 {strides = array<i32>} : memref<2x10x10x128xf32, #tpu.memory_space<vmem>>, vector<2x8x1x128xf32>,
    %99 = vector.extract_strided_slice %78 {offsets = [0, 0, 10, 0], sizes = [2, 8, 1, 128], strides = [1, 1, 1, 1]} : vector<2x8x16x128xf32> to vector<2x8x1x128xf32>
    %100 = vector.extract_strided_slice %78 {offsets = [0, 0, 11, 0], sizes = [2, 8, 1, 128], strides = [1, 1, 1, 1]} : vector<2x8x16x128xf32> to vector<2x8x1x128xf32>
    %101 = arith.maximumf %99, %100 : vector<2x8x1x128xf32>
    %c0_96 = arith.constant 0 : index
    %c1_97 = arith.constant 1 : index
    %c6_98 = arith.constant 6 : index
    %c0_99 = arith.constant 0 : index
    %102 = vector.load %arg14[%c0_96, %c1_97, %c6_98, %c0_99] : memref<2x10x10x128xf32, #tpu.memory_space<vmem>>, vector<2x8x1x128xf32>
    tpu.vector_store %arg14[%c0_96, %c1_97, %c6_98, %c0_99], %101 {strides = array<i32>} : memref<2x10x10x128xf32, #tpu.memory_space<vmem>>, vector<2x8x1x128xf32>,
    %103 = vector.extract_strided_slice %78 {offsets = [0, 0, 12, 0], sizes = [2, 8, 1, 128], strides = [1, 1, 1, 1]} : vector<2x8x16x128xf32> to vector<2x8x1x128xf32>
    %104 = vector.extract_strided_slice %78 {offsets = [0, 0, 13, 0], sizes = [2, 8, 1, 128], strides = [1, 1, 1, 1]} : vector<2x8x16x128xf32> to vector<2x8x1x128xf32>
    %105 = arith.maximumf %103, %104 : vector<2x8x1x128xf32>
    %c0_100 = arith.constant 0 : index
    %c1_101 = arith.constant 1 : index
    %c7_102 = arith.constant 7 : index
    %c0_103 = arith.constant 0 : index
    %106 = vector.load %arg14[%c0_100, %c1_101, %c7_102, %c0_103] : memref<2x10x10x128xf32, #tpu.memory_space<vmem>>, vector<2x8x1x128xf32>
    tpu.vector_store %arg14[%c0_100, %c1_101, %c7_102, %c0_103], %105 {strides = array<i32>} : memref<2x10x10x128xf32, #tpu.memory_space<vmem>>, vector<2x8x1x128xf32>,
    %107 = vector.extract_strided_slice %78 {offsets = [0, 0, 14, 0], sizes = [2, 8, 1, 128], strides = [1, 1, 1, 1]} : vector<2x8x16x128xf32> to vector<2x8x1x128xf32>
    %108 = vector.extract_strided_slice %78 {offsets = [0, 0, 15, 0], sizes = [2, 8, 1, 128], strides = [1, 1, 1, 1]} : vector<2x8x16x128xf32> to vector<2x8x1x128xf32>
    %109 = arith.maximumf %107, %108 : vector<2x8x1x128xf32>
    %c0_104 = arith.constant 0 : index
    %c1_105 = arith.constant 1 : index
    %c8_106 = arith.constant 8 : index
    %c0_107 = arith.constant 0 : index
    %110 = vector.load %arg14[%c0_104, %c1_105, %c8_106, %c0_107] : memref<2x10x10x128xf32, #tpu.memory_space<vmem>>, vector<2x8x1x128xf32>
    tpu.vector_store %arg14[%c0_104, %c1_105, %c8_106, %c0_107], %109 {strides = array<i32>} : memref<2x10x10x128xf32, #tpu.memory_space<vmem>>, vector<2x8x1x128xf32>,
    %cst_108 = arith.constant 0.000000e+00 : f32
    %111 = vector.broadcast %cst_108 : f32 to vector<128x128xf32>
    %c0_109 = arith.constant 0 : index
    %c0_110 = arith.constant 0 : index
    %c0_111 = arith.constant 0 : index
    %c0_112 = arith.constant 0 : index
    %112 = vector.load %arg14[%c0_109, %c0_110, %c0_111, %c0_112] : memref<2x10x10x128xf32, #tpu.memory_space<vmem>>, vector<2x8x8x128xf32>
    %113 = vector.shape_cast %112 : vector<2x8x8x128xf32> to vector<128x128xf32>
    %114 = arith.truncf %113 : vector<128x128xf32> to vector<128x128xbf16>
    %c0_113 = arith.constant 0 : index
    %c0_114 = arith.constant 0 : index
    %c0_115 = arith.constant 0 : index
    %115 = vector.load %arg3[%c0_113, %c0_114, %c0_115] : memref<9x128x128xbf16, #tpu.memory_space<vmem>>, vector<1x128x128xbf16>
    %116 = vector.shape_cast %115 : vector<1x128x128xbf16> to vector<128x128xbf16>
    %cst_116 = arith.constant dense<0.000000e+00> : vector<128x128xf32>
    %117 = tpu.matmul %114, %116, %cst_116 {dimension_numbers = #tpu.dot_dimension_numbers<[1], [0], [0], [1], [0, 0, 1, 1], [], []>} : vector<128x128xbf16>, vector<128x128xbf16>, vector<128x128xf32> -> vector<128x128xf32>
    %118 = arith.addf %111, %117 : vector<128x128xf32>
    %c0_117 = arith.constant 0 : index
    %c0_118 = arith.constant 0 : index
    %c1_119 = arith.constant 1 : index
    %c0_120 = arith.constant 0 : index
    %119 = vector.load %arg14[%c0_117, %c0_118, %c1_119, %c0_120] : memref<2x10x10x128xf32, #tpu.memory_space<vmem>>, vector<2x8x8x128xf32>
    %120 = vector.shape_cast %119 : vector<2x8x8x128xf32> to vector<128x128xf32>
    %121 = arith.truncf %120 : vector<128x128xf32> to vector<128x128xbf16>
    %c1_121 = arith.constant 1 : index
    %c0_122 = arith.constant 0 : index
    %c0_123 = arith.constant 0 : index
    %122 = vector.load %arg3[%c1_121, %c0_122, %c0_123] : memref<9x128x128xbf16, #tpu.memory_space<vmem>>, vector<1x128x128xbf16>
    %123 = vector.shape_cast %122 : vector<1x128x128xbf16> to vector<128x128xbf16>
    %cst_124 = arith.constant dense<0.000000e+00> : vector<128x128xf32>
    %124 = tpu.matmul %121, %123, %cst_124 {dimension_numbers = #tpu.dot_dimension_numbers<[1], [0], [0], [1], [0, 0, 1, 1], [], []>} : vector<128x128xbf16>, vector<128x128xbf16>, vector<128x128xf32> -> vector<128x128xf32>
    %125 = arith.addf %118, %124 : vector<128x128xf32>
    %c0_125 = arith.constant 0 : index
    %c0_126 = arith.constant 0 : index
    %c2_127 = arith.constant 2 : index
    %c0_128 = arith.constant 0 : index
    %126 = vector.load %arg14[%c0_125, %c0_126, %c2_127, %c0_128] : memref<2x10x10x128xf32, #tpu.memory_space<vmem>>, vector<2x8x8x128xf32>
    %127 = vector.shape_cast %126 : vector<2x8x8x128xf32> to vector<128x128xf32>
    %128 = arith.truncf %127 : vector<128x128xf32> to vector<128x128xbf16>
    %c2_129 = arith.constant 2 : index
    %c0_130 = arith.constant 0 : index
    %c0_131 = arith.constant 0 : index
    %129 = vector.load %arg3[%c2_129, %c0_130, %c0_131] : memref<9x128x128xbf16, #tpu.memory_space<vmem>>, vector<1x128x128xbf16>
    %130 = vector.shape_cast %129 : vector<1x128x128xbf16> to vector<128x128xbf16>
    %cst_132 = arith.constant dense<0.000000e+00> : vector<128x128xf32>
    %131 = tpu.matmul %128, %130, %cst_132 {dimension_numbers = #tpu.dot_dimension_numbers<[1], [0], [0], [1], [0, 0, 1, 1], [], []>} : vector<128x128xbf16>, vector<128x128xbf16>, vector<128x128xf32> -> vector<128x128xf32>
    %132 = arith.addf %125, %131 : vector<128x128xf32>
    %c0_133 = arith.constant 0 : index
    %c1_134 = arith.constant 1 : index
    %c0_135 = arith.constant 0 : index
    %c0_136 = arith.constant 0 : index
    %133 = vector.load %arg14[%c0_133, %c1_134, %c0_135, %c0_136] : memref<2x10x10x128xf32, #tpu.memory_space<vmem>>, vector<2x8x8x128xf32>
    %134 = vector.shape_cast %133 : vector<2x8x8x128xf32> to vector<128x128xf32>
    %135 = arith.truncf %134 : vector<128x128xf32> to vector<128x128xbf16>
    %c3_137 = arith.constant 3 : index
    %c0_138 = arith.constant 0 : index
    %c0_139 = arith.constant 0 : index
    %136 = vector.load %arg3[%c3_137, %c0_138, %c0_139] : memref<9x128x128xbf16, #tpu.memory_space<vmem>>, vector<1x128x128xbf16>
    %137 = vector.shape_cast %136 : vector<1x128x128xbf16> to vector<128x128xbf16>
    %cst_140 = arith.constant dense<0.000000e+00> : vector<128x128xf32>
    %138 = tpu.matmul %135, %137, %cst_140 {dimension_numbers = #tpu.dot_dimension_numbers<[1], [0], [0], [1], [0, 0, 1, 1], [], []>} : vector<128x128xbf16>, vector<128x128xbf16>, vector<128x128xf32> -> vector<128x128xf32>
    %139 = arith.addf %132, %138 : vector<128x128xf32>
    %c0_141 = arith.constant 0 : index
    %c1_142 = arith.constant 1 : index
    %c1_143 = arith.constant 1 : index
    %c0_144 = arith.constant 0 : index
    %140 = vector.load %arg14[%c0_141, %c1_142, %c1_143, %c0_144] : memref<2x10x10x128xf32, #tpu.memory_space<vmem>>, vector<2x8x8x128xf32>
    %141 = vector.shape_cast %140 : vector<2x8x8x128xf32> to vector<128x128xf32>
    %142 = arith.truncf %141 : vector<128x128xf32> to vector<128x128xbf16>
    %c4_145 = arith.constant 4 : index
    %c0_146 = arith.constant 0 : index
    %c0_147 = arith.constant 0 : index
    %143 = vector.load %arg3[%c4_145, %c0_146, %c0_147] : memref<9x128x128xbf16, #tpu.memory_space<vmem>>, vector<1x128x128xbf16>
    %144 = vector.shape_cast %143 : vector<1x128x128xbf16> to vector<128x128xbf16>
    %cst_148 = arith.constant dense<0.000000e+00> : vector<128x128xf32>
    %145 = tpu.matmul %142, %144, %cst_148 {dimension_numbers = #tpu.dot_dimension_numbers<[1], [0], [0], [1], [0, 0, 1, 1], [], []>} : vector<128x128xbf16>, vector<128x128xbf16>, vector<128x128xf32> -> vector<128x128xf32>
    %146 = arith.addf %139, %145 : vector<128x128xf32>
    %c0_149 = arith.constant 0 : index
    %c1_150 = arith.constant 1 : index
    %c2_151 = arith.constant 2 : index
    %c0_152 = arith.constant 0 : index
    %147 = vector.load %arg14[%c0_149, %c1_150, %c2_151, %c0_152] : memref<2x10x10x128xf32, #tpu.memory_space<vmem>>, vector<2x8x8x128xf32>
    %148 = vector.shape_cast %147 : vector<2x8x8x128xf32> to vector<128x128xf32>
    %149 = arith.truncf %148 : vector<128x128xf32> to vector<128x128xbf16>
    %c5_153 = arith.constant 5 : index
    %c0_154 = arith.constant 0 : index
    %c0_155 = arith.constant 0 : index
    %150 = vector.load %arg3[%c5_153, %c0_154, %c0_155] : memref<9x128x128xbf16, #tpu.memory_space<vmem>>, vector<1x128x128xbf16>
    %151 = vector.shape_cast %150 : vector<1x128x128xbf16> to vector<128x128xbf16>
    %cst_156 = arith.constant dense<0.000000e+00> : vector<128x128xf32>
    %152 = tpu.matmul %149, %151, %cst_156 {dimension_numbers = #tpu.dot_dimension_numbers<[1], [0], [0], [1], [0, 0, 1, 1], [], []>} : vector<128x128xbf16>, vector<128x128xbf16>, vector<128x128xf32> -> vector<128x128xf32>
    %153 = arith.addf %146, %152 : vector<128x128xf32>
    %c0_157 = arith.constant 0 : index
    %c2_158 = arith.constant 2 : index
    %c0_159 = arith.constant 0 : index
    %c0_160 = arith.constant 0 : index
    %154 = vector.load %arg14[%c0_157, %c2_158, %c0_159, %c0_160] : memref<2x10x10x128xf32, #tpu.memory_space<vmem>>, vector<2x8x8x128xf32>
    %155 = vector.shape_cast %154 : vector<2x8x8x128xf32> to vector<128x128xf32>
    %156 = arith.truncf %155 : vector<128x128xf32> to vector<128x128xbf16>
    %c6_161 = arith.constant 6 : index
    %c0_162 = arith.constant 0 : index
    %c0_163 = arith.constant 0 : index
    %157 = vector.load %arg3[%c6_161, %c0_162, %c0_163] : memref<9x128x128xbf16, #tpu.memory_space<vmem>>, vector<1x128x128xbf16>
    %158 = vector.shape_cast %157 : vector<1x128x128xbf16> to vector<128x128xbf16>
    %cst_164 = arith.constant dense<0.000000e+00> : vector<128x128xf32>
    %159 = tpu.matmul %156, %158, %cst_164 {dimension_numbers = #tpu.dot_dimension_numbers<[1], [0], [0], [1], [0, 0, 1, 1], [], []>} : vector<128x128xbf16>, vector<128x128xbf16>, vector<128x128xf32> -> vector<128x128xf32>
    %160 = arith.addf %153, %159 : vector<128x128xf32>
    %c0_165 = arith.constant 0 : index
    %c2_166 = arith.constant 2 : index
    %c1_167 = arith.constant 1 : index
    %c0_168 = arith.constant 0 : index
    %161 = vector.load %arg14[%c0_165, %c2_166, %c1_167, %c0_168] : memref<2x10x10x128xf32, #tpu.memory_space<vmem>>, vector<2x8x8x128xf32>
    %162 = vector.shape_cast %161 : vector<2x8x8x128xf32> to vector<128x128xf32>
    %163 = arith.truncf %162 : vector<128x128xf32> to vector<128x128xbf16>
    %c7_169 = arith.constant 7 : index
    %c0_170 = arith.constant 0 : index
    %c0_171 = arith.constant 0 : index
    %164 = vector.load %arg3[%c7_169, %c0_170, %c0_171] : memref<9x128x128xbf16, #tpu.memory_space<vmem>>, vector<1x128x128xbf16>
    %165 = vector.shape_cast %164 : vector<1x128x128xbf16> to vector<128x128xbf16>
    %cst_172 = arith.constant dense<0.000000e+00> : vector<128x128xf32>
    %166 = tpu.matmul %163, %165, %cst_172 {dimension_numbers = #tpu.dot_dimension_numbers<[1], [0], [0], [1], [0, 0, 1, 1], [], []>} : vector<128x128xbf16>, vector<128x128xbf16>, vector<128x128xf32> -> vector<128x128xf32>
    %167 = arith.addf %160, %166 : vector<128x128xf32>
    %c0_173 = arith.constant 0 : index
    %c2_174 = arith.constant 2 : index
    %c2_175 = arith.constant 2 : index
    %c0_176 = arith.constant 0 : index
    %168 = vector.load %arg14[%c0_173, %c2_174, %c2_175, %c0_176] : memref<2x10x10x128xf32, #tpu.memory_space<vmem>>, vector<2x8x8x128xf32>
    %169 = vector.shape_cast %168 : vector<2x8x8x128xf32> to vector<128x128xf32>
    %170 = arith.truncf %169 : vector<128x128xf32> to vector<128x128xbf16>
    %c8_177 = arith.constant 8 : index
    %c0_178 = arith.constant 0 : index
    %c0_179 = arith.constant 0 : index
    %171 = vector.load %arg3[%c8_177, %c0_178, %c0_179] : memref<9x128x128xbf16, #tpu.memory_space<vmem>>, vector<1x128x128xbf16>
    %172 = vector.shape_cast %171 : vector<1x128x128xbf16> to vector<128x128xbf16>
    %cst_180 = arith.constant dense<0.000000e+00> : vector<128x128xf32>
    %173 = tpu.matmul %170, %172, %cst_180 {dimension_numbers = #tpu.dot_dimension_numbers<[1], [0], [0], [1], [0, 0, 1, 1], [], []>} : vector<128x128xbf16>, vector<128x128xbf16>, vector<128x128xf32> -> vector<128x128xf32>
    %174 = arith.addf %167, %173 : vector<128x128xf32>
    %c0_181 = arith.constant 0 : index
    %c0_182 = arith.constant 0 : index
    %175 = vector.load %arg4[%c0_181, %c0_182] : memref<1x128xf32, #tpu.memory_space<vmem>>, vector<1x128xf32>
    %176 = vector.broadcast %175 : vector<1x128xf32> to vector<128x128xf32>
    %177 = arith.addf %174, %176 : vector<128x128xf32>
    %cst_183 = arith.constant 0.000000e+00 : f32
    %178 = vector.broadcast %cst_183 : f32 to vector<128x128xf32>
    %179 = arith.maximumf %177, %178 : vector<128x128xf32>
    %180 = vector.shape_cast %179 : vector<128x128xf32> to vector<2x4x2x8x128xf32>
    %181 = vector.extract_strided_slice %180 {offsets = [0, 0, 0, 0, 0], sizes = [2, 4, 1, 8, 128], strides = [1, 1, 1, 1, 1]} : vector<2x4x2x8x128xf32> to vector<2x4x1x8x128xf32>
    %182 = vector.shape_cast %181 : vector<2x4x1x8x128xf32> to vector<2x4x8x128xf32>
    %183 = vector.extract_strided_slice %180 {offsets = [0, 0, 1, 0, 0], sizes = [2, 4, 1, 8, 128], strides = [1, 1, 1, 1, 1]} : vector<2x4x2x8x128xf32> to vector<2x4x1x8x128xf32>
    %184 = vector.shape_cast %183 : vector<2x4x1x8x128xf32> to vector<2x4x8x128xf32>
    %185 = arith.maximumf %182, %184 : vector<2x4x8x128xf32>
    %186 = vector.extract_strided_slice %185 {offsets = [0, 0, 0, 0], sizes = [2, 4, 1, 128], strides = [1, 1, 1, 1]} : vector<2x4x8x128xf32> to vector<2x4x1x128xf32>
    %187 = vector.extract_strided_slice %185 {offsets = [0, 0, 1, 0], sizes = [2, 4, 1, 128], strides = [1, 1, 1, 1]} : vector<2x4x8x128xf32> to vector<2x4x1x128xf32>
    %188 = arith.maximumf %186, %187 : vector<2x4x1x128xf32>
    %c0_184 = arith.constant 0 : index
    %c1_185 = arith.constant 1 : index
    %c1_186 = arith.constant 1 : index
    %c0_187 = arith.constant 0 : index
    %189 = vector.load %arg15[%c0_184, %c1_185, %c1_186, %c0_187] : memref<2x6x10x128xf32, #tpu.memory_space<vmem>>, vector<2x4x1x128xf32>
    tpu.vector_store %arg15[%c0_184, %c1_185, %c1_186, %c0_187], %188 {strides = array<i32>} : memref<2x6x10x128xf32, #tpu.memory_space<vmem>>, vector<2x4x1x128xf32>,
    %190 = vector.extract_strided_slice %185 {offsets = [0, 0, 2, 0], sizes = [2, 4, 1, 128], strides = [1, 1, 1, 1]} : vector<2x4x8x128xf32> to vector<2x4x1x128xf32>
    %191 = vector.extract_strided_slice %185 {offsets = [0, 0, 3, 0], sizes = [2, 4, 1, 128], strides = [1, 1, 1, 1]} : vector<2x4x8x128xf32> to vector<2x4x1x128xf32>
    %192 = arith.maximumf %190, %191 : vector<2x4x1x128xf32>
    %c0_188 = arith.constant 0 : index
    %c1_189 = arith.constant 1 : index
    %c2_190 = arith.constant 2 : index
    %c0_191 = arith.constant 0 : index
    %193 = vector.load %arg15[%c0_188, %c1_189, %c2_190, %c0_191] : memref<2x6x10x128xf32, #tpu.memory_space<vmem>>, vector<2x4x1x128xf32>
    tpu.vector_store %arg15[%c0_188, %c1_189, %c2_190, %c0_191], %192 {strides = array<i32>} : memref<2x6x10x128xf32, #tpu.memory_space<vmem>>, vector<2x4x1x128xf32>,
    %194 = vector.extract_strided_slice %185 {offsets = [0, 0, 4, 0], sizes = [2, 4, 1, 128], strides = [1, 1, 1, 1]} : vector<2x4x8x128xf32> to vector<2x4x1x128xf32>
    %195 = vector.extract_strided_slice %185 {offsets = [0, 0, 5, 0], sizes = [2, 4, 1, 128], strides = [1, 1, 1, 1]} : vector<2x4x8x128xf32> to vector<2x4x1x128xf32>
    %196 = arith.maximumf %194, %195 : vector<2x4x1x128xf32>
    %c0_192 = arith.constant 0 : index
    %c1_193 = arith.constant 1 : index
    %c3_194 = arith.constant 3 : index
    %c0_195 = arith.constant 0 : index
    %197 = vector.load %arg15[%c0_192, %c1_193, %c3_194, %c0_195] : memref<2x6x10x128xf32, #tpu.memory_space<vmem>>, vector<2x4x1x128xf32>
    tpu.vector_store %arg15[%c0_192, %c1_193, %c3_194, %c0_195], %196 {strides = array<i32>} : memref<2x6x10x128xf32, #tpu.memory_space<vmem>>, vector<2x4x1x128xf32>,
    %198 = vector.extract_strided_slice %185 {offsets = [0, 0, 6, 0], sizes = [2, 4, 1, 128], strides = [1, 1, 1, 1]} : vector<2x4x8x128xf32> to vector<2x4x1x128xf32>
    %199 = vector.extract_strided_slice %185 {offsets = [0, 0, 7, 0], sizes = [2, 4, 1, 128], strides = [1, 1, 1, 1]} : vector<2x4x8x128xf32> to vector<2x4x1x128xf32>
    %200 = arith.maximumf %198, %199 : vector<2x4x1x128xf32>
    %c0_196 = arith.constant 0 : index
    %c1_197 = arith.constant 1 : index
    %c4_198 = arith.constant 4 : index
    %c0_199 = arith.constant 0 : index
    %201 = vector.load %arg15[%c0_196, %c1_197, %c4_198, %c0_199] : memref<2x6x10x128xf32, #tpu.memory_space<vmem>>, vector<2x4x1x128xf32>
    tpu.vector_store %arg15[%c0_196, %c1_197, %c4_198, %c0_199], %200 {strides = array<i32>} : memref<2x6x10x128xf32, #tpu.memory_space<vmem>>, vector<2x4x1x128xf32>,
    %cst_200 = arith.constant 0.000000e+00 : f32
    %202 = vector.broadcast %cst_200 : f32 to vector<64x128xf32>
    %c0_201 = arith.constant 0 : index
    %c0_202 = arith.constant 0 : index
    %c0_203 = arith.constant 0 : index
    %c0_204 = arith.constant 0 : index
    %203 = vector.load %arg15[%c0_201, %c0_202, %c0_203, %c0_204] : memref<2x6x10x128xf32, #tpu.memory_space<vmem>>, vector<2x4x8x128xf32>
    %204 = vector.shape_cast %203 : vector<2x4x8x128xf32> to vector<64x128xf32>
    %205 = arith.truncf %204 : vector<64x128xf32> to vector<64x128xbf16>
    %c0_205 = arith.constant 0 : index
    %c0_206 = arith.constant 0 : index
    %c0_207 = arith.constant 0 : index
    %206 = vector.load %arg5[%c0_205, %c0_206, %c0_207] : memref<9x128x128xbf16, #tpu.memory_space<vmem>>, vector<1x128x128xbf16>
    %207 = vector.shape_cast %206 : vector<1x128x128xbf16> to vector<128x128xbf16>
    %cst_208 = arith.constant dense<0.000000e+00> : vector<64x128xf32>
    %208 = tpu.matmul %205, %207, %cst_208 {dimension_numbers = #tpu.dot_dimension_numbers<[1], [0], [0], [1], [0, 0, 1, 1], [], []>} : vector<64x128xbf16>, vector<128x128xbf16>, vector<64x128xf32> -> vector<64x128xf32>
    %209 = arith.addf %202, %208 : vector<64x128xf32>
    %c0_209 = arith.constant 0 : index
    %c0_210 = arith.constant 0 : index
    %c1_211 = arith.constant 1 : index
    %c0_212 = arith.constant 0 : index
    %210 = vector.load %arg15[%c0_209, %c0_210, %c1_211, %c0_212] : memref<2x6x10x128xf32, #tpu.memory_space<vmem>>, vector<2x4x8x128xf32>
    %211 = vector.shape_cast %210 : vector<2x4x8x128xf32> to vector<64x128xf32>
    %212 = arith.truncf %211 : vector<64x128xf32> to vector<64x128xbf16>
    %c1_213 = arith.constant 1 : index
    %c0_214 = arith.constant 0 : index
    %c0_215 = arith.constant 0 : index
    %213 = vector.load %arg5[%c1_213, %c0_214, %c0_215] : memref<9x128x128xbf16, #tpu.memory_space<vmem>>, vector<1x128x128xbf16>
    %214 = vector.shape_cast %213 : vector<1x128x128xbf16> to vector<128x128xbf16>
    %cst_216 = arith.constant dense<0.000000e+00> : vector<64x128xf32>
    %215 = tpu.matmul %212, %214, %cst_216 {dimension_numbers = #tpu.dot_dimension_numbers<[1], [0], [0], [1], [0, 0, 1, 1], [], []>} : vector<64x128xbf16>, vector<128x128xbf16>, vector<64x128xf32> -> vector<64x128xf32>
    %216 = arith.addf %209, %215 : vector<64x128xf32>
    %c0_217 = arith.constant 0 : index
    %c0_218 = arith.constant 0 : index
    %c2_219 = arith.constant 2 : index
    %c0_220 = arith.constant 0 : index
    %217 = vector.load %arg15[%c0_217, %c0_218, %c2_219, %c0_220] : memref<2x6x10x128xf32, #tpu.memory_space<vmem>>, vector<2x4x8x128xf32>
    %218 = vector.shape_cast %217 : vector<2x4x8x128xf32> to vector<64x128xf32>
    %219 = arith.truncf %218 : vector<64x128xf32> to vector<64x128xbf16>
    %c2_221 = arith.constant 2 : index
    %c0_222 = arith.constant 0 : index
    %c0_223 = arith.constant 0 : index
    %220 = vector.load %arg5[%c2_221, %c0_222, %c0_223] : memref<9x128x128xbf16, #tpu.memory_space<vmem>>, vector<1x128x128xbf16>
    %221 = vector.shape_cast %220 : vector<1x128x128xbf16> to vector<128x128xbf16>
    %cst_224 = arith.constant dense<0.000000e+00> : vector<64x128xf32>
    %222 = tpu.matmul %219, %221, %cst_224 {dimension_numbers = #tpu.dot_dimension_numbers<[1], [0], [0], [1], [0, 0, 1, 1], [], []>} : vector<64x128xbf16>, vector<128x128xbf16>, vector<64x128xf32> -> vector<64x128xf32>
    %223 = arith.addf %216, %222 : vector<64x128xf32>
    %c0_225 = arith.constant 0 : index
    %c1_226 = arith.constant 1 : index
    %c0_227 = arith.constant 0 : index
    %c0_228 = arith.constant 0 : index
    %224 = vector.load %arg15[%c0_225, %c1_226, %c0_227, %c0_228] : memref<2x6x10x128xf32, #tpu.memory_space<vmem>>, vector<2x4x8x128xf32>
    %225 = vector.shape_cast %224 : vector<2x4x8x128xf32> to vector<64x128xf32>
    %226 = arith.truncf %225 : vector<64x128xf32> to vector<64x128xbf16>
    %c3_229 = arith.constant 3 : index
    %c0_230 = arith.constant 0 : index
    %c0_231 = arith.constant 0 : index
    %227 = vector.load %arg5[%c3_229, %c0_230, %c0_231] : memref<9x128x128xbf16, #tpu.memory_space<vmem>>, vector<1x128x128xbf16>
    %228 = vector.shape_cast %227 : vector<1x128x128xbf16> to vector<128x128xbf16>
    %cst_232 = arith.constant dense<0.000000e+00> : vector<64x128xf32>
    %229 = tpu.matmul %226, %228, %cst_232 {dimension_numbers = #tpu.dot_dimension_numbers<[1], [0], [0], [1], [0, 0, 1, 1], [], []>} : vector<64x128xbf16>, vector<128x128xbf16>, vector<64x128xf32> -> vector<64x128xf32>
    %230 = arith.addf %223, %229 : vector<64x128xf32>
    %c0_233 = arith.constant 0 : index
    %c1_234 = arith.constant 1 : index
    %c1_235 = arith.constant 1 : index
    %c0_236 = arith.constant 0 : index
    %231 = vector.load %arg15[%c0_233, %c1_234, %c1_235, %c0_236] : memref<2x6x10x128xf32, #tpu.memory_space<vmem>>, vector<2x4x8x128xf32>
    %232 = vector.shape_cast %231 : vector<2x4x8x128xf32> to vector<64x128xf32>
    %233 = arith.truncf %232 : vector<64x128xf32> to vector<64x128xbf16>
    %c4_237 = arith.constant 4 : index
    %c0_238 = arith.constant 0 : index
    %c0_239 = arith.constant 0 : index
    %234 = vector.load %arg5[%c4_237, %c0_238, %c0_239] : memref<9x128x128xbf16, #tpu.memory_space<vmem>>, vector<1x128x128xbf16>
    %235 = vector.shape_cast %234 : vector<1x128x128xbf16> to vector<128x128xbf16>
    %cst_240 = arith.constant dense<0.000000e+00> : vector<64x128xf32>
    %236 = tpu.matmul %233, %235, %cst_240 {dimension_numbers = #tpu.dot_dimension_numbers<[1], [0], [0], [1], [0, 0, 1, 1], [], []>} : vector<64x128xbf16>, vector<128x128xbf16>, vector<64x128xf32> -> vector<64x128xf32>
    %237 = arith.addf %230, %236 : vector<64x128xf32>
    %c0_241 = arith.constant 0 : index
    %c1_242 = arith.constant 1 : index
    %c2_243 = arith.constant 2 : index
    %c0_244 = arith.constant 0 : index
    %238 = vector.load %arg15[%c0_241, %c1_242, %c2_243, %c0_244] : memref<2x6x10x128xf32, #tpu.memory_space<vmem>>, vector<2x4x8x128xf32>
    %239 = vector.shape_cast %238 : vector<2x4x8x128xf32> to vector<64x128xf32>
    %240 = arith.truncf %239 : vector<64x128xf32> to vector<64x128xbf16>
    %c5_245 = arith.constant 5 : index
    %c0_246 = arith.constant 0 : index
    %c0_247 = arith.constant 0 : index
    %241 = vector.load %arg5[%c5_245, %c0_246, %c0_247] : memref<9x128x128xbf16, #tpu.memory_space<vmem>>, vector<1x128x128xbf16>
    %242 = vector.shape_cast %241 : vector<1x128x128xbf16> to vector<128x128xbf16>
    %cst_248 = arith.constant dense<0.000000e+00> : vector<64x128xf32>
    %243 = tpu.matmul %240, %242, %cst_248 {dimension_numbers = #tpu.dot_dimension_numbers<[1], [0], [0], [1], [0, 0, 1, 1], [], []>} : vector<64x128xbf16>, vector<128x128xbf16>, vector<64x128xf32> -> vector<64x128xf32>
    %244 = arith.addf %237, %243 : vector<64x128xf32>
    %c0_249 = arith.constant 0 : index
    %c2_250 = arith.constant 2 : index
    %c0_251 = arith.constant 0 : index
    %c0_252 = arith.constant 0 : index
    %245 = vector.load %arg15[%c0_249, %c2_250, %c0_251, %c0_252] : memref<2x6x10x128xf32, #tpu.memory_space<vmem>>, vector<2x4x8x128xf32>
    %246 = vector.shape_cast %245 : vector<2x4x8x128xf32> to vector<64x128xf32>
    %247 = arith.truncf %246 : vector<64x128xf32> to vector<64x128xbf16>
    %c6_253 = arith.constant 6 : index
    %c0_254 = arith.constant 0 : index
    %c0_255 = arith.constant 0 : index
    %248 = vector.load %arg5[%c6_253, %c0_254, %c0_255] : memref<9x128x128xbf16, #tpu.memory_space<vmem>>, vector<1x128x128xbf16>
    %249 = vector.shape_cast %248 : vector<1x128x128xbf16> to vector<128x128xbf16>
    %cst_256 = arith.constant dense<0.000000e+00> : vector<64x128xf32>
    %250 = tpu.matmul %247, %249, %cst_256 {dimension_numbers = #tpu.dot_dimension_numbers<[1], [0], [0], [1], [0, 0, 1, 1], [], []>} : vector<64x128xbf16>, vector<128x128xbf16>, vector<64x128xf32> -> vector<64x128xf32>
    %251 = arith.addf %244, %250 : vector<64x128xf32>
    %c0_257 = arith.constant 0 : index
    %c2_258 = arith.constant 2 : index
    %c1_259 = arith.constant 1 : index
    %c0_260 = arith.constant 0 : index
    %252 = vector.load %arg15[%c0_257, %c2_258, %c1_259, %c0_260] : memref<2x6x10x128xf32, #tpu.memory_space<vmem>>, vector<2x4x8x128xf32>
    %253 = vector.shape_cast %252 : vector<2x4x8x128xf32> to vector<64x128xf32>
    %254 = arith.truncf %253 : vector<64x128xf32> to vector<64x128xbf16>
    %c7_261 = arith.constant 7 : index
    %c0_262 = arith.constant 0 : index
    %c0_263 = arith.constant 0 : index
    %255 = vector.load %arg5[%c7_261, %c0_262, %c0_263] : memref<9x128x128xbf16, #tpu.memory_space<vmem>>, vector<1x128x128xbf16>
    %256 = vector.shape_cast %255 : vector<1x128x128xbf16> to vector<128x128xbf16>
    %cst_264 = arith.constant dense<0.000000e+00> : vector<64x128xf32>
    %257 = tpu.matmul %254, %256, %cst_264 {dimension_numbers = #tpu.dot_dimension_numbers<[1], [0], [0], [1], [0, 0, 1, 1], [], []>} : vector<64x128xbf16>, vector<128x128xbf16>, vector<64x128xf32> -> vector<64x128xf32>
    %258 = arith.addf %251, %257 : vector<64x128xf32>
    %c0_265 = arith.constant 0 : index
    %c2_266 = arith.constant 2 : index
    %c2_267 = arith.constant 2 : index
    %c0_268 = arith.constant 0 : index
    %259 = vector.load %arg15[%c0_265, %c2_266, %c2_267, %c0_268] : memref<2x6x10x128xf32, #tpu.memory_space<vmem>>, vector<2x4x8x128xf32>
    %260 = vector.shape_cast %259 : vector<2x4x8x128xf32> to vector<64x128xf32>
    %261 = arith.truncf %260 : vector<64x128xf32> to vector<64x128xbf16>
    %c8_269 = arith.constant 8 : index
    %c0_270 = arith.constant 0 : index
    %c0_271 = arith.constant 0 : index
    %262 = vector.load %arg5[%c8_269, %c0_270, %c0_271] : memref<9x128x128xbf16, #tpu.memory_space<vmem>>, vector<1x128x128xbf16>
    %263 = vector.shape_cast %262 : vector<1x128x128xbf16> to vector<128x128xbf16>
    %cst_272 = arith.constant dense<0.000000e+00> : vector<64x128xf32>
    %264 = tpu.matmul %261, %263, %cst_272 {dimension_numbers = #tpu.dot_dimension_numbers<[1], [0], [0], [1], [0, 0, 1, 1], [], []>} : vector<64x128xbf16>, vector<128x128xbf16>, vector<64x128xf32> -> vector<64x128xf32>
    %265 = arith.addf %258, %264 : vector<64x128xf32>
    %c0_273 = arith.constant 0 : index
    %c0_274 = arith.constant 0 : index
    %266 = vector.load %arg6[%c0_273, %c0_274] : memref<1x128xf32, #tpu.memory_space<vmem>>, vector<1x128xf32>
    %267 = vector.broadcast %266 : vector<1x128xf32> to vector<64x128xf32>
    %268 = arith.addf %265, %267 : vector<64x128xf32>
    %cst_275 = arith.constant 0.000000e+00 : f32
    %269 = vector.broadcast %cst_275 : f32 to vector<64x128xf32>
    %270 = arith.maximumf %268, %269 : vector<64x128xf32>
    %271 = vector.shape_cast %270 : vector<64x128xf32> to vector<2x2x2x8x128xf32>
    %272 = vector.extract_strided_slice %271 {offsets = [0, 0, 0, 0, 0], sizes = [2, 2, 1, 8, 128], strides = [1, 1, 1, 1, 1]} : vector<2x2x2x8x128xf32> to vector<2x2x1x8x128xf32>
    %273 = vector.shape_cast %272 : vector<2x2x1x8x128xf32> to vector<2x2x8x128xf32>
    %274 = vector.extract_strided_slice %271 {offsets = [0, 0, 1, 0, 0], sizes = [2, 2, 1, 8, 128], strides = [1, 1, 1, 1, 1]} : vector<2x2x2x8x128xf32> to vector<2x2x1x8x128xf32>
    %275 = vector.shape_cast %274 : vector<2x2x1x8x128xf32> to vector<2x2x8x128xf32>
    %276 = arith.maximumf %273, %275 : vector<2x2x8x128xf32>
    %277 = vector.extract_strided_slice %276 {offsets = [0, 0, 0, 0], sizes = [2, 2, 1, 128], strides = [1, 1, 1, 1]} : vector<2x2x8x128xf32> to vector<2x2x1x128xf32>
    %278 = vector.extract_strided_slice %276 {offsets = [0, 0, 1, 0], sizes = [2, 2, 1, 128], strides = [1, 1, 1, 1]} : vector<2x2x8x128xf32> to vector<2x2x1x128xf32>
    %279 = arith.maximumf %277, %278 : vector<2x2x1x128xf32>
    %c0_276 = arith.constant 0 : index
    %c0_277 = arith.constant 0 : index
    %c0_278 = arith.constant 0 : index
    %c0_279 = arith.constant 0 : index
    %280 = vector.load %arg16[%c0_276, %c0_277, %c0_278, %c0_279] : memref<2x2x2x128xf32, #tpu.memory_space<vmem>>, vector<2x2x1x128xf32>
    tpu.vector_store %arg16[%c0_276, %c0_277, %c0_278, %c0_279], %279 {strides = array<i32>} : memref<2x2x2x128xf32, #tpu.memory_space<vmem>>, vector<2x2x1x128xf32>,
    %281 = vector.extract_strided_slice %276 {offsets = [0, 0, 2, 0], sizes = [2, 2, 1, 128], strides = [1, 1, 1, 1]} : vector<2x2x8x128xf32> to vector<2x2x1x128xf32>
    %282 = vector.extract_strided_slice %276 {offsets = [0, 0, 3, 0], sizes = [2, 2, 1, 128], strides = [1, 1, 1, 1]} : vector<2x2x8x128xf32> to vector<2x2x1x128xf32>
    %283 = arith.maximumf %281, %282 : vector<2x2x1x128xf32>
    %c0_280 = arith.constant 0 : index
    %c0_281 = arith.constant 0 : index
    %c1_282 = arith.constant 1 : index
    %c0_283 = arith.constant 0 : index
    %284 = vector.load %arg16[%c0_280, %c0_281, %c1_282, %c0_283] : memref<2x2x2x128xf32, #tpu.memory_space<vmem>>, vector<2x2x1x128xf32>
    tpu.vector_store %arg16[%c0_280, %c0_281, %c1_282, %c0_283], %283 {strides = array<i32>} : memref<2x2x2x128xf32, #tpu.memory_space<vmem>>, vector<2x2x1x128xf32>,
    %cst_284 = arith.constant 0.000000e+00 : f32
    %285 = vector.broadcast %cst_284 : f32 to vector<2x256xf32>
    %c0_285 = arith.constant 0 : index
    %c0_286 = arith.constant 0 : index
    %c0_287 = arith.constant 0 : index
    %c0_288 = arith.constant 0 : index
    %286 = vector.load %arg16[%c0_285, %c0_286, %c0_287, %c0_288] : memref<2x2x2x128xf32, #tpu.memory_space<vmem>>, vector<2x1x1x128xf32>
    %287 = vector.shape_cast %286 : vector<2x1x1x128xf32> to vector<2x128xf32>
    %288 = arith.truncf %287 : vector<2x128xf32> to vector<2x128xbf16>
    %c0_289 = arith.constant 0 : index
    %c0_290 = arith.constant 0 : index
    %c0_291 = arith.constant 0 : index
    %289 = vector.load %arg7[%c0_289, %c0_290, %c0_291] : memref<4x128x256xbf16, #tpu.memory_space<vmem>>, vector<1x128x256xbf16>
    %290 = vector.shape_cast %289 : vector<1x128x256xbf16> to vector<128x256xbf16>
    %cst_292 = arith.constant dense<0.000000e+00> : vector<2x256xf32>
    %291 = tpu.matmul %288, %290, %cst_292 {dimension_numbers = #tpu.dot_dimension_numbers<[1], [0], [0], [1], [0, 0, 1, 1], [], []>} : vector<2x128xbf16>, vector<128x256xbf16>, vector<2x256xf32> -> vector<2x256xf32>
    %292 = arith.addf %285, %291 : vector<2x256xf32>
    %c0_293 = arith.constant 0 : index
    %c0_294 = arith.constant 0 : index
    %c1_295 = arith.constant 1 : index
    %c0_296 = arith.constant 0 : index
    %293 = vector.load %arg16[%c0_293, %c0_294, %c1_295, %c0_296] : memref<2x2x2x128xf32, #tpu.memory_space<vmem>>, vector<2x1x1x128xf32>
    %294 = vector.shape_cast %293 : vector<2x1x1x128xf32> to vector<2x128xf32>
    %295 = arith.truncf %294 : vector<2x128xf32> to vector<2x128xbf16>
    %c1_297 = arith.constant 1 : index
    %c0_298 = arith.constant 0 : index
    %c0_299 = arith.constant 0 : index
    %296 = vector.load %arg7[%c1_297, %c0_298, %c0_299] : memref<4x128x256xbf16, #tpu.memory_space<vmem>>, vector<1x128x256xbf16>
    %297 = vector.shape_cast %296 : vector<1x128x256xbf16> to vector<128x256xbf16>
    %cst_300 = arith.constant dense<0.000000e+00> : vector<2x256xf32>
    %298 = tpu.matmul %295, %297, %cst_300 {dimension_numbers = #tpu.dot_dimension_numbers<[1], [0], [0], [1], [0, 0, 1, 1], [], []>} : vector<2x128xbf16>, vector<128x256xbf16>, vector<2x256xf32> -> vector<2x256xf32>
    %299 = arith.addf %292, %298 : vector<2x256xf32>
    %c0_301 = arith.constant 0 : index
    %c1_302 = arith.constant 1 : index
    %c0_303 = arith.constant 0 : index
    %c0_304 = arith.constant 0 : index
    %300 = vector.load %arg16[%c0_301, %c1_302, %c0_303, %c0_304] : memref<2x2x2x128xf32, #tpu.memory_space<vmem>>, vector<2x1x1x128xf32>
    %301 = vector.shape_cast %300 : vector<2x1x1x128xf32> to vector<2x128xf32>
    %302 = arith.truncf %301 : vector<2x128xf32> to vector<2x128xbf16>
    %c2_305 = arith.constant 2 : index
    %c0_306 = arith.constant 0 : index
    %c0_307 = arith.constant 0 : index
    %303 = vector.load %arg7[%c2_305, %c0_306, %c0_307] : memref<4x128x256xbf16, #tpu.memory_space<vmem>>, vector<1x128x256xbf16>
    %304 = vector.shape_cast %303 : vector<1x128x256xbf16> to vector<128x256xbf16>
    %cst_308 = arith.constant dense<0.000000e+00> : vector<2x256xf32>
    %305 = tpu.matmul %302, %304, %cst_308 {dimension_numbers = #tpu.dot_dimension_numbers<[1], [0], [0], [1], [0, 0, 1, 1], [], []>} : vector<2x128xbf16>, vector<128x256xbf16>, vector<2x256xf32> -> vector<2x256xf32>
    %306 = arith.addf %299, %305 : vector<2x256xf32>
    %c0_309 = arith.constant 0 : index
    %c1_310 = arith.constant 1 : index
    %c1_311 = arith.constant 1 : index
    %c0_312 = arith.constant 0 : index
    %307 = vector.load %arg16[%c0_309, %c1_310, %c1_311, %c0_312] : memref<2x2x2x128xf32, #tpu.memory_space<vmem>>, vector<2x1x1x128xf32>
    %308 = vector.shape_cast %307 : vector<2x1x1x128xf32> to vector<2x128xf32>
    %309 = arith.truncf %308 : vector<2x128xf32> to vector<2x128xbf16>
    %c3_313 = arith.constant 3 : index
    %c0_314 = arith.constant 0 : index
    %c0_315 = arith.constant 0 : index
    %310 = vector.load %arg7[%c3_313, %c0_314, %c0_315] : memref<4x128x256xbf16, #tpu.memory_space<vmem>>, vector<1x128x256xbf16>
    %311 = vector.shape_cast %310 : vector<1x128x256xbf16> to vector<128x256xbf16>
    %cst_316 = arith.constant dense<0.000000e+00> : vector<2x256xf32>
    %312 = tpu.matmul %309, %311, %cst_316 {dimension_numbers = #tpu.dot_dimension_numbers<[1], [0], [0], [1], [0, 0, 1, 1], [], []>} : vector<2x128xbf16>, vector<128x256xbf16>, vector<2x256xf32> -> vector<2x256xf32>
    %313 = arith.addf %306, %312 : vector<2x256xf32>
    %c0_317 = arith.constant 0 : index
    %c0_318 = arith.constant 0 : index
    %314 = vector.load %arg8[%c0_317, %c0_318] : memref<1x256xf32, #tpu.memory_space<vmem>>, vector<1x256xf32>
    %315 = vector.broadcast %314 : vector<1x256xf32> to vector<2x256xf32>
    %316 = arith.addf %313, %315 : vector<2x256xf32>
    %cst_319 = arith.constant 0.000000e+00 : f32
    %317 = vector.broadcast %cst_319 : f32 to vector<2x256xf32>
    %318 = arith.maximumf %316, %317 : vector<2x256xf32>
    %319 = arith.truncf %318 : vector<2x256xf32> to vector<2x256xbf16>
    %c0_320 = arith.constant 0 : index
    %c0_321 = arith.constant 0 : index
    %320 = vector.load %arg9[%c0_320, %c0_321] : memref<256x128xbf16, #tpu.memory_space<vmem>>, vector<256x128xbf16>
    %cst_322 = arith.constant dense<0.000000e+00> : vector<2x128xf32>
    %321 = tpu.matmul %319, %320, %cst_322 {dimension_numbers = #tpu.dot_dimension_numbers<[1], [0], [0], [1], [0, 0, 1, 1], [], []>} : vector<2x256xbf16>, vector<256x128xbf16>, vector<2x128xf32> -> vector<2x128xf32>
    %c0_323 = arith.constant 0 : index
    %c0_324 = arith.constant 0 : index
    %322 = vector.load %arg10[%c0_323, %c0_324] : memref<1x128xf32, #tpu.memory_space<vmem>>, vector<1x128xf32>
    %323 = vector.broadcast %322 : vector<1x128xf32> to vector<2x128xf32>
    %324 = arith.addf %321, %323 : vector<2x128xf32>
    %cst_325 = arith.constant 0.000000e+00 : f32
    %325 = vector.broadcast %cst_325 : f32 to vector<2x128xf32>
    %326 = arith.maximumf %324, %325 : vector<2x128xf32>
    %327 = arith.truncf %326 : vector<2x128xf32> to vector<2x128xbf16>
    %c0_326 = arith.constant 0 : index
    %c0_327 = arith.constant 0 : index
    %328 = vector.load %arg11[%c0_326, %c0_327] : memref<128x128xbf16, #tpu.memory_space<vmem>>, vector<128x128xbf16>
    %cst_328 = arith.constant dense<0.000000e+00> : vector<2x128xf32>
    %329 = tpu.matmul %327, %328, %cst_328 {dimension_numbers = #tpu.dot_dimension_numbers<[1], [0], [0], [1], [0, 0, 1, 1], [], []>} : vector<2x128xbf16>, vector<128x128xbf16>, vector<2x128xf32> -> vector<2x128xf32>
    %c0_329 = arith.constant 0 : index
    %c0_330 = arith.constant 0 : index
    %330 = vector.load %arg12[%c0_329, %c0_330] : memref<1x128xf32, #tpu.memory_space<vmem>>, vector<1x128xf32>
    %331 = vector.broadcast %330 : vector<1x128xf32> to vector<2x128xf32>
    %332 = arith.addf %329, %331 : vector<2x128xf32>
    %333 = vector.extract_strided_slice %332 {offsets = [0, 0], sizes = [2, 1], strides = [1, 1]} : vector<2x128xf32> to vector<2x1xf32>
    %c0_331 = arith.constant 0 : index
    %c0_332 = arith.constant 0 : index
    %334 = vector.load %arg13[%c0_331, %c0_332] : memref<2x1xf32, #tpu.memory_space<vmem>>, vector<2x1xf32>
    tpu.vector_store %arg13[%c0_331, %c0_332], %333 {strides = array<i32>} : memref<2x1xf32, #tpu.memory_space<vmem>>, vector<2x1xf32>,
    return
  }
}

</mosaic_0001>

<llo_original>
// kernel: net_forward.1
$region0: #{net_forward.1}
  #allocation0 [shape = 'u32[]', space=smem, size = 0x4, offset = 0x4, fixed_abs, tag = 'smem constant byte address 0x4 - core index']
  #allocation1 [shape = 'u32[72,128]{1,0:T(1,128)}', space=vmem, size = 0x9000, scoped, tag = 'internal scratch']
  #allocation2 [shape = 'f32[2,10,10,128]{3,2,1,0:T(8,128)}', space=vmem, size = 0x28000, scoped, tag = 'scratch operand']
  #allocation3 [shape = 'f32[2,6,10,128]{3,2,1,0:T(8,128)}', space=vmem, size = 0x18000, scoped, tag = 'scratch operand']
  #allocation4 [shape = 'f32[2,2,2,128]{3,2,1,0:T(2,128)}', space=vmem, size = 0x1000, scoped, tag = 'scratch operand']
  %s0 = inlined_call_operand.vmem [shape: f32[2,18,18,128], index: 0, kind: input, shape index: {}]
  %s1 = inlined_call_operand.vmem [shape: bf16[9,128,128], index: 1, kind: input, shape index: {}]
  %s2 = inlined_call_operand.vmem [shape: f32[1,128], index: 2, kind: input, shape index: {}]
  %s3 = inlined_call_operand.vmem [shape: bf16[9,128,128], index: 3, kind: input, shape index: {}]
  %s4 = inlined_call_operand.vmem [shape: f32[1,128], index: 4, kind: input, shape index: {}]
  %s5 = inlined_call_operand.vmem [shape: bf16[9,128,128], index: 5, kind: input, shape index: {}]
  %s6 = inlined_call_operand.vmem [shape: f32[1,128], index: 6, kind: input, shape index: {}]
  %s7 = inlined_call_operand.hbm [shape: bf16[4,128,256], index: 7, kind: input, shape index: {}]
  %s8 = inlined_call_operand.vmem [shape: f32[1,256], index: 8, kind: input, shape index: {}]
  %s9 = inlined_call_operand.vmem [shape: bf16[256,128], index: 9, kind: input, shape index: {}]
  %s10 = inlined_call_operand.vmem [shape: f32[1,128], index: 10, kind: input, shape index: {}]
  %s11 = inlined_call_operand.vmem [shape: bf16[128,128], index: 11, kind: input, shape index: {}]
  %s12 = inlined_call_operand.vmem [shape: f32[1,128], index: 12, kind: input, shape index: {}]
  %s13 = inlined_call_operand.vmem [shape: f32[2,1], index: 13, kind: output, shape index: {}]
  %s14 = sld [smem:[#allocation0]]
  $region66: #{net_forward.1} parent=0
    _
  %s16 = ssub.s32 1, %s14
  %s17 = scalar_select 0, %s16, %s14
  $region1: #{net_forward.1} parent=0
    #allocation5 [shape = 'u8[262144]{0}', space=vmem, size = 0x40000, scoped, tag = 'input window, operand 7, single buffered']
    #allocation6 [shape = 's32[1]{0}', space=sflag, size = 0x4, scoped, tag = 'scoped memory for net_forward.1']
    %18 = vsyncpa [#allocation6], 0
    // Predicated region
    $region2: #{net_forward.1} parent=1 // pred_check
      _
    $region3: #{net_forward.1} parent=1 // pred_check_branch
      %20 = sbr.rel (0) target = $region5
    $region4: #{net_forward.1} parent=1 // pred_region
      _
    $region5: #{net_forward.1} parent=1 // pred_fallthru
      _
    // Predicated region
    $region6: #{net_forward.1} parent=1 // pred_check
      _
    $region7: #{net_forward.1} parent=1 // pred_check_branch
      %22 = sbr.rel (0) target = $region9
    $region8: #{net_forward.1} parent=1 // pred_region
      _
    $region9: #{net_forward.1} parent=1 // pred_fallthru
      _
    // Predicated region
    $region10: #{net_forward.1} parent=1 // pred_check
      _
    $region11: #{net_forward.1} parent=1 // pred_check_branch
      %24 = sbr.rel (0) target = $region13
    $region12: #{net_forward.1} parent=1 // pred_region
      _
    $region13: #{net_forward.1} parent=1 // pred_fallthru
      _
    // Predicated region
    $region14: #{net_forward.1} parent=1 // pred_check
      _
    $region15: #{net_forward.1} parent=1 // pred_check_branch
      %26 = sbr.rel (0) target = $region17
    $region16: #{net_forward.1} parent=1 // pred_region
      _
    $region17: #{net_forward.1} parent=1 // pred_fallthru
      _
    // Predicated region
    $region18: #{net_forward.1} parent=1 // pred_check
      _
    $region19: #{net_forward.1} parent=1 // pred_check_branch
      %28 = sbr.rel (0) target = $region21
    $region20: #{net_forward.1} parent=1 // pred_region
      _
    $region21: #{net_forward.1} parent=1 // pred_fallthru
      _
    // Predicated region
    $region22: #{net_forward.1} parent=1 // pred_check
      _
    $region23: #{net_forward.1} parent=1 // pred_check_branch
      %30 = sbr.rel (0) target = $region25
    $region24: #{net_forward.1} parent=1 // pred_region
      _
    $region25: #{net_forward.1} parent=1 // pred_fallthru
      _
    // Predicated region
    $region26: #{net_forward.1} parent=1 // pred_check
      _
    $region27: #{net_forward.1} parent=1 // pred_check_branch
      %32 = sbr.rel (0) target = $region29
    $region28: #{net_forward.1} parent=1 // pred_region
      _
    $region29: #{net_forward.1} parent=1 // pred_fallthru
      _
    // Predicated region
    $region30: #{net_forward.1} parent=1 // pred_check
      _
    $region31: #{net_forward.1} parent=1 // pred_check_branch
      %34 = sbr.rel (0) target = $region33
    $region32: #{net_forward.1} parent=1 // pred_region
      %36 = vsyncadd [#allocation6], 0
      %s37 = sshll.u32 %s7, 4
      %s38 = int_to_ptr.hbm [resolvable:$true] %s37
      %s39 = sshll.u32 [#allocation5], 4
      %s40 = int_to_ptr.vmem [resolvable:$true] %s39
      %45 = dma.hbm_to_vmem [thread:$0]  %s38, 8192, %s40, [#allocation6], 128, 128, 8
    $region33: #{net_forward.1} parent=1 // pred_fallthru
      _
    // Predicated region
    $region34: #{net_forward.1} parent=1 // pred_check
      _
    $region35: #{net_forward.1} parent=1 // pred_check_branch
      %47 = sbr.rel (0) target = $region37
    $region36: #{net_forward.1} parent=1 // pred_region
      _
    $region37: #{net_forward.1} parent=1 // pred_fallthru
      _
    // Predicated region
    $region38: #{net_forward.1} parent=1 // pred_check
      _
    $region39: #{net_forward.1} parent=1 // pred_check_branch
      %49 = sbr.rel (0) target = $region41
    $region40: #{net_forward.1} parent=1 // pred_region
      _
    $region41: #{net_forward.1} parent=1 // pred_fallthru
      _
    // Predicated region
    $region42: #{net_forward.1} parent=1 // pred_check
      _
    $region43: #{net_forward.1} parent=1 // pred_check_branch
      %51 = sbr.rel (0) target = $region45
    $region44: #{net_forward.1} parent=1 // pred_region
      _
    $region45: #{net_forward.1} parent=1 // pred_fallthru
      _
    // Predicated region
    $region46: #{net_forward.1} parent=1 // pred_check
      _
    $region47: #{net_forward.1} parent=1 // pred_check_branch
      %53 = sbr.rel (0) target = $region49
    $region48: #{net_forward.1} parent=1 // pred_region
      _
    $region49: #{net_forward.1} parent=1 // pred_fallthru
      _
    // Predicated region
    $region50: #{net_forward.1} parent=1 // pred_check
      _
    $region51: #{net_forward.1} parent=1 // pred_check_branch
      %55 = sbr.rel (0) target = $region53
    $region52: #{net_forward.1} parent=1 // pred_region
      _
    $region53: #{net_forward.1} parent=1 // pred_fallthru
      _
    // Predicated region
    $region54: #{net_forward.1} parent=1 // pred_check
      _
    $region55: #{net_forward.1} parent=1 // pred_check_branch
      %57 = sbr.rel (0) target = $region57
    $region56: #{net_forward.1} parent=1 // pred_region
      %59 = dma.done [#allocation6], 8192
    $region57: #{net_forward.1} parent=1 // pred_fallthru
      _
    %60 = vst [vmem:[#allocation2] sm:$0xff] 0.0
    %61 = vst [vmem:[#allocation2 + $0x8] sm:$0x3] 0.0
    %62 = vst [vmem:[#allocation2 + $0x10] sm:$0xff] 0.0
    %63 = vst [vmem:[#allocation2 + $0x18] sm:$0x3] 0.0
    %64 = vst [vmem:[#allocation2 + $0x20] sm:$0xff] 0.0
    %65 = vst [vmem:[#allocation2 + $0x28] sm:$0x3] 0.0
    %66 = vst [vmem:[#allocation2 + $0x30] sm:$0xff] 0.0
    %67 = vst [vmem:[#allocation2 + $0x38] sm:$0x3] 0.0
    %68 = vst [vmem:[#allocation2 + $0x40] sm:$0xff] 0.0
    %69 = vst [vmem:[#allocation2 + $0x48] sm:$0x3] 0.0
    %70 = vst [vmem:[#allocation2 + $0x50] sm:$0xff] 0.0
    %71 = vst [vmem:[#allocation2 + $0x58] sm:$0x3] 0.0
    %72 = vst [vmem:[#allocation2 + $0x60] sm:$0xff] 0.0
    %73 = vst [vmem:[#allocation2 + $0x68] sm:$0x3] 0.0
    %74 = vst [vmem:[#allocation2 + $0x70] sm:$0xff] 0.0
    %75 = vst [vmem:[#allocation2 + $0x78] sm:$0x3] 0.0
    %76 = vst [vmem:[#allocation2 + $0x80] sm:$0xff] 0.0
    %77 = vst [vmem:[#allocation2 + $0x88] sm:$0x3] 0.0
    %78 = vst [vmem:[#allocation2 + $0x90] sm:$0xff] 0.0
    %79 = vst [vmem:[#allocation2 + $0x98] sm:$0x3] 0.0
    %80 = vst [vmem:[#allocation2 + $0xa0] sm:$0xff] 0.0
    %81 = vst [vmem:[#allocation2 + $0xa8] sm:$0x3] 0.0
    %82 = vst [vmem:[#allocation2 + $0xb0] sm:$0xff] 0.0
    %83 = vst [vmem:[#allocation2 + $0xb8] sm:$0x3] 0.0
    %84 = vst [vmem:[#allocation2 + $0xc0] sm:$0xff] 0.0
    %85 = vst [vmem:[#allocation2 + $0xc8] sm:$0x3] 0.0
    %86 = vst [vmem:[#allocation2 + $0xd0] sm:$0xff] 0.0
    %87 = vst [vmem:[#allocation2 + $0xd8] sm:$0x3] 0.0
    %88 = vst [vmem:[#allocation2 + $0xe0] sm:$0xff] 0.0
    %89 = vst [vmem:[#allocation2 + $0xe8] sm:$0x3] 0.0
    %90 = vst [vmem:[#allocation2 + $0xf0] sm:$0xff] 0.0
    %91 = vst [vmem:[#allocation2 + $0xf8] sm:$0x3] 0.0
    %92 = vst [vmem:[#allocation2 + $0x100] sm:$0xff] 0.0
    %93 = vst [vmem:[#allocation2 + $0x108] sm:$0x3] 0.0
    %94 = vst [vmem:[#allocation2 + $0x110] sm:$0xff] 0.0
    %95 = vst [vmem:[#allocation2 + $0x118] sm:$0x3] 0.0
    %96 = vst [vmem:[#allocation2 + $0x120] sm:$0xff] 0.0
    %97 = vst [vmem:[#allocation2 + $0x128] sm:$0x3] 0.0
    %98 = vst [vmem:[#allocation2 + $0x130] sm:$0xff] 0.0
    %99 = vst [vmem:[#allocation2 + $0x138] sm:$0x3] 0.0
    %100 = vst [vmem:[#allocation3] sm:$0xff] 0.0
    %101 = vst [vmem:[#allocation3 + $0x8] sm:$0x3] 0.0
    %102 = vst [vmem:[#allocation3 + $0x10] sm:$0xff] 0.0
    %103 = vst [vmem:[#allocation3 + $0x18] sm:$0x3] 0.0
    %104 = vst [vmem:[#allocation3 + $0x20] sm:$0xff] 0.0
    %105 = vst [vmem:[#allocation3 + $0x28] sm:$0x3] 0.0
    %106 = vst [vmem:[#allocation3 + $0x30] sm:$0xff] 0.0
    %107 = vst [vmem:[#allocation3 + $0x38] sm:$0x3] 0.0
    %108 = vst [vmem:[#allocation3 + $0x40] sm:$0xff] 0.0
    %109 = vst [vmem:[#allocation3 + $0x48] sm:$0x3] 0.0
    %110 = vst [vmem:[#allocation3 + $0x50] sm:$0xff] 0.0
    %111 = vst [vmem:[#allocation3 + $0x58] sm:$0x3] 0.0
    %112 = vst [vmem:[#allocation3 + $0x60] sm:$0xff] 0.0
    %113 = vst [vmem:[#allocation3 + $0x68] sm:$0x3] 0.0
    %114 = vst [vmem:[#allocation3 + $0x70] sm:$0xff] 0.0
    %115 = vst [vmem:[#allocation3 + $0x78] sm:$0x3] 0.0
    %116 = vst [vmem:[#allocation3 + $0x80] sm:$0xff] 0.0
    %117 = vst [vmem:[#allocation3 + $0x88] sm:$0x3] 0.0
    %118 = vst [vmem:[#allocation3 + $0x90] sm:$0xff] 0.0
    %119 = vst [vmem:[#allocation3 + $0x98] sm:$0x3] 0.0
    %120 = vst [vmem:[#allocation3 + $0xa0] sm:$0xff] 0.0
    %121 = vst [vmem:[#allocation3 + $0xa8] sm:$0x3] 0.0
    %122 = vst [vmem:[#allocation3 + $0xb0] sm:$0xff] 0.0
    %123 = vst [vmem:[#allocation3 + $0xb8] sm:$0x3] 0.0
    %v124 = vld [vmem:[%s0] sm:$0xff]
    %v125 = vld [vmem:[%s0 + $0x8] sm:$0xff]
    %v126 = vld [vmem:[%s0 + $0x18] sm:$0xff]
    %v127 = vld [vmem:[%s0 + $0x20] sm:$0xff]
    %v128 = vld [vmem:[%s0 + $0x30] sm:$0xff]
    %v129 = vld [vmem:[%s0 + $0x38] sm:$0xff]
    %v130 = vld [vmem:[%s0 + $0x48] sm:$0xff]
    %v131 = vld [vmem:[%s0 + $0x50] sm:$0xff]
    %v132 = vld [vmem:[%s0 + $0x60] sm:$0xff]
    %v133 = vld [vmem:[%s0 + $0x68] sm:$0xff]
    %v134 = vld [vmem:[%s0 + $0x78] sm:$0xff]
    %v135 = vld [vmem:[%s0 + $0x80] sm:$0xff]
    %v136 = vld [vmem:[%s0 + $0x90] sm:$0xff]
    %v137 = vld [vmem:[%s0 + $0x98] sm:$0xff]
    %v138 = vld [vmem:[%s0 + $0xa8] sm:$0xff]
    %v139 = vld [vmem:[%s0 + $0xb0] sm:$0xff]
    %v140 = vld [vmem:[%s0 + $0xc0] sm:$0xff]
    %v141 = vld [vmem:[%s0 + $0xc8] sm:$0xff]
    %v142 = vld [vmem:[%s0 + $0xd8] sm:$0xff]
    %v143 = vld [vmem:[%s0 + $0xe0] sm:$0xff]
    %v144 = vld [vmem:[%s0 + $0xf0] sm:$0xff]
    %v145 = vld [vmem:[%s0 + $0xf8] sm:$0xff]
    %v146 = vld [vmem:[%s0 + $0x108] sm:$0xff]
    %v147 = vld [vmem:[%s0 + $0x110] sm:$0xff]
    %v148 = vld [vmem:[%s0 + $0x120] sm:$0xff]
    %v149 = vld [vmem:[%s0 + $0x128] sm:$0xff]
    %v150 = vld [vmem:[%s0 + $0x138] sm:$0xff]
    %v151 = vld [vmem:[%s0 + $0x140] sm:$0xff]
    %v152 = vld [vmem:[%s0 + $0x150] sm:$0xff]
    %v153 = vld [vmem:[%s0 + $0x158] sm:$0xff]
    %v154 = vld [vmem:[%s0 + $0x168] sm:$0xff]
    %v155 = vld [vmem:[%s0 + $0x170] sm:$0xff]
    %v156 = vld [vmem:[%s0 + $0x1b0] sm:$0xff]
    %v157 = vld [vmem:[%s0 + $0x1b8] sm:$0xff]
    %v158 = vld [vmem:[%s0 + $0x1c8] sm:$0xff]
    %v159 = vld [vmem:[%s0 + $0x1d0] sm:$0xff]
    %v160 = vld [vmem:[%s0 + $0x1e0] sm:$0xff]
    %v161 = vld [vmem:[%s0 + $0x1e8] sm:$0xff]
    %v162 = vld [vmem:[%s0 + $0x1f8] sm:$0xff]
    %v163 = vld [vmem:[%s0 + $0x200] sm:$0xff]
    %v164 = vld [vmem:[%s0 + $0x210] sm:$0xff]
    %v165 = vld [vmem:[%s0 + $0x218] sm:$0xff]
    %v166 = vld [vmem:[%s0 + $0x228] sm:$0xff]
    %v167 = vld [vmem:[%s0 + $0x230] sm:$0xff]
    %v168 = vld [vmem:[%s0 + $0x240] sm:$0xff]
    %v169 = vld [vmem:[%s0 + $0x248] sm:$0xff]
    %v170 = vld [vmem:[%s0 + $0x258] sm:$0xff]
    %v171 = vld [vmem:[%s0 + $0x260] sm:$0xff]
    %v172 = vld [vmem:[%s0 + $0x270] sm:$0xff]
    %v173 = vld [vmem:[%s0 + $0x278] sm:$0xff]
    %v174 = vld [vmem:[%s0 + $0x288] sm:$0xff]
    %v175 = vld [vmem:[%s0 + $0x290] sm:$0xff]
    %v176 = vld [vmem:[%s0 + $0x2a0] sm:$0xff]
    %v177 = vld [vmem:[%s0 + $0x2a8] sm:$0xff]
    %v178 = vld [vmem:[%s0 + $0x2b8] sm:$0xff]
    %v179 = vld [vmem:[%s0 + $0x2c0] sm:$0xff]
    %v180 = vld [vmem:[%s0 + $0x2d0] sm:$0xff]
    %v181 = vld [vmem:[%s0 + $0x2d8] sm:$0xff]
    %v182 = vld [vmem:[%s0 + $0x2e8] sm:$0xff]
    %v183 = vld [vmem:[%s0 + $0x2f0] sm:$0xff]
    %v184 = vld [vmem:[%s0 + $0x300] sm:$0xff]
    %v185 = vld [vmem:[%s0 + $0x308] sm:$0xff]
    %v186 = vld [vmem:[%s0 + $0x318] sm:$0xff]
    %v187 = vld [vmem:[%s0 + $0x320] sm:$0xff]
    %v188 = vpack.c.bf16 %v125, %v124
    %v189 = vpack.c.bf16 %v127, %v126
    %v190 = vpack.c.bf16 %v129, %v128
    %v191 = vpack.c.bf16 %v131, %v130
    %v192 = vpack.c.bf16 %v133, %v132
    %v193 = vpack.c.bf16 %v135, %v134
    %v194 = vpack.c.bf16 %v137, %v136
    %v195 = vpack.c.bf16 %v139, %v138
    %v196 = vpack.c.bf16 %v141, %v140
    %v197 = vpack.c.bf16 %v143, %v142
    %v198 = vpack.c.bf16 %v145, %v144
    %v199 = vpack.c.bf16 %v147, %v146
    %v200 = vpack.c.bf16 %v149, %v148
    %v201 = vpack.c.bf16 %v151, %v150
    %v202 = vpack.c.bf16 %v153, %v152
    %v203 = vpack.c.bf16 %v155, %v154
    %v204 = vpack.c.bf16 %v157, %v156
    %v205 = vpack.c.bf16 %v159, %v158
    %v206 = vpack.c.bf16 %v161, %v160
    %v207 = vpack.c.bf16 %v163, %v162
    %v208 = vpack.c.bf16 %v165, %v164
    %v209 = vpack.c.bf16 %v167, %v166
    %v210 = vpack.c.bf16 %v169, %v168
    %v211 = vpack.c.bf16 %v171, %v170
    %v212 = vpack.c.bf16 %v173, %v172
    %v213 = vpack.c.bf16 %v175, %v174
    %v214 = vpack.c.bf16 %v177, %v176
    %v215 = vpack.c.bf16 %v179, %v178
    %v216 = vpack.c.bf16 %v181, %v180
    %v217 = vpack.c.bf16 %v183, %v182
    %v218 = vpack.c.bf16 %v185, %v184
    %v219 = vpack.c.bf16 %v187, %v186
    %v220 = vld [vmem:[%s1] sm:$0xf]
    %v221 = vld [vmem:[%s1 + $0x4] sm:$0xf]
    %v222 = vld [vmem:[%s1 + $0x8] sm:$0xf]
    %v223 = vld [vmem:[%s1 + $0xc] sm:$0xf]
    %v224 = vld [vmem:[%s1 + $0x10] sm:$0xf]
    %v225 = vld [vmem:[%s1 + $0x14] sm:$0xf]
    %v226 = vld [vmem:[%s1 + $0x18] sm:$0xf]
    %v227 = vld [vmem:[%s1 + $0x1c] sm:$0xf]
    %v228 = vld [vmem:[%s1 + $0x20] sm:$0xf]
    %v229 = vld [vmem:[%s1 + $0x24] sm:$0xf]
    %v230 = vld [vmem:[%s1 + $0x28] sm:$0xf]
    %v231 = vld [vmem:[%s1 + $0x2c] sm:$0xf]
    %v232 = vld [vmem:[%s1 + $0x30] sm:$0xf]
    %v233 = vld [vmem:[%s1 + $0x34] sm:$0xf]
    %v234 = vld [vmem:[%s1 + $0x38] sm:$0xf]
    %v235 = vld [vmem:[%s1 + $0x3c] sm:$0xf]
    %v236 = vld [vmem:[%s0 + $0x1] sm:$0xff]
    %v237 = vld [vmem:[%s0 + $0x9] sm:$0xff]
    %v238 = vld [vmem:[%s0 + $0x19] sm:$0xff]
    %v239 = vld [vmem:[%s0 + $0x21] sm:$0xff]
    %v240 = vld [vmem:[%s0 + $0x31] sm:$0xff]
    %v241 = vld [vmem:[%s0 + $0x39] sm:$0xff]
    %v242 = vld [vmem:[%s0 + $0x49] sm:$0xff]
    %v243 = vld [vmem:[%s0 + $0x51] sm:$0xff]
    %v244 = vld [vmem:[%s0 + $0x61] sm:$0xff]
    %v245 = vld [vmem:[%s0 + $0x69] sm:$0xff]
    %v246 = vld [vmem:[%s0 + $0x79] sm:$0xff]
    %v247 = vld [vmem:[%s0 + $0x81] sm:$0xff]
    %v248 = vld [vmem:[%s0 + $0x91] sm:$0xff]
    %v249 = vld [vmem:[%s0 + $0x99] sm:$0xff]
    %v250 = vld [vmem:[%s0 + $0xa9] sm:$0xff]
    %v251 = vld [vmem:[%s0 + $0xb1] sm:$0xff]
    %v252 = vld [vmem:[%s0 + $0xc1] sm:$0xff]
    %v253 = vld [vmem:[%s0 + $0xc9] sm:$0xff]
    %v254 = vld [vmem:[%s0 + $0xd9] sm:$0xff]
    %v255 = vld [vmem:[%s0 + $0xe1] sm:$0xff]
    %v256 = vld [vmem:[%s0 + $0xf1] sm:$0xff]
    %v257 = vld [vmem:[%s0 + $0xf9] sm:$0xff]
    %v258 = vld [vmem:[%s0 + $0x109] sm:$0xff]
    %v259 = vld [vmem:[%s0 + $0x111] sm:$0xff]
    %v260 = vld [vmem:[%s0 + $0x121] sm:$0xff]
    %v261 = vld [vmem:[%s0 + $0x129] sm:$0xff]
    %v262 = vld [vmem:[%s0 + $0x139] sm:$0xff]
    %v263 = vld [vmem:[%s0 + $0x141] sm:$0xff]
    %v264 = vld [vmem:[%s0 + $0x151] sm:$0xff]
    %v265 = vld [vmem:[%s0 + $0x159] sm:$0xff]
    %v266 = vld [vmem:[%s0 + $0x169] sm:$0xff]
    %v267 = vld [vmem:[%s0 + $0x171] sm:$0xff]
    %v268 = vld [vmem:[%s0 + $0x1b1] sm:$0xff]
    %v269 = vld [vmem:[%s0 + $0x1b9] sm:$0xff]
    %v270 = vld [vmem:[%s0 + $0x1c9] sm:$0xff]
    %v271 = vld [vmem:[%s0 + $0x1d1] sm:$0xff]
    %v272 = vld [vmem:[%s0 + $0x1e1] sm:$0xff]
    %v273 = vld [vmem:[%s0 + $0x1e9] sm:$0xff]
    %v274 = vld [vmem:[%s0 + $0x1f9] sm:$0xff]
    %v275 = vld [vmem:[%s0 + $0x201] sm:$0xff]
    %v276 = vld [vmem:[%s0 + $0x211] sm:$0xff]
    %v277 = vld [vmem:[%s0 + $0x219] sm:$0xff]
    %v278 = vld [vmem:[%s0 + $0x229] sm:$0xff]
    %v279 = vld [vmem:[%s0 + $0x231] sm:$0xff]
    %v280 = vld [vmem:[%s0 + $0x241] sm:$0xff]
    %v281 = vld [vmem:[%s0 + $0x249] sm:$0xff]
    %v282 = vld [vmem:[%s0 + $0x259] sm:$0xff]
    %v283 = vld [vmem:[%s0 + $0x261] sm:$0xff]
    %v284 = vld [vmem:[%s0 + $0x271] sm:$0xff]
    %v285 = vld [vmem:[%s0 + $0x279] sm:$0xff]
    %v286 = vld [vmem:[%s0 + $0x289] sm:$0xff]
    %v287 = vld [vmem:[%s0 + $0x291] sm:$0xff]
    %v288 = vld [vmem:[%s0 + $0x2a1] sm:$0xff]
    %v289 = vld [vmem:[%s0 + $0x2a9] sm:$0xff]
    %v290 = vld [vmem:[%s0 + $0x2b9] sm:$0xff]
    %v291 = vld [vmem:[%s0 + $0x2c1] sm:$0xff]
    %v292 = vld [vmem:[%s0 + $0x2d1] sm:$0xff]
    %v293 = vld [vmem:[%s0 + $0x2d9] sm:$0xff]
    %v294 = vld [vmem:[%s0 + $0x2e9] sm:$0xff]
    %v295 = vld [vmem:[%s0 + $0x2f1] sm:$0xff]
    %v296 = vld [vmem:[%s0 + $0x301] sm:$0xff]
    %v297 = vld [vmem:[%s0 + $0x309] sm:$0xff]
    %v298 = vld [vmem:[%s0 + $0x319] sm:$0xff]
    %v299 = vld [vmem:[%s0 + $0x321] sm:$0xff]
    %v300 = vpack.c.bf16 %v237, %v236
    %v301 = vpack.c.bf16 %v239, %v238
    %v302 = vpack.c.bf16 %v241, %v240
    %v303 = vpack.c.bf16 %v243, %v242
    %v304 = vpack.c.bf16 %v245, %v244
    %v305 = vpack.c.bf16 %v247, %v246
    %v306 = vpack.c.bf16 %v249, %v248
    %v307 = vpack.c.bf16 %v251, %v250
    %v308 = vpack.c.bf16 %v253, %v252
    %v309 = vpack.c.bf16 %v255, %v254
    %v310 = vpack.c.bf16 %v257, %v256
    %v311 = vpack.c.bf16 %v259, %v258
    %v312 = vpack.c.bf16 %v261, %v260
    %v313 = vpack.c.bf16 %v263, %v262
    %v314 = vpack.c.bf16 %v265, %v264
    %v315 = vpack.c.bf16 %v267, %v266
    %v316 = vpack.c.bf16 %v269, %v268
    %v317 = vpack.c.bf16 %v271, %v270
    %v318 = vpack.c.bf16 %v273, %v272
    %v319 = vpack.c.bf16 %v275, %v274
    %v320 = vpack.c.bf16 %v277, %v276
    %v321 = vpack.c.bf16 %v279, %v278
    %v322 = vpack.c.bf16 %v281, %v280
    %v323 = vpack.c.bf16 %v283, %v282
    %v324 = vpack.c.bf16 %v285, %v284
    %v325 = vpack.c.bf16 %v287, %v286
    %v326 = vpack.c.bf16 %v289, %v288
    %v327 = vpack.c.bf16 %v291, %v290
    %v328 = vpack.c.bf16 %v293, %v292
    %v329 = vpack.c.bf16 %v295, %v294
    %v330 = vpack.c.bf16 %v297, %v296
    %v331 = vpack.c.bf16 %v299, %v298
    %s332 = scalar_lea.vmem %s1, 64
    %v333 = vld [vmem:[%s332] sm:$0xf]
    %v334 = vld [vmem:[%s332 + $0x4] sm:$0xf]
    %v335 = vld [vmem:[%s332 + $0x8] sm:$0xf]
    %v336 = vld [vmem:[%s332 + $0xc] sm:$0xf]
    %v337 = vld [vmem:[%s332 + $0x10] sm:$0xf]
    %v338 = vld [vmem:[%s332 + $0x14] sm:$0xf]
    %v339 = vld [vmem:[%s332 + $0x18] sm:$0xf]
    %v340 = vld [vmem:[%s332 + $0x1c] sm:$0xf]
    %v341 = vld [vmem:[%s332 + $0x20] sm:$0xf]
    %v342 = vld [vmem:[%s332 + $0x24] sm:$0xf]
    %v343 = vld [vmem:[%s332 + $0x28] sm:$0xf]
    %v344 = vld [vmem:[%s332 + $0x2c] sm:$0xf]
    %v345 = vld [vmem:[%s332 + $0x30] sm:$0xf]
    %v346 = vld [vmem:[%s332 + $0x34] sm:$0xf]
    %v347 = vld [vmem:[%s332 + $0x38] sm:$0xf]
    %v348 = vld [vmem:[%s332 + $0x3c] sm:$0xf]
    %v365 = vunpack.c.l.b16 %v333
    %v366 = vunpack.c.l.b16 %v334
    %v367 = vunpack.c.l.b16 %v335
    %v368 = vunpack.c.l.b16 %v336
    %v369 = vunpack.c.l.b16 %v337
    %v370 = vunpack.c.l.b16 %v338
    %v371 = vunpack.c.l.b16 %v339
    %v372 = vunpack.c.l.b16 %v340
    %v373 = vunpack.c.l.b16 %v341
    %v374 = vunpack.c.l.b16 %v342
    %v375 = vunpack.c.l.b16 %v343
    %v376 = vunpack.c.l.b16 %v344
    %v377 = vunpack.c.l.b16 %v345
    %v378 = vunpack.c.l.b16 %v346
    %v379 = vunpack.c.l.b16 %v347
    %v380 = vunpack.c.l.b16 %v348
    %v381 = vpack.c.b16 %v366, %v365
    %v382 = vpack.c.b16 %v368, %v367
    %v383 = vpack.c.b16 %v370, %v369
    %v384 = vpack.c.b16 %v372, %v371
    %v385 = vpack.c.b16 %v374, %v373
    %v386 = vpack.c.b16 %v376, %v375
    %v387 = vpack.c.b16 %v378, %v377
    %v388 = vpack.c.b16 %v380, %v379
    %397 = vmatpush.bf16.msra.mxu0 %v388
    %398 = vmatpush.bf16.msra.mxu0 %v387
    %399 = vmatpush.bf16.msra.mxu0 %v386
    %400 = vmatpush.bf16.msra.mxu0 %v385
    %401 = vmatpush.bf16.msra.mxu0 %v384
    %402 = vmatpush.bf16.msra.mxu0 %v383
    %403 = vmatpush.bf16.msra.mxu0 %v382
    %404 = vmatpush.bf16.msra.mxu0 %v381
    %405 = vmatmul.bf16.gmra.mxu0 %v300
    %v406 = vpop.f32.mrf.mxu0
    %v407 = vadd.f32 0.0, %v406
    %v408 = vpop.f32.mrf.mxu0
    %v409 = vadd.f32 0.0, %v408
    %410 = vmatmul.bf16.gmra.mxu0 %v301
    %v411 = vpop.f32.mrf.mxu0
    %v412 = vadd.f32 0.0, %v411
    %v413 = vpop.f32.mrf.mxu0
    %v414 = vadd.f32 0.0, %v413
    %415 = vmatmul.bf16.gmra.mxu0 %v302
    %v416 = vpop.f32.mrf.mxu0
    %v417 = vadd.f32 0.0, %v416
    %v418 = vpop.f32.mrf.mxu0
    %v419 = vadd.f32 0.0, %v418
    %420 = vmatmul.bf16.gmra.mxu0 %v303
    %v421 = vpop.f32.mrf.mxu0
    %v422 = vadd.f32 0.0, %v421
    %v423 = vpop.f32.mrf.mxu0
    %v424 = vadd.f32 0.0, %v423
    %425 = vmatmul.bf16.gmra.mxu0 %v304
    %v426 = vpop.f32.mrf.mxu0
    %v427 = vadd.f32 0.0, %v426
    %v428 = vpop.f32.mrf.mxu0
    %v429 = vadd.f32 0.0, %v428
    %430 = vmatmul.bf16.gmra.mxu0 %v305
    %v431 = vpop.f32.mrf.mxu0
    %v432 = vadd.f32 0.0, %v431
    %v433 = vpop.f32.mrf.mxu0
    %v434 = vadd.f32 0.0, %v433
    %435 = vmatmul.bf16.gmra.mxu0 %v306
    %v436 = vpop.f32.mrf.mxu0
    %v437 = vadd.f32 0.0, %v436
    %v438 = vpop.f32.mrf.mxu0
    %v439 = vadd.f32 0.0, %v438
    %440 = vmatmul.bf16.gmra.mxu0 %v307
    %v441 = vpop.f32.mrf.mxu0
    %v442 = vadd.f32 0.0, %v441
    %v443 = vpop.f32.mrf.mxu0
    %v444 = vadd.f32 0.0, %v443
    %445 = vmatmul.bf16.gmra.mxu0 %v308
    %v446 = vpop.f32.mrf.mxu0
    %v447 = vadd.f32 0.0, %v446
    %v448 = vpop.f32.mrf.mxu0
    %v449 = vadd.f32 0.0, %v448
    %450 = vmatmul.bf16.gmra.mxu0 %v309
    %v451 = vpop.f32.mrf.mxu0
    %v452 = vadd.f32 0.0, %v451
    %v453 = vpop.f32.mrf.mxu0
    %v454 = vadd.f32 0.0, %v453
    %455 = vmatmul.bf16.gmra.mxu0 %v310
    %v456 = vpop.f32.mrf.mxu0
    %v457 = vadd.f32 0.0, %v456
    %v458 = vpop.f32.mrf.mxu0
    %v459 = vadd.f32 0.0, %v458
    %460 = vmatmul.bf16.gmra.mxu0 %v311
    %v461 = vpop.f32.mrf.mxu0
    %v462 = vadd.f32 0.0, %v461
    %v463 = vpop.f32.mrf.mxu0
    %v464 = vadd.f32 0.0, %v463
    %465 = vmatmul.bf16.gmra.mxu0 %v312
    %v466 = vpop.f32.mrf.mxu0
    %v467 = vadd.f32 0.0, %v466
    %v468 = vpop.f32.mrf.mxu0
    %v469 = vadd.f32 0.0, %v468
    %470 = vmatmul.bf16.gmra.mxu0 %v313
    %v471 = vpop.f32.mrf.mxu0
    %v472 = vadd.f32 0.0, %v471
    %v473 = vpop.f32.mrf.mxu0
    %v474 = vadd.f32 0.0, %v473
    %475 = vmatmul.bf16.gmra.mxu0 %v314
    %v476 = vpop.f32.mrf.mxu0
    %v477 = vadd.f32 0.0, %v476
    %v478 = vpop.f32.mrf.mxu0
    %v479 = vadd.f32 0.0, %v478
    %480 = vmatmul.bf16.gmra.mxu0 %v315
    %v481 = vpop.f32.mrf.mxu0
    %v482 = vadd.f32 0.0, %v481
    %v483 = vpop.f32.mrf.mxu0
    %v484 = vadd.f32 0.0, %v483
    %485 = vmatmul.bf16.gmra.mxu0 %v316
    %v486 = vpop.f32.mrf.mxu0
    %v487 = vadd.f32 0.0, %v486
    %v488 = vpop.f32.mrf.mxu0
    %v489 = vadd.f32 0.0, %v488
    %490 = vmatmul.bf16.gmra.mxu0 %v317
    %v491 = vpop.f32.mrf.mxu0
    %v492 = vadd.f32 0.0, %v491
    %v493 = vpop.f32.mrf.mxu0
    %v494 = vadd.f32 0.0, %v493
    %495 = vmatmul.bf16.gmra.mxu0 %v318
    %v496 = vpop.f32.mrf.mxu0
    %v497 = vadd.f32 0.0, %v496
    %v498 = vpop.f32.mrf.mxu0
    %v499 = vadd.f32 0.0, %v498
    %500 = vmatmul.bf16.gmra.mxu0 %v319
    %v501 = vpop.f32.mrf.mxu0
    %v502 = vadd.f32 0.0, %v501
    %v503 = vpop.f32.mrf.mxu0
    %v504 = vadd.f32 0.0, %v503
    %505 = vmatmul.bf16.gmra.mxu0 %v320
    %v506 = vpop.f32.mrf.mxu0
    %v507 = vadd.f32 0.0, %v506
    %v508 = vpop.f32.mrf.mxu0
    %v509 = vadd.f32 0.0, %v508
    %510 = vmatmul.bf16.gmra.mxu0 %v321
    %v511 = vpop.f32.mrf.mxu0
    %v512 = vadd.f32 0.0, %v511
    %v513 = vpop.f32.mrf.mxu0
    %v514 = vadd.f32 0.0, %v513
    %515 = vmatmul.bf16.gmra.mxu0 %v322
    %v516 = vpop.f32.mrf.mxu0
    %v517 = vadd.f32 0.0, %v516
    %v518 = vpop.f32.mrf.mxu0
    %v519 = vadd.f32 0.0, %v518
    %520 = vmatmul.bf16.gmra.mxu0 %v323
    %v521 = vpop.f32.mrf.mxu0
    %v522 = vadd.f32 0.0, %v521
    %v523 = vpop.f32.mrf.mxu0
    %v524 = vadd.f32 0.0, %v523
    %525 = vmatmul.bf16.gmra.mxu0 %v324
    %v526 = vpop.f32.mrf.mxu0
    %v527 = vadd.f32 0.0, %v526
    %v528 = vpop.f32.mrf.mxu0
    %v529 = vadd.f32 0.0, %v528
    %530 = vmatmul.bf16.gmra.mxu0 %v325
    %v531 = vpop.f32.mrf.mxu0
    %v532 = vadd.f32 0.0, %v531
    %v533 = vpop.f32.mrf.mxu0
    %v534 = vadd.f32 0.0, %v533
    %535 = vmatmul.bf16.gmra.mxu0 %v326
    %v536 = vpop.f32.mrf.mxu0
    %v537 = vadd.f32 0.0, %v536
    %v538 = vpop.f32.mrf.mxu0
    %v539 = vadd.f32 0.0, %v538
    %540 = vmatmul.bf16.gmra.mxu0 %v327
    %v541 = vpop.f32.mrf.mxu0
    %v542 = vadd.f32 0.0, %v541
    %v543 = vpop.f32.mrf.mxu0
    %v544 = vadd.f32 0.0, %v543
    %545 = vmatmul.bf16.gmra.mxu0 %v328
    %v546 = vpop.f32.mrf.mxu0
    %v547 = vadd.f32 0.0, %v546
    %v548 = vpop.f32.mrf.mxu0
    %v549 = vadd.f32 0.0, %v548
    %550 = vmatmul.bf16.gmra.mxu0 %v329
    %v551 = vpop.f32.mrf.mxu0
    %v552 = vadd.f32 0.0, %v551
    %v553 = vpop.f32.mrf.mxu0
    %v554 = vadd.f32 0.0, %v553
    %555 = vmatmul.bf16.gmra.mxu0 %v330
    %v556 = vpop.f32.mrf.mxu0
    %v557 = vadd.f32 0.0, %v556
    %v558 = vpop.f32.mrf.mxu0
    %v559 = vadd.f32 0.0, %v558
    %560 = vmatmul.bf16.gmra.mxu0 %v331
    %v561 = vpop.f32.mrf.mxu0
    %v562 = vadd.f32 0.0, %v561
    %v563 = vpop.f32.mrf.mxu0
    %v564 = vadd.f32 0.0, %v563
    %565 = vdwg.mxu0
    %v582 = vunpack.c.l.b16 %v220
    %v583 = vunpack.c.l.b16 %v221
    %v584 = vunpack.c.l.b16 %v222
    %v585 = vunpack.c.l.b16 %v223
    %v586 = vunpack.c.l.b16 %v224
    %v587 = vunpack.c.l.b16 %v225
    %v588 = vunpack.c.l.b16 %v226
    %v589 = vunpack.c.l.b16 %v227
    %v590 = vunpack.c.l.b16 %v228
    %v591 = vunpack.c.l.b16 %v229
    %v592 = vunpack.c.l.b16 %v230
    %v593 = vunpack.c.l.b16 %v231
    %v594 = vunpack.c.l.b16 %v232
    %v595 = vunpack.c.l.b16 %v233
    %v596 = vunpack.c.l.b16 %v234
    %v597 = vunpack.c.l.b16 %v235
    %v598 = vpack.c.b16 %v583, %v582
    %v599 = vpack.c.b16 %v585, %v584
    %v600 = vpack.c.b16 %v587, %v586
    %v601 = vpack.c.b16 %v589, %v588
    %v602 = vpack.c.b16 %v591, %v590
    %v603 = vpack.c.b16 %v593, %v592
    %v604 = vpack.c.b16 %v595, %v594
    %v605 = vpack.c.b16 %v597, %v596
    %614 = vmatpush.bf16.msra.mxu0 %v605
    %615 = vmatpush.bf16.msra.mxu0 %v604
    %616 = vmatpush.bf16.msra.mxu0 %v603
    %617 = vmatpush.bf16.msra.mxu0 %v602
    %618 = vmatpush.bf16.msra.mxu0 %v601
    %619 = vmatpush.bf16.msra.mxu0 %v600
    %620 = vmatpush.bf16.msra.mxu0 %v599
    %621 = vmatpush.bf16.msra.mxu0 %v598
    %622 = vmatmul.bf16.gmra.mxu0 %v188
    %v623 = vpop.f32.mrf.mxu0
    %v624 = vadd.f32 %v407, %v623
    %v625 = vpop.f32.mrf.mxu0
    %v626 = vadd.f32 %v409, %v625
    %627 = vmatmul.bf16.gmra.mxu0 %v189
    %v628 = vpop.f32.mrf.mxu0
    %v629 = vadd.f32 %v412, %v628
    %v630 = vpop.f32.mrf.mxu0
    %v631 = vadd.f32 %v414, %v630
    %632 = vmatmul.bf16.gmra.mxu0 %v190
    %v633 = vpop.f32.mrf.mxu0
    %v634 = vadd.f32 %v417, %v633
    %v635 = vpop.f32.mrf.mxu0
    %v636 = vadd.f32 %v419, %v635
    %637 = vmatmul.bf16.gmra.mxu0 %v191
    %v638 = vpop.f32.mrf.mxu0
    %v639 = vadd.f32 %v422, %v638
    %v640 = vpop.f32.mrf.mxu0
    %v641 = vadd.f32 %v424, %v640
    %642 = vmatmul.bf16.gmra.mxu0 %v192
    %v643 = vpop.f32.mrf.mxu0
    %v644 = vadd.f32 %v427, %v643
    %v645 = vpop.f32.mrf.mxu0
    %v646 = vadd.f32 %v429, %v645
    %647 = vmatmul.bf16.gmra.mxu0 %v193
    %v648 = vpop.f32.mrf.mxu0
    %v649 = vadd.f32 %v432, %v648
    %v650 = vpop.f32.mrf.mxu0
    %v651 = vadd.f32 %v434, %v650
    %652 = vmatmul.bf16.gmra.mxu0 %v194
    %v653 = vpop.f32.mrf.mxu0
    %v654 = vadd.f32 %v437, %v653
    %v655 = vpop.f32.mrf.mxu0
    %v656 = vadd.f32 %v439, %v655
    %657 = vmatmul.bf16.gmra.mxu0 %v195
    %v658 = vpop.f32.mrf.mxu0
    %v659 = vadd.f32 %v442, %v658
    %v660 = vpop.f32.mrf.mxu0
    %v661 = vadd.f32 %v444, %v660
    %662 = vmatmul.bf16.gmra.mxu0 %v196
    %v663 = vpop.f32.mrf.mxu0
    %v664 = vadd.f32 %v447, %v663
    %v665 = vpop.f32.mrf.mxu0
    %v666 = vadd.f32 %v449, %v665
    %667 = vmatmul.bf16.gmra.mxu0 %v197
    %v668 = vpop.f32.mrf.mxu0
    %v669 = vadd.f32 %v452, %v668
    %v670 = vpop.f32.mrf.mxu0
    %v671 = vadd.f32 %v454, %v670
    %672 = vmatmul.bf16.gmra.mxu0 %v198
    %v673 = vpop.f32.mrf.mxu0
    %v674 = vadd.f32 %v457, %v673
    %v675 = vpop.f32.mrf.mxu0
    %v676 = vadd.f32 %v459, %v675
    %677 = vmatmul.bf16.gmra.mxu0 %v199
    %v678 = vpop.f32.mrf.mxu0
    %v679 = vadd.f32 %v462, %v678
    %v680 = vpop.f32.mrf.mxu0
    %v681 = vadd.f32 %v464, %v680
    %682 = vmatmul.bf16.gmra.mxu0 %v200
    %v683 = vpop.f32.mrf.mxu0
    %v684 = vadd.f32 %v467, %v683
    %v685 = vpop.f32.mrf.mxu0
    %v686 = vadd.f32 %v469, %v685
    %687 = vmatmul.bf16.gmra.mxu0 %v201
    %v688 = vpop.f32.mrf.mxu0
    %v689 = vadd.f32 %v472, %v688
    %v690 = vpop.f32.mrf.mxu0
    %v691 = vadd.f32 %v474, %v690
    %692 = vmatmul.bf16.gmra.mxu0 %v202
    %v693 = vpop.f32.mrf.mxu0
    %v694 = vadd.f32 %v477, %v693
    %v695 = vpop.f32.mrf.mxu0
    %v696 = vadd.f32 %v479, %v695
    %697 = vmatmul.bf16.gmra.mxu0 %v203
    %v698 = vpop.f32.mrf.mxu0
    %v699 = vadd.f32 %v482, %v698
    %v700 = vpop.f32.mrf.mxu0
    %v701 = vadd.f32 %v484, %v700
    %702 = vmatmul.bf16.gmra.mxu0 %v204
    %v703 = vpop.f32.mrf.mxu0
    %v704 = vadd.f32 %v487, %v703
    %v705 = vpop.f32.mrf.mxu0
    %v706 = vadd.f32 %v489, %v705
    %707 = vmatmul.bf16.gmra.mxu0 %v205
    %v708 = vpop.f32.mrf.mxu0
    %v709 = vadd.f32 %v492, %v708
    %v710 = vpop.f32.mrf.mxu0
    %v711 = vadd.f32 %v494, %v710
    %712 = vmatmul.bf16.gmra.mxu0 %v206
    %v713 = vpop.f32.mrf.mxu0
    %v714 = vadd.f32 %v497, %v713
    %v715 = vpop.f32.mrf.mxu0
    %v716 = vadd.f32 %v499, %v715
    %717 = vmatmul.bf16.gmra.mxu0 %v207
    %v718 = vpop.f32.mrf.mxu0
    %v719 = vadd.f32 %v502, %v718
    %v720 = vpop.f32.mrf.mxu0
    %v721 = vadd.f32 %v504, %v720
    %722 = vmatmul.bf16.gmra.mxu0 %v208
    %v723 = vpop.f32.mrf.mxu0
    %v724 = vadd.f32 %v507, %v723
    %v725 = vpop.f32.mrf.mxu0
    %v726 = vadd.f32 %v509, %v725
    %727 = vmatmul.bf16.gmra.mxu0 %v209
    %v728 = vpop.f32.mrf.mxu0
    %v729 = vadd.f32 %v512, %v728
    %v730 = vpop.f32.mrf.mxu0
    %v731 = vadd.f32 %v514, %v730
    %732 = vmatmul.bf16.gmra.mxu0 %v210
    %v733 = vpop.f32.mrf.mxu0
    %v734 = vadd.f32 %v517, %v733
    %v735 = vpop.f32.mrf.mxu0
    %v736 = vadd.f32 %v519, %v735
    %737 = vmatmul.bf16.gmra.mxu0 %v211
    %v738 = vpop.f32.mrf.mxu0
    %v739 = vadd.f32 %v522, %v738
    %v740 = vpop.f32.mrf.mxu0
    %v741 = vadd.f32 %v524, %v740
    %742 = vmatmul.bf16.gmra.mxu0 %v212
    %v743 = vpop.f32.mrf.mxu0
    %v744 = vadd.f32 %v527, %v743
    %v745 = vpop.f32.mrf.mxu0
    %v746 = vadd.f32 %v529, %v745
    %747 = vmatmul.bf16.gmra.mxu0 %v213
    %v748 = vpop.f32.mrf.mxu0
    %v749 = vadd.f32 %v532, %v748
    %v750 = vpop.f32.mrf.mxu0
    %v751 = vadd.f32 %v534, %v750
    %752 = vmatmul.bf16.gmra.mxu0 %v214
    %v753 = vpop.f32.mrf.mxu0
    %v754 = vadd.f32 %v537, %v753
    %v755 = vpop.f32.mrf.mxu0
    %v756 = vadd.f32 %v539, %v755
    %757 = vmatmul.bf16.gmra.mxu0 %v215
    %v758 = vpop.f32.mrf.mxu0
    %v759 = vadd.f32 %v542, %v758
    %v760 = vpop.f32.mrf.mxu0
    %v761 = vadd.f32 %v544, %v760
    %762 = vmatmul.bf16.gmra.mxu0 %v216
    %v763 = vpop.f32.mrf.mxu0
    %v764 = vadd.f32 %v547, %v763
    %v765 = vpop.f32.mrf.mxu0
    %v766 = vadd.f32 %v549, %v765
    %767 = vmatmul.bf16.gmra.mxu0 %v217
    %v768 = vpop.f32.mrf.mxu0
    %v769 = vadd.f32 %v552, %v768
    %v770 = vpop.f32.mrf.mxu0
    %v771 = vadd.f32 %v554, %v770
    %772 = vmatmul.bf16.gmra.mxu0 %v218
    %v773 = vpop.f32.mrf.mxu0
    %v774 = vadd.f32 %v557, %v773
    %v775 = vpop.f32.mrf.mxu0
    %v776 = vadd.f32 %v559, %v775
    %777 = vmatmul.bf16.gmra.mxu0 %v219
    %v778 = vpop.f32.mrf.mxu0
    %v779 = vadd.f32 %v562, %v778
    %v780 = vpop.f32.mrf.mxu0
    %v781 = vadd.f32 %v564, %v780
    %782 = vdwg.mxu0
    %v783 = vld [vmem:[%s0 + $0x2] sm:$0xff]
    %v784 = vld [vmem:[%s0 + $0xa] sm:$0xff]
    %v785 = vld [vmem:[%s0 + $0x1a] sm:$0xff]
    %v786 = vld [vmem:[%s0 + $0x22] sm:$0xff]
    %v787 = vld [vmem:[%s0 + $0x32] sm:$0xff]
    %v788 = vld [vmem:[%s0 + $0x3a] sm:$0xff]
    %v789 = vld [vmem:[%s0 + $0x4a] sm:$0xff]
    %v790 = vld [vmem:[%s0 + $0x52] sm:$0xff]
    %v791 = vld [vmem:[%s0 + $0x62] sm:$0xff]
    %v792 = vld [vmem:[%s0 + $0x6a] sm:$0xff]
    %v793 = vld [vmem:[%s0 + $0x7a] sm:$0xff]
    %v794 = vld [vmem:[%s0 + $0x82] sm:$0xff]
    %v795 = vld [vmem:[%s0 + $0x92] sm:$0xff]
    %v796 = vld [vmem:[%s0 + $0x9a] sm:$0xff]
    %v797 = vld [vmem:[%s0 + $0xaa] sm:$0xff]
    %v798 = vld [vmem:[%s0 + $0xb2] sm:$0xff]
    %v799 = vld [vmem:[%s0 + $0xc2] sm:$0xff]
    %v800 = vld [vmem:[%s0 + $0xca] sm:$0xff]
    %v801 = vld [vmem:[%s0 + $0xda] sm:$0xff]
    %v802 = vld [vmem:[%s0 + $0xe2] sm:$0xff]
    %v803 = vld [vmem:[%s0 + $0xf2] sm:$0xff]
    %v804 = vld [vmem:[%s0 + $0xfa] sm:$0xff]
    %v805 = vld [vmem:[%s0 + $0x10a] sm:$0xff]
    %v806 = vld [vmem:[%s0 + $0x112] sm:$0xff]
    %v807 = vld [vmem:[%s0 + $0x122] sm:$0xff]
    %v808 = vld [vmem:[%s0 + $0x12a] sm:$0xff]
    %v809 = vld [vmem:[%s0 + $0x13a] sm:$0xff]
    %v810 = vld [vmem:[%s0 + $0x142] sm:$0xff]
    %v811 = vld [vmem:[%s0 + $0x152] sm:$0xff]
    %v812 = vld [vmem:[%s0 + $0x15a] sm:$0xff]
    %v813 = vld [vmem:[%s0 + $0x16a] sm:$0xff]
    %v814 = vld [vmem:[%s0 + $0x172] sm:$0xff]
    %v815 = vld [vmem:[%s0 + $0x1b2] sm:$0xff]
    %v816 = vld [vmem:[%s0 + $0x1ba] sm:$0xff]
    %v817 = vld [vmem:[%s0 + $0x1ca] sm:$0xff]
    %v818 = vld [vmem:[%s0 + $0x1d2] sm:$0xff]
    %v819 = vld [vmem:[%s0 + $0x1e2] sm:$0xff]
    %v820 = vld [vmem:[%s0 + $0x1ea] sm:$0xff]
    %v821 = vld [vmem:[%s0 + $0x1fa] sm:$0xff]
    %v822 = vld [vmem:[%s0 + $0x202] sm:$0xff]
    %v823 = vld [vmem:[%s0 + $0x212] sm:$0xff]
    %v824 = vld [vmem:[%s0 + $0x21a] sm:$0xff]
    %v825 = vld [vmem:[%s0 + $0x22a] sm:$0xff]
    %v826 = vld [vmem:[%s0 + $0x232] sm:$0xff]
    %v827 = vld [vmem:[%s0 + $0x242] sm:$0xff]
    %v828 = vld [vmem:[%s0 + $0x24a] sm:$0xff]
    %v829 = vld [vmem:[%s0 + $0x25a] sm:$0xff]
    %v830 = vld [vmem:[%s0 + $0x262] sm:$0xff]
    %v831 = vld [vmem:[%s0 + $0x272] sm:$0xff]
    %v832 = vld [vmem:[%s0 + $0x27a] sm:$0xff]
    %v833 = vld [vmem:[%s0 + $0x28a] sm:$0xff]
    %v834 = vld [vmem:[%s0 + $0x292] sm:$0xff]
    %v835 = vld [vmem:[%s0 + $0x2a2] sm:$0xff]
    %v836 = vld [vmem:[%s0 + $0x2aa] sm:$0xff]
    %v837 = vld [vmem:[%s0 + $0x2ba] sm:$0xff]
    %v838 = vld [vmem:[%s0 + $0x2c2] sm:$0xff]
    %v839 = vld [vmem:[%s0 + $0x2d2] sm:$0xff]
    %v840 = vld [vmem:[%s0 + $0x2da] sm:$0xff]
    %v841 = vld [vmem:[%s0 + $0x2ea] sm:$0xff]
    %v842 = vld [vmem:[%s0 + $0x2f2] sm:$0xff]
    %v843 = vld [vmem:[%s0 + $0x302] sm:$0xff]
    %v844 = vld [vmem:[%s0 + $0x30a] sm:$0xff]
    %v845 = vld [vmem:[%s0 + $0x31a] sm:$0xff]
    %v846 = vld [vmem:[%s0 + $0x322] sm:$0xff]
    %v847 = vpack.c.bf16 %v784, %v783
    %v848 = vpack.c.bf16 %v786, %v785
    %v849 = vpack.c.bf16 %v788, %v787
    %v850 = vpack.c.bf16 %v790, %v789
    %v851 = vpack.c.bf16 %v792, %v791
    %v852 = vpack.c.bf16 %v794, %v793
    %v853 = vpack.c.bf16 %v796, %v795
    %v854 = vpack.c.bf16 %v798, %v797
    %v855 = vpack.c.bf16 %v800, %v799
    %v856 = vpack.c.bf16 %v802, %v801
    %v857 = vpack.c.bf16 %v804, %v803
    %v858 = vpack.c.bf16 %v806, %v805
    %v859 = vpack.c.bf16 %v808, %v807
    %v860 = vpack.c.bf16 %v810, %v809
    %v861 = vpack.c.bf16 %v812, %v811
    %v862 = vpack.c.bf16 %v814, %v813
    %v863 = vpack.c.bf16 %v816, %v815
    %v864 = vpack.c.bf16 %v818, %v817
    %v865 = vpack.c.bf16 %v820, %v819
    %v866 = vpack.c.bf16 %v822, %v821
    %v867 = vpack.c.bf16 %v824, %v823
    %v868 = vpack.c.bf16 %v826, %v825
    %v869 = vpack.c.bf16 %v828, %v827
    %v870 = vpack.c.bf16 %v830, %v829
    %v871 = vpack.c.bf16 %v832, %v831
    %v872 = vpack.c.bf16 %v834, %v833
    %v873 = vpack.c.bf16 %v836, %v835
    %v874 = vpack.c.bf16 %v838, %v837
    %v875 = vpack.c.bf16 %v840, %v839
    %v876 = vpack.c.bf16 %v842, %v841
    %v877 = vpack.c.bf16 %v844, %v843
    %v878 = vpack.c.bf16 %v846, %v845
    %s879 = scalar_lea.vmem %s1, 128
    %v880 = vld [vmem:[%s879] sm:$0xf]
    %v881 = vld [vmem:[%s879 + $0x4] sm:$0xf]
    %v882 = vld [vmem:[%s879 + $0x8] sm:$0xf]
    %v883 = vld [vmem:[%s879 + $0xc] sm:$0xf]
    %v884 = vld [vmem:[%s879 + $0x10] sm:$0xf]
    %v885 = vld [vmem:[%s879 + $0x14] sm:$0xf]
    %v886 = vld [vmem:[%s879 + $0x18] sm:$0xf]
    %v887 = vld [vmem:[%s879 + $0x1c] sm:$0xf]
    %v888 = vld [vmem:[%s879 + $0x20] sm:$0xf]
    %v889 = vld [vmem:[%s879 + $0x24] sm:$0xf]
    %v890 = vld [vmem:[%s879 + $0x28] sm:$0xf]
    %v891 = vld [vmem:[%s879 + $0x2c] sm:$0xf]
    %v892 = vld [vmem:[%s879 + $0x30] sm:$0xf]
    %v893 = vld [vmem:[%s879 + $0x34] sm:$0xf]
    %v894 = vld [vmem:[%s879 + $0x38] sm:$0xf]
    %v895 = vld [vmem:[%s879 + $0x3c] sm:$0xf]
    %v912 = vunpack.c.l.b16 %v880
    %v913 = vunpack.c.l.b16 %v881
    %v914 = vunpack.c.l.b16 %v882
    %v915 = vunpack.c.l.b16 %v883
    %v916 = vunpack.c.l.b16 %v884
    %v917 = vunpack.c.l.b16 %v885
    %v918 = vunpack.c.l.b16 %v886
    %v919 = vunpack.c.l.b16 %v887
    %v920 = vunpack.c.l.b16 %v888
    %v921 = vunpack.c.l.b16 %v889
    %v922 = vunpack.c.l.b16 %v890
    %v923 = vunpack.c.l.b16 %v891
    %v924 = vunpack.c.l.b16 %v892
    %v925 = vunpack.c.l.b16 %v893
    %v926 = vunpack.c.l.b16 %v894
    %v927 = vunpack.c.l.b16 %v895
    %v928 = vpack.c.b16 %v913, %v912
    %v929 = vpack.c.b16 %v915, %v914
    %v930 = vpack.c.b16 %v917, %v916
    %v931 = vpack.c.b16 %v919, %v918
    %v932 = vpack.c.b16 %v921, %v920
    %v933 = vpack.c.b16 %v923, %v922
    %v934 = vpack.c.b16 %v925, %v924
    %v935 = vpack.c.b16 %v927, %v926
    %944 = vmatpush.bf16.msra.mxu0 %v935
    %945 = vmatpush.bf16.msra.mxu0 %v934
    %946 = vmatpush.bf16.msra.mxu0 %v933
    %947 = vmatpush.bf16.msra.mxu0 %v932
    %948 = vmatpush.bf16.msra.mxu0 %v931
    %949 = vmatpush.bf16.msra.mxu0 %v930
    %950 = vmatpush.bf16.msra.mxu0 %v929
    %951 = vmatpush.bf16.msra.mxu0 %v928
    %952 = vmatmul.bf16.gmra.mxu0 %v847
    %v953 = vpop.f32.mrf.mxu0
    %v954 = vadd.f32 0.0, %v953
    %v955 = vpop.f32.mrf.mxu0
    %v956 = vadd.f32 0.0, %v955
    %957 = vmatmul.bf16.gmra.mxu0 %v848
    %v958 = vpop.f32.mrf.mxu0
    %v959 = vadd.f32 0.0, %v958
    %v960 = vpop.f32.mrf.mxu0
    %v961 = vadd.f32 0.0, %v960
    %962 = vmatmul.bf16.gmra.mxu0 %v849
    %v963 = vpop.f32.mrf.mxu0
    %v964 = vadd.f32 0.0, %v963
    %v965 = vpop.f32.mrf.mxu0
    %v966 = vadd.f32 0.0, %v965
    %967 = vmatmul.bf16.gmra.mxu0 %v850
    %v968 = vpop.f32.mrf.mxu0
    %v969 = vadd.f32 0.0, %v968
    %v970 = vpop.f32.mrf.mxu0
    %v971 = vadd.f32 0.0, %v970
    %972 = vmatmul.bf16.gmra.mxu0 %v851
    %v973 = vpop.f32.mrf.mxu0
    %v974 = vadd.f32 0.0, %v973
    %v975 = vpop.f32.mrf.mxu0
    %v976 = vadd.f32 0.0, %v975
    %977 = vmatmul.bf16.gmra.mxu0 %v852
    %v978 = vpop.f32.mrf.mxu0
    %v979 = vadd.f32 0.0, %v978
    %v980 = vpop.f32.mrf.mxu0
    %v981 = vadd.f32 0.0, %v980
    %982 = vmatmul.bf16.gmra.mxu0 %v853
    %v983 = vpop.f32.mrf.mxu0
    %v984 = vadd.f32 0.0, %v983
    %v985 = vpop.f32.mrf.mxu0
    %v986 = vadd.f32 0.0, %v985
    %987 = vmatmul.bf16.gmra.mxu0 %v854
    %v988 = vpop.f32.mrf.mxu0
    %v989 = vadd.f32 0.0, %v988
    %v990 = vpop.f32.mrf.mxu0
    %v991 = vadd.f32 0.0, %v990
    %992 = vmatmul.bf16.gmra.mxu0 %v855
    %v993 = vpop.f32.mrf.mxu0
    %v994 = vadd.f32 0.0, %v993
    %v995 = vpop.f32.mrf.mxu0
    %v996 = vadd.f32 0.0, %v995
    %997 = vmatmul.bf16.gmra.mxu0 %v856
    %v998 = vpop.f32.mrf.mxu0
    %v999 = vadd.f32 0.0, %v998
    %v1000 = vpop.f32.mrf.mxu0
    %v1001 = vadd.f32 0.0, %v1000
    %1002 = vmatmul.bf16.gmra.mxu0 %v857
    %v1003 = vpop.f32.mrf.mxu0
    %v1004 = vadd.f32 0.0, %v1003
    %v1005 = vpop.f32.mrf.mxu0
    %v1006 = vadd.f32 0.0, %v1005
    %1007 = vmatmul.bf16.gmra.mxu0 %v858
    %v1008 = vpop.f32.mrf.mxu0
    %v1009 = vadd.f32 0.0, %v1008
    %v1010 = vpop.f32.mrf.mxu0
    %v1011 = vadd.f32 0.0, %v1010
    %1012 = vmatmul.bf16.gmra.mxu0 %v859
    %v1013 = vpop.f32.mrf.mxu0
    %v1014 = vadd.f32 0.0, %v1013
    %v1015 = vpop.f32.mrf.mxu0
    %v1016 = vadd.f32 0.0, %v1015
    %1017 = vmatmul.bf16.gmra.mxu0 %v860
    %v1018 = vpop.f32.mrf.mxu0
    %v1019 = vadd.f32 0.0, %v1018
    %v1020 = vpop.f32.mrf.mxu0
    %v1021 = vadd.f32 0.0, %v1020
    %1022 = vmatmul.bf16.gmra.mxu0 %v861
    %v1023 = vpop.f32.mrf.mxu0
    %v1024 = vadd.f32 0.0, %v1023
    %v1025 = vpop.f32.mrf.mxu0
    %v1026 = vadd.f32 0.0, %v1025
    %1027 = vmatmul.bf16.gmra.mxu0 %v862
    %v1028 = vpop.f32.mrf.mxu0
    %v1029 = vadd.f32 0.0, %v1028
    %v1030 = vpop.f32.mrf.mxu0
    %v1031 = vadd.f32 0.0, %v1030
    %1032 = vmatmul.bf16.gmra.mxu0 %v863
    %v1033 = vpop.f32.mrf.mxu0
    %v1034 = vadd.f32 0.0, %v1033
    %v1035 = vpop.f32.mrf.mxu0
    %v1036 = vadd.f32 0.0, %v1035
    %1037 = vmatmul.bf16.gmra.mxu0 %v864
    %v1038 = vpop.f32.mrf.mxu0
    %v1039 = vadd.f32 0.0, %v1038
    %v1040 = vpop.f32.mrf.mxu0
    %v1041 = vadd.f32 0.0, %v1040
    %1042 = vmatmul.bf16.gmra.mxu0 %v865
    %v1043 = vpop.f32.mrf.mxu0
    %v1044 = vadd.f32 0.0, %v1043
    %v1045 = vpop.f32.mrf.mxu0
    %v1046 = vadd.f32 0.0, %v1045
    %1047 = vmatmul.bf16.gmra.mxu0 %v866
    %v1048 = vpop.f32.mrf.mxu0
    %v1049 = vadd.f32 0.0, %v1048
    %v1050 = vpop.f32.mrf.mxu0
    %v1051 = vadd.f32 0.0, %v1050
    %1052 = vmatmul.bf16.gmra.mxu0 %v867
    %v1053 = vpop.f32.mrf.mxu0
    %v1054 = vadd.f32 0.0, %v1053
    %v1055 = vpop.f32.mrf.mxu0
    %v1056 = vadd.f32 0.0, %v1055
    %1057 = vmatmul.bf16.gmra.mxu0 %v868
    %v1058 = vpop.f32.mrf.mxu0
    %v1059 = vadd.f32 0.0, %v1058
    %v1060 = vpop.f32.mrf.mxu0
    %v1061 = vadd.f32 0.0, %v1060
    %1062 = vmatmul.bf16.gmra.mxu0 %v869
    %v1063 = vpop.f32.mrf.mxu0
    %v1064 = vadd.f32 0.0, %v1063
    %v1065 = vpop.f32.mrf.mxu0
    %v1066 = vadd.f32 0.0, %v1065
    %1067 = vmatmul.bf16.gmra.mxu0 %v870
    %v1068 = vpop.f32.mrf.mxu0
    %v1069 = vadd.f32 0.0, %v1068
    %v1070 = vpop.f32.mrf.mxu0
    %v1071 = vadd.f32 0.0, %v1070
    %1072 = vmatmul.bf16.gmra.mxu0 %v871
    %v1073 = vpop.f32.mrf.mxu0
    %v1074 = vadd.f32 0.0, %v1073
    %v1075 = vpop.f32.mrf.mxu0
    %v1076 = vadd.f32 0.0, %v1075
    %1077 = vmatmul.bf16.gmra.mxu0 %v872
    %v1078 = vpop.f32.mrf.mxu0
    %v1079 = vadd.f32 0.0, %v1078
    %v1080 = vpop.f32.mrf.mxu0
    %v1081 = vadd.f32 0.0, %v1080
    %1082 = vmatmul.bf16.gmra.mxu0 %v873
    %v1083 = vpop.f32.mrf.mxu0
    %v1084 = vadd.f32 0.0, %v1083
    %v1085 = vpop.f32.mrf.mxu0
    %v1086 = vadd.f32 0.0, %v1085
    %1087 = vmatmul.bf16.gmra.mxu0 %v874
    %v1088 = vpop.f32.mrf.mxu0
    %v1089 = vadd.f32 0.0, %v1088
    %v1090 = vpop.f32.mrf.mxu0
    %v1091 = vadd.f32 0.0, %v1090
    %1092 = vmatmul.bf16.gmra.mxu0 %v875
    %v1093 = vpop.f32.mrf.mxu0
    %v1094 = vadd.f32 0.0, %v1093
    %v1095 = vpop.f32.mrf.mxu0
    %v1096 = vadd.f32 0.0, %v1095
    %1097 = vmatmul.bf16.gmra.mxu0 %v876
    %v1098 = vpop.f32.mrf.mxu0
    %v1099 = vadd.f32 0.0, %v1098
    %v1100 = vpop.f32.mrf.mxu0
    %v1101 = vadd.f32 0.0, %v1100
    %1102 = vmatmul.bf16.gmra.mxu0 %v877
    %v1103 = vpop.f32.mrf.mxu0
    %v1104 = vadd.f32 0.0, %v1103
    %v1105 = vpop.f32.mrf.mxu0
    %v1106 = vadd.f32 0.0, %v1105
    %1107 = vmatmul.bf16.gmra.mxu0 %v878
    %v1108 = vpop.f32.mrf.mxu0
    %v1109 = vadd.f32 0.0, %v1108
    %v1110 = vpop.f32.mrf.mxu0
    %v1111 = vadd.f32 0.0, %v1110
    %1112 = vdwg.mxu0
    %v1113 = vadd.f32 %v624, %v954
    %v1114 = vadd.f32 %v626, %v956
    %v1115 = vadd.f32 %v629, %v959
    %v1116 = vadd.f32 %v631, %v961
    %v1117 = vadd.f32 %v634, %v964
    %v1118 = vadd.f32 %v636, %v966
    %v1119 = vadd.f32 %v639, %v969
    %v1120 = vadd.f32 %v641, %v971
    %v1121 = vadd.f32 %v644, %v974
    %v1122 = vadd.f32 %v646, %v976
    %v1123 = vadd.f32 %v649, %v979
    %v1124 = vadd.f32 %v651, %v981
    %v1125 = vadd.f32 %v654, %v984
    %v1126 = vadd.f32 %v656, %v986
    %v1127 = vadd.f32 %v659, %v989
    %v1128 = vadd.f32 %v661, %v991
    %v1129 = vadd.f32 %v664, %v994
    %v1130 = vadd.f32 %v666, %v996
    %v1131 = vadd.f32 %v669, %v999
    %v1132 = vadd.f32 %v671, %v1001
    %v1133 = vadd.f32 %v674, %v1004
    %v1134 = vadd.f32 %v676, %v1006
    %v1135 = vadd.f32 %v679, %v1009
    %v1136 = vadd.f32 %v681, %v1011
    %v1137 = vadd.f32 %v684, %v1014
    %v1138 = vadd.f32 %v686, %v1016
    %v1139 = vadd.f32 %v689, %v1019
    %v1140 = vadd.f32 %v691, %v1021
    %v1141 = vadd.f32 %v694, %v1024
    %v1142 = vadd.f32 %v696, %v1026
    %v1143 = vadd.f32 %v699, %v1029
    %v1144 = vadd.f32 %v701, %v1031
    %v1145 = vadd.f32 %v704, %v1034
    %v1146 = vadd.f32 %v706, %v1036
    %v1147 = vadd.f32 %v709, %v1039
    %v1148 = vadd.f32 %v711, %v1041
    %v1149 = vadd.f32 %v714, %v1044
    %v1150 = vadd.f32 %v716, %v1046
    %v1151 = vadd.f32 %v719, %v1049
    %v1152 = vadd.f32 %v721, %v1051
    %v1153 = vadd.f32 %v724, %v1054
    %v1154 = vadd.f32 %v726, %v1056
    %v1155 = vadd.f32 %v729, %v1059
    %v1156 = vadd.f32 %v731, %v1061
    %v1157 = vadd.f32 %v734, %v1064
    %v1158 = vadd.f32 %v736, %v1066
    %v1159 = vadd.f32 %v739, %v1069
    %v1160 = vadd.f32 %v741, %v1071
    %v1161 = vadd.f32 %v744, %v1074
    %v1162 = vadd.f32 %v746, %v1076
    %v1163 = vadd.f32 %v749, %v1079
    %v1164 = vadd.f32 %v751, %v1081
    %v1165 = vadd.f32 %v754, %v1084
    %v1166 = vadd.f32 %v756, %v1086
    %v1167 = vadd.f32 %v759, %v1089
    %v1168 = vadd.f32 %v761, %v1091
    %v1169 = vadd.f32 %v764, %v1094
    %v1170 = vadd.f32 %v766, %v1096
    %v1171 = vadd.f32 %v769, %v1099
    %v1172 = vadd.f32 %v771, %v1101
    %v1173 = vadd.f32 %v774, %v1104
    %v1174 = vadd.f32 %v776, %v1106
    %v1175 = vadd.f32 %v779, %v1109
    %v1176 = vadd.f32 %v781, %v1111
    %s1177 = scalar_lea.vmem %s0, 24
    %v1178 = vld [vmem:[%s1177] sm:$0xff]
    %v1179 = vld [vmem:[%s1177 + $0x8] sm:$0xff]
    %v1180 = vld [vmem:[%s1177 + $0x18] sm:$0xff]
    %v1181 = vld [vmem:[%s1177 + $0x20] sm:$0xff]
    %v1182 = vld [vmem:[%s1177 + $0x30] sm:$0xff]
    %v1183 = vld [vmem:[%s1177 + $0x38] sm:$0xff]
    %v1184 = vld [vmem:[%s1177 + $0x48] sm:$0xff]
    %v1185 = vld [vmem:[%s1177 + $0x50] sm:$0xff]
    %v1186 = vld [vmem:[%s1177 + $0x60] sm:$0xff]
    %v1187 = vld [vmem:[%s1177 + $0x68] sm:$0xff]
    %v1188 = vld [vmem:[%s1177 + $0x78] sm:$0xff]
    %v1189 = vld [vmem:[%s1177 + $0x80] sm:$0xff]
    %v1190 = vld [vmem:[%s1177 + $0x90] sm:$0xff]
    %v1191 = vld [vmem:[%s1177 + $0x98] sm:$0xff]
    %v1192 = vld [vmem:[%s1177 + $0xa8] sm:$0xff]
    %v1193 = vld [vmem:[%s1177 + $0xb0] sm:$0xff]
    %v1194 = vld [vmem:[%s1177 + $0xc0] sm:$0xff]
    %v1195 = vld [vmem:[%s1177 + $0xc8] sm:$0xff]
    %v1196 = vld [vmem:[%s1177 + $0xd8] sm:$0xff]
    %v1197 = vld [vmem:[%s1177 + $0xe0] sm:$0xff]
    %v1198 = vld [vmem:[%s1177 + $0xf0] sm:$0xff]
    %v1199 = vld [vmem:[%s1177 + $0xf8] sm:$0xff]
    %v1200 = vld [vmem:[%s1177 + $0x108] sm:$0xff]
    %v1201 = vld [vmem:[%s1177 + $0x110] sm:$0xff]
    %v1202 = vld [vmem:[%s1177 + $0x120] sm:$0xff]
    %v1203 = vld [vmem:[%s1177 + $0x128] sm:$0xff]
    %v1204 = vld [vmem:[%s1177 + $0x138] sm:$0xff]
    %v1205 = vld [vmem:[%s1177 + $0x140] sm:$0xff]
    %v1206 = vld [vmem:[%s1177 + $0x150] sm:$0xff]
    %v1207 = vld [vmem:[%s1177 + $0x158] sm:$0xff]
    %v1208 = vld [vmem:[%s1177 + $0x168] sm:$0xff]
    %v1209 = vld [vmem:[%s1177 + $0x170] sm:$0xff]
    %v1210 = vld [vmem:[%s1177 + $0x1b0] sm:$0xff]
    %v1211 = vld [vmem:[%s1177 + $0x1b8] sm:$0xff]
    %v1212 = vld [vmem:[%s1177 + $0x1c8] sm:$0xff]
    %v1213 = vld [vmem:[%s1177 + $0x1d0] sm:$0xff]
    %v1214 = vld [vmem:[%s1177 + $0x1e0] sm:$0xff]
    %v1215 = vld [vmem:[%s1177 + $0x1e8] sm:$0xff]
    %v1216 = vld [vmem:[%s1177 + $0x1f8] sm:$0xff]
    %v1217 = vld [vmem:[%s1177 + $0x200] sm:$0xff]
    %v1218 = vld [vmem:[%s1177 + $0x210] sm:$0xff]
    %v1219 = vld [vmem:[%s1177 + $0x218] sm:$0xff]
    %v1220 = vld [vmem:[%s1177 + $0x228] sm:$0xff]
    %v1221 = vld [vmem:[%s1177 + $0x230] sm:$0xff]
    %v1222 = vld [vmem:[%s1177 + $0x240] sm:$0xff]
    %v1223 = vld [vmem:[%s1177 + $0x248] sm:$0xff]
    %v1224 = vld [vmem:[%s1177 + $0x258] sm:$0xff]
    %v1225 = vld [vmem:[%s1177 + $0x260] sm:$0xff]
    %v1226 = vld [vmem:[%s1177 + $0x270] sm:$0xff]
    %v1227 = vld [vmem:[%s1177 + $0x278] sm:$0xff]
    %v1228 = vld [vmem:[%s1177 + $0x288] sm:$0xff]
    %v1229 = vld [vmem:[%s1177 + $0x290] sm:$0xff]
    %v1230 = vld [vmem:[%s1177 + $0x2a0] sm:$0xff]
    %v1231 = vld [vmem:[%s1177 + $0x2a8] sm:$0xff]
    %v1232 = vld [vmem:[%s1177 + $0x2b8] sm:$0xff]
    %v1233 = vld [vmem:[%s1177 + $0x2c0] sm:$0xff]
    %v1234 = vld [vmem:[%s1177 + $0x2d0] sm:$0xff]
    %v1235 = vld [vmem:[%s1177 + $0x2d8] sm:$0xff]
    %v1236 = vld [vmem:[%s1177 + $0x2e8] sm:$0xff]
    %v1237 = vld [vmem:[%s1177 + $0x2f0] sm:$0xff]
    %v1238 = vld [vmem:[%s1177 + $0x300] sm:$0xff]
    %v1239 = vld [vmem:[%s1177 + $0x308] sm:$0xff]
    %v1240 = vld [vmem:[%s1177 + $0x318] sm:$0xff]
    %v1241 = vld [vmem:[%s1177 + $0x320] sm:$0xff]
    %v1242 = vpack.c.bf16 %v1179, %v1178
    %v1243 = vpack.c.bf16 %v1181, %v1180
    %v1244 = vpack.c.bf16 %v1183, %v1182
    %v1245 = vpack.c.bf16 %v1185, %v1184
    %v1246 = vpack.c.bf16 %v1187, %v1186
    %v1247 = vpack.c.bf16 %v1189, %v1188
    %v1248 = vpack.c.bf16 %v1191, %v1190
    %v1249 = vpack.c.bf16 %v1193, %v1192
    %v1250 = vpack.c.bf16 %v1195, %v1194
    %v1251 = vpack.c.bf16 %v1197, %v1196
    %v1252 = vpack.c.bf16 %v1199, %v1198
    %v1253 = vpack.c.bf16 %v1201, %v1200
    %v1254 = vpack.c.bf16 %v1203, %v1202
    %v1255 = vpack.c.bf16 %v1205, %v1204
    %v1256 = vpack.c.bf16 %v1207, %v1206
    %v1257 = vpack.c.bf16 %v1209, %v1208
    %v1258 = vpack.c.bf16 %v1211, %v1210
    %v1259 = vpack.c.bf16 %v1213, %v1212
    %v1260 = vpack.c.bf16 %v1215, %v1214
    %v1261 = vpack.c.bf16 %v1217, %v1216
    %v1262 = vpack.c.bf16 %v1219, %v1218
    %v1263 = vpack.c.bf16 %v1221, %v1220
    %v1264 = vpack.c.bf16 %v1223, %v1222
    %v1265 = vpack.c.bf16 %v1225, %v1224
    %v1266 = vpack.c.bf16 %v1227, %v1226
    %v1267 = vpack.c.bf16 %v1229, %v1228
    %v1268 = vpack.c.bf16 %v1231, %v1230
    %v1269 = vpack.c.bf16 %v1233, %v1232
    %v1270 = vpack.c.bf16 %v1235, %v1234
    %v1271 = vpack.c.bf16 %v1237, %v1236
    %v1272 = vpack.c.bf16 %v1239, %v1238
    %v1273 = vpack.c.bf16 %v1241, %v1240
    %s1274 = scalar_lea.vmem %s1, 192
    %v1275 = vld [vmem:[%s1274] sm:$0xf]
    %v1276 = vld [vmem:[%s1274 + $0x4] sm:$0xf]
    %v1277 = vld [vmem:[%s1274 + $0x8] sm:$0xf]
    %v1278 = vld [vmem:[%s1274 + $0xc] sm:$0xf]
    %v1279 = vld [vmem:[%s1274 + $0x10] sm:$0xf]
    %v1280 = vld [vmem:[%s1274 + $0x14] sm:$0xf]
    %v1281 = vld [vmem:[%s1274 + $0x18] sm:$0xf]
    %v1282 = vld [vmem:[%s1274 + $0x1c] sm:$0xf]
    %v1283 = vld [vmem:[%s1274 + $0x20] sm:$0xf]
    %v1284 = vld [vmem:[%s1274 + $0x24] sm:$0xf]
    %v1285 = vld [vmem:[%s1274 + $0x28] sm:$0xf]
    %v1286 = vld [vmem:[%s1274 + $0x2c] sm:$0xf]
    %v1287 = vld [vmem:[%s1274 + $0x30] sm:$0xf]
    %v1288 = vld [vmem:[%s1274 + $0x34] sm:$0xf]
    %v1289 = vld [vmem:[%s1274 + $0x38] sm:$0xf]
    %v1290 = vld [vmem:[%s1274 + $0x3c] sm:$0xf]
    %v1307 = vunpack.c.l.b16 %v1275
    %v1308 = vunpack.c.l.b16 %v1276
    %v1309 = vunpack.c.l.b16 %v1277
    %v1310 = vunpack.c.l.b16 %v1278
    %v1311 = vunpack.c.l.b16 %v1279
    %v1312 = vunpack.c.l.b16 %v1280
    %v1313 = vunpack.c.l.b16 %v1281
    %v1314 = vunpack.c.l.b16 %v1282
    %v1315 = vunpack.c.l.b16 %v1283
    %v1316 = vunpack.c.l.b16 %v1284
    %v1317 = vunpack.c.l.b16 %v1285
    %v1318 = vunpack.c.l.b16 %v1286
    %v1319 = vunpack.c.l.b16 %v1287
    %v1320 = vunpack.c.l.b16 %v1288
    %v1321 = vunpack.c.l.b16 %v1289
    %v1322 = vunpack.c.l.b16 %v1290
    %v1323 = vpack.c.b16 %v1308, %v1307
    %v1324 = vpack.c.b16 %v1310, %v1309
    %v1325 = vpack.c.b16 %v1312, %v1311
    %v1326 = vpack.c.b16 %v1314, %v1313
    %v1327 = vpack.c.b16 %v1316, %v1315
    %v1328 = vpack.c.b16 %v1318, %v1317
    %v1329 = vpack.c.b16 %v1320, %v1319
    %v1330 = vpack.c.b16 %v1322, %v1321
    %1339 = vmatpush.bf16.msra.mxu0 %v1330
    %1340 = vmatpush.bf16.msra.mxu0 %v1329
    %1341 = vmatpush.bf16.msra.mxu0 %v1328
    %1342 = vmatpush.bf16.msra.mxu0 %v1327
    %1343 = vmatpush.bf16.msra.mxu0 %v1326
    %1344 = vmatpush.bf16.msra.mxu0 %v1325
    %1345 = vmatpush.bf16.msra.mxu0 %v1324
    %1346 = vmatpush.bf16.msra.mxu0 %v1323
    %1347 = vmatmul.bf16.gmra.mxu0 %v1242
    %v1348 = vpop.f32.mrf.mxu0
    %v1349 = vadd.f32 0.0, %v1348
    %v1350 = vpop.f32.mrf.mxu0
    %v1351 = vadd.f32 0.0, %v1350
    %1352 = vmatmul.bf16.gmra.mxu0 %v1243
    %v1353 = vpop.f32.mrf.mxu0
    %v1354 = vadd.f32 0.0, %v1353
    %v1355 = vpop.f32.mrf.mxu0
    %v1356 = vadd.f32 0.0, %v1355
    %1357 = vmatmul.bf16.gmra.mxu0 %v1244
    %v1358 = vpop.f32.mrf.mxu0
    %v1359 = vadd.f32 0.0, %v1358
    %v1360 = vpop.f32.mrf.mxu0
    %v1361 = vadd.f32 0.0, %v1360
    %1362 = vmatmul.bf16.gmra.mxu0 %v1245
    %v1363 = vpop.f32.mrf.mxu0
    %v1364 = vadd.f32 0.0, %v1363
    %v1365 = vpop.f32.mrf.mxu0
    %v1366 = vadd.f32 0.0, %v1365
    %1367 = vmatmul.bf16.gmra.mxu0 %v1246
    %v1368 = vpop.f32.mrf.mxu0
    %v1369 = vadd.f32 0.0, %v1368
    %v1370 = vpop.f32.mrf.mxu0
    %v1371 = vadd.f32 0.0, %v1370
    %1372 = vmatmul.bf16.gmra.mxu0 %v1247
    %v1373 = vpop.f32.mrf.mxu0
    %v1374 = vadd.f32 0.0, %v1373
    %v1375 = vpop.f32.mrf.mxu0
    %v1376 = vadd.f32 0.0, %v1375
    %1377 = vmatmul.bf16.gmra.mxu0 %v1248
    %v1378 = vpop.f32.mrf.mxu0
    %v1379 = vadd.f32 0.0, %v1378
    %v1380 = vpop.f32.mrf.mxu0
    %v1381 = vadd.f32 0.0, %v1380
    %1382 = vmatmul.bf16.gmra.mxu0 %v1249
    %v1383 = vpop.f32.mrf.mxu0
    %v1384 = vadd.f32 0.0, %v1383
    %v1385 = vpop.f32.mrf.mxu0
    %v1386 = vadd.f32 0.0, %v1385
    %1387 = vmatmul.bf16.gmra.mxu0 %v1250
    %v1388 = vpop.f32.mrf.mxu0
    %v1389 = vadd.f32 0.0, %v1388
    %v1390 = vpop.f32.mrf.mxu0
    %v1391 = vadd.f32 0.0, %v1390
    %1392 = vmatmul.bf16.gmra.mxu0 %v1251
    %v1393 = vpop.f32.mrf.mxu0
    %v1394 = vadd.f32 0.0, %v1393
    %v1395 = vpop.f32.mrf.mxu0
    %v1396 = vadd.f32 0.0, %v1395
    %1397 = vmatmul.bf16.gmra.mxu0 %v1252
    %v1398 = vpop.f32.mrf.mxu0
    %v1399 = vadd.f32 0.0, %v1398
    %v1400 = vpop.f32.mrf.mxu0
    %v1401 = vadd.f32 0.0, %v1400
    %1402 = vmatmul.bf16.gmra.mxu0 %v1253
    %v1403 = vpop.f32.mrf.mxu0
    %v1404 = vadd.f32 0.0, %v1403
    %v1405 = vpop.f32.mrf.mxu0
    %v1406 = vadd.f32 0.0, %v1405
    %1407 = vmatmul.bf16.gmra.mxu0 %v1254
    %v1408 = vpop.f32.mrf.mxu0
    %v1409 = vadd.f32 0.0, %v1408
    %v1410 = vpop.f32.mrf.mxu0
    %v1411 = vadd.f32 0.0, %v1410
    %1412 = vmatmul.bf16.gmra.mxu0 %v1255
    %v1413 = vpop.f32.mrf.mxu0
    %v1414 = vadd.f32 0.0, %v1413
    %v1415 = vpop.f32.mrf.mxu0
    %v1416 = vadd.f32 0.0, %v1415
    %1417 = vmatmul.bf16.gmra.mxu0 %v1256
    %v1418 = vpop.f32.mrf.mxu0
    %v1419 = vadd.f32 0.0, %v1418
    %v1420 = vpop.f32.mrf.mxu0
    %v1421 = vadd.f32 0.0, %v1420
    %1422 = vmatmul.bf16.gmra.mxu0 %v1257
    %v1423 = vpop.f32.mrf.mxu0
    %v1424 = vadd.f32 0.0, %v1423
    %v1425 = vpop.f32.mrf.mxu0
    %v1426 = vadd.f32 0.0, %v1425
    %1427 = vmatmul.bf16.gmra.mxu0 %v1258
    %v1428 = vpop.f32.mrf.mxu0
    %v1429 = vadd.f32 0.0, %v1428
    %v1430 = vpop.f32.mrf.mxu0
    %v1431 = vadd.f32 0.0, %v1430
    %1432 = vmatmul.bf16.gmra.mxu0 %v1259
    %v1433 = vpop.f32.mrf.mxu0
    %v1434 = vadd.f32 0.0, %v1433
    %v1435 = vpop.f32.mrf.mxu0
    %v1436 = vadd.f32 0.0, %v1435
    %1437 = vmatmul.bf16.gmra.mxu0 %v1260
    %v1438 = vpop.f32.mrf.mxu0
    %v1439 = vadd.f32 0.0, %v1438
    %v1440 = vpop.f32.mrf.mxu0
    %v1441 = vadd.f32 0.0, %v1440
    %1442 = vmatmul.bf16.gmra.mxu0 %v1261
    %v1443 = vpop.f32.mrf.mxu0
    %v1444 = vadd.f32 0.0, %v1443
    %v1445 = vpop.f32.mrf.mxu0
    %v1446 = vadd.f32 0.0, %v1445
    %1447 = vmatmul.bf16.gmra.mxu0 %v1262
    %v1448 = vpop.f32.mrf.mxu0
    %v1449 = vadd.f32 0.0, %v1448
    %v1450 = vpop.f32.mrf.mxu0
    %v1451 = vadd.f32 0.0, %v1450
    %1452 = vmatmul.bf16.gmra.mxu0 %v1263
    %v1453 = vpop.f32.mrf.mxu0
    %v1454 = vadd.f32 0.0, %v1453
    %v1455 = vpop.f32.mrf.mxu0
    %v1456 = vadd.f32 0.0, %v1455
    %1457 = vmatmul.bf16.gmra.mxu0 %v1264
    %v1458 = vpop.f32.mrf.mxu0
    %v1459 = vadd.f32 0.0, %v1458
    %v1460 = vpop.f32.mrf.mxu0
    %v1461 = vadd.f32 0.0, %v1460
    %1462 = vmatmul.bf16.gmra.mxu0 %v1265
    %v1463 = vpop.f32.mrf.mxu0
    %v1464 = vadd.f32 0.0, %v1463
    %v1465 = vpop.f32.mrf.mxu0
    %v1466 = vadd.f32 0.0, %v1465
    %1467 = vmatmul.bf16.gmra.mxu0 %v1266
    %v1468 = vpop.f32.mrf.mxu0
    %v1469 = vadd.f32 0.0, %v1468
    %v1470 = vpop.f32.mrf.mxu0
    %v1471 = vadd.f32 0.0, %v1470
    %1472 = vmatmul.bf16.gmra.mxu0 %v1267
    %v1473 = vpop.f32.mrf.mxu0
    %v1474 = vadd.f32 0.0, %v1473
    %v1475 = vpop.f32.mrf.mxu0
    %v1476 = vadd.f32 0.0, %v1475
    %1477 = vmatmul.bf16.gmra.mxu0 %v1268
    %v1478 = vpop.f32.mrf.mxu0
    %v1479 = vadd.f32 0.0, %v1478
    %v1480 = vpop.f32.mrf.mxu0
    %v1481 = vadd.f32 0.0, %v1480
    %1482 = vmatmul.bf16.gmra.mxu0 %v1269
    %v1483 = vpop.f32.mrf.mxu0
    %v1484 = vadd.f32 0.0, %v1483
    %v1485 = vpop.f32.mrf.mxu0
    %v1486 = vadd.f32 0.0, %v1485
    %1487 = vmatmul.bf16.gmra.mxu0 %v1270
    %v1488 = vpop.f32.mrf.mxu0
    %v1489 = vadd.f32 0.0, %v1488
    %v1490 = vpop.f32.mrf.mxu0
    %v1491 = vadd.f32 0.0, %v1490
    %1492 = vmatmul.bf16.gmra.mxu0 %v1271
    %v1493 = vpop.f32.mrf.mxu0
    %v1494 = vadd.f32 0.0, %v1493
    %v1495 = vpop.f32.mrf.mxu0
    %v1496 = vadd.f32 0.0, %v1495
    %1497 = vmatmul.bf16.gmra.mxu0 %v1272
    %v1498 = vpop.f32.mrf.mxu0
    %v1499 = vadd.f32 0.0, %v1498
    %v1500 = vpop.f32.mrf.mxu0
    %v1501 = vadd.f32 0.0, %v1500
    %1502 = vmatmul.bf16.gmra.mxu0 %v1273
    %v1503 = vpop.f32.mrf.mxu0
    %v1504 = vadd.f32 0.0, %v1503
    %v1505 = vpop.f32.mrf.mxu0
    %v1506 = vadd.f32 0.0, %v1505
    %1507 = vdwg.mxu0
    %v1508 = vadd.f32 %v1113, %v1349
    %v1509 = vadd.f32 %v1114, %v1351
    %v1510 = vadd.f32 %v1115, %v1354
    %v1511 = vadd.f32 %v1116, %v1356
    %v1512 = vadd.f32 %v1117, %v1359
    %v1513 = vadd.f32 %v1118, %v1361
    %v1514 = vadd.f32 %v1119, %v1364
    %v1515 = vadd.f32 %v1120, %v1366
    %v1516 = vadd.f32 %v1121, %v1369
    %v1517 = vadd.f32 %v1122, %v1371
    %v1518 = vadd.f32 %v1123, %v1374
    %v1519 = vadd.f32 %v1124, %v1376
    %v1520 = vadd.f32 %v1125, %v1379
    %v1521 = vadd.f32 %v1126, %v1381
    %v1522 = vadd.f32 %v1127, %v1384
    %v1523 = vadd.f32 %v1128, %v1386
    %v1524 = vadd.f32 %v1129, %v1389
    %v1525 = vadd.f32 %v1130, %v1391
    %v1526 = vadd.f32 %v1131, %v1394
    %v1527 = vadd.f32 %v1132, %v1396
    %v1528 = vadd.f32 %v1133, %v1399
    %v1529 = vadd.f32 %v1134, %v1401
    %v1530 = vadd.f32 %v1135, %v1404
    %v1531 = vadd.f32 %v1136, %v1406
    %v1532 = vadd.f32 %v1137, %v1409
    %v1533 = vadd.f32 %v1138, %v1411
    %v1534 = vadd.f32 %v1139, %v1414
    %v1535 = vadd.f32 %v1140, %v1416
    %v1536 = vadd.f32 %v1141, %v1419
    %v1537 = vadd.f32 %v1142, %v1421
    %v1538 = vadd.f32 %v1143, %v1424
    %v1539 = vadd.f32 %v1144, %v1426
    %v1540 = vadd.f32 %v1145, %v1429
    %v1541 = vadd.f32 %v1146, %v1431
    %v1542 = vadd.f32 %v1147, %v1434
    %v1543 = vadd.f32 %v1148, %v1436
    %v1544 = vadd.f32 %v1149, %v1439
    %v1545 = vadd.f32 %v1150, %v1441
    %v1546 = vadd.f32 %v1151, %v1444
    %v1547 = vadd.f32 %v1152, %v1446
    %v1548 = vadd.f32 %v1153, %v1449
    %v1549 = vadd.f32 %v1154, %v1451
    %v1550 = vadd.f32 %v1155, %v1454
    %v1551 = vadd.f32 %v1156, %v1456
    %v1552 = vadd.f32 %v1157, %v1459
    %v1553 = vadd.f32 %v1158, %v1461
    %v1554 = vadd.f32 %v1159, %v1464
    %v1555 = vadd.f32 %v1160, %v1466
    %v1556 = vadd.f32 %v1161, %v1469
    %v1557 = vadd.f32 %v1162, %v1471
    %v1558 = vadd.f32 %v1163, %v1474
    %v1559 = vadd.f32 %v1164, %v1476
    %v1560 = vadd.f32 %v1165, %v1479
    %v1561 = vadd.f32 %v1166, %v1481
    %v1562 = vadd.f32 %v1167, %v1484
    %v1563 = vadd.f32 %v1168, %v1486
    %v1564 = vadd.f32 %v1169, %v1489
    %v1565 = vadd.f32 %v1170, %v1491
    %v1566 = vadd.f32 %v1171, %v1494
    %v1567 = vadd.f32 %v1172, %v1496
    %v1568 = vadd.f32 %v1173, %v1499
    %v1569 = vadd.f32 %v1174, %v1501
    %v1570 = vadd.f32 %v1175, %v1504
    %v1571 = vadd.f32 %v1176, %v1506
    %v1572 = vld [vmem:[%s1177 + $0x1] sm:$0xff]
    %v1573 = vld [vmem:[%s1177 + $0x9] sm:$0xff]
    %v1574 = vld [vmem:[%s1177 + $0x19] sm:$0xff]
    %v1575 = vld [vmem:[%s1177 + $0x21] sm:$0xff]
    %v1576 = vld [vmem:[%s1177 + $0x31] sm:$0xff]
    %v1577 = vld [vmem:[%s1177 + $0x39] sm:$0xff]
    %v1578 = vld [vmem:[%s1177 + $0x49] sm:$0xff]
    %v1579 = vld [vmem:[%s1177 + $0x51] sm:$0xff]
    %v1580 = vld [vmem:[%s1177 + $0x61] sm:$0xff]
    %v1581 = vld [vmem:[%s1177 + $0x69] sm:$0xff]
    %v1582 = vld [vmem:[%s1177 + $0x79] sm:$0xff]
    %v1583 = vld [vmem:[%s1177 + $0x81] sm:$0xff]
    %v1584 = vld [vmem:[%s1177 + $0x91] sm:$0xff]
    %v1585 = vld [vmem:[%s1177 + $0x99] sm:$0xff]
    %v1586 = vld [vmem:[%s1177 + $0xa9] sm:$0xff]
    %v1587 = vld [vmem:[%s1177 + $0xb1] sm:$0xff]
    %v1588 = vld [vmem:[%s1177 + $0xc1] sm:$0xff]
    %v1589 = vld [vmem:[%s1177 + $0xc9] sm:$0xff]
    %v1590 = vld [vmem:[%s1177 + $0xd9] sm:$0xff]
    %v1591 = vld [vmem:[%s1177 + $0xe1] sm:$0xff]
    %v1592 = vld [vmem:[%s1177 + $0xf1] sm:$0xff]
    %v1593 = vld [vmem:[%s1177 + $0xf9] sm:$0xff]
    %v1594 = vld [vmem:[%s1177 + $0x109] sm:$0xff]
    %v1595 = vld [vmem:[%s1177 + $0x111] sm:$0xff]
    %v1596 = vld [vmem:[%s1177 + $0x121] sm:$0xff]
    %v1597 = vld [vmem:[%s1177 + $0x129] sm:$0xff]
    %v1598 = vld [vmem:[%s1177 + $0x139] sm:$0xff]
    %v1599 = vld [vmem:[%s1177 + $0x141] sm:$0xff]
    %v1600 = vld [vmem:[%s1177 + $0x151] sm:$0xff]
    %v1601 = vld [vmem:[%s1177 + $0x159] sm:$0xff]
    %v1602 = vld [vmem:[%s1177 + $0x169] sm:$0xff]
    %v1603 = vld [vmem:[%s1177 + $0x171] sm:$0xff]
    %v1604 = vld [vmem:[%s1177 + $0x1b1] sm:$0xff]
    %v1605 = vld [vmem:[%s1177 + $0x1b9] sm:$0xff]
    %v1606 = vld [vmem:[%s1177 + $0x1c9] sm:$0xff]
    %v1607 = vld [vmem:[%s1177 + $0x1d1] sm:$0xff]
    %v1608 = vld [vmem:[%s1177 + $0x1e1] sm:$0xff]
    %v1609 = vld [vmem:[%s1177 + $0x1e9] sm:$0xff]
    %v1610 = vld [vmem:[%s1177 + $0x1f9] sm:$0xff]
    %v1611 = vld [vmem:[%s1177 + $0x201] sm:$0xff]
    %v1612 = vld [vmem:[%s1177 + $0x211] sm:$0xff]
    %v1613 = vld [vmem:[%s1177 + $0x219] sm:$0xff]
    %v1614 = vld [vmem:[%s1177 + $0x229] sm:$0xff]
    %v1615 = vld [vmem:[%s1177 + $0x231] sm:$0xff]
    %v1616 = vld [vmem:[%s1177 + $0x241] sm:$0xff]
    %v1617 = vld [vmem:[%s1177 + $0x249] sm:$0xff]
    %v1618 = vld [vmem:[%s1177 + $0x259] sm:$0xff]
    %v1619 = vld [vmem:[%s1177 + $0x261] sm:$0xff]
    %v1620 = vld [vmem:[%s1177 + $0x271] sm:$0xff]
    %v1621 = vld [vmem:[%s1177 + $0x279] sm:$0xff]
    %v1622 = vld [vmem:[%s1177 + $0x289] sm:$0xff]
    %v1623 = vld [vmem:[%s1177 + $0x291] sm:$0xff]
    %v1624 = vld [vmem:[%s1177 + $0x2a1] sm:$0xff]
    %v1625 = vld [vmem:[%s1177 + $0x2a9] sm:$0xff]
    %v1626 = vld [vmem:[%s1177 + $0x2b9] sm:$0xff]
    %v1627 = vld [vmem:[%s1177 + $0x2c1] sm:$0xff]
    %v1628 = vld [vmem:[%s1177 + $0x2d1] sm:$0xff]
    %v1629 = vld [vmem:[%s1177 + $0x2d9] sm:$0xff]
    %v1630 = vld [vmem:[%s1177 + $0x2e9] sm:$0xff]
    %v1631 = vld [vmem:[%s1177 + $0x2f1] sm:$0xff]
    %v1632 = vld [vmem:[%s1177 + $0x301] sm:$0xff]
    %v1633 = vld [vmem:[%s1177 + $0x309] sm:$0xff]
    %v1634 = vld [vmem:[%s1177 + $0x319] sm:$0xff]
    %v1635 = vld [vmem:[%s1177 + $0x321] sm:$0xff]
    %v1636 = vpack.c.bf16 %v1573, %v1572
    %v1637 = vpack.c.bf16 %v1575, %v1574
    %v1638 = vpack.c.bf16 %v1577, %v1576
    %v1639 = vpack.c.bf16 %v1579, %v1578
    %v1640 = vpack.c.bf16 %v1581, %v1580
    %v1641 = vpack.c.bf16 %v1583, %v1582
    %v1642 = vpack.c.bf16 %v1585, %v1584
    %v1643 = vpack.c.bf16 %v1587, %v1586
    %v1644 = vpack.c.bf16 %v1589, %v1588
    %v1645 = vpack.c.bf16 %v1591, %v1590
    %v1646 = vpack.c.bf16 %v1593, %v1592
    %v1647 = vpack.c.bf16 %v1595, %v1594
    %v1648 = vpack.c.bf16 %v1597, %v1596
    %v1649 = vpack.c.bf16 %v1599, %v1598
    %v1650 = vpack.c.bf16 %v1601, %v1600
    %v1651 = vpack.c.bf16 %v1603, %v1602
    %v1652 = vpack.c.bf16 %v1605, %v1604
    %v1653 = vpack.c.bf16 %v1607, %v1606
    %v1654 = vpack.c.bf16 %v1609, %v1608
    %v1655 = vpack.c.bf16 %v1611, %v1610
    %v1656 = vpack.c.bf16 %v1613, %v1612
    %v1657 = vpack.c.bf16 %v1615, %v1614
    %v1658 = vpack.c.bf16 %v1617, %v1616
    %v1659 = vpack.c.bf16 %v1619, %v1618
    %v1660 = vpack.c.bf16 %v1621, %v1620
    %v1661 = vpack.c.bf16 %v1623, %v1622
    %v1662 = vpack.c.bf16 %v1625, %v1624
    %v1663 = vpack.c.bf16 %v1627, %v1626
    %v1664 = vpack.c.bf16 %v1629, %v1628
    %v1665 = vpack.c.bf16 %v1631, %v1630
    %v1666 = vpack.c.bf16 %v1633, %v1632
    %v1667 = vpack.c.bf16 %v1635, %v1634
    %s1668 = scalar_lea.vmem %s1, 256
    %v1669 = vld [vmem:[%s1668] sm:$0xf]
    %v1670 = vld [vmem:[%s1668 + $0x4] sm:$0xf]
    %v1671 = vld [vmem:[%s1668 + $0x8] sm:$0xf]
    %v1672 = vld [vmem:[%s1668 + $0xc] sm:$0xf]
    %v1673 = vld [vmem:[%s1668 + $0x10] sm:$0xf]
    %v1674 = vld [vmem:[%s1668 + $0x14] sm:$0xf]
    %v1675 = vld [vmem:[%s1668 + $0x18] sm:$0xf]
    %v1676 = vld [vmem:[%s1668 + $0x1c] sm:$0xf]
    %v1677 = vld [vmem:[%s1668 + $0x20] sm:$0xf]
    %v1678 = vld [vmem:[%s1668 + $0x24] sm:$0xf]
    %v1679 = vld [vmem:[%s1668 + $0x28] sm:$0xf]
    %v1680 = vld [vmem:[%s1668 + $0x2c] sm:$0xf]
    %v1681 = vld [vmem:[%s1668 + $0x30] sm:$0xf]
    %v1682 = vld [vmem:[%s1668 + $0x34] sm:$0xf]
    %v1683 = vld [vmem:[%s1668 + $0x38] sm:$0xf]
    %v1684 = vld [vmem:[%s1668 + $0x3c] sm:$0xf]
    %v1701 = vunpack.c.l.b16 %v1669
    %v1702 = vunpack.c.l.b16 %v1670
    %v1703 = vunpack.c.l.b16 %v1671
    %v1704 = vunpack.c.l.b16 %v1672
    %v1705 = vunpack.c.l.b16 %v1673
    %v1706 = vunpack.c.l.b16 %v1674
    %v1707 = vunpack.c.l.b16 %v1675
    %v1708 = vunpack.c.l.b16 %v1676
    %v1709 = vunpack.c.l.b16 %v1677
    %v1710 = vunpack.c.l.b16 %v1678
    %v1711 = vunpack.c.l.b16 %v1679
    %v1712 = vunpack.c.l.b16 %v1680
    %v1713 = vunpack.c.l.b16 %v1681
    %v1714 = vunpack.c.l.b16 %v1682
    %v1715 = vunpack.c.l.b16 %v1683
    %v1716 = vunpack.c.l.b16 %v1684
    %v1717 = vpack.c.b16 %v1702, %v1701
    %v1718 = vpack.c.b16 %v1704, %v1703
    %v1719 = vpack.c.b16 %v1706, %v1705
    %v1720 = vpack.c.b16 %v1708, %v1707
    %v1721 = vpack.c.b16 %v1710, %v1709
    %v1722 = vpack.c.b16 %v1712, %v1711
    %v1723 = vpack.c.b16 %v1714, %v1713
    %v1724 = vpack.c.b16 %v1716, %v1715
    %1733 = vmatpush.bf16.msra.mxu0 %v1724
    %1734 = vmatpush.bf16.msra.mxu0 %v1723
    %1735 = vmatpush.bf16.msra.mxu0 %v1722
    %1736 = vmatpush.bf16.msra.mxu0 %v1721
    %1737 = vmatpush.bf16.msra.mxu0 %v1720
    %1738 = vmatpush.bf16.msra.mxu0 %v1719
    %1739 = vmatpush.bf16.msra.mxu0 %v1718
    %1740 = vmatpush.bf16.msra.mxu0 %v1717
    %1741 = vmatmul.bf16.gmra.mxu0 %v1636
    %v1742 = vpop.f32.mrf.mxu0
    %v1743 = vadd.f32 0.0, %v1742
    %v1744 = vpop.f32.mrf.mxu0
    %v1745 = vadd.f32 0.0, %v1744
    %1746 = vmatmul.bf16.gmra.mxu0 %v1637
    %v1747 = vpop.f32.mrf.mxu0
    %v1748 = vadd.f32 0.0, %v1747
    %v1749 = vpop.f32.mrf.mxu0
    %v1750 = vadd.f32 0.0, %v1749
    %1751 = vmatmul.bf16.gmra.mxu0 %v1638
    %v1752 = vpop.f32.mrf.mxu0
    %v1753 = vadd.f32 0.0, %v1752
    %v1754 = vpop.f32.mrf.mxu0
    %v1755 = vadd.f32 0.0, %v1754
    %1756 = vmatmul.bf16.gmra.mxu0 %v1639
    %v1757 = vpop.f32.mrf.mxu0
    %v1758 = vadd.f32 0.0, %v1757
    %v1759 = vpop.f32.mrf.mxu0
    %v1760 = vadd.f32 0.0, %v1759
    %1761 = vmatmul.bf16.gmra.mxu0 %v1640
    %v1762 = vpop.f32.mrf.mxu0
    %v1763 = vadd.f32 0.0, %v1762
    %v1764 = vpop.f32.mrf.mxu0
    %v1765 = vadd.f32 0.0, %v1764
    %1766 = vmatmul.bf16.gmra.mxu0 %v1641
    %v1767 = vpop.f32.mrf.mxu0
    %v1768 = vadd.f32 0.0, %v1767
    %v1769 = vpop.f32.mrf.mxu0
    %v1770 = vadd.f32 0.0, %v1769
    %1771 = vmatmul.bf16.gmra.mxu0 %v1642
    %v1772 = vpop.f32.mrf.mxu0
    %v1773 = vadd.f32 0.0, %v1772
    %v1774 = vpop.f32.mrf.mxu0
    %v1775 = vadd.f32 0.0, %v1774
    %1776 = vmatmul.bf16.gmra.mxu0 %v1643
    %v1777 = vpop.f32.mrf.mxu0
    %v1778 = vadd.f32 0.0, %v1777
    %v1779 = vpop.f32.mrf.mxu0
    %v1780 = vadd.f32 0.0, %v1779
    %1781 = vmatmul.bf16.gmra.mxu0 %v1644
    %v1782 = vpop.f32.mrf.mxu0
    %v1783 = vadd.f32 0.0, %v1782
    %v1784 = vpop.f32.mrf.mxu0
    %v1785 = vadd.f32 0.0, %v1784
    %1786 = vmatmul.bf16.gmra.mxu0 %v1645
    %v1787 = vpop.f32.mrf.mxu0
    %v1788 = vadd.f32 0.0, %v1787
    %v1789 = vpop.f32.mrf.mxu0
    %v1790 = vadd.f32 0.0, %v1789
    %1791 = vmatmul.bf16.gmra.mxu0 %v1646
    %v1792 = vpop.f32.mrf.mxu0
    %v1793 = vadd.f32 0.0, %v1792
    %v1794 = vpop.f32.mrf.mxu0
    %v1795 = vadd.f32 0.0, %v1794
    %1796 = vmatmul.bf16.gmra.mxu0 %v1647
    %v1797 = vpop.f32.mrf.mxu0
    %v1798 = vadd.f32 0.0, %v1797
    %v1799 = vpop.f32.mrf.mxu0
    %v1800 = vadd.f32 0.0, %v1799
    %1801 = vmatmul.bf16.gmra.mxu0 %v1648
    %v1802 = vpop.f32.mrf.mxu0
    %v1803 = vadd.f32 0.0, %v1802
    %v1804 = vpop.f32.mrf.mxu0
    %v1805 = vadd.f32 0.0, %v1804
    %1806 = vmatmul.bf16.gmra.mxu0 %v1649
    %v1807 = vpop.f32.mrf.mxu0
    %v1808 = vadd.f32 0.0, %v1807
    %v1809 = vpop.f32.mrf.mxu0
    %v1810 = vadd.f32 0.0, %v1809
    %1811 = vmatmul.bf16.gmra.mxu0 %v1650
    %v1812 = vpop.f32.mrf.mxu0
    %v1813 = vadd.f32 0.0, %v1812
    %v1814 = vpop.f32.mrf.mxu0
    %v1815 = vadd.f32 0.0, %v1814
    %1816 = vmatmul.bf16.gmra.mxu0 %v1651
    %v1817 = vpop.f32.mrf.mxu0
    %v1818 = vadd.f32 0.0, %v1817
    %v1819 = vpop.f32.mrf.mxu0
    %v1820 = vadd.f32 0.0, %v1819
    %1821 = vmatmul.bf16.gmra.mxu0 %v1652
    %v1822 = vpop.f32.mrf.mxu0
    %v1823 = vadd.f32 0.0, %v1822
    %v1824 = vpop.f32.mrf.mxu0
    %v1825 = vadd.f32 0.0, %v1824
    %1826 = vmatmul.bf16.gmra.mxu0 %v1653
    %v1827 = vpop.f32.mrf.mxu0
    %v1828 = vadd.f32 0.0, %v1827
    %v1829 = vpop.f32.mrf.mxu0
    %v1830 = vadd.f32 0.0, %v1829
    %1831 = vmatmul.bf16.gmra.mxu0 %v1654
    %v1832 = vpop.f32.mrf.mxu0
    %v1833 = vadd.f32 0.0, %v1832
    %v1834 = vpop.f32.mrf.mxu0
    %v1835 = vadd.f32 0.0, %v1834
    %1836 = vmatmul.bf16.gmra.mxu0 %v1655
    %v1837 = vpop.f32.mrf.mxu0
    %v1838 = vadd.f32 0.0, %v1837
    %v1839 = vpop.f32.mrf.mxu0
    %v1840 = vadd.f32 0.0, %v1839
    %1841 = vmatmul.bf16.gmra.mxu0 %v1656
    %v1842 = vpop.f32.mrf.mxu0
    %v1843 = vadd.f32 0.0, %v1842
    %v1844 = vpop.f32.mrf.mxu0
    %v1845 = vadd.f32 0.0, %v1844
    %1846 = vmatmul.bf16.gmra.mxu0 %v1657
    %v1847 = vpop.f32.mrf.mxu0
    %v1848 = vadd.f32 0.0, %v1847
    %v1849 = vpop.f32.mrf.mxu0
    %v1850 = vadd.f32 0.0, %v1849
    %1851 = vmatmul.bf16.gmra.mxu0 %v1658
    %v1852 = vpop.f32.mrf.mxu0
    %v1853 = vadd.f32 0.0, %v1852
    %v1854 = vpop.f32.mrf.mxu0
    %v1855 = vadd.f32 0.0, %v1854
    %1856 = vmatmul.bf16.gmra.mxu0 %v1659
    %v1857 = vpop.f32.mrf.mxu0
    %v1858 = vadd.f32 0.0, %v1857
    %v1859 = vpop.f32.mrf.mxu0
    %v1860 = vadd.f32 0.0, %v1859
    %1861 = vmatmul.bf16.gmra.mxu0 %v1660
    %v1862 = vpop.f32.mrf.mxu0
    %v1863 = vadd.f32 0.0, %v1862
    %v1864 = vpop.f32.mrf.mxu0
    %v1865 = vadd.f32 0.0, %v1864
    %1866 = vmatmul.bf16.gmra.mxu0 %v1661
    %v1867 = vpop.f32.mrf.mxu0
    %v1868 = vadd.f32 0.0, %v1867
    %v1869 = vpop.f32.mrf.mxu0
    %v1870 = vadd.f32 0.0, %v1869
    %1871 = vmatmul.bf16.gmra.mxu0 %v1662
    %v1872 = vpop.f32.mrf.mxu0
    %v1873 = vadd.f32 0.0, %v1872
    %v1874 = vpop.f32.mrf.mxu0
    %v1875 = vadd.f32 0.0, %v1874
    %1876 = vmatmul.bf16.gmra.mxu0 %v1663
    %v1877 = vpop.f32.mrf.mxu0
    %v1878 = vadd.f32 0.0, %v1877
    %v1879 = vpop.f32.mrf.mxu0
    %v1880 = vadd.f32 0.0, %v1879
    %1881 = vmatmul.bf16.gmra.mxu0 %v1664
    %v1882 = vpop.f32.mrf.mxu0
    %v1883 = vadd.f32 0.0, %v1882
    %v1884 = vpop.f32.mrf.mxu0
    %v1885 = vadd.f32 0.0, %v1884
    %1886 = vmatmul.bf16.gmra.mxu0 %v1665
    %v1887 = vpop.f32.mrf.mxu0
    %v1888 = vadd.f32 0.0, %v1887
    %v1889 = vpop.f32.mrf.mxu0
    %v1890 = vadd.f32 0.0, %v1889
    %1891 = vmatmul.bf16.gmra.mxu0 %v1666
    %v1892 = vpop.f32.mrf.mxu0
    %v1893 = vadd.f32 0.0, %v1892
    %v1894 = vpop.f32.mrf.mxu0
    %v1895 = vadd.f32 0.0, %v1894
    %1896 = vmatmul.bf16.gmra.mxu0 %v1667
    %v1897 = vpop.f32.mrf.mxu0
    %v1898 = vadd.f32 0.0, %v1897
    %v1899 = vpop.f32.mrf.mxu0
    %v1900 = vadd.f32 0.0, %v1899
    %1901 = vdwg.mxu0
    %v1902 = vadd.f32 %v1508, %v1743
    %v1903 = vadd.f32 %v1509, %v1745
    %v1904 = vadd.f32 %v1510, %v1748
    %v1905 = vadd.f32 %v1511, %v1750
    %v1906 = vadd.f32 %v1512, %v1753
    %v1907 = vadd.f32 %v1513, %v1755
    %v1908 = vadd.f32 %v1514, %v1758
    %v1909 = vadd.f32 %v1515, %v1760
    %v1910 = vadd.f32 %v1516, %v1763
    %v1911 = vadd.f32 %v1517, %v1765
    %v1912 = vadd.f32 %v1518, %v1768
    %v1913 = vadd.f32 %v1519, %v1770
    %v1914 = vadd.f32 %v1520, %v1773
    %v1915 = vadd.f32 %v1521, %v1775
    %v1916 = vadd.f32 %v1522, %v1778
    %v1917 = vadd.f32 %v1523, %v1780
    %v1918 = vadd.f32 %v1524, %v1783
    %v1919 = vadd.f32 %v1525, %v1785
    %v1920 = vadd.f32 %v1526, %v1788
    %v1921 = vadd.f32 %v1527, %v1790
    %v1922 = vadd.f32 %v1528, %v1793
    %v1923 = vadd.f32 %v1529, %v1795
    %v1924 = vadd.f32 %v1530, %v1798
    %v1925 = vadd.f32 %v1531, %v1800
    %v1926 = vadd.f32 %v1532, %v1803
    %v1927 = vadd.f32 %v1533, %v1805
    %v1928 = vadd.f32 %v1534, %v1808
    %v1929 = vadd.f32 %v1535, %v1810
    %v1930 = vadd.f32 %v1536, %v1813
    %v1931 = vadd.f32 %v1537, %v1815
    %v1932 = vadd.f32 %v1538, %v1818
    %v1933 = vadd.f32 %v1539, %v1820
    %v1934 = vadd.f32 %v1540, %v1823
    %v1935 = vadd.f32 %v1541, %v1825
    %v1936 = vadd.f32 %v1542, %v1828
    %v1937 = vadd.f32 %v1543, %v1830
    %v1938 = vadd.f32 %v1544, %v1833
    %v1939 = vadd.f32 %v1545, %v1835
    %v1940 = vadd.f32 %v1546, %v1838
    %v1941 = vadd.f32 %v1547, %v1840
    %v1942 = vadd.f32 %v1548, %v1843
    %v1943 = vadd.f32 %v1549, %v1845
    %v1944 = vadd.f32 %v1550, %v1848
    %v1945 = vadd.f32 %v1551, %v1850
    %v1946 = vadd.f32 %v1552, %v1853
    %v1947 = vadd.f32 %v1553, %v1855
    %v1948 = vadd.f32 %v1554, %v1858
    %v1949 = vadd.f32 %v1555, %v1860
    %v1950 = vadd.f32 %v1556, %v1863
    %v1951 = vadd.f32 %v1557, %v1865
    %v1952 = vadd.f32 %v1558, %v1868
    %v1953 = vadd.f32 %v1559, %v1870
    %v1954 = vadd.f32 %v1560, %v1873
    %v1955 = vadd.f32 %v1561, %v1875
    %v1956 = vadd.f32 %v1562, %v1878
    %v1957 = vadd.f32 %v1563, %v1880
    %v1958 = vadd.f32 %v1564, %v1883
    %v1959 = vadd.f32 %v1565, %v1885
    %v1960 = vadd.f32 %v1566, %v1888
    %v1961 = vadd.f32 %v1567, %v1890
    %v1962 = vadd.f32 %v1568, %v1893
    %v1963 = vadd.f32 %v1569, %v1895
    %v1964 = vadd.f32 %v1570, %v1898
    %v1965 = vadd.f32 %v1571, %v1900
    %v1966 = vld [vmem:[%s1177 + $0x2] sm:$0xff]
    %v1967 = vld [vmem:[%s1177 + $0xa] sm:$0xff]
    %v1968 = vld [vmem:[%s1177 + $0x1a] sm:$0xff]
    %v1969 = vld [vmem:[%s1177 + $0x22] sm:$0xff]
    %v1970 = vld [vmem:[%s1177 + $0x32] sm:$0xff]
    %v1971 = vld [vmem:[%s1177 + $0x3a] sm:$0xff]
    %v1972 = vld [vmem:[%s1177 + $0x4a] sm:$0xff]
    %v1973 = vld [vmem:[%s1177 + $0x52] sm:$0xff]
    %v1974 = vld [vmem:[%s1177 + $0x62] sm:$0xff]
    %v1975 = vld [vmem:[%s1177 + $0x6a] sm:$0xff]
    %v1976 = vld [vmem:[%s1177 + $0x7a] sm:$0xff]
    %v1977 = vld [vmem:[%s1177 + $0x82] sm:$0xff]
    %v1978 = vld [vmem:[%s1177 + $0x92] sm:$0xff]
    %v1979 = vld [vmem:[%s1177 + $0x9a] sm:$0xff]
    %v1980 = vld [vmem:[%s1177 + $0xaa] sm:$0xff]
    %v1981 = vld [vmem:[%s1177 + $0xb2] sm:$0xff]
    %v1982 = vld [vmem:[%s1177 + $0xc2] sm:$0xff]
    %v1983 = vld [vmem:[%s1177 + $0xca] sm:$0xff]
    %v1984 = vld [vmem:[%s1177 + $0xda] sm:$0xff]
    %v1985 = vld [vmem:[%s1177 + $0xe2] sm:$0xff]
    %v1986 = vld [vmem:[%s1177 + $0xf2] sm:$0xff]
    %v1987 = vld [vmem:[%s1177 + $0xfa] sm:$0xff]
    %v1988 = vld [vmem:[%s1177 + $0x10a] sm:$0xff]
    %v1989 = vld [vmem:[%s1177 + $0x112] sm:$0xff]
    %v1990 = vld [vmem:[%s1177 + $0x122] sm:$0xff]
    %v1991 = vld [vmem:[%s1177 + $0x12a] sm:$0xff]
    %v1992 = vld [vmem:[%s1177 + $0x13a] sm:$0xff]
    %v1993 = vld [vmem:[%s1177 + $0x142] sm:$0xff]
    %v1994 = vld [vmem:[%s1177 + $0x152] sm:$0xff]
    %v1995 = vld [vmem:[%s1177 + $0x15a] sm:$0xff]
    %v1996 = vld [vmem:[%s1177 + $0x16a] sm:$0xff]
    %v1997 = vld [vmem:[%s1177 + $0x172] sm:$0xff]
    %v1998 = vld [vmem:[%s1177 + $0x1b2] sm:$0xff]
    %v1999 = vld [vmem:[%s1177 + $0x1ba] sm:$0xff]
    %v2000 = vld [vmem:[%s1177 + $0x1ca] sm:$0xff]
    %v2001 = vld [vmem:[%s1177 + $0x1d2] sm:$0xff]
    %v2002 = vld [vmem:[%s1177 + $0x1e2] sm:$0xff]
    %v2003 = vld [vmem:[%s1177 + $0x1ea] sm:$0xff]
    %v2004 = vld [vmem:[%s1177 + $0x1fa] sm:$0xff]
    %v2005 = vld [vmem:[%s1177 + $0x202] sm:$0xff]
    %v2006 = vld [vmem:[%s1177 + $0x212] sm:$0xff]
    %v2007 = vld [vmem:[%s1177 + $0x21a] sm:$0xff]
    %v2008 = vld [vmem:[%s1177 + $0x22a] sm:$0xff]
    %v2009 = vld [vmem:[%s1177 + $0x232] sm:$0xff]
    %v2010 = vld [vmem:[%s1177 + $0x242] sm:$0xff]
    %v2011 = vld [vmem:[%s1177 + $0x24a] sm:$0xff]
    %v2012 = vld [vmem:[%s1177 + $0x25a] sm:$0xff]
    %v2013 = vld [vmem:[%s1177 + $0x262] sm:$0xff]
    %v2014 = vld [vmem:[%s1177 + $0x272] sm:$0xff]
    %v2015 = vld [vmem:[%s1177 + $0x27a] sm:$0xff]
    %v2016 = vld [vmem:[%s1177 + $0x28a] sm:$0xff]
    %v2017 = vld [vmem:[%s1177 + $0x292] sm:$0xff]
    %v2018 = vld [vmem:[%s1177 + $0x2a2] sm:$0xff]
    %v2019 = vld [vmem:[%s1177 + $0x2aa] sm:$0xff]
    %v2020 = vld [vmem:[%s1177 + $0x2ba] sm:$0xff]
    %v2021 = vld [vmem:[%s1177 + $0x2c2] sm:$0xff]
    %v2022 = vld [vmem:[%s1177 + $0x2d2] sm:$0xff]
    %v2023 = vld [vmem:[%s1177 + $0x2da] sm:$0xff]
    %v2024 = vld [vmem:[%s1177 + $0x2ea] sm:$0xff]
    %v2025 = vld [vmem:[%s1177 + $0x2f2] sm:$0xff]
    %v2026 = vld [vmem:[%s1177 + $0x302] sm:$0xff]
    %v2027 = vld [vmem:[%s1177 + $0x30a] sm:$0xff]
    %v2028 = vld [vmem:[%s1177 + $0x31a] sm:$0xff]
    %v2029 = vld [vmem:[%s1177 + $0x322] sm:$0xff]
    %v2030 = vpack.c.bf16 %v1967, %v1966
    %v2031 = vpack.c.bf16 %v1969, %v1968
    %v2032 = vpack.c.bf16 %v1971, %v1970
    %v2033 = vpack.c.bf16 %v1973, %v1972
    %v2034 = vpack.c.bf16 %v1975, %v1974
    %v2035 = vpack.c.bf16 %v1977, %v1976
    %v2036 = vpack.c.bf16 %v1979, %v1978
    %v2037 = vpack.c.bf16 %v1981, %v1980
    %v2038 = vpack.c.bf16 %v1983, %v1982
    %v2039 = vpack.c.bf16 %v1985, %v1984
    %v2040 = vpack.c.bf16 %v1987, %v1986
    %v2041 = vpack.c.bf16 %v1989, %v1988
    %v2042 = vpack.c.bf16 %v1991, %v1990
    %v2043 = vpack.c.bf16 %v1993, %v1992
    %v2044 = vpack.c.bf16 %v1995, %v1994
    %v2045 = vpack.c.bf16 %v1997, %v1996
    %v2046 = vpack.c.bf16 %v1999, %v1998
    %v2047 = vpack.c.bf16 %v2001, %v2000
    %v2048 = vpack.c.bf16 %v2003, %v2002
    %v2049 = vpack.c.bf16 %v2005, %v2004
    %v2050 = vpack.c.bf16 %v2007, %v2006
    %v2051 = vpack.c.bf16 %v2009, %v2008
    %v2052 = vpack.c.bf16 %v2011, %v2010
    %v2053 = vpack.c.bf16 %v2013, %v2012
    %v2054 = vpack.c.bf16 %v2015, %v2014
    %v2055 = vpack.c.bf16 %v2017, %v2016
    %v2056 = vpack.c.bf16 %v2019, %v2018
    %v2057 = vpack.c.bf16 %v2021, %v2020
    %v2058 = vpack.c.bf16 %v2023, %v2022
    %v2059 = vpack.c.bf16 %v2025, %v2024
    %v2060 = vpack.c.bf16 %v2027, %v2026
    %v2061 = vpack.c.bf16 %v2029, %v2028
    %s2062 = scalar_lea.vmem %s1, 320
    %v2063 = vld [vmem:[%s2062] sm:$0xf]
    %v2064 = vld [vmem:[%s2062 + $0x4] sm:$0xf]
    %v2065 = vld [vmem:[%s2062 + $0x8] sm:$0xf]
    %v2066 = vld [vmem:[%s2062 + $0xc] sm:$0xf]
    %v2067 = vld [vmem:[%s2062 + $0x10] sm:$0xf]
    %v2068 = vld [vmem:[%s2062 + $0x14] sm:$0xf]
    %v2069 = vld [vmem:[%s2062 + $0x18] sm:$0xf]
    %v2070 = vld [vmem:[%s2062 + $0x1c] sm:$0xf]
    %v2071 = vld [vmem:[%s2062 + $0x20] sm:$0xf]
    %v2072 = vld [vmem:[%s2062 + $0x24] sm:$0xf]
    %v2073 = vld [vmem:[%s2062 + $0x28] sm:$0xf]
    %v2074 = vld [vmem:[%s2062 + $0x2c] sm:$0xf]
    %v2075 = vld [vmem:[%s2062 + $0x30] sm:$0xf]
    %v2076 = vld [vmem:[%s2062 + $0x34] sm:$0xf]
    %v2077 = vld [vmem:[%s2062 + $0x38] sm:$0xf]
    %v2078 = vld [vmem:[%s2062 + $0x3c] sm:$0xf]
    %v2095 = vunpack.c.l.b16 %v2063
    %v2096 = vunpack.c.l.b16 %v2064
    %v2097 = vunpack.c.l.b16 %v2065
    %v2098 = vunpack.c.l.b16 %v2066
    %v2099 = vunpack.c.l.b16 %v2067
    %v2100 = vunpack.c.l.b16 %v2068
    %v2101 = vunpack.c.l.b16 %v2069
    %v2102 = vunpack.c.l.b16 %v2070
    %v2103 = vunpack.c.l.b16 %v2071
    %v2104 = vunpack.c.l.b16 %v2072
    %v2105 = vunpack.c.l.b16 %v2073
    %v2106 = vunpack.c.l.b16 %v2074
    %v2107 = vunpack.c.l.b16 %v2075
    %v2108 = vunpack.c.l.b16 %v2076
    %v2109 = vunpack.c.l.b16 %v2077
    %v2110 = vunpack.c.l.b16 %v2078
    %v2111 = vpack.c.b16 %v2096, %v2095
    %v2112 = vpack.c.b16 %v2098, %v2097
    %v2113 = vpack.c.b16 %v2100, %v2099
    %v2114 = vpack.c.b16 %v2102, %v2101
    %v2115 = vpack.c.b16 %v2104, %v2103
    %v2116 = vpack.c.b16 %v2106, %v2105
    %v2117 = vpack.c.b16 %v2108, %v2107
    %v2118 = vpack.c.b16 %v2110, %v2109
    %2127 = vmatpush.bf16.msra.mxu0 %v2118
    %2128 = vmatpush.bf16.msra.mxu0 %v2117
    %2129 = vmatpush.bf16.msra.mxu0 %v2116
    %2130 = vmatpush.bf16.msra.mxu0 %v2115
    %2131 = vmatpush.bf16.msra.mxu0 %v2114
    %2132 = vmatpush.bf16.msra.mxu0 %v2113
    %2133 = vmatpush.bf16.msra.mxu0 %v2112
    %2134 = vmatpush.bf16.msra.mxu0 %v2111
    %2135 = vmatmul.bf16.gmra.mxu0 %v2030
    %v2136 = vpop.f32.mrf.mxu0
    %v2137 = vadd.f32 0.0, %v2136
    %v2138 = vpop.f32.mrf.mxu0
    %v2139 = vadd.f32 0.0, %v2138
    %2140 = vmatmul.bf16.gmra.mxu0 %v2031
    %v2141 = vpop.f32.mrf.mxu0
    %v2142 = vadd.f32 0.0, %v2141
    %v2143 = vpop.f32.mrf.mxu0
    %v2144 = vadd.f32 0.0, %v2143
    %2145 = vmatmul.bf16.gmra.mxu0 %v2032
    %v2146 = vpop.f32.mrf.mxu0
    %v2147 = vadd.f32 0.0, %v2146
    %v2148 = vpop.f32.mrf.mxu0
    %v2149 = vadd.f32 0.0, %v2148
    %2150 = vmatmul.bf16.gmra.mxu0 %v2033
    %v2151 = vpop.f32.mrf.mxu0
    %v2152 = vadd.f32 0.0, %v2151
    %v2153 = vpop.f32.mrf.mxu0
    %v2154 = vadd.f32 0.0, %v2153
    %2155 = vmatmul.bf16.gmra.mxu0 %v2034
    %v2156 = vpop.f32.mrf.mxu0
    %v2157 = vadd.f32 0.0, %v2156
    %v2158 = vpop.f32.mrf.mxu0
    %v2159 = vadd.f32 0.0, %v2158
    %2160 = vmatmul.bf16.gmra.mxu0 %v2035
    %v2161 = vpop.f32.mrf.mxu0
    %v2162 = vadd.f32 0.0, %v2161
    %v2163 = vpop.f32.mrf.mxu0
    %v2164 = vadd.f32 0.0, %v2163
    %2165 = vmatmul.bf16.gmra.mxu0 %v2036
    %v2166 = vpop.f32.mrf.mxu0
    %v2167 = vadd.f32 0.0, %v2166
    %v2168 = vpop.f32.mrf.mxu0
    %v2169 = vadd.f32 0.0, %v2168
    %2170 = vmatmul.bf16.gmra.mxu0 %v2037
    %v2171 = vpop.f32.mrf.mxu0
    %v2172 = vadd.f32 0.0, %v2171
    %v2173 = vpop.f32.mrf.mxu0
    %v2174 = vadd.f32 0.0, %v2173
    %2175 = vmatmul.bf16.gmra.mxu0 %v2038
    %v2176 = vpop.f32.mrf.mxu0
    %v2177 = vadd.f32 0.0, %v2176
    %v2178 = vpop.f32.mrf.mxu0
    %v2179 = vadd.f32 0.0, %v2178
    %2180 = vmatmul.bf16.gmra.mxu0 %v2039
    %v2181 = vpop.f32.mrf.mxu0
    %v2182 = vadd.f32 0.0, %v2181
    %v2183 = vpop.f32.mrf.mxu0
    %v2184 = vadd.f32 0.0, %v2183
    %2185 = vmatmul.bf16.gmra.mxu0 %v2040
    %v2186 = vpop.f32.mrf.mxu0
    %v2187 = vadd.f32 0.0, %v2186
    %v2188 = vpop.f32.mrf.mxu0
    %v2189 = vadd.f32 0.0, %v2188
    %2190 = vmatmul.bf16.gmra.mxu0 %v2041
    %v2191 = vpop.f32.mrf.mxu0
    %v2192 = vadd.f32 0.0, %v2191
    %v2193 = vpop.f32.mrf.mxu0
    %v2194 = vadd.f32 0.0, %v2193
    %2195 = vmatmul.bf16.gmra.mxu0 %v2042
    %v2196 = vpop.f32.mrf.mxu0
    %v2197 = vadd.f32 0.0, %v2196
    %v2198 = vpop.f32.mrf.mxu0
    %v2199 = vadd.f32 0.0, %v2198
    %2200 = vmatmul.bf16.gmra.mxu0 %v2043
    %v2201 = vpop.f32.mrf.mxu0
    %v2202 = vadd.f32 0.0, %v2201
    %v2203 = vpop.f32.mrf.mxu0
    %v2204 = vadd.f32 0.0, %v2203
    %2205 = vmatmul.bf16.gmra.mxu0 %v2044
    %v2206 = vpop.f32.mrf.mxu0
    %v2207 = vadd.f32 0.0, %v2206
    %v2208 = vpop.f32.mrf.mxu0
    %v2209 = vadd.f32 0.0, %v2208
    %2210 = vmatmul.bf16.gmra.mxu0 %v2045
    %v2211 = vpop.f32.mrf.mxu0
    %v2212 = vadd.f32 0.0, %v2211
    %v2213 = vpop.f32.mrf.mxu0
    %v2214 = vadd.f32 0.0, %v2213
    %2215 = vmatmul.bf16.gmra.mxu0 %v2046
    %v2216 = vpop.f32.mrf.mxu0
    %v2217 = vadd.f32 0.0, %v2216
    %v2218 = vpop.f32.mrf.mxu0
    %v2219 = vadd.f32 0.0, %v2218
    %2220 = vmatmul.bf16.gmra.mxu0 %v2047
    %v2221 = vpop.f32.mrf.mxu0
    %v2222 = vadd.f32 0.0, %v2221
    %v2223 = vpop.f32.mrf.mxu0
    %v2224 = vadd.f32 0.0, %v2223
    %2225 = vmatmul.bf16.gmra.mxu0 %v2048
    %v2226 = vpop.f32.mrf.mxu0
    %v2227 = vadd.f32 0.0, %v2226
    %v2228 = vpop.f32.mrf.mxu0
    %v2229 = vadd.f32 0.0, %v2228
    %2230 = vmatmul.bf16.gmra.mxu0 %v2049
    %v2231 = vpop.f32.mrf.mxu0
    %v2232 = vadd.f32 0.0, %v2231
    %v2233 = vpop.f32.mrf.mxu0
    %v2234 = vadd.f32 0.0, %v2233
    %2235 = vmatmul.bf16.gmra.mxu0 %v2050
    %v2236 = vpop.f32.mrf.mxu0
    %v2237 = vadd.f32 0.0, %v2236
    %v2238 = vpop.f32.mrf.mxu0
    %v2239 = vadd.f32 0.0, %v2238
    %2240 = vmatmul.bf16.gmra.mxu0 %v2051
    %v2241 = vpop.f32.mrf.mxu0
    %v2242 = vadd.f32 0.0, %v2241
    %v2243 = vpop.f32.mrf.mxu0
    %v2244 = vadd.f32 0.0, %v2243
    %2245 = vmatmul.bf16.gmra.mxu0 %v2052
    %v2246 = vpop.f32.mrf.mxu0
    %v2247 = vadd.f32 0.0, %v2246
    %v2248 = vpop.f32.mrf.mxu0
    %v2249 = vadd.f32 0.0, %v2248
    %2250 = vmatmul.bf16.gmra.mxu0 %v2053
    %v2251 = vpop.f32.mrf.mxu0
    %v2252 = vadd.f32 0.0, %v2251
    %v2253 = vpop.f32.mrf.mxu0
    %v2254 = vadd.f32 0.0, %v2253
    %2255 = vmatmul.bf16.gmra.mxu0 %v2054
    %v2256 = vpop.f32.mrf.mxu0
    %v2257 = vadd.f32 0.0, %v2256
    %v2258 = vpop.f32.mrf.mxu0
    %v2259 = vadd.f32 0.0, %v2258
    %2260 = vmatmul.bf16.gmra.mxu0 %v2055
    %v2261 = vpop.f32.mrf.mxu0
    %v2262 = vadd.f32 0.0, %v2261
    %v2263 = vpop.f32.mrf.mxu0
    %v2264 = vadd.f32 0.0, %v2263
    %2265 = vmatmul.bf16.gmra.mxu0 %v2056
    %v2266 = vpop.f32.mrf.mxu0
    %v2267 = vadd.f32 0.0, %v2266
    %v2268 = vpop.f32.mrf.mxu0
    %v2269 = vadd.f32 0.0, %v2268
    %2270 = vmatmul.bf16.gmra.mxu0 %v2057
    %v2271 = vpop.f32.mrf.mxu0
    %v2272 = vadd.f32 0.0, %v2271
    %v2273 = vpop.f32.mrf.mxu0
    %v2274 = vadd.f32 0.0, %v2273
    %2275 = vmatmul.bf16.gmra.mxu0 %v2058
    %v2276 = vpop.f32.mrf.mxu0
    %v2277 = vadd.f32 0.0, %v2276
    %v2278 = vpop.f32.mrf.mxu0
    %v2279 = vadd.f32 0.0, %v2278
    %2280 = vmatmul.bf16.gmra.mxu0 %v2059
    %v2281 = vpop.f32.mrf.mxu0
    %v2282 = vadd.f32 0.0, %v2281
    %v2283 = vpop.f32.mrf.mxu0
    %v2284 = vadd.f32 0.0, %v2283
    %2285 = vmatmul.bf16.gmra.mxu0 %v2060
    %v2286 = vpop.f32.mrf.mxu0
    %v2287 = vadd.f32 0.0, %v2286
    %v2288 = vpop.f32.mrf.mxu0
    %v2289 = vadd.f32 0.0, %v2288
    %2290 = vmatmul.bf16.gmra.mxu0 %v2061
    %v2291 = vpop.f32.mrf.mxu0
    %v2292 = vadd.f32 0.0, %v2291
    %v2293 = vpop.f32.mrf.mxu0
    %v2294 = vadd.f32 0.0, %v2293
    %2295 = vdwg.mxu0
    %v2296 = vadd.f32 %v1902, %v2137
    %v2297 = vadd.f32 %v1903, %v2139
    %v2298 = vadd.f32 %v1904, %v2142
    %v2299 = vadd.f32 %v1905, %v2144
    %v2300 = vadd.f32 %v1906, %v2147
    %v2301 = vadd.f32 %v1907, %v2149
    %v2302 = vadd.f32 %v1908, %v2152
    %v2303 = vadd.f32 %v1909, %v2154
    %v2304 = vadd.f32 %v1910, %v2157
    %v2305 = vadd.f32 %v1911, %v2159
    %v2306 = vadd.f32 %v1912, %v2162
    %v2307 = vadd.f32 %v1913, %v2164
    %v2308 = vadd.f32 %v1914, %v2167
    %v2309 = vadd.f32 %v1915, %v2169
    %v2310 = vadd.f32 %v1916, %v2172
    %v2311 = vadd.f32 %v1917, %v2174
    %v2312 = vadd.f32 %v1918, %v2177
    %v2313 = vadd.f32 %v1919, %v2179
    %v2314 = vadd.f32 %v1920, %v2182
    %v2315 = vadd.f32 %v1921, %v2184
    %v2316 = vadd.f32 %v1922, %v2187
    %v2317 = vadd.f32 %v1923, %v2189
    %v2318 = vadd.f32 %v1924, %v2192
    %v2319 = vadd.f32 %v1925, %v2194
    %v2320 = vadd.f32 %v1926, %v2197
    %v2321 = vadd.f32 %v1927, %v2199
    %v2322 = vadd.f32 %v1928, %v2202
    %v2323 = vadd.f32 %v1929, %v2204
    %v2324 = vadd.f32 %v1930, %v2207
    %v2325 = vadd.f32 %v1931, %v2209
    %v2326 = vadd.f32 %v1932, %v2212
    %v2327 = vadd.f32 %v1933, %v2214
    %v2328 = vadd.f32 %v1934, %v2217
    %v2329 = vadd.f32 %v1935, %v2219
    %v2330 = vadd.f32 %v1936, %v2222
    %v2331 = vadd.f32 %v1937, %v2224
    %v2332 = vadd.f32 %v1938, %v2227
    %v2333 = vadd.f32 %v1939, %v2229
    %v2334 = vadd.f32 %v1940, %v2232
    %v2335 = vadd.f32 %v1941, %v2234
    %v2336 = vadd.f32 %v1942, %v2237
    %v2337 = vadd.f32 %v1943, %v2239
    %v2338 = vadd.f32 %v1944, %v2242
    %v2339 = vadd.f32 %v1945, %v2244
    %v2340 = vadd.f32 %v1946, %v2247
    %v2341 = vadd.f32 %v1947, %v2249
    %v2342 = vadd.f32 %v1948, %v2252
    %v2343 = vadd.f32 %v1949, %v2254
    %v2344 = vadd.f32 %v1950, %v2257
    %v2345 = vadd.f32 %v1951, %v2259
    %v2346 = vadd.f32 %v1952, %v2262
    %v2347 = vadd.f32 %v1953, %v2264
    %v2348 = vadd.f32 %v1954, %v2267
    %v2349 = vadd.f32 %v1955, %v2269
    %v2350 = vadd.f32 %v1956, %v2272
    %v2351 = vadd.f32 %v1957, %v2274
    %v2352 = vadd.f32 %v1958, %v2277
    %v2353 = vadd.f32 %v1959, %v2279
    %v2354 = vadd.f32 %v1960, %v2282
    %v2355 = vadd.f32 %v1961, %v2284
    %v2356 = vadd.f32 %v1962, %v2287
    %v2357 = vadd.f32 %v1963, %v2289
    %v2358 = vadd.f32 %v1964, %v2292
    %v2359 = vadd.f32 %v1965, %v2294
    %s2360 = scalar_lea.vmem %s0, 48
    %v2361 = vld [vmem:[%s2360] sm:$0xff]
    %v2362 = vld [vmem:[%s2360 + $0x8] sm:$0xff]
    %v2363 = vld [vmem:[%s2360 + $0x18] sm:$0xff]
    %v2364 = vld [vmem:[%s2360 + $0x20] sm:$0xff]
    %v2365 = vld [vmem:[%s2360 + $0x30] sm:$0xff]
    %v2366 = vld [vmem:[%s2360 + $0x38] sm:$0xff]
    %v2367 = vld [vmem:[%s2360 + $0x48] sm:$0xff]
    %v2368 = vld [vmem:[%s2360 + $0x50] sm:$0xff]
    %v2369 = vld [vmem:[%s2360 + $0x60] sm:$0xff]
    %v2370 = vld [vmem:[%s2360 + $0x68] sm:$0xff]
    %v2371 = vld [vmem:[%s2360 + $0x78] sm:$0xff]
    %v2372 = vld [vmem:[%s2360 + $0x80] sm:$0xff]
    %v2373 = vld [vmem:[%s2360 + $0x90] sm:$0xff]
    %v2374 = vld [vmem:[%s2360 + $0x98] sm:$0xff]
    %v2375 = vld [vmem:[%s2360 + $0xa8] sm:$0xff]
    %v2376 = vld [vmem:[%s2360 + $0xb0] sm:$0xff]
    %v2377 = vld [vmem:[%s2360 + $0xc0] sm:$0xff]
    %v2378 = vld [vmem:[%s2360 + $0xc8] sm:$0xff]
    %v2379 = vld [vmem:[%s2360 + $0xd8] sm:$0xff]
    %v2380 = vld [vmem:[%s2360 + $0xe0] sm:$0xff]
    %v2381 = vld [vmem:[%s2360 + $0xf0] sm:$0xff]
    %v2382 = vld [vmem:[%s2360 + $0xf8] sm:$0xff]
    %v2383 = vld [vmem:[%s2360 + $0x108] sm:$0xff]
    %v2384 = vld [vmem:[%s2360 + $0x110] sm:$0xff]
    %v2385 = vld [vmem:[%s2360 + $0x120] sm:$0xff]
    %v2386 = vld [vmem:[%s2360 + $0x128] sm:$0xff]
    %v2387 = vld [vmem:[%s2360 + $0x138] sm:$0xff]
    %v2388 = vld [vmem:[%s2360 + $0x140] sm:$0xff]
    %v2389 = vld [vmem:[%s2360 + $0x150] sm:$0xff]
    %v2390 = vld [vmem:[%s2360 + $0x158] sm:$0xff]
    %v2391 = vld [vmem:[%s2360 + $0x168] sm:$0xff]
    %v2392 = vld [vmem:[%s2360 + $0x170] sm:$0xff]
    %v2393 = vld [vmem:[%s2360 + $0x1b0] sm:$0xff]
    %v2394 = vld [vmem:[%s2360 + $0x1b8] sm:$0xff]
    %v2395 = vld [vmem:[%s2360 + $0x1c8] sm:$0xff]
    %v2396 = vld [vmem:[%s2360 + $0x1d0] sm:$0xff]
    %v2397 = vld [vmem:[%s2360 + $0x1e0] sm:$0xff]
    %v2398 = vld [vmem:[%s2360 + $0x1e8] sm:$0xff]
    %v2399 = vld [vmem:[%s2360 + $0x1f8] sm:$0xff]
    %v2400 = vld [vmem:[%s2360 + $0x200] sm:$0xff]
    %v2401 = vld [vmem:[%s2360 + $0x210] sm:$0xff]
    %v2402 = vld [vmem:[%s2360 + $0x218] sm:$0xff]
    %v2403 = vld [vmem:[%s2360 + $0x228] sm:$0xff]
    %v2404 = vld [vmem:[%s2360 + $0x230] sm:$0xff]
    %v2405 = vld [vmem:[%s2360 + $0x240] sm:$0xff]
    %v2406 = vld [vmem:[%s2360 + $0x248] sm:$0xff]
    %v2407 = vld [vmem:[%s2360 + $0x258] sm:$0xff]
    %v2408 = vld [vmem:[%s2360 + $0x260] sm:$0xff]
    %v2409 = vld [vmem:[%s2360 + $0x270] sm:$0xff]
    %v2410 = vld [vmem:[%s2360 + $0x278] sm:$0xff]
    %v2411 = vld [vmem:[%s2360 + $0x288] sm:$0xff]
    %v2412 = vld [vmem:[%s2360 + $0x290] sm:$0xff]
    %v2413 = vld [vmem:[%s2360 + $0x2a0] sm:$0xff]
    %v2414 = vld [vmem:[%s2360 + $0x2a8] sm:$0xff]
    %v2415 = vld [vmem:[%s2360 + $0x2b8] sm:$0xff]
    %v2416 = vld [vmem:[%s2360 + $0x2c0] sm:$0xff]
    %v2417 = vld [vmem:[%s2360 + $0x2d0] sm:$0xff]
    %v2418 = vld [vmem:[%s2360 + $0x2d8] sm:$0xff]
    %v2419 = vld [vmem:[%s2360 + $0x2e8] sm:$0xff]
    %v2420 = vld [vmem:[%s2360 + $0x2f0] sm:$0xff]
    %v2421 = vld [vmem:[%s2360 + $0x300] sm:$0xff]
    %v2422 = vld [vmem:[%s2360 + $0x308] sm:$0xff]
    %v2423 = vld [vmem:[%s2360 + $0x318] sm:$0xff]
    %v2424 = vld [vmem:[%s2360 + $0x320] sm:$0xff]
    %v2425 = vpack.c.bf16 %v2362, %v2361
    %v2426 = vpack.c.bf16 %v2364, %v2363
    %v2427 = vpack.c.bf16 %v2366, %v2365
    %v2428 = vpack.c.bf16 %v2368, %v2367
    %v2429 = vpack.c.bf16 %v2370, %v2369
    %v2430 = vpack.c.bf16 %v2372, %v2371
    %v2431 = vpack.c.bf16 %v2374, %v2373
    %v2432 = vpack.c.bf16 %v2376, %v2375
    %v2433 = vpack.c.bf16 %v2378, %v2377
    %v2434 = vpack.c.bf16 %v2380, %v2379
    %v2435 = vpack.c.bf16 %v2382, %v2381
    %v2436 = vpack.c.bf16 %v2384, %v2383
    %v2437 = vpack.c.bf16 %v2386, %v2385
    %v2438 = vpack.c.bf16 %v2388, %v2387
    %v2439 = vpack.c.bf16 %v2390, %v2389
    %v2440 = vpack.c.bf16 %v2392, %v2391
    %v2441 = vpack.c.bf16 %v2394, %v2393
    %v2442 = vpack.c.bf16 %v2396, %v2395
    %v2443 = vpack.c.bf16 %v2398, %v2397
    %v2444 = vpack.c.bf16 %v2400, %v2399
    %v2445 = vpack.c.bf16 %v2402, %v2401
    %v2446 = vpack.c.bf16 %v2404, %v2403
    %v2447 = vpack.c.bf16 %v2406, %v2405
    %v2448 = vpack.c.bf16 %v2408, %v2407
    %v2449 = vpack.c.bf16 %v2410, %v2409
    %v2450 = vpack.c.bf16 %v2412, %v2411
    %v2451 = vpack.c.bf16 %v2414, %v2413
    %v2452 = vpack.c.bf16 %v2416, %v2415
    %v2453 = vpack.c.bf16 %v2418, %v2417
    %v2454 = vpack.c.bf16 %v2420, %v2419
    %v2455 = vpack.c.bf16 %v2422, %v2421
    %v2456 = vpack.c.bf16 %v2424, %v2423
    %s2457 = scalar_lea.vmem %s1, 384
    %v2458 = vld [vmem:[%s2457] sm:$0xf]
    %v2459 = vld [vmem:[%s2457 + $0x4] sm:$0xf]
    %v2460 = vld [vmem:[%s2457 + $0x8] sm:$0xf]
    %v2461 = vld [vmem:[%s2457 + $0xc] sm:$0xf]
    %v2462 = vld [vmem:[%s2457 + $0x10] sm:$0xf]
    %v2463 = vld [vmem:[%s2457 + $0x14] sm:$0xf]
    %v2464 = vld [vmem:[%s2457 + $0x18] sm:$0xf]
    %v2465 = vld [vmem:[%s2457 + $0x1c] sm:$0xf]
    %v2466 = vld [vmem:[%s2457 + $0x20] sm:$0xf]
    %v2467 = vld [vmem:[%s2457 + $0x24] sm:$0xf]
    %v2468 = vld [vmem:[%s2457 + $0x28] sm:$0xf]
    %v2469 = vld [vmem:[%s2457 + $0x2c] sm:$0xf]
    %v2470 = vld [vmem:[%s2457 + $0x30] sm:$0xf]
    %v2471 = vld [vmem:[%s2457 + $0x34] sm:$0xf]
    %v2472 = vld [vmem:[%s2457 + $0x38] sm:$0xf]
    %v2473 = vld [vmem:[%s2457 + $0x3c] sm:$0xf]
    %v2490 = vunpack.c.l.b16 %v2458
    %v2491 = vunpack.c.l.b16 %v2459
    %v2492 = vunpack.c.l.b16 %v2460
    %v2493 = vunpack.c.l.b16 %v2461
    %v2494 = vunpack.c.l.b16 %v2462
    %v2495 = vunpack.c.l.b16 %v2463
    %v2496 = vunpack.c.l.b16 %v2464
    %v2497 = vunpack.c.l.b16 %v2465
    %v2498 = vunpack.c.l.b16 %v2466
    %v2499 = vunpack.c.l.b16 %v2467
    %v2500 = vunpack.c.l.b16 %v2468
    %v2501 = vunpack.c.l.b16 %v2469
    %v2502 = vunpack.c.l.b16 %v2470
    %v2503 = vunpack.c.l.b16 %v2471
    %v2504 = vunpack.c.l.b16 %v2472
    %v2505 = vunpack.c.l.b16 %v2473
    %v2506 = vpack.c.b16 %v2491, %v2490
    %v2507 = vpack.c.b16 %v2493, %v2492
    %v2508 = vpack.c.b16 %v2495, %v2494
    %v2509 = vpack.c.b16 %v2497, %v2496
    %v2510 = vpack.c.b16 %v2499, %v2498
    %v2511 = vpack.c.b16 %v2501, %v2500
    %v2512 = vpack.c.b16 %v2503, %v2502
    %v2513 = vpack.c.b16 %v2505, %v2504
    %2522 = vmatpush.bf16.msra.mxu0 %v2513
    %2523 = vmatpush.bf16.msra.mxu0 %v2512
    %2524 = vmatpush.bf16.msra.mxu0 %v2511
    %2525 = vmatpush.bf16.msra.mxu0 %v2510
    %2526 = vmatpush.bf16.msra.mxu0 %v2509
    %2527 = vmatpush.bf16.msra.mxu0 %v2508
    %2528 = vmatpush.bf16.msra.mxu0 %v2507
    %2529 = vmatpush.bf16.msra.mxu0 %v2506
    %2530 = vmatmul.bf16.gmra.mxu0 %v2425
    %v2531 = vpop.f32.mrf.mxu0
    %v2532 = vadd.f32 0.0, %v2531
    %v2533 = vpop.f32.mrf.mxu0
    %v2534 = vadd.f32 0.0, %v2533
    %2535 = vmatmul.bf16.gmra.mxu0 %v2426
    %v2536 = vpop.f32.mrf.mxu0
    %v2537 = vadd.f32 0.0, %v2536
    %v2538 = vpop.f32.mrf.mxu0
    %v2539 = vadd.f32 0.0, %v2538
    %2540 = vmatmul.bf16.gmra.mxu0 %v2427
    %v2541 = vpop.f32.mrf.mxu0
    %v2542 = vadd.f32 0.0, %v2541
    %v2543 = vpop.f32.mrf.mxu0
    %v2544 = vadd.f32 0.0, %v2543
    %2545 = vmatmul.bf16.gmra.mxu0 %v2428
    %v2546 = vpop.f32.mrf.mxu0
    %v2547 = vadd.f32 0.0, %v2546
    %v2548 = vpop.f32.mrf.mxu0
    %v2549 = vadd.f32 0.0, %v2548
    %2550 = vmatmul.bf16.gmra.mxu0 %v2429
    %v2551 = vpop.f32.mrf.mxu0
    %v2552 = vadd.f32 0.0, %v2551
    %v2553 = vpop.f32.mrf.mxu0
    %v2554 = vadd.f32 0.0, %v2553
    %2555 = vmatmul.bf16.gmra.mxu0 %v2430
    %v2556 = vpop.f32.mrf.mxu0
    %v2557 = vadd.f32 0.0, %v2556
    %v2558 = vpop.f32.mrf.mxu0
    %v2559 = vadd.f32 0.0, %v2558
    %2560 = vmatmul.bf16.gmra.mxu0 %v2431
    %v2561 = vpop.f32.mrf.mxu0
    %v2562 = vadd.f32 0.0, %v2561
    %v2563 = vpop.f32.mrf.mxu0
    %v2564 = vadd.f32 0.0, %v2563
    %2565 = vmatmul.bf16.gmra.mxu0 %v2432
    %v2566 = vpop.f32.mrf.mxu0
    %v2567 = vadd.f32 0.0, %v2566
    %v2568 = vpop.f32.mrf.mxu0
    %v2569 = vadd.f32 0.0, %v2568
    %2570 = vmatmul.bf16.gmra.mxu0 %v2433
    %v2571 = vpop.f32.mrf.mxu0
    %v2572 = vadd.f32 0.0, %v2571
    %v2573 = vpop.f32.mrf.mxu0
    %v2574 = vadd.f32 0.0, %v2573
    %2575 = vmatmul.bf16.gmra.mxu0 %v2434
    %v2576 = vpop.f32.mrf.mxu0
    %v2577 = vadd.f32 0.0, %v2576
    %v2578 = vpop.f32.mrf.mxu0
    %v2579 = vadd.f32 0.0, %v2578
    %2580 = vmatmul.bf16.gmra.mxu0 %v2435
    %v2581 = vpop.f32.mrf.mxu0
    %v2582 = vadd.f32 0.0, %v2581
    %v2583 = vpop.f32.mrf.mxu0
    %v2584 = vadd.f32 0.0, %v2583
    %2585 = vmatmul.bf16.gmra.mxu0 %v2436
    %v2586 = vpop.f32.mrf.mxu0
    %v2587 = vadd.f32 0.0, %v2586
    %v2588 = vpop.f32.mrf.mxu0
    %v2589 = vadd.f32 0.0, %v2588
    %2590 = vmatmul.bf16.gmra.mxu0 %v2437
    %v2591 = vpop.f32.mrf.mxu0
    %v2592 = vadd.f32 0.0, %v2591
    %v2593 = vpop.f32.mrf.mxu0
    %v2594 = vadd.f32 0.0, %v2593
    %2595 = vmatmul.bf16.gmra.mxu0 %v2438
    %v2596 = vpop.f32.mrf.mxu0
    %v2597 = vadd.f32 0.0, %v2596
    %v2598 = vpop.f32.mrf.mxu0
    %v2599 = vadd.f32 0.0, %v2598
    %2600 = vmatmul.bf16.gmra.mxu0 %v2439
    %v2601 = vpop.f32.mrf.mxu0
    %v2602 = vadd.f32 0.0, %v2601
    %v2603 = vpop.f32.mrf.mxu0
    %v2604 = vadd.f32 0.0, %v2603
    %2605 = vmatmul.bf16.gmra.mxu0 %v2440
    %v2606 = vpop.f32.mrf.mxu0
    %v2607 = vadd.f32 0.0, %v2606
    %v2608 = vpop.f32.mrf.mxu0
    %v2609 = vadd.f32 0.0, %v2608
    %2610 = vmatmul.bf16.gmra.mxu0 %v2441
    %v2611 = vpop.f32.mrf.mxu0
    %v2612 = vadd.f32 0.0, %v2611
    %v2613 = vpop.f32.mrf.mxu0
    %v2614 = vadd.f32 0.0, %v2613
    %2615 = vmatmul.bf16.gmra.mxu0 %v2442
    %v2616 = vpop.f32.mrf.mxu0
    %v2617 = vadd.f32 0.0, %v2616
    %v2618 = vpop.f32.mrf.mxu0
    %v2619 = vadd.f32 0.0, %v2618
    %2620 = vmatmul.bf16.gmra.mxu0 %v2443
    %v2621 = vpop.f32.mrf.mxu0
    %v2622 = vadd.f32 0.0, %v2621
    %v2623 = vpop.f32.mrf.mxu0
    %v2624 = vadd.f32 0.0, %v2623
    %2625 = vmatmul.bf16.gmra.mxu0 %v2444
    %v2626 = vpop.f32.mrf.mxu0
    %v2627 = vadd.f32 0.0, %v2626
    %v2628 = vpop.f32.mrf.mxu0
    %v2629 = vadd.f32 0.0, %v2628
    %2630 = vmatmul.bf16.gmra.mxu0 %v2445
    %v2631 = vpop.f32.mrf.mxu0
    %v2632 = vadd.f32 0.0, %v2631
    %v2633 = vpop.f32.mrf.mxu0
    %v2634 = vadd.f32 0.0, %v2633
    %2635 = vmatmul.bf16.gmra.mxu0 %v2446
    %v2636 = vpop.f32.mrf.mxu0
    %v2637 = vadd.f32 0.0, %v2636
    %v2638 = vpop.f32.mrf.mxu0
    %v2639 = vadd.f32 0.0, %v2638
    %2640 = vmatmul.bf16.gmra.mxu0 %v2447
    %v2641 = vpop.f32.mrf.mxu0
    %v2642 = vadd.f32 0.0, %v2641
    %v2643 = vpop.f32.mrf.mxu0
    %v2644 = vadd.f32 0.0, %v2643
    %2645 = vmatmul.bf16.gmra.mxu0 %v2448
    %v2646 = vpop.f32.mrf.mxu0
    %v2647 = vadd.f32 0.0, %v2646
    %v2648 = vpop.f32.mrf.mxu0
    %v2649 = vadd.f32 0.0, %v2648
    %2650 = vmatmul.bf16.gmra.mxu0 %v2449
    %v2651 = vpop.f32.mrf.mxu0
    %v2652 = vadd.f32 0.0, %v2651
    %v2653 = vpop.f32.mrf.mxu0
    %v2654 = vadd.f32 0.0, %v2653
    %2655 = vmatmul.bf16.gmra.mxu0 %v2450
    %v2656 = vpop.f32.mrf.mxu0
    %v2657 = vadd.f32 0.0, %v2656
    %v2658 = vpop.f32.mrf.mxu0
    %v2659 = vadd.f32 0.0, %v2658
    %2660 = vmatmul.bf16.gmra.mxu0 %v2451
    %v2661 = vpop.f32.mrf.mxu0
    %v2662 = vadd.f32 0.0, %v2661
    %v2663 = vpop.f32.mrf.mxu0
    %v2664 = vadd.f32 0.0, %v2663
    %2665 = vmatmul.bf16.gmra.mxu0 %v2452
    %v2666 = vpop.f32.mrf.mxu0
    %v2667 = vadd.f32 0.0, %v2666
    %v2668 = vpop.f32.mrf.mxu0
    %v2669 = vadd.f32 0.0, %v2668
    %2670 = vmatmul.bf16.gmra.mxu0 %v2453
    %v2671 = vpop.f32.mrf.mxu0
    %v2672 = vadd.f32 0.0, %v2671
    %v2673 = vpop.f32.mrf.mxu0
    %v2674 = vadd.f32 0.0, %v2673
    %2675 = vmatmul.bf16.gmra.mxu0 %v2454
    %v2676 = vpop.f32.mrf.mxu0
    %v2677 = vadd.f32 0.0, %v2676
    %v2678 = vpop.f32.mrf.mxu0
    %v2679 = vadd.f32 0.0, %v2678
    %2680 = vmatmul.bf16.gmra.mxu0 %v2455
    %v2681 = vpop.f32.mrf.mxu0
    %v2682 = vadd.f32 0.0, %v2681
    %v2683 = vpop.f32.mrf.mxu0
    %v2684 = vadd.f32 0.0, %v2683
    %2685 = vmatmul.bf16.gmra.mxu0 %v2456
    %v2686 = vpop.f32.mrf.mxu0
    %v2687 = vadd.f32 0.0, %v2686
    %v2688 = vpop.f32.mrf.mxu0
    %v2689 = vadd.f32 0.0, %v2688
    %2690 = vdwg.mxu0
    %v2691 = vadd.f32 %v2296, %v2532
    %v2692 = vadd.f32 %v2297, %v2534
    %v2693 = vadd.f32 %v2298, %v2537
    %v2694 = vadd.f32 %v2299, %v2539
    %v2695 = vadd.f32 %v2300, %v2542
    %v2696 = vadd.f32 %v2301, %v2544
    %v2697 = vadd.f32 %v2302, %v2547
    %v2698 = vadd.f32 %v2303, %v2549
    %v2699 = vadd.f32 %v2304, %v2552
    %v2700 = vadd.f32 %v2305, %v2554
    %v2701 = vadd.f32 %v2306, %v2557
    %v2702 = vadd.f32 %v2307, %v2559
    %v2703 = vadd.f32 %v2308, %v2562
    %v2704 = vadd.f32 %v2309, %v2564
    %v2705 = vadd.f32 %v2310, %v2567
    %v2706 = vadd.f32 %v2311, %v2569
    %v2707 = vadd.f32 %v2312, %v2572
    %v2708 = vadd.f32 %v2313, %v2574
    %v2709 = vadd.f32 %v2314, %v2577
    %v2710 = vadd.f32 %v2315, %v2579
    %v2711 = vadd.f32 %v2316, %v2582
    %v2712 = vadd.f32 %v2317, %v2584
    %v2713 = vadd.f32 %v2318, %v2587
    %v2714 = vadd.f32 %v2319, %v2589
    %v2715 = vadd.f32 %v2320, %v2592
    %v2716 = vadd.f32 %v2321, %v2594
    %v2717 = vadd.f32 %v2322, %v2597
    %v2718 = vadd.f32 %v2323, %v2599
    %v2719 = vadd.f32 %v2324, %v2602
    %v2720 = vadd.f32 %v2325, %v2604
    %v2721 = vadd.f32 %v2326, %v2607
    %v2722 = vadd.f32 %v2327, %v2609
    %v2723 = vadd.f32 %v2328, %v2612
    %v2724 = vadd.f32 %v2329, %v2614
    %v2725 = vadd.f32 %v2330, %v2617
    %v2726 = vadd.f32 %v2331, %v2619
    %v2727 = vadd.f32 %v2332, %v2622
    %v2728 = vadd.f32 %v2333, %v2624
    %v2729 = vadd.f32 %v2334, %v2627
    %v2730 = vadd.f32 %v2335, %v2629
    %v2731 = vadd.f32 %v2336, %v2632
    %v2732 = vadd.f32 %v2337, %v2634
    %v2733 = vadd.f32 %v2338, %v2637
    %v2734 = vadd.f32 %v2339, %v2639
    %v2735 = vadd.f32 %v2340, %v2642
    %v2736 = vadd.f32 %v2341, %v2644
    %v2737 = vadd.f32 %v2342, %v2647
    %v2738 = vadd.f32 %v2343, %v2649
    %v2739 = vadd.f32 %v2344, %v2652
    %v2740 = vadd.f32 %v2345, %v2654
    %v2741 = vadd.f32 %v2346, %v2657
    %v2742 = vadd.f32 %v2347, %v2659
    %v2743 = vadd.f32 %v2348, %v2662
    %v2744 = vadd.f32 %v2349, %v2664
    %v2745 = vadd.f32 %v2350, %v2667
    %v2746 = vadd.f32 %v2351, %v2669
    %v2747 = vadd.f32 %v2352, %v2672
    %v2748 = vadd.f32 %v2353, %v2674
    %v2749 = vadd.f32 %v2354, %v2677
    %v2750 = vadd.f32 %v2355, %v2679
    %v2751 = vadd.f32 %v2356, %v2682
    %v2752 = vadd.f32 %v2357, %v2684
    %v2753 = vadd.f32 %v2358, %v2687
    %v2754 = vadd.f32 %v2359, %v2689
    %v2755 = vld [vmem:[%s2360 + $0x1] sm:$0xff]
    %v2756 = vld [vmem:[%s2360 + $0x9] sm:$0xff]
    %v2757 = vld [vmem:[%s2360 + $0x19] sm:$0xff]
    %v2758 = vld [vmem:[%s2360 + $0x21] sm:$0xff]
    %v2759 = vld [vmem:[%s2360 + $0x31] sm:$0xff]
    %v2760 = vld [vmem:[%s2360 + $0x39] sm:$0xff]
    %v2761 = vld [vmem:[%s2360 + $0x49] sm:$0xff]
    %v2762 = vld [vmem:[%s2360 + $0x51] sm:$0xff]
    %v2763 = vld [vmem:[%s2360 + $0x61] sm:$0xff]
    %v2764 = vld [vmem:[%s2360 + $0x69] sm:$0xff]
    %v2765 = vld [vmem:[%s2360 + $0x79] sm:$0xff]
    %v2766 = vld [vmem:[%s2360 + $0x81] sm:$0xff]
    %v2767 = vld [vmem:[%s2360 + $0x91] sm:$0xff]
    %v2768 = vld [vmem:[%s2360 + $0x99] sm:$0xff]
    %v2769 = vld [vmem:[%s2360 + $0xa9] sm:$0xff]
    %v2770 = vld [vmem:[%s2360 + $0xb1] sm:$0xff]
    %v2771 = vld [vmem:[%s2360 + $0xc1] sm:$0xff]
    %v2772 = vld [vmem:[%s2360 + $0xc9] sm:$0xff]
    %v2773 = vld [vmem:[%s2360 + $0xd9] sm:$0xff]
    %v2774 = vld [vmem:[%s2360 + $0xe1] sm:$0xff]
    %v2775 = vld [vmem:[%s2360 + $0xf1] sm:$0xff]
    %v2776 = vld [vmem:[%s2360 + $0xf9] sm:$0xff]
    %v2777 = vld [vmem:[%s2360 + $0x109] sm:$0xff]
    %v2778 = vld [vmem:[%s2360 + $0x111] sm:$0xff]
    %v2779 = vld [vmem:[%s2360 + $0x121] sm:$0xff]
    %v2780 = vld [vmem:[%s2360 + $0x129] sm:$0xff]
    %v2781 = vld [vmem:[%s2360 + $0x139] sm:$0xff]
    %v2782 = vld [vmem:[%s2360 + $0x141] sm:$0xff]
    %v2783 = vld [vmem:[%s2360 + $0x151] sm:$0xff]
    %v2784 = vld [vmem:[%s2360 + $0x159] sm:$0xff]
    %v2785 = vld [vmem:[%s2360 + $0x169] sm:$0xff]
    %v2786 = vld [vmem:[%s2360 + $0x171] sm:$0xff]
    %v2787 = vld [vmem:[%s2360 + $0x1b1] sm:$0xff]
    %v2788 = vld [vmem:[%s2360 + $0x1b9] sm:$0xff]
    %v2789 = vld [vmem:[%s2360 + $0x1c9] sm:$0xff]
    %v2790 = vld [vmem:[%s2360 + $0x1d1] sm:$0xff]
    %v2791 = vld [vmem:[%s2360 + $0x1e1] sm:$0xff]
    %v2792 = vld [vmem:[%s2360 + $0x1e9] sm:$0xff]
    %v2793 = vld [vmem:[%s2360 + $0x1f9] sm:$0xff]
    %v2794 = vld [vmem:[%s2360 + $0x201] sm:$0xff]
    %v2795 = vld [vmem:[%s2360 + $0x211] sm:$0xff]
    %v2796 = vld [vmem:[%s2360 + $0x219] sm:$0xff]
    %v2797 = vld [vmem:[%s2360 + $0x229] sm:$0xff]
    %v2798 = vld [vmem:[%s2360 + $0x231] sm:$0xff]
    %v2799 = vld [vmem:[%s2360 + $0x241] sm:$0xff]
    %v2800 = vld [vmem:[%s2360 + $0x249] sm:$0xff]
    %v2801 = vld [vmem:[%s2360 + $0x259] sm:$0xff]
    %v2802 = vld [vmem:[%s2360 + $0x261] sm:$0xff]
    %v2803 = vld [vmem:[%s2360 + $0x271] sm:$0xff]
    %v2804 = vld [vmem:[%s2360 + $0x279] sm:$0xff]
    %v2805 = vld [vmem:[%s2360 + $0x289] sm:$0xff]
    %v2806 = vld [vmem:[%s2360 + $0x291] sm:$0xff]
    %v2807 = vld [vmem:[%s2360 + $0x2a1] sm:$0xff]
    %v2808 = vld [vmem:[%s2360 + $0x2a9] sm:$0xff]
    %v2809 = vld [vmem:[%s2360 + $0x2b9] sm:$0xff]
    %v2810 = vld [vmem:[%s2360 + $0x2c1] sm:$0xff]
    %v2811 = vld [vmem:[%s2360 + $0x2d1] sm:$0xff]
    %v2812 = vld [vmem:[%s2360 + $0x2d9] sm:$0xff]
    %v2813 = vld [vmem:[%s2360 + $0x2e9] sm:$0xff]
    %v2814 = vld [vmem:[%s2360 + $0x2f1] sm:$0xff]
    %v2815 = vld [vmem:[%s2360 + $0x301] sm:$0xff]
    %v2816 = vld [vmem:[%s2360 + $0x309] sm:$0xff]
    %v2817 = vld [vmem:[%s2360 + $0x319] sm:$0xff]
    %v2818 = vld [vmem:[%s2360 + $0x321] sm:$0xff]
    %v2819 = vpack.c.bf16 %v2756, %v2755
    %v2820 = vpack.c.bf16 %v2758, %v2757
    %v2821 = vpack.c.bf16 %v2760, %v2759
    %v2822 = vpack.c.bf16 %v2762, %v2761
    %v2823 = vpack.c.bf16 %v2764, %v2763
    %v2824 = vpack.c.bf16 %v2766, %v2765
    %v2825 = vpack.c.bf16 %v2768, %v2767
    %v2826 = vpack.c.bf16 %v2770, %v2769
    %v2827 = vpack.c.bf16 %v2772, %v2771
    %v2828 = vpack.c.bf16 %v2774, %v2773
    %v2829 = vpack.c.bf16 %v2776, %v2775
    %v2830 = vpack.c.bf16 %v2778, %v2777
    %v2831 = vpack.c.bf16 %v2780, %v2779
    %v2832 = vpack.c.bf16 %v2782, %v2781
    %v2833 = vpack.c.bf16 %v2784, %v2783
    %v2834 = vpack.c.bf16 %v2786, %v2785
    %v2835 = vpack.c.bf16 %v2788, %v2787
    %v2836 = vpack.c.bf16 %v2790, %v2789
    %v2837 = vpack.c.bf16 %v2792, %v2791
    %v2838 = vpack.c.bf16 %v2794, %v2793
    %v2839 = vpack.c.bf16 %v2796, %v2795
    %v2840 = vpack.c.bf16 %v2798, %v2797
    %v2841 = vpack.c.bf16 %v2800, %v2799
    %v2842 = vpack.c.bf16 %v2802, %v2801
    %v2843 = vpack.c.bf16 %v2804, %v2803
    %v2844 = vpack.c.bf16 %v2806, %v2805
    %v2845 = vpack.c.bf16 %v2808, %v2807
    %v2846 = vpack.c.bf16 %v2810, %v2809
    %v2847 = vpack.c.bf16 %v2812, %v2811
    %v2848 = vpack.c.bf16 %v2814, %v2813
    %v2849 = vpack.c.bf16 %v2816, %v2815
    %v2850 = vpack.c.bf16 %v2818, %v2817
    %s2851 = scalar_lea.vmem %s1, 448
    %v2852 = vld [vmem:[%s2851] sm:$0xf]
    %v2853 = vld [vmem:[%s2851 + $0x4] sm:$0xf]
    %v2854 = vld [vmem:[%s2851 + $0x8] sm:$0xf]
    %v2855 = vld [vmem:[%s2851 + $0xc] sm:$0xf]
    %v2856 = vld [vmem:[%s2851 + $0x10] sm:$0xf]
    %v2857 = vld [vmem:[%s2851 + $0x14] sm:$0xf]
    %v2858 = vld [vmem:[%s2851 + $0x18] sm:$0xf]
    %v2859 = vld [vmem:[%s2851 + $0x1c] sm:$0xf]
    %v2860 = vld [vmem:[%s2851 + $0x20] sm:$0xf]
    %v2861 = vld [vmem:[%s2851 + $0x24] sm:$0xf]
    %v2862 = vld [vmem:[%s2851 + $0x28] sm:$0xf]
    %v2863 = vld [vmem:[%s2851 + $0x2c] sm:$0xf]
    %v2864 = vld [vmem:[%s2851 + $0x30] sm:$0xf]
    %v2865 = vld [vmem:[%s2851 + $0x34] sm:$0xf]
    %v2866 = vld [vmem:[%s2851 + $0x38] sm:$0xf]
    %v2867 = vld [vmem:[%s2851 + $0x3c] sm:$0xf]
    %v2884 = vunpack.c.l.b16 %v2852
    %v2885 = vunpack.c.l.b16 %v2853
    %v2886 = vunpack.c.l.b16 %v2854
    %v2887 = vunpack.c.l.b16 %v2855
    %v2888 = vunpack.c.l.b16 %v2856
    %v2889 = vunpack.c.l.b16 %v2857
    %v2890 = vunpack.c.l.b16 %v2858
    %v2891 = vunpack.c.l.b16 %v2859
    %v2892 = vunpack.c.l.b16 %v2860
    %v2893 = vunpack.c.l.b16 %v2861
    %v2894 = vunpack.c.l.b16 %v2862
    %v2895 = vunpack.c.l.b16 %v2863
    %v2896 = vunpack.c.l.b16 %v2864
    %v2897 = vunpack.c.l.b16 %v2865
    %v2898 = vunpack.c.l.b16 %v2866
    %v2899 = vunpack.c.l.b16 %v2867
    %v2900 = vpack.c.b16 %v2885, %v2884
    %v2901 = vpack.c.b16 %v2887, %v2886
    %v2902 = vpack.c.b16 %v2889, %v2888
    %v2903 = vpack.c.b16 %v2891, %v2890
    %v2904 = vpack.c.b16 %v2893, %v2892
    %v2905 = vpack.c.b16 %v2895, %v2894
    %v2906 = vpack.c.b16 %v2897, %v2896
    %v2907 = vpack.c.b16 %v2899, %v2898
    %2916 = vmatpush.bf16.msra.mxu0 %v2907
    %2917 = vmatpush.bf16.msra.mxu0 %v2906
    %2918 = vmatpush.bf16.msra.mxu0 %v2905
    %2919 = vmatpush.bf16.msra.mxu0 %v2904
    %2920 = vmatpush.bf16.msra.mxu0 %v2903
    %2921 = vmatpush.bf16.msra.mxu0 %v2902
    %2922 = vmatpush.bf16.msra.mxu0 %v2901
    %2923 = vmatpush.bf16.msra.mxu0 %v2900
    %2924 = vmatmul.bf16.gmra.mxu0 %v2819
    %v2925 = vpop.f32.mrf.mxu0
    %v2926 = vadd.f32 0.0, %v2925
    %v2927 = vpop.f32.mrf.mxu0
    %v2928 = vadd.f32 0.0, %v2927
    %2929 = vmatmul.bf16.gmra.mxu0 %v2820
    %v2930 = vpop.f32.mrf.mxu0
    %v2931 = vadd.f32 0.0, %v2930
    %v2932 = vpop.f32.mrf.mxu0
    %v2933 = vadd.f32 0.0, %v2932
    %2934 = vmatmul.bf16.gmra.mxu0 %v2821
    %v2935 = vpop.f32.mrf.mxu0
    %v2936 = vadd.f32 0.0, %v2935
    %v2937 = vpop.f32.mrf.mxu0
    %v2938 = vadd.f32 0.0, %v2937
    %2939 = vmatmul.bf16.gmra.mxu0 %v2822
    %v2940 = vpop.f32.mrf.mxu0
    %v2941 = vadd.f32 0.0, %v2940
    %v2942 = vpop.f32.mrf.mxu0
    %v2943 = vadd.f32 0.0, %v2942
    %2944 = vmatmul.bf16.gmra.mxu0 %v2823
    %v2945 = vpop.f32.mrf.mxu0
    %v2946 = vadd.f32 0.0, %v2945
    %v2947 = vpop.f32.mrf.mxu0
    %v2948 = vadd.f32 0.0, %v2947
    %2949 = vmatmul.bf16.gmra.mxu0 %v2824
    %v2950 = vpop.f32.mrf.mxu0
    %v2951 = vadd.f32 0.0, %v2950
    %v2952 = vpop.f32.mrf.mxu0
    %v2953 = vadd.f32 0.0, %v2952
    %2954 = vmatmul.bf16.gmra.mxu0 %v2825
    %v2955 = vpop.f32.mrf.mxu0
    %v2956 = vadd.f32 0.0, %v2955
    %v2957 = vpop.f32.mrf.mxu0
    %v2958 = vadd.f32 0.0, %v2957
    %2959 = vmatmul.bf16.gmra.mxu0 %v2826
    %v2960 = vpop.f32.mrf.mxu0
    %v2961 = vadd.f32 0.0, %v2960
    %v2962 = vpop.f32.mrf.mxu0
    %v2963 = vadd.f32 0.0, %v2962
    %2964 = vmatmul.bf16.gmra.mxu0 %v2827
    %v2965 = vpop.f32.mrf.mxu0
    %v2966 = vadd.f32 0.0, %v2965
    %v2967 = vpop.f32.mrf.mxu0
    %v2968 = vadd.f32 0.0, %v2967
    %2969 = vmatmul.bf16.gmra.mxu0 %v2828
    %v2970 = vpop.f32.mrf.mxu0
    %v2971 = vadd.f32 0.0, %v2970
    %v2972 = vpop.f32.mrf.mxu0
    %v2973 = vadd.f32 0.0, %v2972
    %2974 = vmatmul.bf16.gmra.mxu0 %v2829
    %v2975 = vpop.f32.mrf.mxu0
    %v2976 = vadd.f32 0.0, %v2975
    %v2977 = vpop.f32.mrf.mxu0
    %v2978 = vadd.f32 0.0, %v2977
    %2979 = vmatmul.bf16.gmra.mxu0 %v2830
    %v2980 = vpop.f32.mrf.mxu0
    %v2981 = vadd.f32 0.0, %v2980
    %v2982 = vpop.f32.mrf.mxu0
    %v2983 = vadd.f32 0.0, %v2982
    %2984 = vmatmul.bf16.gmra.mxu0 %v2831
    %v2985 = vpop.f32.mrf.mxu0
    %v2986 = vadd.f32 0.0, %v2985
    %v2987 = vpop.f32.mrf.mxu0
    %v2988 = vadd.f32 0.0, %v2987
    %2989 = vmatmul.bf16.gmra.mxu0 %v2832
    %v2990 = vpop.f32.mrf.mxu0
    %v2991 = vadd.f32 0.0, %v2990
    %v2992 = vpop.f32.mrf.mxu0
    %v2993 = vadd.f32 0.0, %v2992
    %2994 = vmatmul.bf16.gmra.mxu0 %v2833
    %v2995 = vpop.f32.mrf.mxu0
    %v2996 = vadd.f32 0.0, %v2995
    %v2997 = vpop.f32.mrf.mxu0
    %v2998 = vadd.f32 0.0, %v2997
    %2999 = vmatmul.bf16.gmra.mxu0 %v2834
    %v3000 = vpop.f32.mrf.mxu0
    %v3001 = vadd.f32 0.0, %v3000
    %v3002 = vpop.f32.mrf.mxu0
    %v3003 = vadd.f32 0.0, %v3002
    %3004 = vmatmul.bf16.gmra.mxu0 %v2835
    %v3005 = vpop.f32.mrf.mxu0
    %v3006 = vadd.f32 0.0, %v3005
    %v3007 = vpop.f32.mrf.mxu0
    %v3008 = vadd.f32 0.0, %v3007
    %3009 = vmatmul.bf16.gmra.mxu0 %v2836
    %v3010 = vpop.f32.mrf.mxu0
    %v3011 = vadd.f32 0.0, %v3010
    %v3012 = vpop.f32.mrf.mxu0
    %v3013 = vadd.f32 0.0, %v3012
    %3014 = vmatmul.bf16.gmra.mxu0 %v2837
    %v3015 = vpop.f32.mrf.mxu0
    %v3016 = vadd.f32 0.0, %v3015
    %v3017 = vpop.f32.mrf.mxu0
    %v3018 = vadd.f32 0.0, %v3017
    %3019 = vmatmul.bf16.gmra.mxu0 %v2838
    %v3020 = vpop.f32.mrf.mxu0
    %v3021 = vadd.f32 0.0, %v3020
    %v3022 = vpop.f32.mrf.mxu0
    %v3023 = vadd.f32 0.0, %v3022
    %3024 = vmatmul.bf16.gmra.mxu0 %v2839
    %v3025 = vpop.f32.mrf.mxu0
    %v3026 = vadd.f32 0.0, %v3025
    %v3027 = vpop.f32.mrf.mxu0
    %v3028 = vadd.f32 0.0, %v3027
    %3029 = vmatmul.bf16.gmra.mxu0 %v2840
    %v3030 = vpop.f32.mrf.mxu0
    %v3031 = vadd.f32 0.0, %v3030
    %v3032 = vpop.f32.mrf.mxu0
    %v3033 = vadd.f32 0.0, %v3032
    %3034 = vmatmul.bf16.gmra.mxu0 %v2841
    %v3035 = vpop.f32.mrf.mxu0
    %v3036 = vadd.f32 0.0, %v3035
    %v3037 = vpop.f32.mrf.mxu0
    %v3038 = vadd.f32 0.0, %v3037
    %3039 = vmatmul.bf16.gmra.mxu0 %v2842
    %v3040 = vpop.f32.mrf.mxu0
    %v3041 = vadd.f32 0.0, %v3040
    %v3042 = vpop.f32.mrf.mxu0
    %v3043 = vadd.f32 0.0, %v3042
    %3044 = vmatmul.bf16.gmra.mxu0 %v2843
    %v3045 = vpop.f32.mrf.mxu0
    %v3046 = vadd.f32 0.0, %v3045
    %v3047 = vpop.f32.mrf.mxu0
    %v3048 = vadd.f32 0.0, %v3047
    %3049 = vmatmul.bf16.gmra.mxu0 %v2844
    %v3050 = vpop.f32.mrf.mxu0
    %v3051 = vadd.f32 0.0, %v3050
    %v3052 = vpop.f32.mrf.mxu0
    %v3053 = vadd.f32 0.0, %v3052
    %3054 = vmatmul.bf16.gmra.mxu0 %v2845
    %v3055 = vpop.f32.mrf.mxu0
    %v3056 = vadd.f32 0.0, %v3055
    %v3057 = vpop.f32.mrf.mxu0
    %v3058 = vadd.f32 0.0, %v3057
    %3059 = vmatmul.bf16.gmra.mxu0 %v2846
    %v3060 = vpop.f32.mrf.mxu0
    %v3061 = vadd.f32 0.0, %v3060
    %v3062 = vpop.f32.mrf.mxu0
    %v3063 = vadd.f32 0.0, %v3062
    %3064 = vmatmul.bf16.gmra.mxu0 %v2847
    %v3065 = vpop.f32.mrf.mxu0
    %v3066 = vadd.f32 0.0, %v3065
    %v3067 = vpop.f32.mrf.mxu0
    %v3068 = vadd.f32 0.0, %v3067
    %3069 = vmatmul.bf16.gmra.mxu0 %v2848
    %v3070 = vpop.f32.mrf.mxu0
    %v3071 = vadd.f32 0.0, %v3070
    %v3072 = vpop.f32.mrf.mxu0
    %v3073 = vadd.f32 0.0, %v3072
    %3074 = vmatmul.bf16.gmra.mxu0 %v2849
    %v3075 = vpop.f32.mrf.mxu0
    %v3076 = vadd.f32 0.0, %v3075
    %v3077 = vpop.f32.mrf.mxu0
    %v3078 = vadd.f32 0.0, %v3077
    %3079 = vmatmul.bf16.gmra.mxu0 %v2850
    %v3080 = vpop.f32.mrf.mxu0
    %v3081 = vadd.f32 0.0, %v3080
    %v3082 = vpop.f32.mrf.mxu0
    %v3083 = vadd.f32 0.0, %v3082
    %3084 = vdwg.mxu0
    %v3085 = vadd.f32 %v2691, %v2926
    %v3086 = vadd.f32 %v2692, %v2928
    %v3087 = vadd.f32 %v2693, %v2931
    %v3088 = vadd.f32 %v2694, %v2933
    %v3089 = vadd.f32 %v2695, %v2936
    %v3090 = vadd.f32 %v2696, %v2938
    %v3091 = vadd.f32 %v2697, %v2941
    %v3092 = vadd.f32 %v2698, %v2943
    %v3093 = vadd.f32 %v2699, %v2946
    %v3094 = vadd.f32 %v2700, %v2948
    %v3095 = vadd.f32 %v2701, %v2951
    %v3096 = vadd.f32 %v2702, %v2953
    %v3097 = vadd.f32 %v2703, %v2956
    %v3098 = vadd.f32 %v2704, %v2958
    %v3099 = vadd.f32 %v2705, %v2961
    %v3100 = vadd.f32 %v2706, %v2963
    %v3101 = vadd.f32 %v2707, %v2966
    %v3102 = vadd.f32 %v2708, %v2968
    %v3103 = vadd.f32 %v2709, %v2971
    %v3104 = vadd.f32 %v2710, %v2973
    %v3105 = vadd.f32 %v2711, %v2976
    %v3106 = vadd.f32 %v2712, %v2978
    %v3107 = vadd.f32 %v2713, %v2981
    %v3108 = vadd.f32 %v2714, %v2983
    %v3109 = vadd.f32 %v2715, %v2986
    %v3110 = vadd.f32 %v2716, %v2988
    %v3111 = vadd.f32 %v2717, %v2991
    %v3112 = vadd.f32 %v2718, %v2993
    %v3113 = vadd.f32 %v2719, %v2996
    %v3114 = vadd.f32 %v2720, %v2998
    %v3115 = vadd.f32 %v2721, %v3001
    %v3116 = vadd.f32 %v2722, %v3003
    %v3117 = vadd.f32 %v2723, %v3006
    %v3118 = vadd.f32 %v2724, %v3008
    %v3119 = vadd.f32 %v2725, %v3011
    %v3120 = vadd.f32 %v2726, %v3013
    %v3121 = vadd.f32 %v2727, %v3016
    %v3122 = vadd.f32 %v2728, %v3018
    %v3123 = vadd.f32 %v2729, %v3021
    %v3124 = vadd.f32 %v2730, %v3023
    %v3125 = vadd.f32 %v2731, %v3026
    %v3126 = vadd.f32 %v2732, %v3028
    %v3127 = vadd.f32 %v2733, %v3031
    %v3128 = vadd.f32 %v2734, %v3033
    %v3129 = vadd.f32 %v2735, %v3036
    %v3130 = vadd.f32 %v2736, %v3038
    %v3131 = vadd.f32 %v2737, %v3041
    %v3132 = vadd.f32 %v2738, %v3043
    %v3133 = vadd.f32 %v2739, %v3046
    %v3134 = vadd.f32 %v2740, %v3048
    %v3135 = vadd.f32 %v2741, %v3051
    %v3136 = vadd.f32 %v2742, %v3053
    %v3137 = vadd.f32 %v2743, %v3056
    %v3138 = vadd.f32 %v2744, %v3058
    %v3139 = vadd.f32 %v2745, %v3061
    %v3140 = vadd.f32 %v2746, %v3063
    %v3141 = vadd.f32 %v2747, %v3066
    %v3142 = vadd.f32 %v2748, %v3068
    %v3143 = vadd.f32 %v2749, %v3071
    %v3144 = vadd.f32 %v2750, %v3073
    %v3145 = vadd.f32 %v2751, %v3076
    %v3146 = vadd.f32 %v2752, %v3078
    %v3147 = vadd.f32 %v2753, %v3081
    %v3148 = vadd.f32 %v2754, %v3083
    %v3149 = vld [vmem:[%s2360 + $0x2] sm:$0xff]
    %v3150 = vld [vmem:[%s2360 + $0xa] sm:$0xff]
    %v3151 = vld [vmem:[%s2360 + $0x1a] sm:$0xff]
    %v3152 = vld [vmem:[%s2360 + $0x22] sm:$0xff]
    %v3153 = vld [vmem:[%s2360 + $0x32] sm:$0xff]
    %v3154 = vld [vmem:[%s2360 + $0x3a] sm:$0xff]
    %v3155 = vld [vmem:[%s2360 + $0x4a] sm:$0xff]
    %v3156 = vld [vmem:[%s2360 + $0x52] sm:$0xff]
    %v3157 = vld [vmem:[%s2360 + $0x62] sm:$0xff]
    %v3158 = vld [vmem:[%s2360 + $0x6a] sm:$0xff]
    %v3159 = vld [vmem:[%s2360 + $0x7a] sm:$0xff]
    %v3160 = vld [vmem:[%s2360 + $0x82] sm:$0xff]
    %v3161 = vld [vmem:[%s2360 + $0x92] sm:$0xff]
    %v3162 = vld [vmem:[%s2360 + $0x9a] sm:$0xff]
    %v3163 = vld [vmem:[%s2360 + $0xaa] sm:$0xff]
    %v3164 = vld [vmem:[%s2360 + $0xb2] sm:$0xff]
    %v3165 = vld [vmem:[%s2360 + $0xc2] sm:$0xff]
    %v3166 = vld [vmem:[%s2360 + $0xca] sm:$0xff]
    %v3167 = vld [vmem:[%s2360 + $0xda] sm:$0xff]
    %v3168 = vld [vmem:[%s2360 + $0xe2] sm:$0xff]
    %v3169 = vld [vmem:[%s2360 + $0xf2] sm:$0xff]
    %v3170 = vld [vmem:[%s2360 + $0xfa] sm:$0xff]
    %v3171 = vld [vmem:[%s2360 + $0x10a] sm:$0xff]
    %v3172 = vld [vmem:[%s2360 + $0x112] sm:$0xff]
    %v3173 = vld [vmem:[%s2360 + $0x122] sm:$0xff]
    %v3174 = vld [vmem:[%s2360 + $0x12a] sm:$0xff]
    %v3175 = vld [vmem:[%s2360 + $0x13a] sm:$0xff]
    %v3176 = vld [vmem:[%s2360 + $0x142] sm:$0xff]
    %v3177 = vld [vmem:[%s2360 + $0x152] sm:$0xff]
    %v3178 = vld [vmem:[%s2360 + $0x15a] sm:$0xff]
    %v3179 = vld [vmem:[%s2360 + $0x16a] sm:$0xff]
    %v3180 = vld [vmem:[%s2360 + $0x172] sm:$0xff]
    %v3181 = vld [vmem:[%s2360 + $0x1b2] sm:$0xff]
    %v3182 = vld [vmem:[%s2360 + $0x1ba] sm:$0xff]
    %v3183 = vld [vmem:[%s2360 + $0x1ca] sm:$0xff]
    %v3184 = vld [vmem:[%s2360 + $0x1d2] sm:$0xff]
    %v3185 = vld [vmem:[%s2360 + $0x1e2] sm:$0xff]
    %v3186 = vld [vmem:[%s2360 + $0x1ea] sm:$0xff]
    %v3187 = vld [vmem:[%s2360 + $0x1fa] sm:$0xff]
    %v3188 = vld [vmem:[%s2360 + $0x202] sm:$0xff]
    %v3189 = vld [vmem:[%s2360 + $0x212] sm:$0xff]
    %v3190 = vld [vmem:[%s2360 + $0x21a] sm:$0xff]
    %v3191 = vld [vmem:[%s2360 + $0x22a] sm:$0xff]
    %v3192 = vld [vmem:[%s2360 + $0x232] sm:$0xff]
    %v3193 = vld [vmem:[%s2360 + $0x242] sm:$0xff]
    %v3194 = vld [vmem:[%s2360 + $0x24a] sm:$0xff]
    %v3195 = vld [vmem:[%s2360 + $0x25a] sm:$0xff]
    %v3196 = vld [vmem:[%s2360 + $0x262] sm:$0xff]
    %v3197 = vld [vmem:[%s2360 + $0x272] sm:$0xff]
    %v3198 = vld [vmem:[%s2360 + $0x27a] sm:$0xff]
    %v3199 = vld [vmem:[%s2360 + $0x28a] sm:$0xff]
    %v3200 = vld [vmem:[%s2360 + $0x292] sm:$0xff]
    %v3201 = vld [vmem:[%s2360 + $0x2a2] sm:$0xff]
    %v3202 = vld [vmem:[%s2360 + $0x2aa] sm:$0xff]
    %v3203 = vld [vmem:[%s2360 + $0x2ba] sm:$0xff]
    %v3204 = vld [vmem:[%s2360 + $0x2c2] sm:$0xff]
    %v3205 = vld [vmem:[%s2360 + $0x2d2] sm:$0xff]
    %v3206 = vld [vmem:[%s2360 + $0x2da] sm:$0xff]
    %v3207 = vld [vmem:[%s2360 + $0x2ea] sm:$0xff]
    %v3208 = vld [vmem:[%s2360 + $0x2f2] sm:$0xff]
    %v3209 = vld [vmem:[%s2360 + $0x302] sm:$0xff]
    %v3210 = vld [vmem:[%s2360 + $0x30a] sm:$0xff]
    %v3211 = vld [vmem:[%s2360 + $0x31a] sm:$0xff]
    %v3212 = vld [vmem:[%s2360 + $0x322] sm:$0xff]
    %v3213 = vpack.c.bf16 %v3150, %v3149
    %v3214 = vpack.c.bf16 %v3152, %v3151
    %v3215 = vpack.c.bf16 %v3154, %v3153
    %v3216 = vpack.c.bf16 %v3156, %v3155
    %v3217 = vpack.c.bf16 %v3158, %v3157
    %v3218 = vpack.c.bf16 %v3160, %v3159
    %v3219 = vpack.c.bf16 %v3162, %v3161
    %v3220 = vpack.c.bf16 %v3164, %v3163
    %v3221 = vpack.c.bf16 %v3166, %v3165
    %v3222 = vpack.c.bf16 %v3168, %v3167
    %v3223 = vpack.c.bf16 %v3170, %v3169
    %v3224 = vpack.c.bf16 %v3172, %v3171
    %v3225 = vpack.c.bf16 %v3174, %v3173
    %v3226 = vpack.c.bf16 %v3176, %v3175
    %v3227 = vpack.c.bf16 %v3178, %v3177
    %v3228 = vpack.c.bf16 %v3180, %v3179
    %v3229 = vpack.c.bf16 %v3182, %v3181
    %v3230 = vpack.c.bf16 %v3184, %v3183
    %v3231 = vpack.c.bf16 %v3186, %v3185
    %v3232 = vpack.c.bf16 %v3188, %v3187
    %v3233 = vpack.c.bf16 %v3190, %v3189
    %v3234 = vpack.c.bf16 %v3192, %v3191
    %v3235 = vpack.c.bf16 %v3194, %v3193
    %v3236 = vpack.c.bf16 %v3196, %v3195
    %v3237 = vpack.c.bf16 %v3198, %v3197
    %v3238 = vpack.c.bf16 %v3200, %v3199
    %v3239 = vpack.c.bf16 %v3202, %v3201
    %v3240 = vpack.c.bf16 %v3204, %v3203
    %v3241 = vpack.c.bf16 %v3206, %v3205
    %v3242 = vpack.c.bf16 %v3208, %v3207
    %v3243 = vpack.c.bf16 %v3210, %v3209
    %v3244 = vpack.c.bf16 %v3212, %v3211
    %s3245 = scalar_lea.vmem %s1, 512
    %v3246 = vld [vmem:[%s3245] sm:$0xf]
    %v3247 = vld [vmem:[%s3245 + $0x4] sm:$0xf]
    %v3248 = vld [vmem:[%s3245 + $0x8] sm:$0xf]
    %v3249 = vld [vmem:[%s3245 + $0xc] sm:$0xf]
    %v3250 = vld [vmem:[%s3245 + $0x10] sm:$0xf]
    %v3251 = vld [vmem:[%s3245 + $0x14] sm:$0xf]
    %v3252 = vld [vmem:[%s3245 + $0x18] sm:$0xf]
    %v3253 = vld [vmem:[%s3245 + $0x1c] sm:$0xf]
    %v3254 = vld [vmem:[%s3245 + $0x20] sm:$0xf]
    %v3255 = vld [vmem:[%s3245 + $0x24] sm:$0xf]
    %v3256 = vld [vmem:[%s3245 + $0x28] sm:$0xf]
    %v3257 = vld [vmem:[%s3245 + $0x2c] sm:$0xf]
    %v3258 = vld [vmem:[%s3245 + $0x30] sm:$0xf]
    %v3259 = vld [vmem:[%s3245 + $0x34] sm:$0xf]
    %v3260 = vld [vmem:[%s3245 + $0x38] sm:$0xf]
    %v3261 = vld [vmem:[%s3245 + $0x3c] sm:$0xf]
    %v3278 = vunpack.c.l.b16 %v3246
    %v3279 = vunpack.c.l.b16 %v3247
    %v3280 = vunpack.c.l.b16 %v3248
    %v3281 = vunpack.c.l.b16 %v3249
    %v3282 = vunpack.c.l.b16 %v3250
    %v3283 = vunpack.c.l.b16 %v3251
    %v3284 = vunpack.c.l.b16 %v3252
    %v3285 = vunpack.c.l.b16 %v3253
    %v3286 = vunpack.c.l.b16 %v3254
    %v3287 = vunpack.c.l.b16 %v3255
    %v3288 = vunpack.c.l.b16 %v3256
    %v3289 = vunpack.c.l.b16 %v3257
    %v3290 = vunpack.c.l.b16 %v3258
    %v3291 = vunpack.c.l.b16 %v3259
    %v3292 = vunpack.c.l.b16 %v3260
    %v3293 = vunpack.c.l.b16 %v3261
    %v3294 = vpack.c.b16 %v3279, %v3278
    %v3295 = vpack.c.b16 %v3281, %v3280
    %v3296 = vpack.c.b16 %v3283, %v3282
    %v3297 = vpack.c.b16 %v3285, %v3284
    %v3298 = vpack.c.b16 %v3287, %v3286
    %v3299 = vpack.c.b16 %v3289, %v3288
    %v3300 = vpack.c.b16 %v3291, %v3290
    %v3301 = vpack.c.b16 %v3293, %v3292
    %3310 = vmatpush.bf16.msra.mxu0 %v3301
    %3311 = vmatpush.bf16.msra.mxu0 %v3300
    %3312 = vmatpush.bf16.msra.mxu0 %v3299
    %3313 = vmatpush.bf16.msra.mxu0 %v3298
    %3314 = vmatpush.bf16.msra.mxu0 %v3297
    %3315 = vmatpush.bf16.msra.mxu0 %v3296
    %3316 = vmatpush.bf16.msra.mxu0 %v3295
    %3317 = vmatpush.bf16.msra.mxu0 %v3294
    %3318 = vmatmul.bf16.gmra.mxu0 %v3213
    %v3319 = vpop.f32.mrf.mxu0
    %v3320 = vadd.f32 0.0, %v3319
    %v3321 = vpop.f32.mrf.mxu0
    %v3322 = vadd.f32 0.0, %v3321
    %3323 = vmatmul.bf16.gmra.mxu0 %v3214
    %v3324 = vpop.f32.mrf.mxu0
    %v3325 = vadd.f32 0.0, %v3324
    %v3326 = vpop.f32.mrf.mxu0
    %v3327 = vadd.f32 0.0, %v3326
    %3328 = vmatmul.bf16.gmra.mxu0 %v3215
    %v3329 = vpop.f32.mrf.mxu0
    %v3330 = vadd.f32 0.0, %v3329
    %v3331 = vpop.f32.mrf.mxu0
    %v3332 = vadd.f32 0.0, %v3331
    %3333 = vmatmul.bf16.gmra.mxu0 %v3216
    %v3334 = vpop.f32.mrf.mxu0
    %v3335 = vadd.f32 0.0, %v3334
    %v3336 = vpop.f32.mrf.mxu0
    %v3337 = vadd.f32 0.0, %v3336
    %3338 = vmatmul.bf16.gmra.mxu0 %v3217
    %v3339 = vpop.f32.mrf.mxu0
    %v3340 = vadd.f32 0.0, %v3339
    %v3341 = vpop.f32.mrf.mxu0
    %v3342 = vadd.f32 0.0, %v3341
    %3343 = vmatmul.bf16.gmra.mxu0 %v3218
    %v3344 = vpop.f32.mrf.mxu0
    %v3345 = vadd.f32 0.0, %v3344
    %v3346 = vpop.f32.mrf.mxu0
    %v3347 = vadd.f32 0.0, %v3346
    %3348 = vmatmul.bf16.gmra.mxu0 %v3219
    %v3349 = vpop.f32.mrf.mxu0
    %v3350 = vadd.f32 0.0, %v3349
    %v3351 = vpop.f32.mrf.mxu0
    %v3352 = vadd.f32 0.0, %v3351
    %3353 = vmatmul.bf16.gmra.mxu0 %v3220
    %v3354 = vpop.f32.mrf.mxu0
    %v3355 = vadd.f32 0.0, %v3354
    %v3356 = vpop.f32.mrf.mxu0
    %v3357 = vadd.f32 0.0, %v3356
    %3358 = vmatmul.bf16.gmra.mxu0 %v3221
    %v3359 = vpop.f32.mrf.mxu0
    %v3360 = vadd.f32 0.0, %v3359
    %v3361 = vpop.f32.mrf.mxu0
    %v3362 = vadd.f32 0.0, %v3361
    %3363 = vmatmul.bf16.gmra.mxu0 %v3222
    %v3364 = vpop.f32.mrf.mxu0
    %v3365 = vadd.f32 0.0, %v3364
    %v3366 = vpop.f32.mrf.mxu0
    %v3367 = vadd.f32 0.0, %v3366
    %3368 = vmatmul.bf16.gmra.mxu0 %v3223
    %v3369 = vpop.f32.mrf.mxu0
    %v3370 = vadd.f32 0.0, %v3369
    %v3371 = vpop.f32.mrf.mxu0
    %v3372 = vadd.f32 0.0, %v3371
    %3373 = vmatmul.bf16.gmra.mxu0 %v3224
    %v3374 = vpop.f32.mrf.mxu0
    %v3375 = vadd.f32 0.0, %v3374
    %v3376 = vpop.f32.mrf.mxu0
    %v3377 = vadd.f32 0.0, %v3376
    %3378 = vmatmul.bf16.gmra.mxu0 %v3225
    %v3379 = vpop.f32.mrf.mxu0
    %v3380 = vadd.f32 0.0, %v3379
    %v3381 = vpop.f32.mrf.mxu0
    %v3382 = vadd.f32 0.0, %v3381
    %3383 = vmatmul.bf16.gmra.mxu0 %v3226
    %v3384 = vpop.f32.mrf.mxu0
    %v3385 = vadd.f32 0.0, %v3384
    %v3386 = vpop.f32.mrf.mxu0
    %v3387 = vadd.f32 0.0, %v3386
    %3388 = vmatmul.bf16.gmra.mxu0 %v3227
    %v3389 = vpop.f32.mrf.mxu0
    %v3390 = vadd.f32 0.0, %v3389
    %v3391 = vpop.f32.mrf.mxu0
    %v3392 = vadd.f32 0.0, %v3391
    %3393 = vmatmul.bf16.gmra.mxu0 %v3228
    %v3394 = vpop.f32.mrf.mxu0
    %v3395 = vadd.f32 0.0, %v3394
    %v3396 = vpop.f32.mrf.mxu0
    %v3397 = vadd.f32 0.0, %v3396
    %3398 = vmatmul.bf16.gmra.mxu0 %v3229
    %v3399 = vpop.f32.mrf.mxu0
    %v3400 = vadd.f32 0.0, %v3399
    %v3401 = vpop.f32.mrf.mxu0
    %v3402 = vadd.f32 0.0, %v3401
    %3403 = vmatmul.bf16.gmra.mxu0 %v3230
    %v3404 = vpop.f32.mrf.mxu0
    %v3405 = vadd.f32 0.0, %v3404
    %v3406 = vpop.f32.mrf.mxu0
    %v3407 = vadd.f32 0.0, %v3406
    %3408 = vmatmul.bf16.gmra.mxu0 %v3231
    %v3409 = vpop.f32.mrf.mxu0
    %v3410 = vadd.f32 0.0, %v3409
    %v3411 = vpop.f32.mrf.mxu0
    %v3412 = vadd.f32 0.0, %v3411
    %3413 = vmatmul.bf16.gmra.mxu0 %v3232
    %v3414 = vpop.f32.mrf.mxu0
    %v3415 = vadd.f32 0.0, %v3414
    %v3416 = vpop.f32.mrf.mxu0
    %v3417 = vadd.f32 0.0, %v3416
    %3418 = vmatmul.bf16.gmra.mxu0 %v3233
    %v3419 = vpop.f32.mrf.mxu0
    %v3420 = vadd.f32 0.0, %v3419
    %v3421 = vpop.f32.mrf.mxu0
    %v3422 = vadd.f32 0.0, %v3421
    %3423 = vmatmul.bf16.gmra.mxu0 %v3234
    %v3424 = vpop.f32.mrf.mxu0
    %v3425 = vadd.f32 0.0, %v3424
    %v3426 = vpop.f32.mrf.mxu0
    %v3427 = vadd.f32 0.0, %v3426
    %3428 = vmatmul.bf16.gmra.mxu0 %v3235
    %v3429 = vpop.f32.mrf.mxu0
    %v3430 = vadd.f32 0.0, %v3429
    %v3431 = vpop.f32.mrf.mxu0
    %v3432 = vadd.f32 0.0, %v3431
    %3433 = vmatmul.bf16.gmra.mxu0 %v3236
    %v3434 = vpop.f32.mrf.mxu0
    %v3435 = vadd.f32 0.0, %v3434
    %v3436 = vpop.f32.mrf.mxu0
    %v3437 = vadd.f32 0.0, %v3436
    %3438 = vmatmul.bf16.gmra.mxu0 %v3237
    %v3439 = vpop.f32.mrf.mxu0
    %v3440 = vadd.f32 0.0, %v3439
    %v3441 = vpop.f32.mrf.mxu0
    %v3442 = vadd.f32 0.0, %v3441
    %3443 = vmatmul.bf16.gmra.mxu0 %v3238
    %v3444 = vpop.f32.mrf.mxu0
    %v3445 = vadd.f32 0.0, %v3444
    %v3446 = vpop.f32.mrf.mxu0
    %v3447 = vadd.f32 0.0, %v3446
    %3448 = vmatmul.bf16.gmra.mxu0 %v3239
    %v3449 = vpop.f32.mrf.mxu0
    %v3450 = vadd.f32 0.0, %v3449
    %v3451 = vpop.f32.mrf.mxu0
    %v3452 = vadd.f32 0.0, %v3451
    %3453 = vmatmul.bf16.gmra.mxu0 %v3240
    %v3454 = vpop.f32.mrf.mxu0
    %v3455 = vadd.f32 0.0, %v3454
    %v3456 = vpop.f32.mrf.mxu0
    %v3457 = vadd.f32 0.0, %v3456
    %3458 = vmatmul.bf16.gmra.mxu0 %v3241
    %v3459 = vpop.f32.mrf.mxu0
    %v3460 = vadd.f32 0.0, %v3459
    %v3461 = vpop.f32.mrf.mxu0
    %v3462 = vadd.f32 0.0, %v3461
    %3463 = vmatmul.bf16.gmra.mxu0 %v3242
    %v3464 = vpop.f32.mrf.mxu0
    %v3465 = vadd.f32 0.0, %v3464
    %v3466 = vpop.f32.mrf.mxu0
    %v3467 = vadd.f32 0.0, %v3466
    %3468 = vmatmul.bf16.gmra.mxu0 %v3243
    %v3469 = vpop.f32.mrf.mxu0
    %v3470 = vadd.f32 0.0, %v3469
    %v3471 = vpop.f32.mrf.mxu0
    %v3472 = vadd.f32 0.0, %v3471
    %3473 = vmatmul.bf16.gmra.mxu0 %v3244
    %v3474 = vpop.f32.mrf.mxu0
    %v3475 = vadd.f32 0.0, %v3474
    %v3476 = vpop.f32.mrf.mxu0
    %v3477 = vadd.f32 0.0, %v3476
    %3478 = vdwg.mxu0
    %v3479 = vadd.f32 %v3085, %v3320
    %v3480 = vadd.f32 %v3086, %v3322
    %v3481 = vadd.f32 %v3087, %v3325
    %v3482 = vadd.f32 %v3088, %v3327
    %v3483 = vadd.f32 %v3089, %v3330
    %v3484 = vadd.f32 %v3090, %v3332
    %v3485 = vadd.f32 %v3091, %v3335
    %v3486 = vadd.f32 %v3092, %v3337
    %v3487 = vadd.f32 %v3093, %v3340
    %v3488 = vadd.f32 %v3094, %v3342
    %v3489 = vadd.f32 %v3095, %v3345
    %v3490 = vadd.f32 %v3096, %v3347
    %v3491 = vadd.f32 %v3097, %v3350
    %v3492 = vadd.f32 %v3098, %v3352
    %v3493 = vadd.f32 %v3099, %v3355
    %v3494 = vadd.f32 %v3100, %v3357
    %v3495 = vadd.f32 %v3101, %v3360
    %v3496 = vadd.f32 %v3102, %v3362
    %v3497 = vadd.f32 %v3103, %v3365
    %v3498 = vadd.f32 %v3104, %v3367
    %v3499 = vadd.f32 %v3105, %v3370
    %v3500 = vadd.f32 %v3106, %v3372
    %v3501 = vadd.f32 %v3107, %v3375
    %v3502 = vadd.f32 %v3108, %v3377
    %v3503 = vadd.f32 %v3109, %v3380
    %v3504 = vadd.f32 %v3110, %v3382
    %v3505 = vadd.f32 %v3111, %v3385
    %v3506 = vadd.f32 %v3112, %v3387
    %v3507 = vadd.f32 %v3113, %v3390
    %v3508 = vadd.f32 %v3114, %v3392
    %v3509 = vadd.f32 %v3115, %v3395
    %v3510 = vadd.f32 %v3116, %v3397
    %v3511 = vadd.f32 %v3117, %v3400
    %v3512 = vadd.f32 %v3118, %v3402
    %v3513 = vadd.f32 %v3119, %v3405
    %v3514 = vadd.f32 %v3120, %v3407
    %v3515 = vadd.f32 %v3121, %v3410
    %v3516 = vadd.f32 %v3122, %v3412
    %v3517 = vadd.f32 %v3123, %v3415
    %v3518 = vadd.f32 %v3124, %v3417
    %v3519 = vadd.f32 %v3125, %v3420
    %v3520 = vadd.f32 %v3126, %v3422
    %v3521 = vadd.f32 %v3127, %v3425
    %v3522 = vadd.f32 %v3128, %v3427
    %v3523 = vadd.f32 %v3129, %v3430
    %v3524 = vadd.f32 %v3130, %v3432
    %v3525 = vadd.f32 %v3131, %v3435
    %v3526 = vadd.f32 %v3132, %v3437
    %v3527 = vadd.f32 %v3133, %v3440
    %v3528 = vadd.f32 %v3134, %v3442
    %v3529 = vadd.f32 %v3135, %v3445
    %v3530 = vadd.f32 %v3136, %v3447
    %v3531 = vadd.f32 %v3137, %v3450
    %v3532 = vadd.f32 %v3138, %v3452
    %v3533 = vadd.f32 %v3139, %v3455
    %v3534 = vadd.f32 %v3140, %v3457
    %v3535 = vadd.f32 %v3141, %v3460
    %v3536 = vadd.f32 %v3142, %v3462
    %v3537 = vadd.f32 %v3143, %v3465
    %v3538 = vadd.f32 %v3144, %v3467
    %v3539 = vadd.f32 %v3145, %v3470
    %v3540 = vadd.f32 %v3146, %v3472
    %v3541 = vadd.f32 %v3147, %v3475
    %v3542 = vadd.f32 %v3148, %v3477
    %v3543 = vld [vmem:[%s2] sm:$0x1]
    %v3545 = vperm.slane %v3543, 0
    %v3547 = vadd.f32 %v3479, %v3545
    %v3548 = vadd.f32 %v3480, %v3545
    %v3549 = vadd.f32 %v3481, %v3545
    %v3550 = vadd.f32 %v3482, %v3545
    %v3551 = vadd.f32 %v3483, %v3545
    %v3552 = vadd.f32 %v3484, %v3545
    %v3553 = vadd.f32 %v3485, %v3545
    %v3554 = vadd.f32 %v3486, %v3545
    %v3555 = vadd.f32 %v3487, %v3545
    %v3556 = vadd.f32 %v3488, %v3545
    %v3557 = vadd.f32 %v3489, %v3545
    %v3558 = vadd.f32 %v3490, %v3545
    %v3559 = vadd.f32 %v3491, %v3545
    %v3560 = vadd.f32 %v3492, %v3545
    %v3561 = vadd.f32 %v3493, %v3545
    %v3562 = vadd.f32 %v3494, %v3545
    %v3563 = vadd.f32 %v3495, %v3545
    %v3564 = vadd.f32 %v3496, %v3545
    %v3565 = vadd.f32 %v3497, %v3545
    %v3566 = vadd.f32 %v3498, %v3545
    %v3567 = vadd.f32 %v3499, %v3545
    %v3568 = vadd.f32 %v3500, %v3545
    %v3569 = vadd.f32 %v3501, %v3545
    %v3570 = vadd.f32 %v3502, %v3545
    %v3571 = vadd.f32 %v3503, %v3545
    %v3572 = vadd.f32 %v3504, %v3545
    %v3573 = vadd.f32 %v3505, %v3545
    %v3574 = vadd.f32 %v3506, %v3545
    %v3575 = vadd.f32 %v3507, %v3545
    %v3576 = vadd.f32 %v3508, %v3545
    %v3577 = vadd.f32 %v3509, %v3545
    %v3578 = vadd.f32 %v3510, %v3545
    %v3579 = vadd.f32 %v3511, %v3545
    %v3580 = vadd.f32 %v3512, %v3545
    %v3581 = vadd.f32 %v3513, %v3545
    %v3582 = vadd.f32 %v3514, %v3545
    %v3583 = vadd.f32 %v3515, %v3545
    %v3584 = vadd.f32 %v3516, %v3545
    %v3585 = vadd.f32 %v3517, %v3545
    %v3586 = vadd.f32 %v3518, %v3545
    %v3587 = vadd.f32 %v3519, %v3545
    %v3588 = vadd.f32 %v3520, %v3545
    %v3589 = vadd.f32 %v3521, %v3545
    %v3590 = vadd.f32 %v3522, %v3545
    %v3591 = vadd.f32 %v3523, %v3545
    %v3592 = vadd.f32 %v3524, %v3545
    %v3593 = vadd.f32 %v3525, %v3545
    %v3594 = vadd.f32 %v3526, %v3545
    %v3595 = vadd.f32 %v3527, %v3545
    %v3596 = vadd.f32 %v3528, %v3545
    %v3597 = vadd.f32 %v3529, %v3545
    %v3598 = vadd.f32 %v3530, %v3545
    %v3599 = vadd.f32 %v3531, %v3545
    %v3600 = vadd.f32 %v3532, %v3545
    %v3601 = vadd.f32 %v3533, %v3545
    %v3602 = vadd.f32 %v3534, %v3545
    %v3603 = vadd.f32 %v3535, %v3545
    %v3604 = vadd.f32 %v3536, %v3545
    %v3605 = vadd.f32 %v3537, %v3545
    %v3606 = vadd.f32 %v3538, %v3545
    %v3607 = vadd.f32 %v3539, %v3545
    %v3608 = vadd.f32 %v3540, %v3545
    %v3609 = vadd.f32 %v3541, %v3545
    %v3610 = vadd.f32 %v3542, %v3545
    %v3611 = vmax.f32 %v3547, 0.0
    %v3612 = vmax.f32 %v3548, 0.0
    %v3613 = vmax.f32 %v3549, 0.0
    %v3614 = vmax.f32 %v3550, 0.0
    %v3615 = vmax.f32 %v3551, 0.0
    %v3616 = vmax.f32 %v3552, 0.0
    %v3617 = vmax.f32 %v3553, 0.0
    %v3618 = vmax.f32 %v3554, 0.0
    %v3619 = vmax.f32 %v3555, 0.0
    %v3620 = vmax.f32 %v3556, 0.0
    %v3621 = vmax.f32 %v3557, 0.0
    %v3622 = vmax.f32 %v3558, 0.0
    %v3623 = vmax.f32 %v3559, 0.0
    %v3624 = vmax.f32 %v3560, 0.0
    %v3625 = vmax.f32 %v3561, 0.0
    %v3626 = vmax.f32 %v3562, 0.0
    %v3627 = vmax.f32 %v3563, 0.0
    %v3628 = vmax.f32 %v3564, 0.0
    %v3629 = vmax.f32 %v3565, 0.0
    %v3630 = vmax.f32 %v3566, 0.0
    %v3631 = vmax.f32 %v3567, 0.0
    %v3632 = vmax.f32 %v3568, 0.0
    %v3633 = vmax.f32 %v3569, 0.0
    %v3634 = vmax.f32 %v3570, 0.0
    %v3635 = vmax.f32 %v3571, 0.0
    %v3636 = vmax.f32 %v3572, 0.0
    %v3637 = vmax.f32 %v3573, 0.0
    %v3638 = vmax.f32 %v3574, 0.0
    %v3639 = vmax.f32 %v3575, 0.0
    %v3640 = vmax.f32 %v3576, 0.0
    %v3641 = vmax.f32 %v3577, 0.0
    %v3642 = vmax.f32 %v3578, 0.0
    %v3643 = vmax.f32 %v3579, 0.0
    %v3644 = vmax.f32 %v3580, 0.0
    %v3645 = vmax.f32 %v3581, 0.0
    %v3646 = vmax.f32 %v3582, 0.0
    %v3647 = vmax.f32 %v3583, 0.0
    %v3648 = vmax.f32 %v3584, 0.0
    %v3649 = vmax.f32 %v3585, 0.0
    %v3650 = vmax.f32 %v3586, 0.0
    %v3651 = vmax.f32 %v3587, 0.0
    %v3652 = vmax.f32 %v3588, 0.0
    %v3653 = vmax.f32 %v3589, 0.0
    %v3654 = vmax.f32 %v3590, 0.0
    %v3655 = vmax.f32 %v3591, 0.0
    %v3656 = vmax.f32 %v3592, 0.0
    %v3657 = vmax.f32 %v3593, 0.0
    %v3658 = vmax.f32 %v3594, 0.0
    %v3659 = vmax.f32 %v3595, 0.0
    %v3660 = vmax.f32 %v3596, 0.0
    %v3661 = vmax.f32 %v3597, 0.0
    %v3662 = vmax.f32 %v3598, 0.0
    %v3663 = vmax.f32 %v3599, 0.0
    %v3664 = vmax.f32 %v3600, 0.0
    %v3665 = vmax.f32 %v3601, 0.0
    %v3666 = vmax.f32 %v3602, 0.0
    %v3667 = vmax.f32 %v3603, 0.0
    %v3668 = vmax.f32 %v3604, 0.0
    %v3669 = vmax.f32 %v3605, 0.0
    %v3670 = vmax.f32 %v3606, 0.0
    %v3671 = vmax.f32 %v3607, 0.0
    %v3672 = vmax.f32 %v3608, 0.0
    %v3673 = vmax.f32 %v3609, 0.0
    %v3674 = vmax.f32 %v3610, 0.0
    %v3675 = vmax.f32 %v3611, %v3613
    %v3676 = vmax.f32 %v3612, %v3614
    %v3677 = vmax.f32 %v3615, %v3617
    %v3678 = vmax.f32 %v3616, %v3618
    %v3679 = vmax.f32 %v3619, %v3621
    %v3680 = vmax.f32 %v3620, %v3622
    %v3681 = vmax.f32 %v3623, %v3625
    %v3682 = vmax.f32 %v3624, %v3626
    %v3683 = vmax.f32 %v3627, %v3629
    %v3684 = vmax.f32 %v3628, %v3630
    %v3685 = vmax.f32 %v3631, %v3633
    %v3686 = vmax.f32 %v3632, %v3634
    %v3687 = vmax.f32 %v3635, %v3637
    %v3688 = vmax.f32 %v3636, %v3638
    %v3689 = vmax.f32 %v3639, %v3641
    %v3690 = vmax.f32 %v3640, %v3642
    %v3691 = vmax.f32 %v3643, %v3645
    %v3692 = vmax.f32 %v3644, %v3646
    %v3693 = vmax.f32 %v3647, %v3649
    %v3694 = vmax.f32 %v3648, %v3650
    %v3695 = vmax.f32 %v3651, %v3653
    %v3696 = vmax.f32 %v3652, %v3654
    %v3697 = vmax.f32 %v3655, %v3657
    %v3698 = vmax.f32 %v3656, %v3658
    %v3699 = vmax.f32 %v3659, %v3661
    %v3700 = vmax.f32 %v3660, %v3662
    %v3701 = vmax.f32 %v3663, %v3665
    %v3702 = vmax.f32 %v3664, %v3666
    %v3703 = vmax.f32 %v3667, %v3669
    %v3704 = vmax.f32 %v3668, %v3670
    %v3705 = vmax.f32 %v3671, %v3673
    %v3706 = vmax.f32 %v3672, %v3674
    %v3723 = vrot.slane %v3675, 1
    %v3724 = vrot.slane %v3677, 1
    %v3725 = vrot.slane %v3679, 1
    %v3726 = vrot.slane %v3681, 1
    %v3727 = vrot.slane %v3683, 1
    %v3728 = vrot.slane %v3685, 1
    %v3729 = vrot.slane %v3687, 1
    %v3730 = vrot.slane %v3689, 1
    %v3731 = vrot.slane %v3691, 1
    %v3732 = vrot.slane %v3693, 1
    %v3733 = vrot.slane %v3695, 1
    %v3734 = vrot.slane %v3697, 1
    %v3735 = vrot.slane %v3699, 1
    %v3736 = vrot.slane %v3701, 1
    %v3737 = vrot.slane %v3703, 1
    %v3738 = vrot.slane %v3705, 1
    %v3755 = vmax.f32 %v3675, %v3723
    %v3756 = vmax.f32 %v3677, %v3724
    %v3757 = vmax.f32 %v3679, %v3725
    %v3758 = vmax.f32 %v3681, %v3726
    %v3759 = vmax.f32 %v3683, %v3727
    %v3760 = vmax.f32 %v3685, %v3728
    %v3761 = vmax.f32 %v3687, %v3729
    %v3762 = vmax.f32 %v3689, %v3730
    %v3763 = vmax.f32 %v3691, %v3731
    %v3764 = vmax.f32 %v3693, %v3732
    %v3765 = vmax.f32 %v3695, %v3733
    %v3766 = vmax.f32 %v3697, %v3734
    %v3767 = vmax.f32 %v3699, %v3735
    %v3768 = vmax.f32 %v3701, %v3736
    %v3769 = vmax.f32 %v3703, %v3737
    %v3770 = vmax.f32 %v3705, %v3738
    %s3771 = scalar_lea.vmem [#allocation2], 16
    %3772 = vst [vmem:[%s3771 + $0x1] sm:$0x1] %v3755
    %3773 = vst [vmem:[%s3771 + $0x11] sm:$0x1] %v3756
    %3774 = vst [vmem:[%s3771 + $0x21] sm:$0x1] %v3757
    %3775 = vst [vmem:[%s3771 + $0x31] sm:$0x1] %v3758
    %3776 = vst [vmem:[%s3771 + $0x41] sm:$0x1] %v3759
    %3777 = vst [vmem:[%s3771 + $0x51] sm:$0x1] %v3760
    %3778 = vst [vmem:[%s3771 + $0x61] sm:$0x1] %v3761
    %3779 = vst [vmem:[%s3771 + $0x71] sm:$0x1] %v3762
    %3780 = vst [vmem:[%s3771 + $0xa1] sm:$0x1] %v3763
    %3781 = vst [vmem:[%s3771 + $0xb1] sm:$0x1] %v3764
    %3782 = vst [vmem:[%s3771 + $0xc1] sm:$0x1] %v3765
    %3783 = vst [vmem:[%s3771 + $0xd1] sm:$0x1] %v3766
    %3784 = vst [vmem:[%s3771 + $0xe1] sm:$0x1] %v3767
    %3785 = vst [vmem:[%s3771 + $0xf1] sm:$0x1] %v3768
    %3786 = vst [vmem:[%s3771 + $0x101] sm:$0x1] %v3769
    %3787 = vst [vmem:[%s3771 + $0x111] sm:$0x1] %v3770
    %3788 = vst [vmem:[%s3771] sm:$0x4] %v3755
    %3789 = vst [vmem:[%s3771 + $0x10] sm:$0x4] %v3756
    %3790 = vst [vmem:[%s3771 + $0x20] sm:$0x4] %v3757
    %3791 = vst [vmem:[%s3771 + $0x30] sm:$0x4] %v3758
    %3792 = vst [vmem:[%s3771 + $0x40] sm:$0x4] %v3759
    %3793 = vst [vmem:[%s3771 + $0x50] sm:$0x4] %v3760
    %3794 = vst [vmem:[%s3771 + $0x60] sm:$0x4] %v3761
    %3795 = vst [vmem:[%s3771 + $0x70] sm:$0x4] %v3762
    %3796 = vst [vmem:[%s3771 + $0xa0] sm:$0x4] %v3763
    %3797 = vst [vmem:[%s3771 + $0xb0] sm:$0x4] %v3764
    %3798 = vst [vmem:[%s3771 + $0xc0] sm:$0x4] %v3765
    %3799 = vst [vmem:[%s3771 + $0xd0] sm:$0x4] %v3766
    %3800 = vst [vmem:[%s3771 + $0xe0] sm:$0x4] %v3767
    %3801 = vst [vmem:[%s3771 + $0xf0] sm:$0x4] %v3768
    %3802 = vst [vmem:[%s3771 + $0x100] sm:$0x4] %v3769
    %3803 = vst [vmem:[%s3771 + $0x110] sm:$0x4] %v3770
    %3804 = vst [vmem:[%s3771 - $0x1] sm:$0x10] %v3755
    %3805 = vst [vmem:[%s3771 + $0xf] sm:$0x10] %v3756
    %3806 = vst [vmem:[%s3771 + $0x1f] sm:$0x10] %v3757
    %3807 = vst [vmem:[%s3771 + $0x2f] sm:$0x10] %v3758
    %3808 = vst [vmem:[%s3771 + $0x3f] sm:$0x10] %v3759
    %3809 = vst [vmem:[%s3771 + $0x4f] sm:$0x10] %v3760
    %3810 = vst [vmem:[%s3771 + $0x5f] sm:$0x10] %v3761
    %3811 = vst [vmem:[%s3771 + $0x6f] sm:$0x10] %v3762
    %3812 = vst [vmem:[%s3771 + $0x9f] sm:$0x10] %v3763
    %3813 = vst [vmem:[%s3771 + $0xaf] sm:$0x10] %v3764
    %3814 = vst [vmem:[%s3771 + $0xbf] sm:$0x10] %v3765
    %3815 = vst [vmem:[%s3771 + $0xcf] sm:$0x10] %v3766
    %3816 = vst [vmem:[%s3771 + $0xdf] sm:$0x10] %v3767
    %3817 = vst [vmem:[%s3771 + $0xef] sm:$0x10] %v3768
    %3818 = vst [vmem:[%s3771 + $0xff] sm:$0x10] %v3769
    %3819 = vst [vmem:[%s3771 + $0x10f] sm:$0x10] %v3770
    %3820 = vst [vmem:[%s3771 - $0x2] sm:$0x40] %v3755
    %3821 = vst [vmem:[%s3771 + $0xe] sm:$0x40] %v3756
    %3822 = vst [vmem:[%s3771 + $0x1e] sm:$0x40] %v3757
    %3823 = vst [vmem:[%s3771 + $0x2e] sm:$0x40] %v3758
    %3824 = vst [vmem:[%s3771 + $0x3e] sm:$0x40] %v3759
    %3825 = vst [vmem:[%s3771 + $0x4e] sm:$0x40] %v3760
    %3826 = vst [vmem:[%s3771 + $0x5e] sm:$0x40] %v3761
    %3827 = vst [vmem:[%s3771 + $0x6e] sm:$0x40] %v3762
    %3828 = vst [vmem:[%s3771 + $0x9e] sm:$0x40] %v3763
    %3829 = vst [vmem:[%s3771 + $0xae] sm:$0x40] %v3764
    %3830 = vst [vmem:[%s3771 + $0xbe] sm:$0x40] %v3765
    %3831 = vst [vmem:[%s3771 + $0xce] sm:$0x40] %v3766
    %3832 = vst [vmem:[%s3771 + $0xde] sm:$0x40] %v3767
    %3833 = vst [vmem:[%s3771 + $0xee] sm:$0x40] %v3768
    %3834 = vst [vmem:[%s3771 + $0xfe] sm:$0x40] %v3769
    %3835 = vst [vmem:[%s3771 + $0x10e] sm:$0x40] %v3770
    %v3852 = vrot.slane %v3676, 1
    %v3853 = vrot.slane %v3678, 1
    %v3854 = vrot.slane %v3680, 1
    %v3855 = vrot.slane %v3682, 1
    %v3856 = vrot.slane %v3684, 1
    %v3857 = vrot.slane %v3686, 1
    %v3858 = vrot.slane %v3688, 1
    %v3859 = vrot.slane %v3690, 1
    %v3860 = vrot.slane %v3692, 1
    %v3861 = vrot.slane %v3694, 1
    %v3862 = vrot.slane %v3696, 1
    %v3863 = vrot.slane %v3698, 1
    %v3864 = vrot.slane %v3700, 1
    %v3865 = vrot.slane %v3702, 1
    %v3866 = vrot.slane %v3704, 1
    %v3867 = vrot.slane %v3706, 1
    %v3884 = vmax.f32 %v3676, %v3852
    %v3885 = vmax.f32 %v3678, %v3853
    %v3886 = vmax.f32 %v3680, %v3854
    %v3887 = vmax.f32 %v3682, %v3855
    %v3888 = vmax.f32 %v3684, %v3856
    %v3889 = vmax.f32 %v3686, %v3857
    %v3890 = vmax.f32 %v3688, %v3858
    %v3891 = vmax.f32 %v3690, %v3859
    %v3892 = vmax.f32 %v3692, %v3860
    %v3893 = vmax.f32 %v3694, %v3861
    %v3894 = vmax.f32 %v3696, %v3862
    %v3895 = vmax.f32 %v3698, %v3863
    %v3896 = vmax.f32 %v3700, %v3864
    %v3897 = vmax.f32 %v3702, %v3865
    %v3898 = vmax.f32 %v3704, %v3866
    %v3899 = vmax.f32 %v3706, %v3867
    %3900 = vst [vmem:[%s3771 + $0x5] sm:$0x1] %v3884
    %3901 = vst [vmem:[%s3771 + $0x15] sm:$0x1] %v3885
    %3902 = vst [vmem:[%s3771 + $0x25] sm:$0x1] %v3886
    %3903 = vst [vmem:[%s3771 + $0x35] sm:$0x1] %v3887
    %3904 = vst [vmem:[%s3771 + $0x45] sm:$0x1] %v3888
    %3905 = vst [vmem:[%s3771 + $0x55] sm:$0x1] %v3889
    %3906 = vst [vmem:[%s3771 + $0x65] sm:$0x1] %v3890
    %3907 = vst [vmem:[%s3771 + $0x75] sm:$0x1] %v3891
    %3908 = vst [vmem:[%s3771 + $0xa5] sm:$0x1] %v3892
    %3909 = vst [vmem:[%s3771 + $0xb5] sm:$0x1] %v3893
    %3910 = vst [vmem:[%s3771 + $0xc5] sm:$0x1] %v3894
    %3911 = vst [vmem:[%s3771 + $0xd5] sm:$0x1] %v3895
    %3912 = vst [vmem:[%s3771 + $0xe5] sm:$0x1] %v3896
    %3913 = vst [vmem:[%s3771 + $0xf5] sm:$0x1] %v3897
    %3914 = vst [vmem:[%s3771 + $0x105] sm:$0x1] %v3898
    %3915 = vst [vmem:[%s3771 + $0x115] sm:$0x1] %v3899
    %3916 = vst [vmem:[%s3771 + $0x4] sm:$0x4] %v3884
    %3917 = vst [vmem:[%s3771 + $0x14] sm:$0x4] %v3885
    %3918 = vst [vmem:[%s3771 + $0x24] sm:$0x4] %v3886
    %3919 = vst [vmem:[%s3771 + $0x34] sm:$0x4] %v3887
    %3920 = vst [vmem:[%s3771 + $0x44] sm:$0x4] %v3888
    %3921 = vst [vmem:[%s3771 + $0x54] sm:$0x4] %v3889
    %3922 = vst [vmem:[%s3771 + $0x64] sm:$0x4] %v3890
    %3923 = vst [vmem:[%s3771 + $0x74] sm:$0x4] %v3891
    %3924 = vst [vmem:[%s3771 + $0xa4] sm:$0x4] %v3892
    %3925 = vst [vmem:[%s3771 + $0xb4] sm:$0x4] %v3893
    %3926 = vst [vmem:[%s3771 + $0xc4] sm:$0x4] %v3894
    %3927 = vst [vmem:[%s3771 + $0xd4] sm:$0x4] %v3895
    %3928 = vst [vmem:[%s3771 + $0xe4] sm:$0x4] %v3896
    %3929 = vst [vmem:[%s3771 + $0xf4] sm:$0x4] %v3897
    %3930 = vst [vmem:[%s3771 + $0x104] sm:$0x4] %v3898
    %3931 = vst [vmem:[%s3771 + $0x114] sm:$0x4] %v3899
    %3932 = vst [vmem:[%s3771 + $0x3] sm:$0x10] %v3884
    %3933 = vst [vmem:[%s3771 + $0x13] sm:$0x10] %v3885
    %3934 = vst [vmem:[%s3771 + $0x23] sm:$0x10] %v3886
    %3935 = vst [vmem:[%s3771 + $0x33] sm:$0x10] %v3887
    %3936 = vst [vmem:[%s3771 + $0x43] sm:$0x10] %v3888
    %3937 = vst [vmem:[%s3771 + $0x53] sm:$0x10] %v3889
    %3938 = vst [vmem:[%s3771 + $0x63] sm:$0x10] %v3890
    %3939 = vst [vmem:[%s3771 + $0x73] sm:$0x10] %v3891
    %3940 = vst [vmem:[%s3771 + $0xa3] sm:$0x10] %v3892
    %3941 = vst [vmem:[%s3771 + $0xb3] sm:$0x10] %v3893
    %3942 = vst [vmem:[%s3771 + $0xc3] sm:$0x10] %v3894
    %3943 = vst [vmem:[%s3771 + $0xd3] sm:$0x10] %v3895
    %3944 = vst [vmem:[%s3771 + $0xe3] sm:$0x10] %v3896
    %3945 = vst [vmem:[%s3771 + $0xf3] sm:$0x10] %v3897
    %3946 = vst [vmem:[%s3771 + $0x103] sm:$0x10] %v3898
    %3947 = vst [vmem:[%s3771 + $0x113] sm:$0x10] %v3899
    %3948 = vst [vmem:[%s3771 + $0x2] sm:$0x40] %v3884
    %3949 = vst [vmem:[%s3771 + $0x12] sm:$0x40] %v3885
    %3950 = vst [vmem:[%s3771 + $0x22] sm:$0x40] %v3886
    %3951 = vst [vmem:[%s3771 + $0x32] sm:$0x40] %v3887
    %3952 = vst [vmem:[%s3771 + $0x42] sm:$0x40] %v3888
    %3953 = vst [vmem:[%s3771 + $0x52] sm:$0x40] %v3889
    %3954 = vst [vmem:[%s3771 + $0x62] sm:$0x40] %v3890
    %3955 = vst [vmem:[%s3771 + $0x72] sm:$0x40] %v3891
    %3956 = vst [vmem:[%s3771 + $0xa2] sm:$0x40] %v3892
    %3957 = vst [vmem:[%s3771 + $0xb2] sm:$0x40] %v3893
    %3958 = vst [vmem:[%s3771 + $0xc2] sm:$0x40] %v3894
    %3959 = vst [vmem:[%s3771 + $0xd2] sm:$0x40] %v3895
    %3960 = vst [vmem:[%s3771 + $0xe2] sm:$0x40] %v3896
    %3961 = vst [vmem:[%s3771 + $0xf2] sm:$0x40] %v3897
    %3962 = vst [vmem:[%s3771 + $0x102] sm:$0x40] %v3898
    %3963 = vst [vmem:[%s3771 + $0x112] sm:$0x40] %v3899
    %v3964 = vld [vmem:[#allocation2] sm:$0xff]
    %v3965 = vld [vmem:[#allocation2 + $0x10] sm:$0xff]
    %v3966 = vld [vmem:[#allocation2 + $0x20] sm:$0xff]
    %v3967 = vld [vmem:[#allocation2 + $0x30] sm:$0xff]
    %v3968 = vld [vmem:[#allocation2 + $0x40] sm:$0xff]
    %v3969 = vld [vmem:[#allocation2 + $0x50] sm:$0xff]
    %v3970 = vld [vmem:[#allocation2 + $0x60] sm:$0xff]
    %v3971 = vld [vmem:[#allocation2 + $0x70] sm:$0xff]
    %v3972 = vld [vmem:[#allocation2 + $0xa0] sm:$0xff]
    %v3973 = vld [vmem:[#allocation2 + $0xb0] sm:$0xff]
    %v3974 = vld [vmem:[#allocation2 + $0xc0] sm:$0xff]
    %v3975 = vld [vmem:[#allocation2 + $0xd0] sm:$0xff]
    %v3976 = vld [vmem:[#allocation2 + $0xe0] sm:$0xff]
    %v3977 = vld [vmem:[#allocation2 + $0xf0] sm:$0xff]
    %v3978 = vld [vmem:[#allocation2 + $0x100] sm:$0xff]
    %v3979 = vld [vmem:[#allocation2 + $0x110] sm:$0xff]
    %v3980 = vpack.c.bf16 %v3965, %v3964
    %v3981 = vpack.c.bf16 %v3967, %v3966
    %v3982 = vpack.c.bf16 %v3969, %v3968
    %v3983 = vpack.c.bf16 %v3971, %v3970
    %v3984 = vpack.c.bf16 %v3973, %v3972
    %v3985 = vpack.c.bf16 %v3975, %v3974
    %v3986 = vpack.c.bf16 %v3977, %v3976
    %v3987 = vpack.c.bf16 %v3979, %v3978
    %v3988 = vld [vmem:[%s3] sm:$0xf]
    %v3989 = vld [vmem:[%s3 + $0x4] sm:$0xf]
    %v3990 = vld [vmem:[%s3 + $0x8] sm:$0xf]
    %v3991 = vld [vmem:[%s3 + $0xc] sm:$0xf]
    %v3992 = vld [vmem:[%s3 + $0x10] sm:$0xf]
    %v3993 = vld [vmem:[%s3 + $0x14] sm:$0xf]
    %v3994 = vld [vmem:[%s3 + $0x18] sm:$0xf]
    %v3995 = vld [vmem:[%s3 + $0x1c] sm:$0xf]
    %v3996 = vld [vmem:[%s3 + $0x20] sm:$0xf]
    %v3997 = vld [vmem:[%s3 + $0x24] sm:$0xf]
    %v3998 = vld [vmem:[%s3 + $0x28] sm:$0xf]
    %v3999 = vld [vmem:[%s3 + $0x2c] sm:$0xf]
    %v4000 = vld [vmem:[%s3 + $0x30] sm:$0xf]
    %v4001 = vld [vmem:[%s3 + $0x34] sm:$0xf]
    %v4002 = vld [vmem:[%s3 + $0x38] sm:$0xf]
    %v4003 = vld [vmem:[%s3 + $0x3c] sm:$0xf]
    %v4004 = vld [vmem:[#allocation2 + $0x1] sm:$0xff]
    %v4005 = vld [vmem:[#allocation2 + $0x11] sm:$0xff]
    %v4006 = vld [vmem:[#allocation2 + $0x21] sm:$0xff]
    %v4007 = vld [vmem:[#allocation2 + $0x31] sm:$0xff]
    %v4008 = vld [vmem:[#allocation2 + $0x41] sm:$0xff]
    %v4009 = vld [vmem:[#allocation2 + $0x51] sm:$0xff]
    %v4010 = vld [vmem:[#allocation2 + $0x61] sm:$0xff]
    %v4011 = vld [vmem:[#allocation2 + $0x71] sm:$0xff]
    %v4012 = vld [vmem:[#allocation2 + $0xa1] sm:$0xff]
    %v4013 = vld [vmem:[#allocation2 + $0xb1] sm:$0xff]
    %v4014 = vld [vmem:[#allocation2 + $0xc1] sm:$0xff]
    %v4015 = vld [vmem:[#allocation2 + $0xd1] sm:$0xff]
    %v4016 = vld [vmem:[#allocation2 + $0xe1] sm:$0xff]
    %v4017 = vld [vmem:[#allocation2 + $0xf1] sm:$0xff]
    %v4018 = vld [vmem:[#allocation2 + $0x101] sm:$0xff]
    %v4019 = vld [vmem:[#allocation2 + $0x111] sm:$0xff]
    %v4020 = vpack.c.bf16 %v4005, %v4004
    %v4021 = vpack.c.bf16 %v4007, %v4006
    %v4022 = vpack.c.bf16 %v4009, %v4008
    %v4023 = vpack.c.bf16 %v4011, %v4010
    %v4024 = vpack.c.bf16 %v4013, %v4012
    %v4025 = vpack.c.bf16 %v4015, %v4014
    %v4026 = vpack.c.bf16 %v4017, %v4016
    %v4027 = vpack.c.bf16 %v4019, %v4018
    %s4028 = scalar_lea.vmem %s3, 64
    %v4029 = vld [vmem:[%s4028] sm:$0xf]
    %v4030 = vld [vmem:[%s4028 + $0x4] sm:$0xf]
    %v4031 = vld [vmem:[%s4028 + $0x8] sm:$0xf]
    %v4032 = vld [vmem:[%s4028 + $0xc] sm:$0xf]
    %v4033 = vld [vmem:[%s4028 + $0x10] sm:$0xf]
    %v4034 = vld [vmem:[%s4028 + $0x14] sm:$0xf]
    %v4035 = vld [vmem:[%s4028 + $0x18] sm:$0xf]
    %v4036 = vld [vmem:[%s4028 + $0x1c] sm:$0xf]
    %v4037 = vld [vmem:[%s4028 + $0x20] sm:$0xf]
    %v4038 = vld [vmem:[%s4028 + $0x24] sm:$0xf]
    %v4039 = vld [vmem:[%s4028 + $0x28] sm:$0xf]
    %v4040 = vld [vmem:[%s4028 + $0x2c] sm:$0xf]
    %v4041 = vld [vmem:[%s4028 + $0x30] sm:$0xf]
    %v4042 = vld [vmem:[%s4028 + $0x34] sm:$0xf]
    %v4043 = vld [vmem:[%s4028 + $0x38] sm:$0xf]
    %v4044 = vld [vmem:[%s4028 + $0x3c] sm:$0xf]
    %v4061 = vunpack.c.l.b16 %v4029
    %v4062 = vunpack.c.l.b16 %v4030
    %v4063 = vunpack.c.l.b16 %v4031
    %v4064 = vunpack.c.l.b16 %v4032
    %v4065 = vunpack.c.l.b16 %v4033
    %v4066 = vunpack.c.l.b16 %v4034
    %v4067 = vunpack.c.l.b16 %v4035
    %v4068 = vunpack.c.l.b16 %v4036
    %v4069 = vunpack.c.l.b16 %v4037
    %v4070 = vunpack.c.l.b16 %v4038
    %v4071 = vunpack.c.l.b16 %v4039
    %v4072 = vunpack.c.l.b16 %v4040
    %v4073 = vunpack.c.l.b16 %v4041
    %v4074 = vunpack.c.l.b16 %v4042
    %v4075 = vunpack.c.l.b16 %v4043
    %v4076 = vunpack.c.l.b16 %v4044
    %v4077 = vpack.c.b16 %v4062, %v4061
    %v4078 = vpack.c.b16 %v4064, %v4063
    %v4079 = vpack.c.b16 %v4066, %v4065
    %v4080 = vpack.c.b16 %v4068, %v4067
    %v4081 = vpack.c.b16 %v4070, %v4069
    %v4082 = vpack.c.b16 %v4072, %v4071
    %v4083 = vpack.c.b16 %v4074, %v4073
    %v4084 = vpack.c.b16 %v4076, %v4075
    %4093 = vmatpush.bf16.msra.mxu0 %v4084
    %4094 = vmatpush.bf16.msra.mxu0 %v4083
    %4095 = vmatpush.bf16.msra.mxu0 %v4082
    %4096 = vmatpush.bf16.msra.mxu0 %v4081
    %4097 = vmatpush.bf16.msra.mxu0 %v4080
    %4098 = vmatpush.bf16.msra.mxu0 %v4079
    %4099 = vmatpush.bf16.msra.mxu0 %v4078
    %4100 = vmatpush.bf16.msra.mxu0 %v4077
    %4101 = vmatmul.bf16.gmra.mxu0 %v4020
    %v4102 = vpop.f32.mrf.mxu0
    %v4103 = vadd.f32 0.0, %v4102
    %v4104 = vpop.f32.mrf.mxu0
    %v4105 = vadd.f32 0.0, %v4104
    %4106 = vmatmul.bf16.gmra.mxu0 %v4021
    %v4107 = vpop.f32.mrf.mxu0
    %v4108 = vadd.f32 0.0, %v4107
    %v4109 = vpop.f32.mrf.mxu0
    %v4110 = vadd.f32 0.0, %v4109
    %4111 = vmatmul.bf16.gmra.mxu0 %v4022
    %v4112 = vpop.f32.mrf.mxu0
    %v4113 = vadd.f32 0.0, %v4112
    %v4114 = vpop.f32.mrf.mxu0
    %v4115 = vadd.f32 0.0, %v4114
    %4116 = vmatmul.bf16.gmra.mxu0 %v4023
    %v4117 = vpop.f32.mrf.mxu0
    %v4118 = vadd.f32 0.0, %v4117
    %v4119 = vpop.f32.mrf.mxu0
    %v4120 = vadd.f32 0.0, %v4119
    %4121 = vmatmul.bf16.gmra.mxu0 %v4024
    %v4122 = vpop.f32.mrf.mxu0
    %v4123 = vadd.f32 0.0, %v4122
    %v4124 = vpop.f32.mrf.mxu0
    %v4125 = vadd.f32 0.0, %v4124
    %4126 = vmatmul.bf16.gmra.mxu0 %v4025
    %v4127 = vpop.f32.mrf.mxu0
    %v4128 = vadd.f32 0.0, %v4127
    %v4129 = vpop.f32.mrf.mxu0
    %v4130 = vadd.f32 0.0, %v4129
    %4131 = vmatmul.bf16.gmra.mxu0 %v4026
    %v4132 = vpop.f32.mrf.mxu0
    %v4133 = vadd.f32 0.0, %v4132
    %v4134 = vpop.f32.mrf.mxu0
    %v4135 = vadd.f32 0.0, %v4134
    %4136 = vmatmul.bf16.gmra.mxu0 %v4027
    %v4137 = vpop.f32.mrf.mxu0
    %v4138 = vadd.f32 0.0, %v4137
    %v4139 = vpop.f32.mrf.mxu0
    %v4140 = vadd.f32 0.0, %v4139
    %4141 = vdwg.mxu0
    %v4158 = vunpack.c.l.b16 %v3988
    %v4159 = vunpack.c.l.b16 %v3989
    %v4160 = vunpack.c.l.b16 %v3990
    %v4161 = vunpack.c.l.b16 %v3991
    %v4162 = vunpack.c.l.b16 %v3992
    %v4163 = vunpack.c.l.b16 %v3993
    %v4164 = vunpack.c.l.b16 %v3994
    %v4165 = vunpack.c.l.b16 %v3995
    %v4166 = vunpack.c.l.b16 %v3996
    %v4167 = vunpack.c.l.b16 %v3997
    %v4168 = vunpack.c.l.b16 %v3998
    %v4169 = vunpack.c.l.b16 %v3999
    %v4170 = vunpack.c.l.b16 %v4000
    %v4171 = vunpack.c.l.b16 %v4001
    %v4172 = vunpack.c.l.b16 %v4002
    %v4173 = vunpack.c.l.b16 %v4003
    %v4174 = vpack.c.b16 %v4159, %v4158
    %v4175 = vpack.c.b16 %v4161, %v4160
    %v4176 = vpack.c.b16 %v4163, %v4162
    %v4177 = vpack.c.b16 %v4165, %v4164
    %v4178 = vpack.c.b16 %v4167, %v4166
    %v4179 = vpack.c.b16 %v4169, %v4168
    %v4180 = vpack.c.b16 %v4171, %v4170
    %v4181 = vpack.c.b16 %v4173, %v4172
    %4190 = vmatpush.bf16.msra.mxu0 %v4181
    %4191 = vmatpush.bf16.msra.mxu0 %v4180
    %4192 = vmatpush.bf16.msra.mxu0 %v4179
    %4193 = vmatpush.bf16.msra.mxu0 %v4178
    %4194 = vmatpush.bf16.msra.mxu0 %v4177
    %4195 = vmatpush.bf16.msra.mxu0 %v4176
    %4196 = vmatpush.bf16.msra.mxu0 %v4175
    %4197 = vmatpush.bf16.msra.mxu0 %v4174
    %4198 = vmatmul.bf16.gmra.mxu0 %v3980
    %v4199 = vpop.f32.mrf.mxu0
    %v4200 = vadd.f32 %v4103, %v4199
    %v4201 = vpop.f32.mrf.mxu0
    %v4202 = vadd.f32 %v4105, %v4201
    %4203 = vmatmul.bf16.gmra.mxu0 %v3981
    %v4204 = vpop.f32.mrf.mxu0
    %v4205 = vadd.f32 %v4108, %v4204
    %v4206 = vpop.f32.mrf.mxu0
    %v4207 = vadd.f32 %v4110, %v4206
    %4208 = vmatmul.bf16.gmra.mxu0 %v3982
    %v4209 = vpop.f32.mrf.mxu0
    %v4210 = vadd.f32 %v4113, %v4209
    %v4211 = vpop.f32.mrf.mxu0
    %v4212 = vadd.f32 %v4115, %v4211
    %4213 = vmatmul.bf16.gmra.mxu0 %v3983
    %v4214 = vpop.f32.mrf.mxu0
    %v4215 = vadd.f32 %v4118, %v4214
    %v4216 = vpop.f32.mrf.mxu0
    %v4217 = vadd.f32 %v4120, %v4216
    %4218 = vmatmul.bf16.gmra.mxu0 %v3984
    %v4219 = vpop.f32.mrf.mxu0
    %v4220 = vadd.f32 %v4123, %v4219
    %v4221 = vpop.f32.mrf.mxu0
    %v4222 = vadd.f32 %v4125, %v4221
    %4223 = vmatmul.bf16.gmra.mxu0 %v3985
    %v4224 = vpop.f32.mrf.mxu0
    %v4225 = vadd.f32 %v4128, %v4224
    %v4226 = vpop.f32.mrf.mxu0
    %v4227 = vadd.f32 %v4130, %v4226
    %4228 = vmatmul.bf16.gmra.mxu0 %v3986
    %v4229 = vpop.f32.mrf.mxu0
    %v4230 = vadd.f32 %v4133, %v4229
    %v4231 = vpop.f32.mrf.mxu0
    %v4232 = vadd.f32 %v4135, %v4231
    %4233 = vmatmul.bf16.gmra.mxu0 %v3987
    %v4234 = vpop.f32.mrf.mxu0
    %v4235 = vadd.f32 %v4138, %v4234
    %v4236 = vpop.f32.mrf.mxu0
    %v4237 = vadd.f32 %v4140, %v4236
    %4238 = vdwg.mxu0
    %v4239 = vld [vmem:[#allocation2 + $0x2] sm:$0xff]
    %v4240 = vld [vmem:[#allocation2 + $0x12] sm:$0xff]
    %v4241 = vld [vmem:[#allocation2 + $0x22] sm:$0xff]
    %v4242 = vld [vmem:[#allocation2 + $0x32] sm:$0xff]
    %v4243 = vld [vmem:[#allocation2 + $0x42] sm:$0xff]
    %v4244 = vld [vmem:[#allocation2 + $0x52] sm:$0xff]
    %v4245 = vld [vmem:[#allocation2 + $0x62] sm:$0xff]
    %v4246 = vld [vmem:[#allocation2 + $0x72] sm:$0xff]
    %v4247 = vld [vmem:[#allocation2 + $0xa2] sm:$0xff]
    %v4248 = vld [vmem:[#allocation2 + $0xb2] sm:$0xff]
    %v4249 = vld [vmem:[#allocation2 + $0xc2] sm:$0xff]
    %v4250 = vld [vmem:[#allocation2 + $0xd2] sm:$0xff]
    %v4251 = vld [vmem:[#allocation2 + $0xe2] sm:$0xff]
    %v4252 = vld [vmem:[#allocation2 + $0xf2] sm:$0xff]
    %v4253 = vld [vmem:[#allocation2 + $0x102] sm:$0xff]
    %v4254 = vld [vmem:[#allocation2 + $0x112] sm:$0xff]
    %v4255 = vpack.c.bf16 %v4240, %v4239
    %v4256 = vpack.c.bf16 %v4242, %v4241
    %v4257 = vpack.c.bf16 %v4244, %v4243
    %v4258 = vpack.c.bf16 %v4246, %v4245
    %v4259 = vpack.c.bf16 %v4248, %v4247
    %v4260 = vpack.c.bf16 %v4250, %v4249
    %v4261 = vpack.c.bf16 %v4252, %v4251
    %v4262 = vpack.c.bf16 %v4254, %v4253
    %s4263 = scalar_lea.vmem %s3, 128
    %v4264 = vld [vmem:[%s4263] sm:$0xf]
    %v4265 = vld [vmem:[%s4263 + $0x4] sm:$0xf]
    %v4266 = vld [vmem:[%s4263 + $0x8] sm:$0xf]
    %v4267 = vld [vmem:[%s4263 + $0xc] sm:$0xf]
    %v4268 = vld [vmem:[%s4263 + $0x10] sm:$0xf]
    %v4269 = vld [vmem:[%s4263 + $0x14] sm:$0xf]
    %v4270 = vld [vmem:[%s4263 + $0x18] sm:$0xf]
    %v4271 = vld [vmem:[%s4263 + $0x1c] sm:$0xf]
    %v4272 = vld [vmem:[%s4263 + $0x20] sm:$0xf]
    %v4273 = vld [vmem:[%s4263 + $0x24] sm:$0xf]
    %v4274 = vld [vmem:[%s4263 + $0x28] sm:$0xf]
    %v4275 = vld [vmem:[%s4263 + $0x2c] sm:$0xf]
    %v4276 = vld [vmem:[%s4263 + $0x30] sm:$0xf]
    %v4277 = vld [vmem:[%s4263 + $0x34] sm:$0xf]
    %v4278 = vld [vmem:[%s4263 + $0x38] sm:$0xf]
    %v4279 = vld [vmem:[%s4263 + $0x3c] sm:$0xf]
    %v4296 = vunpack.c.l.b16 %v4264
    %v4297 = vunpack.c.l.b16 %v4265
    %v4298 = vunpack.c.l.b16 %v4266
    %v4299 = vunpack.c.l.b16 %v4267
    %v4300 = vunpack.c.l.b16 %v4268
    %v4301 = vunpack.c.l.b16 %v4269
    %v4302 = vunpack.c.l.b16 %v4270
    %v4303 = vunpack.c.l.b16 %v4271
    %v4304 = vunpack.c.l.b16 %v4272
    %v4305 = vunpack.c.l.b16 %v4273
    %v4306 = vunpack.c.l.b16 %v4274
    %v4307 = vunpack.c.l.b16 %v4275
    %v4308 = vunpack.c.l.b16 %v4276
    %v4309 = vunpack.c.l.b16 %v4277
    %v4310 = vunpack.c.l.b16 %v4278
    %v4311 = vunpack.c.l.b16 %v4279
    %v4312 = vpack.c.b16 %v4297, %v4296
    %v4313 = vpack.c.b16 %v4299, %v4298
    %v4314 = vpack.c.b16 %v4301, %v4300
    %v4315 = vpack.c.b16 %v4303, %v4302
    %v4316 = vpack.c.b16 %v4305, %v4304
    %v4317 = vpack.c.b16 %v4307, %v4306
    %v4318 = vpack.c.b16 %v4309, %v4308
    %v4319 = vpack.c.b16 %v4311, %v4310
    %4328 = vmatpush.bf16.msra.mxu0 %v4319
    %4329 = vmatpush.bf16.msra.mxu0 %v4318
    %4330 = vmatpush.bf16.msra.mxu0 %v4317
    %4331 = vmatpush.bf16.msra.mxu0 %v4316
    %4332 = vmatpush.bf16.msra.mxu0 %v4315
    %4333 = vmatpush.bf16.msra.mxu0 %v4314
    %4334 = vmatpush.bf16.msra.mxu0 %v4313
    %4335 = vmatpush.bf16.msra.mxu0 %v4312
    %4336 = vmatmul.bf16.gmra.mxu0 %v4255
    %v4337 = vpop.f32.mrf.mxu0
    %v4338 = vadd.f32 0.0, %v4337
    %v4339 = vpop.f32.mrf.mxu0
    %v4340 = vadd.f32 0.0, %v4339
    %4341 = vmatmul.bf16.gmra.mxu0 %v4256
    %v4342 = vpop.f32.mrf.mxu0
    %v4343 = vadd.f32 0.0, %v4342
    %v4344 = vpop.f32.mrf.mxu0
    %v4345 = vadd.f32 0.0, %v4344
    %4346 = vmatmul.bf16.gmra.mxu0 %v4257
    %v4347 = vpop.f32.mrf.mxu0
    %v4348 = vadd.f32 0.0, %v4347
    %v4349 = vpop.f32.mrf.mxu0
    %v4350 = vadd.f32 0.0, %v4349
    %4351 = vmatmul.bf16.gmra.mxu0 %v4258
    %v4352 = vpop.f32.mrf.mxu0
    %v4353 = vadd.f32 0.0, %v4352
    %v4354 = vpop.f32.mrf.mxu0
    %v4355 = vadd.f32 0.0, %v4354
    %4356 = vmatmul.bf16.gmra.mxu0 %v4259
    %v4357 = vpop.f32.mrf.mxu0
    %v4358 = vadd.f32 0.0, %v4357
    %v4359 = vpop.f32.mrf.mxu0
    %v4360 = vadd.f32 0.0, %v4359
    %4361 = vmatmul.bf16.gmra.mxu0 %v4260
    %v4362 = vpop.f32.mrf.mxu0
    %v4363 = vadd.f32 0.0, %v4362
    %v4364 = vpop.f32.mrf.mxu0
    %v4365 = vadd.f32 0.0, %v4364
    %4366 = vmatmul.bf16.gmra.mxu0 %v4261
    %v4367 = vpop.f32.mrf.mxu0
    %v4368 = vadd.f32 0.0, %v4367
    %v4369 = vpop.f32.mrf.mxu0
    %v4370 = vadd.f32 0.0, %v4369
    %4371 = vmatmul.bf16.gmra.mxu0 %v4262
    %v4372 = vpop.f32.mrf.mxu0
    %v4373 = vadd.f32 0.0, %v4372
    %v4374 = vpop.f32.mrf.mxu0
    %v4375 = vadd.f32 0.0, %v4374
    %4376 = vdwg.mxu0
    %v4377 = vadd.f32 %v4200, %v4338
    %v4378 = vadd.f32 %v4202, %v4340
    %v4379 = vadd.f32 %v4205, %v4343
    %v4380 = vadd.f32 %v4207, %v4345
    %v4381 = vadd.f32 %v4210, %v4348
    %v4382 = vadd.f32 %v4212, %v4350
    %v4383 = vadd.f32 %v4215, %v4353
    %v4384 = vadd.f32 %v4217, %v4355
    %v4385 = vadd.f32 %v4220, %v4358
    %v4386 = vadd.f32 %v4222, %v4360
    %v4387 = vadd.f32 %v4225, %v4363
    %v4388 = vadd.f32 %v4227, %v4365
    %v4389 = vadd.f32 %v4230, %v4368
    %v4390 = vadd.f32 %v4232, %v4370
    %v4391 = vadd.f32 %v4235, %v4373
    %v4392 = vadd.f32 %v4237, %v4375
    %v4393 = vld [vmem:[%s3771] sm:$0xff]
    %v4394 = vld [vmem:[%s3771 + $0x10] sm:$0xff]
    %v4395 = vld [vmem:[%s3771 + $0x20] sm:$0xff]
    %v4396 = vld [vmem:[%s3771 + $0x30] sm:$0xff]
    %v4397 = vld [vmem:[%s3771 + $0x40] sm:$0xff]
    %v4398 = vld [vmem:[%s3771 + $0x50] sm:$0xff]
    %v4399 = vld [vmem:[%s3771 + $0x60] sm:$0xff]
    %v4400 = vld [vmem:[%s3771 + $0x70] sm:$0xff]
    %v4401 = vld [vmem:[%s3771 + $0xa0] sm:$0xff]
    %v4402 = vld [vmem:[%s3771 + $0xb0] sm:$0xff]
    %v4403 = vld [vmem:[%s3771 + $0xc0] sm:$0xff]
    %v4404 = vld [vmem:[%s3771 + $0xd0] sm:$0xff]
    %v4405 = vld [vmem:[%s3771 + $0xe0] sm:$0xff]
    %v4406 = vld [vmem:[%s3771 + $0xf0] sm:$0xff]
    %v4407 = vld [vmem:[%s3771 + $0x100] sm:$0xff]
    %v4408 = vld [vmem:[%s3771 + $0x110] sm:$0xff]
    %v4409 = vpack.c.bf16 %v4394, %v4393
    %v4410 = vpack.c.bf16 %v4396, %v4395
    %v4411 = vpack.c.bf16 %v4398, %v4397
    %v4412 = vpack.c.bf16 %v4400, %v4399
    %v4413 = vpack.c.bf16 %v4402, %v4401
    %v4414 = vpack.c.bf16 %v4404, %v4403
    %v4415 = vpack.c.bf16 %v4406, %v4405
    %v4416 = vpack.c.bf16 %v4408, %v4407
    %s4417 = scalar_lea.vmem %s3, 192
    %v4418 = vld [vmem:[%s4417] sm:$0xf]
    %v4419 = vld [vmem:[%s4417 + $0x4] sm:$0xf]
    %v4420 = vld [vmem:[%s4417 + $0x8] sm:$0xf]
    %v4421 = vld [vmem:[%s4417 + $0xc] sm:$0xf]
    %v4422 = vld [vmem:[%s4417 + $0x10] sm:$0xf]
    %v4423 = vld [vmem:[%s4417 + $0x14] sm:$0xf]
    %v4424 = vld [vmem:[%s4417 + $0x18] sm:$0xf]
    %v4425 = vld [vmem:[%s4417 + $0x1c] sm:$0xf]
    %v4426 = vld [vmem:[%s4417 + $0x20] sm:$0xf]
    %v4427 = vld [vmem:[%s4417 + $0x24] sm:$0xf]
    %v4428 = vld [vmem:[%s4417 + $0x28] sm:$0xf]
    %v4429 = vld [vmem:[%s4417 + $0x2c] sm:$0xf]
    %v4430 = vld [vmem:[%s4417 + $0x30] sm:$0xf]
    %v4431 = vld [vmem:[%s4417 + $0x34] sm:$0xf]
    %v4432 = vld [vmem:[%s4417 + $0x38] sm:$0xf]
    %v4433 = vld [vmem:[%s4417 + $0x3c] sm:$0xf]
    %v4450 = vunpack.c.l.b16 %v4418
    %v4451 = vunpack.c.l.b16 %v4419
    %v4452 = vunpack.c.l.b16 %v4420
    %v4453 = vunpack.c.l.b16 %v4421
    %v4454 = vunpack.c.l.b16 %v4422
    %v4455 = vunpack.c.l.b16 %v4423
    %v4456 = vunpack.c.l.b16 %v4424
    %v4457 = vunpack.c.l.b16 %v4425
    %v4458 = vunpack.c.l.b16 %v4426
    %v4459 = vunpack.c.l.b16 %v4427
    %v4460 = vunpack.c.l.b16 %v4428
    %v4461 = vunpack.c.l.b16 %v4429
    %v4462 = vunpack.c.l.b16 %v4430
    %v4463 = vunpack.c.l.b16 %v4431
    %v4464 = vunpack.c.l.b16 %v4432
    %v4465 = vunpack.c.l.b16 %v4433
    %v4466 = vpack.c.b16 %v4451, %v4450
    %v4467 = vpack.c.b16 %v4453, %v4452
    %v4468 = vpack.c.b16 %v4455, %v4454
    %v4469 = vpack.c.b16 %v4457, %v4456
    %v4470 = vpack.c.b16 %v4459, %v4458
    %v4471 = vpack.c.b16 %v4461, %v4460
    %v4472 = vpack.c.b16 %v4463, %v4462
    %v4473 = vpack.c.b16 %v4465, %v4464
    %4482 = vmatpush.bf16.msra.mxu0 %v4473
    %4483 = vmatpush.bf16.msra.mxu0 %v4472
    %4484 = vmatpush.bf16.msra.mxu0 %v4471
    %4485 = vmatpush.bf16.msra.mxu0 %v4470
    %4486 = vmatpush.bf16.msra.mxu0 %v4469
    %4487 = vmatpush.bf16.msra.mxu0 %v4468
    %4488 = vmatpush.bf16.msra.mxu0 %v4467
    %4489 = vmatpush.bf16.msra.mxu0 %v4466
    %4490 = vmatmul.bf16.gmra.mxu0 %v4409
    %v4491 = vpop.f32.mrf.mxu0
    %v4492 = vadd.f32 0.0, %v4491
    %v4493 = vpop.f32.mrf.mxu0
    %v4494 = vadd.f32 0.0, %v4493
    %4495 = vmatmul.bf16.gmra.mxu0 %v4410
    %v4496 = vpop.f32.mrf.mxu0
    %v4497 = vadd.f32 0.0, %v4496
    %v4498 = vpop.f32.mrf.mxu0
    %v4499 = vadd.f32 0.0, %v4498
    %4500 = vmatmul.bf16.gmra.mxu0 %v4411
    %v4501 = vpop.f32.mrf.mxu0
    %v4502 = vadd.f32 0.0, %v4501
    %v4503 = vpop.f32.mrf.mxu0
    %v4504 = vadd.f32 0.0, %v4503
    %4505 = vmatmul.bf16.gmra.mxu0 %v4412
    %v4506 = vpop.f32.mrf.mxu0
    %v4507 = vadd.f32 0.0, %v4506
    %v4508 = vpop.f32.mrf.mxu0
    %v4509 = vadd.f32 0.0, %v4508
    %4510 = vmatmul.bf16.gmra.mxu0 %v4413
    %v4511 = vpop.f32.mrf.mxu0
    %v4512 = vadd.f32 0.0, %v4511
    %v4513 = vpop.f32.mrf.mxu0
    %v4514 = vadd.f32 0.0, %v4513
    %4515 = vmatmul.bf16.gmra.mxu0 %v4414
    %v4516 = vpop.f32.mrf.mxu0
    %v4517 = vadd.f32 0.0, %v4516
    %v4518 = vpop.f32.mrf.mxu0
    %v4519 = vadd.f32 0.0, %v4518
    %4520 = vmatmul.bf16.gmra.mxu0 %v4415
    %v4521 = vpop.f32.mrf.mxu0
    %v4522 = vadd.f32 0.0, %v4521
    %v4523 = vpop.f32.mrf.mxu0
    %v4524 = vadd.f32 0.0, %v4523
    %4525 = vmatmul.bf16.gmra.mxu0 %v4416
    %v4526 = vpop.f32.mrf.mxu0
    %v4527 = vadd.f32 0.0, %v4526
    %v4528 = vpop.f32.mrf.mxu0
    %v4529 = vadd.f32 0.0, %v4528
    %4530 = vdwg.mxu0
    %v4531 = vadd.f32 %v4377, %v4492
    %v4532 = vadd.f32 %v4378, %v4494
    %v4533 = vadd.f32 %v4379, %v4497
    %v4534 = vadd.f32 %v4380, %v4499
    %v4535 = vadd.f32 %v4381, %v4502
    %v4536 = vadd.f32 %v4382, %v4504
    %v4537 = vadd.f32 %v4383, %v4507
    %v4538 = vadd.f32 %v4384, %v4509
    %v4539 = vadd.f32 %v4385, %v4512
    %v4540 = vadd.f32 %v4386, %v4514
    %v4541 = vadd.f32 %v4387, %v4517
    %v4542 = vadd.f32 %v4388, %v4519
    %v4543 = vadd.f32 %v4389, %v4522
    %v4544 = vadd.f32 %v4390, %v4524
    %v4545 = vadd.f32 %v4391, %v4527
    %v4546 = vadd.f32 %v4392, %v4529
    %v4547 = vld [vmem:[%s3771 + $0x1] sm:$0xff]
    %v4548 = vld [vmem:[%s3771 + $0x11] sm:$0xff]
    %v4549 = vld [vmem:[%s3771 + $0x21] sm:$0xff]
    %v4550 = vld [vmem:[%s3771 + $0x31] sm:$0xff]
    %v4551 = vld [vmem:[%s3771 + $0x41] sm:$0xff]
    %v4552 = vld [vmem:[%s3771 + $0x51] sm:$0xff]
    %v4553 = vld [vmem:[%s3771 + $0x61] sm:$0xff]
    %v4554 = vld [vmem:[%s3771 + $0x71] sm:$0xff]
    %v4555 = vld [vmem:[%s3771 + $0xa1] sm:$0xff]
    %v4556 = vld [vmem:[%s3771 + $0xb1] sm:$0xff]
    %v4557 = vld [vmem:[%s3771 + $0xc1] sm:$0xff]
    %v4558 = vld [vmem:[%s3771 + $0xd1] sm:$0xff]
    %v4559 = vld [vmem:[%s3771 + $0xe1] sm:$0xff]
    %v4560 = vld [vmem:[%s3771 + $0xf1] sm:$0xff]
    %v4561 = vld [vmem:[%s3771 + $0x101] sm:$0xff]
    %v4562 = vld [vmem:[%s3771 + $0x111] sm:$0xff]
    %v4563 = vpack.c.bf16 %v4548, %v4547
    %v4564 = vpack.c.bf16 %v4550, %v4549
    %v4565 = vpack.c.bf16 %v4552, %v4551
    %v4566 = vpack.c.bf16 %v4554, %v4553
    %v4567 = vpack.c.bf16 %v4556, %v4555
    %v4568 = vpack.c.bf16 %v4558, %v4557
    %v4569 = vpack.c.bf16 %v4560, %v4559
    %v4570 = vpack.c.bf16 %v4562, %v4561
    %s4571 = scalar_lea.vmem %s3, 256
    %v4572 = vld [vmem:[%s4571] sm:$0xf]
    %v4573 = vld [vmem:[%s4571 + $0x4] sm:$0xf]
    %v4574 = vld [vmem:[%s4571 + $0x8] sm:$0xf]
    %v4575 = vld [vmem:[%s4571 + $0xc] sm:$0xf]
    %v4576 = vld [vmem:[%s4571 + $0x10] sm:$0xf]
    %v4577 = vld [vmem:[%s4571 + $0x14] sm:$0xf]
    %v4578 = vld [vmem:[%s4571 + $0x18] sm:$0xf]
    %v4579 = vld [vmem:[%s4571 + $0x1c] sm:$0xf]
    %v4580 = vld [vmem:[%s4571 + $0x20] sm:$0xf]
    %v4581 = vld [vmem:[%s4571 + $0x24] sm:$0xf]
    %v4582 = vld [vmem:[%s4571 + $0x28] sm:$0xf]
    %v4583 = vld [vmem:[%s4571 + $0x2c] sm:$0xf]
    %v4584 = vld [vmem:[%s4571 + $0x30] sm:$0xf]
    %v4585 = vld [vmem:[%s4571 + $0x34] sm:$0xf]
    %v4586 = vld [vmem:[%s4571 + $0x38] sm:$0xf]
    %v4587 = vld [vmem:[%s4571 + $0x3c] sm:$0xf]
    %v4604 = vunpack.c.l.b16 %v4572
    %v4605 = vunpack.c.l.b16 %v4573
    %v4606 = vunpack.c.l.b16 %v4574
    %v4607 = vunpack.c.l.b16 %v4575
    %v4608 = vunpack.c.l.b16 %v4576
    %v4609 = vunpack.c.l.b16 %v4577
    %v4610 = vunpack.c.l.b16 %v4578
    %v4611 = vunpack.c.l.b16 %v4579
    %v4612 = vunpack.c.l.b16 %v4580
    %v4613 = vunpack.c.l.b16 %v4581
    %v4614 = vunpack.c.l.b16 %v4582
    %v4615 = vunpack.c.l.b16 %v4583
    %v4616 = vunpack.c.l.b16 %v4584
    %v4617 = vunpack.c.l.b16 %v4585
    %v4618 = vunpack.c.l.b16 %v4586
    %v4619 = vunpack.c.l.b16 %v4587
    %v4620 = vpack.c.b16 %v4605, %v4604
    %v4621 = vpack.c.b16 %v4607, %v4606
    %v4622 = vpack.c.b16 %v4609, %v4608
    %v4623 = vpack.c.b16 %v4611, %v4610
    %v4624 = vpack.c.b16 %v4613, %v4612
    %v4625 = vpack.c.b16 %v4615, %v4614
    %v4626 = vpack.c.b16 %v4617, %v4616
    %v4627 = vpack.c.b16 %v4619, %v4618
    %4636 = vmatpush.bf16.msra.mxu0 %v4627
    %4637 = vmatpush.bf16.msra.mxu0 %v4626
    %4638 = vmatpush.bf16.msra.mxu0 %v4625
    %4639 = vmatpush.bf16.msra.mxu0 %v4624
    %4640 = vmatpush.bf16.msra.mxu0 %v4623
    %4641 = vmatpush.bf16.msra.mxu0 %v4622
    %4642 = vmatpush.bf16.msra.mxu0 %v4621
    %4643 = vmatpush.bf16.msra.mxu0 %v4620
    %4644 = vmatmul.bf16.gmra.mxu0 %v4563
    %v4645 = vpop.f32.mrf.mxu0
    %v4646 = vadd.f32 0.0, %v4645
    %v4647 = vpop.f32.mrf.mxu0
    %v4648 = vadd.f32 0.0, %v4647
    %4649 = vmatmul.bf16.gmra.mxu0 %v4564
    %v4650 = vpop.f32.mrf.mxu0
    %v4651 = vadd.f32 0.0, %v4650
    %v4652 = vpop.f32.mrf.mxu0
    %v4653 = vadd.f32 0.0, %v4652
    %4654 = vmatmul.bf16.gmra.mxu0 %v4565
    %v4655 = vpop.f32.mrf.mxu0
    %v4656 = vadd.f32 0.0, %v4655
    %v4657 = vpop.f32.mrf.mxu0
    %v4658 = vadd.f32 0.0, %v4657
    %4659 = vmatmul.bf16.gmra.mxu0 %v4566
    %v4660 = vpop.f32.mrf.mxu0
    %v4661 = vadd.f32 0.0, %v4660
    %v4662 = vpop.f32.mrf.mxu0
    %v4663 = vadd.f32 0.0, %v4662
    %4664 = vmatmul.bf16.gmra.mxu0 %v4567
    %v4665 = vpop.f32.mrf.mxu0
    %v4666 = vadd.f32 0.0, %v4665
    %v4667 = vpop.f32.mrf.mxu0
    %v4668 = vadd.f32 0.0, %v4667
    %4669 = vmatmul.bf16.gmra.mxu0 %v4568
    %v4670 = vpop.f32.mrf.mxu0
    %v4671 = vadd.f32 0.0, %v4670
    %v4672 = vpop.f32.mrf.mxu0
    %v4673 = vadd.f32 0.0, %v4672
    %4674 = vmatmul.bf16.gmra.mxu0 %v4569
    %v4675 = vpop.f32.mrf.mxu0
    %v4676 = vadd.f32 0.0, %v4675
    %v4677 = vpop.f32.mrf.mxu0
    %v4678 = vadd.f32 0.0, %v4677
    %4679 = vmatmul.bf16.gmra.mxu0 %v4570
    %v4680 = vpop.f32.mrf.mxu0
    %v4681 = vadd.f32 0.0, %v4680
    %v4682 = vpop.f32.mrf.mxu0
    %v4683 = vadd.f32 0.0, %v4682
    %4684 = vdwg.mxu0
    %v4685 = vadd.f32 %v4531, %v4646
    %v4686 = vadd.f32 %v4532, %v4648
    %v4687 = vadd.f32 %v4533, %v4651
    %v4688 = vadd.f32 %v4534, %v4653
    %v4689 = vadd.f32 %v4535, %v4656
    %v4690 = vadd.f32 %v4536, %v4658
    %v4691 = vadd.f32 %v4537, %v4661
    %v4692 = vadd.f32 %v4538, %v4663
    %v4693 = vadd.f32 %v4539, %v4666
    %v4694 = vadd.f32 %v4540, %v4668
    %v4695 = vadd.f32 %v4541, %v4671
    %v4696 = vadd.f32 %v4542, %v4673
    %v4697 = vadd.f32 %v4543, %v4676
    %v4698 = vadd.f32 %v4544, %v4678
    %v4699 = vadd.f32 %v4545, %v4681
    %v4700 = vadd.f32 %v4546, %v4683
    %v4701 = vld [vmem:[%s3771 + $0x2] sm:$0xff]
    %v4702 = vld [vmem:[%s3771 + $0x12] sm:$0xff]
    %v4703 = vld [vmem:[%s3771 + $0x22] sm:$0xff]
    %v4704 = vld [vmem:[%s3771 + $0x32] sm:$0xff]
    %v4705 = vld [vmem:[%s3771 + $0x42] sm:$0xff]
    %v4706 = vld [vmem:[%s3771 + $0x52] sm:$0xff]
    %v4707 = vld [vmem:[%s3771 + $0x62] sm:$0xff]
    %v4708 = vld [vmem:[%s3771 + $0x72] sm:$0xff]
    %v4709 = vld [vmem:[%s3771 + $0xa2] sm:$0xff]
    %v4710 = vld [vmem:[%s3771 + $0xb2] sm:$0xff]
    %v4711 = vld [vmem:[%s3771 + $0xc2] sm:$0xff]
    %v4712 = vld [vmem:[%s3771 + $0xd2] sm:$0xff]
    %v4713 = vld [vmem:[%s3771 + $0xe2] sm:$0xff]
    %v4714 = vld [vmem:[%s3771 + $0xf2] sm:$0xff]
    %v4715 = vld [vmem:[%s3771 + $0x102] sm:$0xff]
    %v4716 = vld [vmem:[%s3771 + $0x112] sm:$0xff]
    %v4717 = vpack.c.bf16 %v4702, %v4701
    %v4718 = vpack.c.bf16 %v4704, %v4703
    %v4719 = vpack.c.bf16 %v4706, %v4705
    %v4720 = vpack.c.bf16 %v4708, %v4707
    %v4721 = vpack.c.bf16 %v4710, %v4709
    %v4722 = vpack.c.bf16 %v4712, %v4711
    %v4723 = vpack.c.bf16 %v4714, %v4713
    %v4724 = vpack.c.bf16 %v4716, %v4715
    %s4725 = scalar_lea.vmem %s3, 320
    %v4726 = vld [vmem:[%s4725] sm:$0xf]
    %v4727 = vld [vmem:[%s4725 + $0x4] sm:$0xf]
    %v4728 = vld [vmem:[%s4725 + $0x8] sm:$0xf]
    %v4729 = vld [vmem:[%s4725 + $0xc] sm:$0xf]
    %v4730 = vld [vmem:[%s4725 + $0x10] sm:$0xf]
    %v4731 = vld [vmem:[%s4725 + $0x14] sm:$0xf]
    %v4732 = vld [vmem:[%s4725 + $0x18] sm:$0xf]
    %v4733 = vld [vmem:[%s4725 + $0x1c] sm:$0xf]
    %v4734 = vld [vmem:[%s4725 + $0x20] sm:$0xf]
    %v4735 = vld [vmem:[%s4725 + $0x24] sm:$0xf]
    %v4736 = vld [vmem:[%s4725 + $0x28] sm:$0xf]
    %v4737 = vld [vmem:[%s4725 + $0x2c] sm:$0xf]
    %v4738 = vld [vmem:[%s4725 + $0x30] sm:$0xf]
    %v4739 = vld [vmem:[%s4725 + $0x34] sm:$0xf]
    %v4740 = vld [vmem:[%s4725 + $0x38] sm:$0xf]
    %v4741 = vld [vmem:[%s4725 + $0x3c] sm:$0xf]
    %v4758 = vunpack.c.l.b16 %v4726
    %v4759 = vunpack.c.l.b16 %v4727
    %v4760 = vunpack.c.l.b16 %v4728
    %v4761 = vunpack.c.l.b16 %v4729
    %v4762 = vunpack.c.l.b16 %v4730
    %v4763 = vunpack.c.l.b16 %v4731
    %v4764 = vunpack.c.l.b16 %v4732
    %v4765 = vunpack.c.l.b16 %v4733
    %v4766 = vunpack.c.l.b16 %v4734
    %v4767 = vunpack.c.l.b16 %v4735
    %v4768 = vunpack.c.l.b16 %v4736
    %v4769 = vunpack.c.l.b16 %v4737
    %v4770 = vunpack.c.l.b16 %v4738
    %v4771 = vunpack.c.l.b16 %v4739
    %v4772 = vunpack.c.l.b16 %v4740
    %v4773 = vunpack.c.l.b16 %v4741
    %v4774 = vpack.c.b16 %v4759, %v4758
    %v4775 = vpack.c.b16 %v4761, %v4760
    %v4776 = vpack.c.b16 %v4763, %v4762
    %v4777 = vpack.c.b16 %v4765, %v4764
    %v4778 = vpack.c.b16 %v4767, %v4766
    %v4779 = vpack.c.b16 %v4769, %v4768
    %v4780 = vpack.c.b16 %v4771, %v4770
    %v4781 = vpack.c.b16 %v4773, %v4772
    %4790 = vmatpush.bf16.msra.mxu0 %v4781
    %4791 = vmatpush.bf16.msra.mxu0 %v4780
    %4792 = vmatpush.bf16.msra.mxu0 %v4779
    %4793 = vmatpush.bf16.msra.mxu0 %v4778
    %4794 = vmatpush.bf16.msra.mxu0 %v4777
    %4795 = vmatpush.bf16.msra.mxu0 %v4776
    %4796 = vmatpush.bf16.msra.mxu0 %v4775
    %4797 = vmatpush.bf16.msra.mxu0 %v4774
    %4798 = vmatmul.bf16.gmra.mxu0 %v4717
    %v4799 = vpop.f32.mrf.mxu0
    %v4800 = vadd.f32 0.0, %v4799
    %v4801 = vpop.f32.mrf.mxu0
    %v4802 = vadd.f32 0.0, %v4801
    %4803 = vmatmul.bf16.gmra.mxu0 %v4718
    %v4804 = vpop.f32.mrf.mxu0
    %v4805 = vadd.f32 0.0, %v4804
    %v4806 = vpop.f32.mrf.mxu0
    %v4807 = vadd.f32 0.0, %v4806
    %4808 = vmatmul.bf16.gmra.mxu0 %v4719
    %v4809 = vpop.f32.mrf.mxu0
    %v4810 = vadd.f32 0.0, %v4809
    %v4811 = vpop.f32.mrf.mxu0
    %v4812 = vadd.f32 0.0, %v4811
    %4813 = vmatmul.bf16.gmra.mxu0 %v4720
    %v4814 = vpop.f32.mrf.mxu0
    %v4815 = vadd.f32 0.0, %v4814
    %v4816 = vpop.f32.mrf.mxu0
    %v4817 = vadd.f32 0.0, %v4816
    %4818 = vmatmul.bf16.gmra.mxu0 %v4721
    %v4819 = vpop.f32.mrf.mxu0
    %v4820 = vadd.f32 0.0, %v4819
    %v4821 = vpop.f32.mrf.mxu0
    %v4822 = vadd.f32 0.0, %v4821
    %4823 = vmatmul.bf16.gmra.mxu0 %v4722
    %v4824 = vpop.f32.mrf.mxu0
    %v4825 = vadd.f32 0.0, %v4824
    %v4826 = vpop.f32.mrf.mxu0
    %v4827 = vadd.f32 0.0, %v4826
    %4828 = vmatmul.bf16.gmra.mxu0 %v4723
    %v4829 = vpop.f32.mrf.mxu0
    %v4830 = vadd.f32 0.0, %v4829
    %v4831 = vpop.f32.mrf.mxu0
    %v4832 = vadd.f32 0.0, %v4831
    %4833 = vmatmul.bf16.gmra.mxu0 %v4724
    %v4834 = vpop.f32.mrf.mxu0
    %v4835 = vadd.f32 0.0, %v4834
    %v4836 = vpop.f32.mrf.mxu0
    %v4837 = vadd.f32 0.0, %v4836
    %4838 = vdwg.mxu0
    %v4839 = vadd.f32 %v4685, %v4800
    %v4840 = vadd.f32 %v4686, %v4802
    %v4841 = vadd.f32 %v4687, %v4805
    %v4842 = vadd.f32 %v4688, %v4807
    %v4843 = vadd.f32 %v4689, %v4810
    %v4844 = vadd.f32 %v4690, %v4812
    %v4845 = vadd.f32 %v4691, %v4815
    %v4846 = vadd.f32 %v4692, %v4817
    %v4847 = vadd.f32 %v4693, %v4820
    %v4848 = vadd.f32 %v4694, %v4822
    %v4849 = vadd.f32 %v4695, %v4825
    %v4850 = vadd.f32 %v4696, %v4827
    %v4851 = vadd.f32 %v4697, %v4830
    %v4852 = vadd.f32 %v4698, %v4832
    %v4853 = vadd.f32 %v4699, %v4835
    %v4854 = vadd.f32 %v4700, %v4837
    %s4855 = scalar_lea.vmem [#allocation2], 32
    %v4856 = vld [vmem:[%s4855] sm:$0xff]
    %v4857 = vld [vmem:[%s4855 + $0x10] sm:$0xff]
    %v4858 = vld [vmem:[%s4855 + $0x20] sm:$0xff]
    %v4859 = vld [vmem:[%s4855 + $0x30] sm:$0xff]
    %v4860 = vld [vmem:[%s4855 + $0x40] sm:$0xff]
    %v4861 = vld [vmem:[%s4855 + $0x50] sm:$0xff]
    %v4862 = vld [vmem:[%s4855 + $0x60] sm:$0xff]
    %v4863 = vld [vmem:[%s4855 + $0x70] sm:$0xff]
    %v4864 = vld [vmem:[%s4855 + $0xa0] sm:$0xff]
    %v4865 = vld [vmem:[%s4855 + $0xb0] sm:$0xff]
    %v4866 = vld [vmem:[%s4855 + $0xc0] sm:$0xff]
    %v4867 = vld [vmem:[%s4855 + $0xd0] sm:$0xff]
    %v4868 = vld [vmem:[%s4855 + $0xe0] sm:$0xff]
    %v4869 = vld [vmem:[%s4855 + $0xf0] sm:$0xff]
    %v4870 = vld [vmem:[%s4855 + $0x100] sm:$0xff]
    %v4871 = vld [vmem:[%s4855 + $0x110] sm:$0xff]
    %v4872 = vpack.c.bf16 %v4857, %v4856
    %v4873 = vpack.c.bf16 %v4859, %v4858
    %v4874 = vpack.c.bf16 %v4861, %v4860
    %v4875 = vpack.c.bf16 %v4863, %v4862
    %v4876 = vpack.c.bf16 %v4865, %v4864
    %v4877 = vpack.c.bf16 %v4867, %v4866
    %v4878 = vpack.c.bf16 %v4869, %v4868
    %v4879 = vpack.c.bf16 %v4871, %v4870
    %s4880 = scalar_lea.vmem %s3, 384
    %v4881 = vld [vmem:[%s4880] sm:$0xf]
    %v4882 = vld [vmem:[%s4880 + $0x4] sm:$0xf]
    %v4883 = vld [vmem:[%s4880 + $0x8] sm:$0xf]
    %v4884 = vld [vmem:[%s4880 + $0xc] sm:$0xf]
    %v4885 = vld [vmem:[%s4880 + $0x10] sm:$0xf]
    %v4886 = vld [vmem:[%s4880 + $0x14] sm:$0xf]
    %v4887 = vld [vmem:[%s4880 + $0x18] sm:$0xf]
    %v4888 = vld [vmem:[%s4880 + $0x1c] sm:$0xf]
    %v4889 = vld [vmem:[%s4880 + $0x20] sm:$0xf]
    %v4890 = vld [vmem:[%s4880 + $0x24] sm:$0xf]
    %v4891 = vld [vmem:[%s4880 + $0x28] sm:$0xf]
    %v4892 = vld [vmem:[%s4880 + $0x2c] sm:$0xf]
    %v4893 = vld [vmem:[%s4880 + $0x30] sm:$0xf]
    %v4894 = vld [vmem:[%s4880 + $0x34] sm:$0xf]
    %v4895 = vld [vmem:[%s4880 + $0x38] sm:$0xf]
    %v4896 = vld [vmem:[%s4880 + $0x3c] sm:$0xf]
    %v4913 = vunpack.c.l.b16 %v4881
    %v4914 = vunpack.c.l.b16 %v4882
    %v4915 = vunpack.c.l.b16 %v4883
    %v4916 = vunpack.c.l.b16 %v4884
    %v4917 = vunpack.c.l.b16 %v4885
    %v4918 = vunpack.c.l.b16 %v4886
    %v4919 = vunpack.c.l.b16 %v4887
    %v4920 = vunpack.c.l.b16 %v4888
    %v4921 = vunpack.c.l.b16 %v4889
    %v4922 = vunpack.c.l.b16 %v4890
    %v4923 = vunpack.c.l.b16 %v4891
    %v4924 = vunpack.c.l.b16 %v4892
    %v4925 = vunpack.c.l.b16 %v4893
    %v4926 = vunpack.c.l.b16 %v4894
    %v4927 = vunpack.c.l.b16 %v4895
    %v4928 = vunpack.c.l.b16 %v4896
    %v4929 = vpack.c.b16 %v4914, %v4913
    %v4930 = vpack.c.b16 %v4916, %v4915
    %v4931 = vpack.c.b16 %v4918, %v4917
    %v4932 = vpack.c.b16 %v4920, %v4919
    %v4933 = vpack.c.b16 %v4922, %v4921
    %v4934 = vpack.c.b16 %v4924, %v4923
    %v4935 = vpack.c.b16 %v4926, %v4925
    %v4936 = vpack.c.b16 %v4928, %v4927
    %4945 = vmatpush.bf16.msra.mxu0 %v4936
    %4946 = vmatpush.bf16.msra.mxu0 %v4935
    %4947 = vmatpush.bf16.msra.mxu0 %v4934
    %4948 = vmatpush.bf16.msra.mxu0 %v4933
    %4949 = vmatpush.bf16.msra.mxu0 %v4932
    %4950 = vmatpush.bf16.msra.mxu0 %v4931
    %4951 = vmatpush.bf16.msra.mxu0 %v4930
    %4952 = vmatpush.bf16.msra.mxu0 %v4929
    %4953 = vmatmul.bf16.gmra.mxu0 %v4872
    %v4954 = vpop.f32.mrf.mxu0
    %v4955 = vadd.f32 0.0, %v4954
    %v4956 = vpop.f32.mrf.mxu0
    %v4957 = vadd.f32 0.0, %v4956
    %4958 = vmatmul.bf16.gmra.mxu0 %v4873
    %v4959 = vpop.f32.mrf.mxu0
    %v4960 = vadd.f32 0.0, %v4959
    %v4961 = vpop.f32.mrf.mxu0
    %v4962 = vadd.f32 0.0, %v4961
    %4963 = vmatmul.bf16.gmra.mxu0 %v4874
    %v4964 = vpop.f32.mrf.mxu0
    %v4965 = vadd.f32 0.0, %v4964
    %v4966 = vpop.f32.mrf.mxu0
    %v4967 = vadd.f32 0.0, %v4966
    %4968 = vmatmul.bf16.gmra.mxu0 %v4875
    %v4969 = vpop.f32.mrf.mxu0
    %v4970 = vadd.f32 0.0, %v4969
    %v4971 = vpop.f32.mrf.mxu0
    %v4972 = vadd.f32 0.0, %v4971
    %4973 = vmatmul.bf16.gmra.mxu0 %v4876
    %v4974 = vpop.f32.mrf.mxu0
    %v4975 = vadd.f32 0.0, %v4974
    %v4976 = vpop.f32.mrf.mxu0
    %v4977 = vadd.f32 0.0, %v4976
    %4978 = vmatmul.bf16.gmra.mxu0 %v4877
    %v4979 = vpop.f32.mrf.mxu0
    %v4980 = vadd.f32 0.0, %v4979
    %v4981 = vpop.f32.mrf.mxu0
    %v4982 = vadd.f32 0.0, %v4981
    %4983 = vmatmul.bf16.gmra.mxu0 %v4878
    %v4984 = vpop.f32.mrf.mxu0
    %v4985 = vadd.f32 0.0, %v4984
    %v4986 = vpop.f32.mrf.mxu0
    %v4987 = vadd.f32 0.0, %v4986
    %4988 = vmatmul.bf16.gmra.mxu0 %v4879
    %v4989 = vpop.f32.mrf.mxu0
    %v4990 = vadd.f32 0.0, %v4989
    %v4991 = vpop.f32.mrf.mxu0
    %v4992 = vadd.f32 0.0, %v4991
    %4993 = vdwg.mxu0
    %v4994 = vadd.f32 %v4839, %v4955
    %v4995 = vadd.f32 %v4840, %v4957
    %v4996 = vadd.f32 %v4841, %v4960
    %v4997 = vadd.f32 %v4842, %v4962
    %v4998 = vadd.f32 %v4843, %v4965
    %v4999 = vadd.f32 %v4844, %v4967
    %v5000 = vadd.f32 %v4845, %v4970
    %v5001 = vadd.f32 %v4846, %v4972
    %v5002 = vadd.f32 %v4847, %v4975
    %v5003 = vadd.f32 %v4848, %v4977
    %v5004 = vadd.f32 %v4849, %v4980
    %v5005 = vadd.f32 %v4850, %v4982
    %v5006 = vadd.f32 %v4851, %v4985
    %v5007 = vadd.f32 %v4852, %v4987
    %v5008 = vadd.f32 %v4853, %v4990
    %v5009 = vadd.f32 %v4854, %v4992
    %v5010 = vld [vmem:[%s4855 + $0x1] sm:$0xff]
    %v5011 = vld [vmem:[%s4855 + $0x11] sm:$0xff]
    %v5012 = vld [vmem:[%s4855 + $0x21] sm:$0xff]
    %v5013 = vld [vmem:[%s4855 + $0x31] sm:$0xff]
    %v5014 = vld [vmem:[%s4855 + $0x41] sm:$0xff]
    %v5015 = vld [vmem:[%s4855 + $0x51] sm:$0xff]
    %v5016 = vld [vmem:[%s4855 + $0x61] sm:$0xff]
    %v5017 = vld [vmem:[%s4855 + $0x71] sm:$0xff]
    %v5018 = vld [vmem:[%s4855 + $0xa1] sm:$0xff]
    %v5019 = vld [vmem:[%s4855 + $0xb1] sm:$0xff]
    %v5020 = vld [vmem:[%s4855 + $0xc1] sm:$0xff]
    %v5021 = vld [vmem:[%s4855 + $0xd1] sm:$0xff]
    %v5022 = vld [vmem:[%s4855 + $0xe1] sm:$0xff]
    %v5023 = vld [vmem:[%s4855 + $0xf1] sm:$0xff]
    %v5024 = vld [vmem:[%s4855 + $0x101] sm:$0xff]
    %v5025 = vld [vmem:[%s4855 + $0x111] sm:$0xff]
    %v5026 = vpack.c.bf16 %v5011, %v5010
    %v5027 = vpack.c.bf16 %v5013, %v5012
    %v5028 = vpack.c.bf16 %v5015, %v5014
    %v5029 = vpack.c.bf16 %v5017, %v5016
    %v5030 = vpack.c.bf16 %v5019, %v5018
    %v5031 = vpack.c.bf16 %v5021, %v5020
    %v5032 = vpack.c.bf16 %v5023, %v5022
    %v5033 = vpack.c.bf16 %v5025, %v5024
    %s5034 = scalar_lea.vmem %s3, 448
    %v5035 = vld [vmem:[%s5034] sm:$0xf]
    %v5036 = vld [vmem:[%s5034 + $0x4] sm:$0xf]
    %v5037 = vld [vmem:[%s5034 + $0x8] sm:$0xf]
    %v5038 = vld [vmem:[%s5034 + $0xc] sm:$0xf]
    %v5039 = vld [vmem:[%s5034 + $0x10] sm:$0xf]
    %v5040 = vld [vmem:[%s5034 + $0x14] sm:$0xf]
    %v5041 = vld [vmem:[%s5034 + $0x18] sm:$0xf]
    %v5042 = vld [vmem:[%s5034 + $0x1c] sm:$0xf]
    %v5043 = vld [vmem:[%s5034 + $0x20] sm:$0xf]
    %v5044 = vld [vmem:[%s5034 + $0x24] sm:$0xf]
    %v5045 = vld [vmem:[%s5034 + $0x28] sm:$0xf]
    %v5046 = vld [vmem:[%s5034 + $0x2c] sm:$0xf]
    %v5047 = vld [vmem:[%s5034 + $0x30] sm:$0xf]
    %v5048 = vld [vmem:[%s5034 + $0x34] sm:$0xf]
    %v5049 = vld [vmem:[%s5034 + $0x38] sm:$0xf]
    %v5050 = vld [vmem:[%s5034 + $0x3c] sm:$0xf]
    %v5067 = vunpack.c.l.b16 %v5035
    %v5068 = vunpack.c.l.b16 %v5036
    %v5069 = vunpack.c.l.b16 %v5037
    %v5070 = vunpack.c.l.b16 %v5038
    %v5071 = vunpack.c.l.b16 %v5039
    %v5072 = vunpack.c.l.b16 %v5040
    %v5073 = vunpack.c.l.b16 %v5041
    %v5074 = vunpack.c.l.b16 %v5042
    %v5075 = vunpack.c.l.b16 %v5043
    %v5076 = vunpack.c.l.b16 %v5044
    %v5077 = vunpack.c.l.b16 %v5045
    %v5078 = vunpack.c.l.b16 %v5046
    %v5079 = vunpack.c.l.b16 %v5047
    %v5080 = vunpack.c.l.b16 %v5048
    %v5081 = vunpack.c.l.b16 %v5049
    %v5082 = vunpack.c.l.b16 %v5050
    %v5083 = vpack.c.b16 %v5068, %v5067
    %v5084 = vpack.c.b16 %v5070, %v5069
    %v5085 = vpack.c.b16 %v5072, %v5071
    %v5086 = vpack.c.b16 %v5074, %v5073
    %v5087 = vpack.c.b16 %v5076, %v5075
    %v5088 = vpack.c.b16 %v5078, %v5077
    %v5089 = vpack.c.b16 %v5080, %v5079
    %v5090 = vpack.c.b16 %v5082, %v5081
    %5099 = vmatpush.bf16.msra.mxu0 %v5090
    %5100 = vmatpush.bf16.msra.mxu0 %v5089
    %5101 = vmatpush.bf16.msra.mxu0 %v5088
    %5102 = vmatpush.bf16.msra.mxu0 %v5087
    %5103 = vmatpush.bf16.msra.mxu0 %v5086
    %5104 = vmatpush.bf16.msra.mxu0 %v5085
    %5105 = vmatpush.bf16.msra.mxu0 %v5084
    %5106 = vmatpush.bf16.msra.mxu0 %v5083
    %5107 = vmatmul.bf16.gmra.mxu0 %v5026
    %v5108 = vpop.f32.mrf.mxu0
    %v5109 = vadd.f32 0.0, %v5108
    %v5110 = vpop.f32.mrf.mxu0
    %v5111 = vadd.f32 0.0, %v5110
    %5112 = vmatmul.bf16.gmra.mxu0 %v5027
    %v5113 = vpop.f32.mrf.mxu0
    %v5114 = vadd.f32 0.0, %v5113
    %v5115 = vpop.f32.mrf.mxu0
    %v5116 = vadd.f32 0.0, %v5115
    %5117 = vmatmul.bf16.gmra.mxu0 %v5028
    %v5118 = vpop.f32.mrf.mxu0
    %v5119 = vadd.f32 0.0, %v5118
    %v5120 = vpop.f32.mrf.mxu0
    %v5121 = vadd.f32 0.0, %v5120
    %5122 = vmatmul.bf16.gmra.mxu0 %v5029
    %v5123 = vpop.f32.mrf.mxu0
    %v5124 = vadd.f32 0.0, %v5123
    %v5125 = vpop.f32.mrf.mxu0
    %v5126 = vadd.f32 0.0, %v5125
    %5127 = vmatmul.bf16.gmra.mxu0 %v5030
    %v5128 = vpop.f32.mrf.mxu0
    %v5129 = vadd.f32 0.0, %v5128
    %v5130 = vpop.f32.mrf.mxu0
    %v5131 = vadd.f32 0.0, %v5130
    %5132 = vmatmul.bf16.gmra.mxu0 %v5031
    %v5133 = vpop.f32.mrf.mxu0
    %v5134 = vadd.f32 0.0, %v5133
    %v5135 = vpop.f32.mrf.mxu0
    %v5136 = vadd.f32 0.0, %v5135
    %5137 = vmatmul.bf16.gmra.mxu0 %v5032
    %v5138 = vpop.f32.mrf.mxu0
    %v5139 = vadd.f32 0.0, %v5138
    %v5140 = vpop.f32.mrf.mxu0
    %v5141 = vadd.f32 0.0, %v5140
    %5142 = vmatmul.bf16.gmra.mxu0 %v5033
    %v5143 = vpop.f32.mrf.mxu0
    %v5144 = vadd.f32 0.0, %v5143
    %v5145 = vpop.f32.mrf.mxu0
    %v5146 = vadd.f32 0.0, %v5145
    %5147 = vdwg.mxu0
    %v5148 = vadd.f32 %v4994, %v5109
    %v5149 = vadd.f32 %v4995, %v5111
    %v5150 = vadd.f32 %v4996, %v5114
    %v5151 = vadd.f32 %v4997, %v5116
    %v5152 = vadd.f32 %v4998, %v5119
    %v5153 = vadd.f32 %v4999, %v5121
    %v5154 = vadd.f32 %v5000, %v5124
    %v5155 = vadd.f32 %v5001, %v5126
    %v5156 = vadd.f32 %v5002, %v5129
    %v5157 = vadd.f32 %v5003, %v5131
    %v5158 = vadd.f32 %v5004, %v5134
    %v5159 = vadd.f32 %v5005, %v5136
    %v5160 = vadd.f32 %v5006, %v5139
    %v5161 = vadd.f32 %v5007, %v5141
    %v5162 = vadd.f32 %v5008, %v5144
    %v5163 = vadd.f32 %v5009, %v5146
    %v5164 = vld [vmem:[%s4855 + $0x2] sm:$0xff]
    %v5165 = vld [vmem:[%s4855 + $0x12] sm:$0xff]
    %v5166 = vld [vmem:[%s4855 + $0x22] sm:$0xff]
    %v5167 = vld [vmem:[%s4855 + $0x32] sm:$0xff]
    %v5168 = vld [vmem:[%s4855 + $0x42] sm:$0xff]
    %v5169 = vld [vmem:[%s4855 + $0x52] sm:$0xff]
    %v5170 = vld [vmem:[%s4855 + $0x62] sm:$0xff]
    %v5171 = vld [vmem:[%s4855 + $0x72] sm:$0xff]
    %v5172 = vld [vmem:[%s4855 + $0xa2] sm:$0xff]
    %v5173 = vld [vmem:[%s4855 + $0xb2] sm:$0xff]
    %v5174 = vld [vmem:[%s4855 + $0xc2] sm:$0xff]
    %v5175 = vld [vmem:[%s4855 + $0xd2] sm:$0xff]
    %v5176 = vld [vmem:[%s4855 + $0xe2] sm:$0xff]
    %v5177 = vld [vmem:[%s4855 + $0xf2] sm:$0xff]
    %v5178 = vld [vmem:[%s4855 + $0x102] sm:$0xff]
    %v5179 = vld [vmem:[%s4855 + $0x112] sm:$0xff]
    %v5180 = vpack.c.bf16 %v5165, %v5164
    %v5181 = vpack.c.bf16 %v5167, %v5166
    %v5182 = vpack.c.bf16 %v5169, %v5168
    %v5183 = vpack.c.bf16 %v5171, %v5170
    %v5184 = vpack.c.bf16 %v5173, %v5172
    %v5185 = vpack.c.bf16 %v5175, %v5174
    %v5186 = vpack.c.bf16 %v5177, %v5176
    %v5187 = vpack.c.bf16 %v5179, %v5178
    %s5188 = scalar_lea.vmem %s3, 512
    %v5189 = vld [vmem:[%s5188] sm:$0xf]
    %v5190 = vld [vmem:[%s5188 + $0x4] sm:$0xf]
    %v5191 = vld [vmem:[%s5188 + $0x8] sm:$0xf]
    %v5192 = vld [vmem:[%s5188 + $0xc] sm:$0xf]
    %v5193 = vld [vmem:[%s5188 + $0x10] sm:$0xf]
    %v5194 = vld [vmem:[%s5188 + $0x14] sm:$0xf]
    %v5195 = vld [vmem:[%s5188 + $0x18] sm:$0xf]
    %v5196 = vld [vmem:[%s5188 + $0x1c] sm:$0xf]
    %v5197 = vld [vmem:[%s5188 + $0x20] sm:$0xf]
    %v5198 = vld [vmem:[%s5188 + $0x24] sm:$0xf]
    %v5199 = vld [vmem:[%s5188 + $0x28] sm:$0xf]
    %v5200 = vld [vmem:[%s5188 + $0x2c] sm:$0xf]
    %v5201 = vld [vmem:[%s5188 + $0x30] sm:$0xf]
    %v5202 = vld [vmem:[%s5188 + $0x34] sm:$0xf]
    %v5203 = vld [vmem:[%s5188 + $0x38] sm:$0xf]
    %v5204 = vld [vmem:[%s5188 + $0x3c] sm:$0xf]
    %v5221 = vunpack.c.l.b16 %v5189
    %v5222 = vunpack.c.l.b16 %v5190
    %v5223 = vunpack.c.l.b16 %v5191
    %v5224 = vunpack.c.l.b16 %v5192
    %v5225 = vunpack.c.l.b16 %v5193
    %v5226 = vunpack.c.l.b16 %v5194
    %v5227 = vunpack.c.l.b16 %v5195
    %v5228 = vunpack.c.l.b16 %v5196
    %v5229 = vunpack.c.l.b16 %v5197
    %v5230 = vunpack.c.l.b16 %v5198
    %v5231 = vunpack.c.l.b16 %v5199
    %v5232 = vunpack.c.l.b16 %v5200
    %v5233 = vunpack.c.l.b16 %v5201
    %v5234 = vunpack.c.l.b16 %v5202
    %v5235 = vunpack.c.l.b16 %v5203
    %v5236 = vunpack.c.l.b16 %v5204
    %v5237 = vpack.c.b16 %v5222, %v5221
    %v5238 = vpack.c.b16 %v5224, %v5223
    %v5239 = vpack.c.b16 %v5226, %v5225
    %v5240 = vpack.c.b16 %v5228, %v5227
    %v5241 = vpack.c.b16 %v5230, %v5229
    %v5242 = vpack.c.b16 %v5232, %v5231
    %v5243 = vpack.c.b16 %v5234, %v5233
    %v5244 = vpack.c.b16 %v5236, %v5235
    %5253 = vmatpush.bf16.msra.mxu0 %v5244
    %5254 = vmatpush.bf16.msra.mxu0 %v5243
    %5255 = vmatpush.bf16.msra.mxu0 %v5242
    %5256 = vmatpush.bf16.msra.mxu0 %v5241
    %5257 = vmatpush.bf16.msra.mxu0 %v5240
    %5258 = vmatpush.bf16.msra.mxu0 %v5239
    %5259 = vmatpush.bf16.msra.mxu0 %v5238
    %5260 = vmatpush.bf16.msra.mxu0 %v5237
    %5261 = vmatmul.bf16.gmra.mxu0 %v5180
    %v5262 = vpop.f32.mrf.mxu0
    %v5263 = vadd.f32 0.0, %v5262
    %v5264 = vpop.f32.mrf.mxu0
    %v5265 = vadd.f32 0.0, %v5264
    %5266 = vmatmul.bf16.gmra.mxu0 %v5181
    %v5267 = vpop.f32.mrf.mxu0
    %v5268 = vadd.f32 0.0, %v5267
    %v5269 = vpop.f32.mrf.mxu0
    %v5270 = vadd.f32 0.0, %v5269
    %5271 = vmatmul.bf16.gmra.mxu0 %v5182
    %v5272 = vpop.f32.mrf.mxu0
    %v5273 = vadd.f32 0.0, %v5272
    %v5274 = vpop.f32.mrf.mxu0
    %v5275 = vadd.f32 0.0, %v5274
    %5276 = vmatmul.bf16.gmra.mxu0 %v5183
    %v5277 = vpop.f32.mrf.mxu0
    %v5278 = vadd.f32 0.0, %v5277
    %v5279 = vpop.f32.mrf.mxu0
    %v5280 = vadd.f32 0.0, %v5279
    %5281 = vmatmul.bf16.gmra.mxu0 %v5184
    %v5282 = vpop.f32.mrf.mxu0
    %v5283 = vadd.f32 0.0, %v5282
    %v5284 = vpop.f32.mrf.mxu0
    %v5285 = vadd.f32 0.0, %v5284
    %5286 = vmatmul.bf16.gmra.mxu0 %v5185
    %v5287 = vpop.f32.mrf.mxu0
    %v5288 = vadd.f32 0.0, %v5287
    %v5289 = vpop.f32.mrf.mxu0
    %v5290 = vadd.f32 0.0, %v5289
    %5291 = vmatmul.bf16.gmra.mxu0 %v5186
    %v5292 = vpop.f32.mrf.mxu0
    %v5293 = vadd.f32 0.0, %v5292
    %v5294 = vpop.f32.mrf.mxu0
    %v5295 = vadd.f32 0.0, %v5294
    %5296 = vmatmul.bf16.gmra.mxu0 %v5187
    %v5297 = vpop.f32.mrf.mxu0
    %v5298 = vadd.f32 0.0, %v5297
    %v5299 = vpop.f32.mrf.mxu0
    %v5300 = vadd.f32 0.0, %v5299
    %5301 = vdwg.mxu0
    %v5302 = vadd.f32 %v5148, %v5263
    %v5303 = vadd.f32 %v5149, %v5265
    %v5304 = vadd.f32 %v5150, %v5268
    %v5305 = vadd.f32 %v5151, %v5270
    %v5306 = vadd.f32 %v5152, %v5273
    %v5307 = vadd.f32 %v5153, %v5275
    %v5308 = vadd.f32 %v5154, %v5278
    %v5309 = vadd.f32 %v5155, %v5280
    %v5310 = vadd.f32 %v5156, %v5283
    %v5311 = vadd.f32 %v5157, %v5285
    %v5312 = vadd.f32 %v5158, %v5288
    %v5313 = vadd.f32 %v5159, %v5290
    %v5314 = vadd.f32 %v5160, %v5293
    %v5315 = vadd.f32 %v5161, %v5295
    %v5316 = vadd.f32 %v5162, %v5298
    %v5317 = vadd.f32 %v5163, %v5300
    %v5318 = vld [vmem:[%s4] sm:$0x1]
    %v5320 = vperm.slane %v5318, 0
    %v5322 = vadd.f32 %v5302, %v5320
    %v5323 = vadd.f32 %v5303, %v5320
    %v5324 = vadd.f32 %v5304, %v5320
    %v5325 = vadd.f32 %v5305, %v5320
    %v5326 = vadd.f32 %v5306, %v5320
    %v5327 = vadd.f32 %v5307, %v5320
    %v5328 = vadd.f32 %v5308, %v5320
    %v5329 = vadd.f32 %v5309, %v5320
    %v5330 = vadd.f32 %v5310, %v5320
    %v5331 = vadd.f32 %v5311, %v5320
    %v5332 = vadd.f32 %v5312, %v5320
    %v5333 = vadd.f32 %v5313, %v5320
    %v5334 = vadd.f32 %v5314, %v5320
    %v5335 = vadd.f32 %v5315, %v5320
    %v5336 = vadd.f32 %v5316, %v5320
    %v5337 = vadd.f32 %v5317, %v5320
    %v5338 = vmax.f32 %v5322, 0.0
    %v5339 = vmax.f32 %v5323, 0.0
    %v5340 = vmax.f32 %v5324, 0.0
    %v5341 = vmax.f32 %v5325, 0.0
    %v5342 = vmax.f32 %v5326, 0.0
    %v5343 = vmax.f32 %v5327, 0.0
    %v5344 = vmax.f32 %v5328, 0.0
    %v5345 = vmax.f32 %v5329, 0.0
    %v5346 = vmax.f32 %v5330, 0.0
    %v5347 = vmax.f32 %v5331, 0.0
    %v5348 = vmax.f32 %v5332, 0.0
    %v5349 = vmax.f32 %v5333, 0.0
    %v5350 = vmax.f32 %v5334, 0.0
    %v5351 = vmax.f32 %v5335, 0.0
    %v5352 = vmax.f32 %v5336, 0.0
    %v5353 = vmax.f32 %v5337, 0.0
    %v5354 = vmax.f32 %v5338, %v5339
    %v5355 = vmax.f32 %v5340, %v5341
    %v5356 = vmax.f32 %v5342, %v5343
    %v5357 = vmax.f32 %v5344, %v5345
    %v5358 = vmax.f32 %v5346, %v5347
    %v5359 = vmax.f32 %v5348, %v5349
    %v5360 = vmax.f32 %v5350, %v5351
    %v5361 = vmax.f32 %v5352, %v5353
    %v5370 = vrot.slane %v5354, 1
    %v5371 = vrot.slane %v5355, 1
    %v5372 = vrot.slane %v5356, 1
    %v5373 = vrot.slane %v5357, 1
    %v5374 = vrot.slane %v5358, 1
    %v5375 = vrot.slane %v5359, 1
    %v5376 = vrot.slane %v5360, 1
    %v5377 = vrot.slane %v5361, 1
    %v5386 = vmax.f32 %v5354, %v5370
    %v5387 = vmax.f32 %v5355, %v5371
    %v5388 = vmax.f32 %v5356, %v5372
    %v5389 = vmax.f32 %v5357, %v5373
    %v5390 = vmax.f32 %v5358, %v5374
    %v5391 = vmax.f32 %v5359, %v5375
    %v5392 = vmax.f32 %v5360, %v5376
    %v5393 = vmax.f32 %v5361, %v5377
    %s5394 = scalar_lea.vmem [#allocation3], 16
    %5395 = vst [vmem:[%s5394 + $0x1] sm:$0x1] %v5386
    %5396 = vst [vmem:[%s5394 + $0x11] sm:$0x1] %v5387
    %5397 = vst [vmem:[%s5394 + $0x21] sm:$0x1] %v5388
    %5398 = vst [vmem:[%s5394 + $0x31] sm:$0x1] %v5389
    %5399 = vst [vmem:[%s5394 + $0x61] sm:$0x1] %v5390
    %5400 = vst [vmem:[%s5394 + $0x71] sm:$0x1] %v5391
    %5401 = vst [vmem:[%s5394 + $0x81] sm:$0x1] %v5392
    %5402 = vst [vmem:[%s5394 + $0x91] sm:$0x1] %v5393
    %5403 = vst [vmem:[%s5394] sm:$0x4] %v5386
    %5404 = vst [vmem:[%s5394 + $0x10] sm:$0x4] %v5387
    %5405 = vst [vmem:[%s5394 + $0x20] sm:$0x4] %v5388
    %5406 = vst [vmem:[%s5394 + $0x30] sm:$0x4] %v5389
    %5407 = vst [vmem:[%s5394 + $0x60] sm:$0x4] %v5390
    %5408 = vst [vmem:[%s5394 + $0x70] sm:$0x4] %v5391
    %5409 = vst [vmem:[%s5394 + $0x80] sm:$0x4] %v5392
    %5410 = vst [vmem:[%s5394 + $0x90] sm:$0x4] %v5393
    %5411 = vst [vmem:[%s5394 - $0x1] sm:$0x10] %v5386
    %5412 = vst [vmem:[%s5394 + $0xf] sm:$0x10] %v5387
    %5413 = vst [vmem:[%s5394 + $0x1f] sm:$0x10] %v5388
    %5414 = vst [vmem:[%s5394 + $0x2f] sm:$0x10] %v5389
    %5415 = vst [vmem:[%s5394 + $0x5f] sm:$0x10] %v5390
    %5416 = vst [vmem:[%s5394 + $0x6f] sm:$0x10] %v5391
    %5417 = vst [vmem:[%s5394 + $0x7f] sm:$0x10] %v5392
    %5418 = vst [vmem:[%s5394 + $0x8f] sm:$0x10] %v5393
    %5419 = vst [vmem:[%s5394 - $0x2] sm:$0x40] %v5386
    %5420 = vst [vmem:[%s5394 + $0xe] sm:$0x40] %v5387
    %5421 = vst [vmem:[%s5394 + $0x1e] sm:$0x40] %v5388
    %5422 = vst [vmem:[%s5394 + $0x2e] sm:$0x40] %v5389
    %5423 = vst [vmem:[%s5394 + $0x5e] sm:$0x40] %v5390
    %5424 = vst [vmem:[%s5394 + $0x6e] sm:$0x40] %v5391
    %5425 = vst [vmem:[%s5394 + $0x7e] sm:$0x40] %v5392
    %5426 = vst [vmem:[%s5394 + $0x8e] sm:$0x40] %v5393
    %v5427 = vld [vmem:[#allocation3] sm:$0xff]
    %v5428 = vld [vmem:[#allocation3 + $0x10] sm:$0xff]
    %v5429 = vld [vmem:[#allocation3 + $0x20] sm:$0xff]
    %v5430 = vld [vmem:[#allocation3 + $0x30] sm:$0xff]
    %v5431 = vld [vmem:[#allocation3 + $0x60] sm:$0xff]
    %v5432 = vld [vmem:[#allocation3 + $0x70] sm:$0xff]
    %v5433 = vld [vmem:[#allocation3 + $0x80] sm:$0xff]
    %v5434 = vld [vmem:[#allocation3 + $0x90] sm:$0xff]
    %v5435 = vpack.c.bf16 %v5428, %v5427
    %v5436 = vpack.c.bf16 %v5430, %v5429
    %v5437 = vpack.c.bf16 %v5432, %v5431
    %v5438 = vpack.c.bf16 %v5434, %v5433
    %v5439 = vld [vmem:[%s5] sm:$0xf]
    %v5440 = vld [vmem:[%s5 + $0x4] sm:$0xf]
    %v5441 = vld [vmem:[%s5 + $0x8] sm:$0xf]
    %v5442 = vld [vmem:[%s5 + $0xc] sm:$0xf]
    %v5443 = vld [vmem:[%s5 + $0x10] sm:$0xf]
    %v5444 = vld [vmem:[%s5 + $0x14] sm:$0xf]
    %v5445 = vld [vmem:[%s5 + $0x18] sm:$0xf]
    %v5446 = vld [vmem:[%s5 + $0x1c] sm:$0xf]
    %v5447 = vld [vmem:[%s5 + $0x20] sm:$0xf]
    %v5448 = vld [vmem:[%s5 + $0x24] sm:$0xf]
    %v5449 = vld [vmem:[%s5 + $0x28] sm:$0xf]
    %v5450 = vld [vmem:[%s5 + $0x2c] sm:$0xf]
    %v5451 = vld [vmem:[%s5 + $0x30] sm:$0xf]
    %v5452 = vld [vmem:[%s5 + $0x34] sm:$0xf]
    %v5453 = vld [vmem:[%s5 + $0x38] sm:$0xf]
    %v5454 = vld [vmem:[%s5 + $0x3c] sm:$0xf]
    %v5455 = vld [vmem:[#allocation3 + $0x1] sm:$0xff]
    %v5456 = vld [vmem:[#allocation3 + $0x11] sm:$0xff]
    %v5457 = vld [vmem:[#allocation3 + $0x21] sm:$0xff]
    %v5458 = vld [vmem:[#allocation3 + $0x31] sm:$0xff]
    %v5459 = vld [vmem:[#allocation3 + $0x61] sm:$0xff]
    %v5460 = vld [vmem:[#allocation3 + $0x71] sm:$0xff]
    %v5461 = vld [vmem:[#allocation3 + $0x81] sm:$0xff]
    %v5462 = vld [vmem:[#allocation3 + $0x91] sm:$0xff]
    %v5463 = vpack.c.bf16 %v5456, %v5455
    %v5464 = vpack.c.bf16 %v5458, %v5457
    %v5465 = vpack.c.bf16 %v5460, %v5459
    %v5466 = vpack.c.bf16 %v5462, %v5461
    %s5467 = scalar_lea.vmem %s5, 64
    %v5468 = vld [vmem:[%s5467] sm:$0xf]
    %v5469 = vld [vmem:[%s5467 + $0x4] sm:$0xf]
    %v5470 = vld [vmem:[%s5467 + $0x8] sm:$0xf]
    %v5471 = vld [vmem:[%s5467 + $0xc] sm:$0xf]
    %v5472 = vld [vmem:[%s5467 + $0x10] sm:$0xf]
    %v5473 = vld [vmem:[%s5467 + $0x14] sm:$0xf]
    %v5474 = vld [vmem:[%s5467 + $0x18] sm:$0xf]
    %v5475 = vld [vmem:[%s5467 + $0x1c] sm:$0xf]
    %v5476 = vld [vmem:[%s5467 + $0x20] sm:$0xf]
    %v5477 = vld [vmem:[%s5467 + $0x24] sm:$0xf]
    %v5478 = vld [vmem:[%s5467 + $0x28] sm:$0xf]
    %v5479 = vld [vmem:[%s5467 + $0x2c] sm:$0xf]
    %v5480 = vld [vmem:[%s5467 + $0x30] sm:$0xf]
    %v5481 = vld [vmem:[%s5467 + $0x34] sm:$0xf]
    %v5482 = vld [vmem:[%s5467 + $0x38] sm:$0xf]
    %v5483 = vld [vmem:[%s5467 + $0x3c] sm:$0xf]
    %v5500 = vunpack.c.l.b16 %v5468
    %v5501 = vunpack.c.l.b16 %v5469
    %v5502 = vunpack.c.l.b16 %v5470
    %v5503 = vunpack.c.l.b16 %v5471
    %v5504 = vunpack.c.l.b16 %v5472
    %v5505 = vunpack.c.l.b16 %v5473
    %v5506 = vunpack.c.l.b16 %v5474
    %v5507 = vunpack.c.l.b16 %v5475
    %v5508 = vunpack.c.l.b16 %v5476
    %v5509 = vunpack.c.l.b16 %v5477
    %v5510 = vunpack.c.l.b16 %v5478
    %v5511 = vunpack.c.l.b16 %v5479
    %v5512 = vunpack.c.l.b16 %v5480
    %v5513 = vunpack.c.l.b16 %v5481
    %v5514 = vunpack.c.l.b16 %v5482
    %v5515 = vunpack.c.l.b16 %v5483
    %v5516 = vpack.c.b16 %v5501, %v5500
    %v5517 = vpack.c.b16 %v5503, %v5502
    %v5518 = vpack.c.b16 %v5505, %v5504
    %v5519 = vpack.c.b16 %v5507, %v5506
    %v5520 = vpack.c.b16 %v5509, %v5508
    %v5521 = vpack.c.b16 %v5511, %v5510
    %v5522 = vpack.c.b16 %v5513, %v5512
    %v5523 = vpack.c.b16 %v5515, %v5514
    %5532 = vmatpush.bf16.msra.mxu0 %v5523
    %5533 = vmatpush.bf16.msra.mxu0 %v5522
    %5534 = vmatpush.bf16.msra.mxu0 %v5521
    %5535 = vmatpush.bf16.msra.mxu0 %v5520
    %5536 = vmatpush.bf16.msra.mxu0 %v5519
    %5537 = vmatpush.bf16.msra.mxu0 %v5518
    %5538 = vmatpush.bf16.msra.mxu0 %v5517
    %5539 = vmatpush.bf16.msra.mxu0 %v5516
    %5540 = vmatmul.bf16.gmra.mxu0 %v5463
    %v5541 = vpop.f32.mrf.mxu0
    %v5542 = vadd.f32 0.0, %v5541
    %v5543 = vpop.f32.mrf.mxu0
    %v5544 = vadd.f32 0.0, %v5543
    %5545 = vmatmul.bf16.gmra.mxu0 %v5464
    %v5546 = vpop.f32.mrf.mxu0
    %v5547 = vadd.f32 0.0, %v5546
    %v5548 = vpop.f32.mrf.mxu0
    %v5549 = vadd.f32 0.0, %v5548
    %5550 = vmatmul.bf16.gmra.mxu0 %v5465
    %v5551 = vpop.f32.mrf.mxu0
    %v5552 = vadd.f32 0.0, %v5551
    %v5553 = vpop.f32.mrf.mxu0
    %v5554 = vadd.f32 0.0, %v5553
    %5555 = vmatmul.bf16.gmra.mxu0 %v5466
    %v5556 = vpop.f32.mrf.mxu0
    %v5557 = vadd.f32 0.0, %v5556
    %v5558 = vpop.f32.mrf.mxu0
    %v5559 = vadd.f32 0.0, %v5558
    %5560 = vdwg.mxu0
    %v5577 = vunpack.c.l.b16 %v5439
    %v5578 = vunpack.c.l.b16 %v5440
    %v5579 = vunpack.c.l.b16 %v5441
    %v5580 = vunpack.c.l.b16 %v5442
    %v5581 = vunpack.c.l.b16 %v5443
    %v5582 = vunpack.c.l.b16 %v5444
    %v5583 = vunpack.c.l.b16 %v5445
    %v5584 = vunpack.c.l.b16 %v5446
    %v5585 = vunpack.c.l.b16 %v5447
    %v5586 = vunpack.c.l.b16 %v5448
    %v5587 = vunpack.c.l.b16 %v5449
    %v5588 = vunpack.c.l.b16 %v5450
    %v5589 = vunpack.c.l.b16 %v5451
    %v5590 = vunpack.c.l.b16 %v5452
    %v5591 = vunpack.c.l.b16 %v5453
    %v5592 = vunpack.c.l.b16 %v5454
    %v5593 = vpack.c.b16 %v5578, %v5577
    %v5594 = vpack.c.b16 %v5580, %v5579
    %v5595 = vpack.c.b16 %v5582, %v5581
    %v5596 = vpack.c.b16 %v5584, %v5583
    %v5597 = vpack.c.b16 %v5586, %v5585
    %v5598 = vpack.c.b16 %v5588, %v5587
    %v5599 = vpack.c.b16 %v5590, %v5589
    %v5600 = vpack.c.b16 %v5592, %v5591
    %5609 = vmatpush.bf16.msra.mxu0 %v5600
    %5610 = vmatpush.bf16.msra.mxu0 %v5599
    %5611 = vmatpush.bf16.msra.mxu0 %v5598
    %5612 = vmatpush.bf16.msra.mxu0 %v5597
    %5613 = vmatpush.bf16.msra.mxu0 %v5596
    %5614 = vmatpush.bf16.msra.mxu0 %v5595
    %5615 = vmatpush.bf16.msra.mxu0 %v5594
    %5616 = vmatpush.bf16.msra.mxu0 %v5593
    %5617 = vmatmul.bf16.gmra.mxu0 %v5435
    %v5618 = vpop.f32.mrf.mxu0
    %v5619 = vadd.f32 %v5542, %v5618
    %v5620 = vpop.f32.mrf.mxu0
    %v5621 = vadd.f32 %v5544, %v5620
    %5622 = vmatmul.bf16.gmra.mxu0 %v5436
    %v5623 = vpop.f32.mrf.mxu0
    %v5624 = vadd.f32 %v5547, %v5623
    %v5625 = vpop.f32.mrf.mxu0
    %v5626 = vadd.f32 %v5549, %v5625
    %5627 = vmatmul.bf16.gmra.mxu0 %v5437
    %v5628 = vpop.f32.mrf.mxu0
    %v5629 = vadd.f32 %v5552, %v5628
    %v5630 = vpop.f32.mrf.mxu0
    %v5631 = vadd.f32 %v5554, %v5630
    %5632 = vmatmul.bf16.gmra.mxu0 %v5438
    %v5633 = vpop.f32.mrf.mxu0
    %v5634 = vadd.f32 %v5557, %v5633
    %v5635 = vpop.f32.mrf.mxu0
    %v5636 = vadd.f32 %v5559, %v5635
    %5637 = vdwg.mxu0
    %v5638 = vld [vmem:[#allocation3 + $0x2] sm:$0xff]
    %v5639 = vld [vmem:[#allocation3 + $0x12] sm:$0xff]
    %v5640 = vld [vmem:[#allocation3 + $0x22] sm:$0xff]
    %v5641 = vld [vmem:[#allocation3 + $0x32] sm:$0xff]
    %v5642 = vld [vmem:[#allocation3 + $0x62] sm:$0xff]
    %v5643 = vld [vmem:[#allocation3 + $0x72] sm:$0xff]
    %v5644 = vld [vmem:[#allocation3 + $0x82] sm:$0xff]
    %v5645 = vld [vmem:[#allocation3 + $0x92] sm:$0xff]
    %v5646 = vpack.c.bf16 %v5639, %v5638
    %v5647 = vpack.c.bf16 %v5641, %v5640
    %v5648 = vpack.c.bf16 %v5643, %v5642
    %v5649 = vpack.c.bf16 %v5645, %v5644
    %s5650 = scalar_lea.vmem %s5, 128
    %v5651 = vld [vmem:[%s5650] sm:$0xf]
    %v5652 = vld [vmem:[%s5650 + $0x4] sm:$0xf]
    %v5653 = vld [vmem:[%s5650 + $0x8] sm:$0xf]
    %v5654 = vld [vmem:[%s5650 + $0xc] sm:$0xf]
    %v5655 = vld [vmem:[%s5650 + $0x10] sm:$0xf]
    %v5656 = vld [vmem:[%s5650 + $0x14] sm:$0xf]
    %v5657 = vld [vmem:[%s5650 + $0x18] sm:$0xf]
    %v5658 = vld [vmem:[%s5650 + $0x1c] sm:$0xf]
    %v5659 = vld [vmem:[%s5650 + $0x20] sm:$0xf]
    %v5660 = vld [vmem:[%s5650 + $0x24] sm:$0xf]
    %v5661 = vld [vmem:[%s5650 + $0x28] sm:$0xf]
    %v5662 = vld [vmem:[%s5650 + $0x2c] sm:$0xf]
    %v5663 = vld [vmem:[%s5650 + $0x30] sm:$0xf]
    %v5664 = vld [vmem:[%s5650 + $0x34] sm:$0xf]
    %v5665 = vld [vmem:[%s5650 + $0x38] sm:$0xf]
    %v5666 = vld [vmem:[%s5650 + $0x3c] sm:$0xf]
    %v5683 = vunpack.c.l.b16 %v5651
    %v5684 = vunpack.c.l.b16 %v5652
    %v5685 = vunpack.c.l.b16 %v5653
    %v5686 = vunpack.c.l.b16 %v5654
    %v5687 = vunpack.c.l.b16 %v5655
    %v5688 = vunpack.c.l.b16 %v5656
    %v5689 = vunpack.c.l.b16 %v5657
    %v5690 = vunpack.c.l.b16 %v5658
    %v5691 = vunpack.c.l.b16 %v5659
    %v5692 = vunpack.c.l.b16 %v5660
    %v5693 = vunpack.c.l.b16 %v5661
    %v5694 = vunpack.c.l.b16 %v5662
    %v5695 = vunpack.c.l.b16 %v5663
    %v5696 = vunpack.c.l.b16 %v5664
    %v5697 = vunpack.c.l.b16 %v5665
    %v5698 = vunpack.c.l.b16 %v5666
    %v5699 = vpack.c.b16 %v5684, %v5683
    %v5700 = vpack.c.b16 %v5686, %v5685
    %v5701 = vpack.c.b16 %v5688, %v5687
    %v5702 = vpack.c.b16 %v5690, %v5689
    %v5703 = vpack.c.b16 %v5692, %v5691
    %v5704 = vpack.c.b16 %v5694, %v5693
    %v5705 = vpack.c.b16 %v5696, %v5695
    %v5706 = vpack.c.b16 %v5698, %v5697
    %5715 = vmatpush.bf16.msra.mxu0 %v5706
    %5716 = vmatpush.bf16.msra.mxu0 %v5705
    %5717 = vmatpush.bf16.msra.mxu0 %v5704
    %5718 = vmatpush.bf16.msra.mxu0 %v5703
    %5719 = vmatpush.bf16.msra.mxu0 %v5702
    %5720 = vmatpush.bf16.msra.mxu0 %v5701
    %5721 = vmatpush.bf16.msra.mxu0 %v5700
    %5722 = vmatpush.bf16.msra.mxu0 %v5699
    %5723 = vmatmul.bf16.gmra.mxu0 %v5646
    %v5724 = vpop.f32.mrf.mxu0
    %v5725 = vadd.f32 0.0, %v5724
    %v5726 = vpop.f32.mrf.mxu0
    %v5727 = vadd.f32 0.0, %v5726
    %5728 = vmatmul.bf16.gmra.mxu0 %v5647
    %v5729 = vpop.f32.mrf.mxu0
    %v5730 = vadd.f32 0.0, %v5729
    %v5731 = vpop.f32.mrf.mxu0
    %v5732 = vadd.f32 0.0, %v5731
    %5733 = vmatmul.bf16.gmra.mxu0 %v5648
    %v5734 = vpop.f32.mrf.mxu0
    %v5735 = vadd.f32 0.0, %v5734
    %v5736 = vpop.f32.mrf.mxu0
    %v5737 = vadd.f32 0.0, %v5736
    %5738 = vmatmul.bf16.gmra.mxu0 %v5649
    %v5739 = vpop.f32.mrf.mxu0
    %v5740 = vadd.f32 0.0, %v5739
    %v5741 = vpop.f32.mrf.mxu0
    %v5742 = vadd.f32 0.0, %v5741
    %5743 = vdwg.mxu0
    %v5744 = vadd.f32 %v5619, %v5725
    %v5745 = vadd.f32 %v5621, %v5727
    %v5746 = vadd.f32 %v5624, %v5730
    %v5747 = vadd.f32 %v5626, %v5732
    %v5748 = vadd.f32 %v5629, %v5735
    %v5749 = vadd.f32 %v5631, %v5737
    %v5750 = vadd.f32 %v5634, %v5740
    %v5751 = vadd.f32 %v5636, %v5742
    %v5752 = vld [vmem:[%s5394] sm:$0xff]
    %v5753 = vld [vmem:[%s5394 + $0x10] sm:$0xff]
    %v5754 = vld [vmem:[%s5394 + $0x20] sm:$0xff]
    %v5755 = vld [vmem:[%s5394 + $0x30] sm:$0xff]
    %v5756 = vld [vmem:[%s5394 + $0x60] sm:$0xff]
    %v5757 = vld [vmem:[%s5394 + $0x70] sm:$0xff]
    %v5758 = vld [vmem:[%s5394 + $0x80] sm:$0xff]
    %v5759 = vld [vmem:[%s5394 + $0x90] sm:$0xff]
    %v5760 = vpack.c.bf16 %v5753, %v5752
    %v5761 = vpack.c.bf16 %v5755, %v5754
    %v5762 = vpack.c.bf16 %v5757, %v5756
    %v5763 = vpack.c.bf16 %v5759, %v5758
    %s5764 = scalar_lea.vmem %s5, 192
    %v5765 = vld [vmem:[%s5764] sm:$0xf]
    %v5766 = vld [vmem:[%s5764 + $0x4] sm:$0xf]
    %v5767 = vld [vmem:[%s5764 + $0x8] sm:$0xf]
    %v5768 = vld [vmem:[%s5764 + $0xc] sm:$0xf]
    %v5769 = vld [vmem:[%s5764 + $0x10] sm:$0xf]
    %v5770 = vld [vmem:[%s5764 + $0x14] sm:$0xf]
    %v5771 = vld [vmem:[%s5764 + $0x18] sm:$0xf]
    %v5772 = vld [vmem:[%s5764 + $0x1c] sm:$0xf]
    %v5773 = vld [vmem:[%s5764 + $0x20] sm:$0xf]
    %v5774 = vld [vmem:[%s5764 + $0x24] sm:$0xf]
    %v5775 = vld [vmem:[%s5764 + $0x28] sm:$0xf]
    %v5776 = vld [vmem:[%s5764 + $0x2c] sm:$0xf]
    %v5777 = vld [vmem:[%s5764 + $0x30] sm:$0xf]
    %v5778 = vld [vmem:[%s5764 + $0x34] sm:$0xf]
    %v5779 = vld [vmem:[%s5764 + $0x38] sm:$0xf]
    %v5780 = vld [vmem:[%s5764 + $0x3c] sm:$0xf]
    %v5797 = vunpack.c.l.b16 %v5765
    %v5798 = vunpack.c.l.b16 %v5766
    %v5799 = vunpack.c.l.b16 %v5767
    %v5800 = vunpack.c.l.b16 %v5768
    %v5801 = vunpack.c.l.b16 %v5769
    %v5802 = vunpack.c.l.b16 %v5770
    %v5803 = vunpack.c.l.b16 %v5771
    %v5804 = vunpack.c.l.b16 %v5772
    %v5805 = vunpack.c.l.b16 %v5773
    %v5806 = vunpack.c.l.b16 %v5774
    %v5807 = vunpack.c.l.b16 %v5775
    %v5808 = vunpack.c.l.b16 %v5776
    %v5809 = vunpack.c.l.b16 %v5777
    %v5810 = vunpack.c.l.b16 %v5778
    %v5811 = vunpack.c.l.b16 %v5779
    %v5812 = vunpack.c.l.b16 %v5780
    %v5813 = vpack.c.b16 %v5798, %v5797
    %v5814 = vpack.c.b16 %v5800, %v5799
    %v5815 = vpack.c.b16 %v5802, %v5801
    %v5816 = vpack.c.b16 %v5804, %v5803
    %v5817 = vpack.c.b16 %v5806, %v5805
    %v5818 = vpack.c.b16 %v5808, %v5807
    %v5819 = vpack.c.b16 %v5810, %v5809
    %v5820 = vpack.c.b16 %v5812, %v5811
    %5829 = vmatpush.bf16.msra.mxu0 %v5820
    %5830 = vmatpush.bf16.msra.mxu0 %v5819
    %5831 = vmatpush.bf16.msra.mxu0 %v5818
    %5832 = vmatpush.bf16.msra.mxu0 %v5817
    %5833 = vmatpush.bf16.msra.mxu0 %v5816
    %5834 = vmatpush.bf16.msra.mxu0 %v5815
    %5835 = vmatpush.bf16.msra.mxu0 %v5814
    %5836 = vmatpush.bf16.msra.mxu0 %v5813
    %5837 = vmatmul.bf16.gmra.mxu0 %v5760
    %v5838 = vpop.f32.mrf.mxu0
    %v5839 = vadd.f32 0.0, %v5838
    %v5840 = vpop.f32.mrf.mxu0
    %v5841 = vadd.f32 0.0, %v5840
    %5842 = vmatmul.bf16.gmra.mxu0 %v5761
    %v5843 = vpop.f32.mrf.mxu0
    %v5844 = vadd.f32 0.0, %v5843
    %v5845 = vpop.f32.mrf.mxu0
    %v5846 = vadd.f32 0.0, %v5845
    %5847 = vmatmul.bf16.gmra.mxu0 %v5762
    %v5848 = vpop.f32.mrf.mxu0
    %v5849 = vadd.f32 0.0, %v5848
    %v5850 = vpop.f32.mrf.mxu0
    %v5851 = vadd.f32 0.0, %v5850
    %5852 = vmatmul.bf16.gmra.mxu0 %v5763
    %v5853 = vpop.f32.mrf.mxu0
    %v5854 = vadd.f32 0.0, %v5853
    %v5855 = vpop.f32.mrf.mxu0
    %v5856 = vadd.f32 0.0, %v5855
    %5857 = vdwg.mxu0
    %v5858 = vadd.f32 %v5744, %v5839
    %v5859 = vadd.f32 %v5745, %v5841
    %v5860 = vadd.f32 %v5746, %v5844
    %v5861 = vadd.f32 %v5747, %v5846
    %v5862 = vadd.f32 %v5748, %v5849
    %v5863 = vadd.f32 %v5749, %v5851
    %v5864 = vadd.f32 %v5750, %v5854
    %v5865 = vadd.f32 %v5751, %v5856
    %v5866 = vld [vmem:[%s5394 + $0x1] sm:$0xff]
    %v5867 = vld [vmem:[%s5394 + $0x11] sm:$0xff]
    %v5868 = vld [vmem:[%s5394 + $0x21] sm:$0xff]
    %v5869 = vld [vmem:[%s5394 + $0x31] sm:$0xff]
    %v5870 = vld [vmem:[%s5394 + $0x61] sm:$0xff]
    %v5871 = vld [vmem:[%s5394 + $0x71] sm:$0xff]
    %v5872 = vld [vmem:[%s5394 + $0x81] sm:$0xff]
    %v5873 = vld [vmem:[%s5394 + $0x91] sm:$0xff]
    %v5874 = vpack.c.bf16 %v5867, %v5866
    %v5875 = vpack.c.bf16 %v5869, %v5868
    %v5876 = vpack.c.bf16 %v5871, %v5870
    %v5877 = vpack.c.bf16 %v5873, %v5872
    %s5878 = scalar_lea.vmem %s5, 256
    %v5879 = vld [vmem:[%s5878] sm:$0xf]
    %v5880 = vld [vmem:[%s5878 + $0x4] sm:$0xf]
    %v5881 = vld [vmem:[%s5878 + $0x8] sm:$0xf]
    %v5882 = vld [vmem:[%s5878 + $0xc] sm:$0xf]
    %v5883 = vld [vmem:[%s5878 + $0x10] sm:$0xf]
    %v5884 = vld [vmem:[%s5878 + $0x14] sm:$0xf]
    %v5885 = vld [vmem:[%s5878 + $0x18] sm:$0xf]
    %v5886 = vld [vmem:[%s5878 + $0x1c] sm:$0xf]
    %v5887 = vld [vmem:[%s5878 + $0x20] sm:$0xf]
    %v5888 = vld [vmem:[%s5878 + $0x24] sm:$0xf]
    %v5889 = vld [vmem:[%s5878 + $0x28] sm:$0xf]
    %v5890 = vld [vmem:[%s5878 + $0x2c] sm:$0xf]
    %v5891 = vld [vmem:[%s5878 + $0x30] sm:$0xf]
    %v5892 = vld [vmem:[%s5878 + $0x34] sm:$0xf]
    %v5893 = vld [vmem:[%s5878 + $0x38] sm:$0xf]
    %v5894 = vld [vmem:[%s5878 + $0x3c] sm:$0xf]
    %v5911 = vunpack.c.l.b16 %v5879
    %v5912 = vunpack.c.l.b16 %v5880
    %v5913 = vunpack.c.l.b16 %v5881
    %v5914 = vunpack.c.l.b16 %v5882
    %v5915 = vunpack.c.l.b16 %v5883
    %v5916 = vunpack.c.l.b16 %v5884
    %v5917 = vunpack.c.l.b16 %v5885
    %v5918 = vunpack.c.l.b16 %v5886
    %v5919 = vunpack.c.l.b16 %v5887
    %v5920 = vunpack.c.l.b16 %v5888
    %v5921 = vunpack.c.l.b16 %v5889
    %v5922 = vunpack.c.l.b16 %v5890
    %v5923 = vunpack.c.l.b16 %v5891
    %v5924 = vunpack.c.l.b16 %v5892
    %v5925 = vunpack.c.l.b16 %v5893
    %v5926 = vunpack.c.l.b16 %v5894
    %v5927 = vpack.c.b16 %v5912, %v5911
    %v5928 = vpack.c.b16 %v5914, %v5913
    %v5929 = vpack.c.b16 %v5916, %v5915
    %v5930 = vpack.c.b16 %v5918, %v5917
    %v5931 = vpack.c.b16 %v5920, %v5919
    %v5932 = vpack.c.b16 %v5922, %v5921
    %v5933 = vpack.c.b16 %v5924, %v5923
    %v5934 = vpack.c.b16 %v5926, %v5925
    %5943 = vmatpush.bf16.msra.mxu0 %v5934
    %5944 = vmatpush.bf16.msra.mxu0 %v5933
    %5945 = vmatpush.bf16.msra.mxu0 %v5932
    %5946 = vmatpush.bf16.msra.mxu0 %v5931
    %5947 = vmatpush.bf16.msra.mxu0 %v5930
    %5948 = vmatpush.bf16.msra.mxu0 %v5929
    %5949 = vmatpush.bf16.msra.mxu0 %v5928
    %5950 = vmatpush.bf16.msra.mxu0 %v5927
    %5951 = vmatmul.bf16.gmra.mxu0 %v5874
    %v5952 = vpop.f32.mrf.mxu0
    %v5953 = vadd.f32 0.0, %v5952
    %v5954 = vpop.f32.mrf.mxu0
    %v5955 = vadd.f32 0.0, %v5954
    %5956 = vmatmul.bf16.gmra.mxu0 %v5875
    %v5957 = vpop.f32.mrf.mxu0
    %v5958 = vadd.f32 0.0, %v5957
    %v5959 = vpop.f32.mrf.mxu0
    %v5960 = vadd.f32 0.0, %v5959
    %5961 = vmatmul.bf16.gmra.mxu0 %v5876
    %v5962 = vpop.f32.mrf.mxu0
    %v5963 = vadd.f32 0.0, %v5962
    %v5964 = vpop.f32.mrf.mxu0
    %v5965 = vadd.f32 0.0, %v5964
    %5966 = vmatmul.bf16.gmra.mxu0 %v5877
    %v5967 = vpop.f32.mrf.mxu0
    %v5968 = vadd.f32 0.0, %v5967
    %v5969 = vpop.f32.mrf.mxu0
    %v5970 = vadd.f32 0.0, %v5969
    %5971 = vdwg.mxu0
    %v5972 = vadd.f32 %v5858, %v5953
    %v5973 = vadd.f32 %v5859, %v5955
    %v5974 = vadd.f32 %v5860, %v5958
    %v5975 = vadd.f32 %v5861, %v5960
    %v5976 = vadd.f32 %v5862, %v5963
    %v5977 = vadd.f32 %v5863, %v5965
    %v5978 = vadd.f32 %v5864, %v5968
    %v5979 = vadd.f32 %v5865, %v5970
    %v5980 = vld [vmem:[%s5394 + $0x2] sm:$0xff]
    %v5981 = vld [vmem:[%s5394 + $0x12] sm:$0xff]
    %v5982 = vld [vmem:[%s5394 + $0x22] sm:$0xff]
    %v5983 = vld [vmem:[%s5394 + $0x32] sm:$0xff]
    %v5984 = vld [vmem:[%s5394 + $0x62] sm:$0xff]
    %v5985 = vld [vmem:[%s5394 + $0x72] sm:$0xff]
    %v5986 = vld [vmem:[%s5394 + $0x82] sm:$0xff]
    %v5987 = vld [vmem:[%s5394 + $0x92] sm:$0xff]
    %v5988 = vpack.c.bf16 %v5981, %v5980
    %v5989 = vpack.c.bf16 %v5983, %v5982
    %v5990 = vpack.c.bf16 %v5985, %v5984
    %v5991 = vpack.c.bf16 %v5987, %v5986
    %s5992 = scalar_lea.vmem %s5, 320
    %v5993 = vld [vmem:[%s5992] sm:$0xf]
    %v5994 = vld [vmem:[%s5992 + $0x4] sm:$0xf]
    %v5995 = vld [vmem:[%s5992 + $0x8] sm:$0xf]
    %v5996 = vld [vmem:[%s5992 + $0xc] sm:$0xf]
    %v5997 = vld [vmem:[%s5992 + $0x10] sm:$0xf]
    %v5998 = vld [vmem:[%s5992 + $0x14] sm:$0xf]
    %v5999 = vld [vmem:[%s5992 + $0x18] sm:$0xf]
    %v6000 = vld [vmem:[%s5992 + $0x1c] sm:$0xf]
    %v6001 = vld [vmem:[%s5992 + $0x20] sm:$0xf]
    %v6002 = vld [vmem:[%s5992 + $0x24] sm:$0xf]
    %v6003 = vld [vmem:[%s5992 + $0x28] sm:$0xf]
    %v6004 = vld [vmem:[%s5992 + $0x2c] sm:$0xf]
    %v6005 = vld [vmem:[%s5992 + $0x30] sm:$0xf]
    %v6006 = vld [vmem:[%s5992 + $0x34] sm:$0xf]
    %v6007 = vld [vmem:[%s5992 + $0x38] sm:$0xf]
    %v6008 = vld [vmem:[%s5992 + $0x3c] sm:$0xf]
    %v6025 = vunpack.c.l.b16 %v5993
    %v6026 = vunpack.c.l.b16 %v5994
    %v6027 = vunpack.c.l.b16 %v5995
    %v6028 = vunpack.c.l.b16 %v5996
    %v6029 = vunpack.c.l.b16 %v5997
    %v6030 = vunpack.c.l.b16 %v5998
    %v6031 = vunpack.c.l.b16 %v5999
    %v6032 = vunpack.c.l.b16 %v6000
    %v6033 = vunpack.c.l.b16 %v6001
    %v6034 = vunpack.c.l.b16 %v6002
    %v6035 = vunpack.c.l.b16 %v6003
    %v6036 = vunpack.c.l.b16 %v6004
    %v6037 = vunpack.c.l.b16 %v6005
    %v6038 = vunpack.c.l.b16 %v6006
    %v6039 = vunpack.c.l.b16 %v6007
    %v6040 = vunpack.c.l.b16 %v6008
    %v6041 = vpack.c.b16 %v6026, %v6025
    %v6042 = vpack.c.b16 %v6028, %v6027
    %v6043 = vpack.c.b16 %v6030, %v6029
    %v6044 = vpack.c.b16 %v6032, %v6031
    %v6045 = vpack.c.b16 %v6034, %v6033
    %v6046 = vpack.c.b16 %v6036, %v6035
    %v6047 = vpack.c.b16 %v6038, %v6037
    %v6048 = vpack.c.b16 %v6040, %v6039
    %6057 = vmatpush.bf16.msra.mxu0 %v6048
    %6058 = vmatpush.bf16.msra.mxu0 %v6047
    %6059 = vmatpush.bf16.msra.mxu0 %v6046
    %6060 = vmatpush.bf16.msra.mxu0 %v6045
    %6061 = vmatpush.bf16.msra.mxu0 %v6044
    %6062 = vmatpush.bf16.msra.mxu0 %v6043
    %6063 = vmatpush.bf16.msra.mxu0 %v6042
    %6064 = vmatpush.bf16.msra.mxu0 %v6041
    %6065 = vmatmul.bf16.gmra.mxu0 %v5988
    %v6066 = vpop.f32.mrf.mxu0
    %v6067 = vadd.f32 0.0, %v6066
    %v6068 = vpop.f32.mrf.mxu0
    %v6069 = vadd.f32 0.0, %v6068
    %6070 = vmatmul.bf16.gmra.mxu0 %v5989
    %v6071 = vpop.f32.mrf.mxu0
    %v6072 = vadd.f32 0.0, %v6071
    %v6073 = vpop.f32.mrf.mxu0
    %v6074 = vadd.f32 0.0, %v6073
    %6075 = vmatmul.bf16.gmra.mxu0 %v5990
    %v6076 = vpop.f32.mrf.mxu0
    %v6077 = vadd.f32 0.0, %v6076
    %v6078 = vpop.f32.mrf.mxu0
    %v6079 = vadd.f32 0.0, %v6078
    %6080 = vmatmul.bf16.gmra.mxu0 %v5991
    %v6081 = vpop.f32.mrf.mxu0
    %v6082 = vadd.f32 0.0, %v6081
    %v6083 = vpop.f32.mrf.mxu0
    %v6084 = vadd.f32 0.0, %v6083
    %6085 = vdwg.mxu0
    %v6086 = vadd.f32 %v5972, %v6067
    %v6087 = vadd.f32 %v5973, %v6069
    %v6088 = vadd.f32 %v5974, %v6072
    %v6089 = vadd.f32 %v5975, %v6074
    %v6090 = vadd.f32 %v5976, %v6077
    %v6091 = vadd.f32 %v5977, %v6079
    %v6092 = vadd.f32 %v5978, %v6082
    %v6093 = vadd.f32 %v5979, %v6084
    %s6094 = scalar_lea.vmem [#allocation3], 32
    %v6095 = vld [vmem:[%s6094] sm:$0xff]
    %v6096 = vld [vmem:[%s6094 + $0x10] sm:$0xff]
    %v6097 = vld [vmem:[%s6094 + $0x20] sm:$0xff]
    %v6098 = vld [vmem:[%s6094 + $0x30] sm:$0xff]
    %v6099 = vld [vmem:[%s6094 + $0x60] sm:$0xff]
    %v6100 = vld [vmem:[%s6094 + $0x70] sm:$0xff]
    %v6101 = vld [vmem:[%s6094 + $0x80] sm:$0xff]
    %v6102 = vld [vmem:[%s6094 + $0x90] sm:$0xff]
    %v6103 = vpack.c.bf16 %v6096, %v6095
    %v6104 = vpack.c.bf16 %v6098, %v6097
    %v6105 = vpack.c.bf16 %v6100, %v6099
    %v6106 = vpack.c.bf16 %v6102, %v6101
    %s6107 = scalar_lea.vmem %s5, 384
    %v6108 = vld [vmem:[%s6107] sm:$0xf]
    %v6109 = vld [vmem:[%s6107 + $0x4] sm:$0xf]
    %v6110 = vld [vmem:[%s6107 + $0x8] sm:$0xf]
    %v6111 = vld [vmem:[%s6107 + $0xc] sm:$0xf]
    %v6112 = vld [vmem:[%s6107 + $0x10] sm:$0xf]
    %v6113 = vld [vmem:[%s6107 + $0x14] sm:$0xf]
    %v6114 = vld [vmem:[%s6107 + $0x18] sm:$0xf]
    %v6115 = vld [vmem:[%s6107 + $0x1c] sm:$0xf]
    %v6116 = vld [vmem:[%s6107 + $0x20] sm:$0xf]
    %v6117 = vld [vmem:[%s6107 + $0x24] sm:$0xf]
    %v6118 = vld [vmem:[%s6107 + $0x28] sm:$0xf]
    %v6119 = vld [vmem:[%s6107 + $0x2c] sm:$0xf]
    %v6120 = vld [vmem:[%s6107 + $0x30] sm:$0xf]
    %v6121 = vld [vmem:[%s6107 + $0x34] sm:$0xf]
    %v6122 = vld [vmem:[%s6107 + $0x38] sm:$0xf]
    %v6123 = vld [vmem:[%s6107 + $0x3c] sm:$0xf]
    %v6140 = vunpack.c.l.b16 %v6108
    %v6141 = vunpack.c.l.b16 %v6109
    %v6142 = vunpack.c.l.b16 %v6110
    %v6143 = vunpack.c.l.b16 %v6111
    %v6144 = vunpack.c.l.b16 %v6112
    %v6145 = vunpack.c.l.b16 %v6113
    %v6146 = vunpack.c.l.b16 %v6114
    %v6147 = vunpack.c.l.b16 %v6115
    %v6148 = vunpack.c.l.b16 %v6116
    %v6149 = vunpack.c.l.b16 %v6117
    %v6150 = vunpack.c.l.b16 %v6118
    %v6151 = vunpack.c.l.b16 %v6119
    %v6152 = vunpack.c.l.b16 %v6120
    %v6153 = vunpack.c.l.b16 %v6121
    %v6154 = vunpack.c.l.b16 %v6122
    %v6155 = vunpack.c.l.b16 %v6123
    %v6156 = vpack.c.b16 %v6141, %v6140
    %v6157 = vpack.c.b16 %v6143, %v6142
    %v6158 = vpack.c.b16 %v6145, %v6144
    %v6159 = vpack.c.b16 %v6147, %v6146
    %v6160 = vpack.c.b16 %v6149, %v6148
    %v6161 = vpack.c.b16 %v6151, %v6150
    %v6162 = vpack.c.b16 %v6153, %v6152
    %v6163 = vpack.c.b16 %v6155, %v6154
    %6172 = vmatpush.bf16.msra.mxu0 %v6163
    %6173 = vmatpush.bf16.msra.mxu0 %v6162
    %6174 = vmatpush.bf16.msra.mxu0 %v6161
    %6175 = vmatpush.bf16.msra.mxu0 %v6160
    %6176 = vmatpush.bf16.msra.mxu0 %v6159
    %6177 = vmatpush.bf16.msra.mxu0 %v6158
    %6178 = vmatpush.bf16.msra.mxu0 %v6157
    %6179 = vmatpush.bf16.msra.mxu0 %v6156
    %6180 = vmatmul.bf16.gmra.mxu0 %v6103
    %v6181 = vpop.f32.mrf.mxu0
    %v6182 = vadd.f32 0.0, %v6181
    %v6183 = vpop.f32.mrf.mxu0
    %v6184 = vadd.f32 0.0, %v6183
    %6185 = vmatmul.bf16.gmra.mxu0 %v6104
    %v6186 = vpop.f32.mrf.mxu0
    %v6187 = vadd.f32 0.0, %v6186
    %v6188 = vpop.f32.mrf.mxu0
    %v6189 = vadd.f32 0.0, %v6188
    %6190 = vmatmul.bf16.gmra.mxu0 %v6105
    %v6191 = vpop.f32.mrf.mxu0
    %v6192 = vadd.f32 0.0, %v6191
    %v6193 = vpop.f32.mrf.mxu0
    %v6194 = vadd.f32 0.0, %v6193
    %6195 = vmatmul.bf16.gmra.mxu0 %v6106
    %v6196 = vpop.f32.mrf.mxu0
    %v6197 = vadd.f32 0.0, %v6196
    %v6198 = vpop.f32.mrf.mxu0
    %v6199 = vadd.f32 0.0, %v6198
    %6200 = vdwg.mxu0
    %v6201 = vadd.f32 %v6086, %v6182
    %v6202 = vadd.f32 %v6087, %v6184
    %v6203 = vadd.f32 %v6088, %v6187
    %v6204 = vadd.f32 %v6089, %v6189
    %v6205 = vadd.f32 %v6090, %v6192
    %v6206 = vadd.f32 %v6091, %v6194
    %v6207 = vadd.f32 %v6092, %v6197
    %v6208 = vadd.f32 %v6093, %v6199
    %v6209 = vld [vmem:[%s6094 + $0x1] sm:$0xff]
    %v6210 = vld [vmem:[%s6094 + $0x11] sm:$0xff]
    %v6211 = vld [vmem:[%s6094 + $0x21] sm:$0xff]
    %v6212 = vld [vmem:[%s6094 + $0x31] sm:$0xff]
    %v6213 = vld [vmem:[%s6094 + $0x61] sm:$0xff]
    %v6214 = vld [vmem:[%s6094 + $0x71] sm:$0xff]
    %v6215 = vld [vmem:[%s6094 + $0x81] sm:$0xff]
    %v6216 = vld [vmem:[%s6094 + $0x91] sm:$0xff]
    %v6217 = vpack.c.bf16 %v6210, %v6209
    %v6218 = vpack.c.bf16 %v6212, %v6211
    %v6219 = vpack.c.bf16 %v6214, %v6213
    %v6220 = vpack.c.bf16 %v6216, %v6215
    %s6221 = scalar_lea.vmem %s5, 448
    %v6222 = vld [vmem:[%s6221] sm:$0xf]
    %v6223 = vld [vmem:[%s6221 + $0x4] sm:$0xf]
    %v6224 = vld [vmem:[%s6221 + $0x8] sm:$0xf]
    %v6225 = vld [vmem:[%s6221 + $0xc] sm:$0xf]
    %v6226 = vld [vmem:[%s6221 + $0x10] sm:$0xf]
    %v6227 = vld [vmem:[%s6221 + $0x14] sm:$0xf]
    %v6228 = vld [vmem:[%s6221 + $0x18] sm:$0xf]
    %v6229 = vld [vmem:[%s6221 + $0x1c] sm:$0xf]
    %v6230 = vld [vmem:[%s6221 + $0x20] sm:$0xf]
    %v6231 = vld [vmem:[%s6221 + $0x24] sm:$0xf]
    %v6232 = vld [vmem:[%s6221 + $0x28] sm:$0xf]
    %v6233 = vld [vmem:[%s6221 + $0x2c] sm:$0xf]
    %v6234 = vld [vmem:[%s6221 + $0x30] sm:$0xf]
    %v6235 = vld [vmem:[%s6221 + $0x34] sm:$0xf]
    %v6236 = vld [vmem:[%s6221 + $0x38] sm:$0xf]
    %v6237 = vld [vmem:[%s6221 + $0x3c] sm:$0xf]
    %v6254 = vunpack.c.l.b16 %v6222
    %v6255 = vunpack.c.l.b16 %v6223
    %v6256 = vunpack.c.l.b16 %v6224
    %v6257 = vunpack.c.l.b16 %v6225
    %v6258 = vunpack.c.l.b16 %v6226
    %v6259 = vunpack.c.l.b16 %v6227
    %v6260 = vunpack.c.l.b16 %v6228
    %v6261 = vunpack.c.l.b16 %v6229
    %v6262 = vunpack.c.l.b16 %v6230
    %v6263 = vunpack.c.l.b16 %v6231
    %v6264 = vunpack.c.l.b16 %v6232
    %v6265 = vunpack.c.l.b16 %v6233
    %v6266 = vunpack.c.l.b16 %v6234
    %v6267 = vunpack.c.l.b16 %v6235
    %v6268 = vunpack.c.l.b16 %v6236
    %v6269 = vunpack.c.l.b16 %v6237
    %v6270 = vpack.c.b16 %v6255, %v6254
    %v6271 = vpack.c.b16 %v6257, %v6256
    %v6272 = vpack.c.b16 %v6259, %v6258
    %v6273 = vpack.c.b16 %v6261, %v6260
    %v6274 = vpack.c.b16 %v6263, %v6262
    %v6275 = vpack.c.b16 %v6265, %v6264
    %v6276 = vpack.c.b16 %v6267, %v6266
    %v6277 = vpack.c.b16 %v6269, %v6268
    %6286 = vmatpush.bf16.msra.mxu0 %v6277
    %6287 = vmatpush.bf16.msra.mxu0 %v6276
    %6288 = vmatpush.bf16.msra.mxu0 %v6275
    %6289 = vmatpush.bf16.msra.mxu0 %v6274
    %6290 = vmatpush.bf16.msra.mxu0 %v6273
    %6291 = vmatpush.bf16.msra.mxu0 %v6272
    %6292 = vmatpush.bf16.msra.mxu0 %v6271
    %6293 = vmatpush.bf16.msra.mxu0 %v6270
    %6294 = vmatmul.bf16.gmra.mxu0 %v6217
    %v6295 = vpop.f32.mrf.mxu0
    %v6296 = vadd.f32 0.0, %v6295
    %v6297 = vpop.f32.mrf.mxu0
    %v6298 = vadd.f32 0.0, %v6297
    %6299 = vmatmul.bf16.gmra.mxu0 %v6218
    %v6300 = vpop.f32.mrf.mxu0
    %v6301 = vadd.f32 0.0, %v6300
    %v6302 = vpop.f32.mrf.mxu0
    %v6303 = vadd.f32 0.0, %v6302
    %6304 = vmatmul.bf16.gmra.mxu0 %v6219
    %v6305 = vpop.f32.mrf.mxu0
    %v6306 = vadd.f32 0.0, %v6305
    %v6307 = vpop.f32.mrf.mxu0
    %v6308 = vadd.f32 0.0, %v6307
    %6309 = vmatmul.bf16.gmra.mxu0 %v6220
    %v6310 = vpop.f32.mrf.mxu0
    %v6311 = vadd.f32 0.0, %v6310
    %v6312 = vpop.f32.mrf.mxu0
    %v6313 = vadd.f32 0.0, %v6312
    %6314 = vdwg.mxu0
    %v6315 = vadd.f32 %v6201, %v6296
    %v6316 = vadd.f32 %v6202, %v6298
    %v6317 = vadd.f32 %v6203, %v6301
    %v6318 = vadd.f32 %v6204, %v6303
    %v6319 = vadd.f32 %v6205, %v6306
    %v6320 = vadd.f32 %v6206, %v6308
    %v6321 = vadd.f32 %v6207, %v6311
    %v6322 = vadd.f32 %v6208, %v6313
    %v6323 = vld [vmem:[%s6094 + $0x2] sm:$0xff]
    %v6324 = vld [vmem:[%s6094 + $0x12] sm:$0xff]
    %v6325 = vld [vmem:[%s6094 + $0x22] sm:$0xff]
    %v6326 = vld [vmem:[%s6094 + $0x32] sm:$0xff]
    %v6327 = vld [vmem:[%s6094 + $0x62] sm:$0xff]
    %v6328 = vld [vmem:[%s6094 + $0x72] sm:$0xff]
    %v6329 = vld [vmem:[%s6094 + $0x82] sm:$0xff]
    %v6330 = vld [vmem:[%s6094 + $0x92] sm:$0xff]
    %v6331 = vpack.c.bf16 %v6324, %v6323
    %v6332 = vpack.c.bf16 %v6326, %v6325
    %v6333 = vpack.c.bf16 %v6328, %v6327
    %v6334 = vpack.c.bf16 %v6330, %v6329
    %s6335 = scalar_lea.vmem %s5, 512
    %v6336 = vld [vmem:[%s6335] sm:$0xf]
    %v6337 = vld [vmem:[%s6335 + $0x4] sm:$0xf]
    %v6338 = vld [vmem:[%s6335 + $0x8] sm:$0xf]
    %v6339 = vld [vmem:[%s6335 + $0xc] sm:$0xf]
    %v6340 = vld [vmem:[%s6335 + $0x10] sm:$0xf]
    %v6341 = vld [vmem:[%s6335 + $0x14] sm:$0xf]
    %v6342 = vld [vmem:[%s6335 + $0x18] sm:$0xf]
    %v6343 = vld [vmem:[%s6335 + $0x1c] sm:$0xf]
    %v6344 = vld [vmem:[%s6335 + $0x20] sm:$0xf]
    %v6345 = vld [vmem:[%s6335 + $0x24] sm:$0xf]
    %v6346 = vld [vmem:[%s6335 + $0x28] sm:$0xf]
    %v6347 = vld [vmem:[%s6335 + $0x2c] sm:$0xf]
    %v6348 = vld [vmem:[%s6335 + $0x30] sm:$0xf]
    %v6349 = vld [vmem:[%s6335 + $0x34] sm:$0xf]
    %v6350 = vld [vmem:[%s6335 + $0x38] sm:$0xf]
    %v6351 = vld [vmem:[%s6335 + $0x3c] sm:$0xf]
    %v6368 = vunpack.c.l.b16 %v6336
    %v6369 = vunpack.c.l.b16 %v6337
    %v6370 = vunpack.c.l.b16 %v6338
    %v6371 = vunpack.c.l.b16 %v6339
    %v6372 = vunpack.c.l.b16 %v6340
    %v6373 = vunpack.c.l.b16 %v6341
    %v6374 = vunpack.c.l.b16 %v6342
    %v6375 = vunpack.c.l.b16 %v6343
    %v6376 = vunpack.c.l.b16 %v6344
    %v6377 = vunpack.c.l.b16 %v6345
    %v6378 = vunpack.c.l.b16 %v6346
    %v6379 = vunpack.c.l.b16 %v6347
    %v6380 = vunpack.c.l.b16 %v6348
    %v6381 = vunpack.c.l.b16 %v6349
    %v6382 = vunpack.c.l.b16 %v6350
    %v6383 = vunpack.c.l.b16 %v6351
    %v6384 = vpack.c.b16 %v6369, %v6368
    %v6385 = vpack.c.b16 %v6371, %v6370
    %v6386 = vpack.c.b16 %v6373, %v6372
    %v6387 = vpack.c.b16 %v6375, %v6374
    %v6388 = vpack.c.b16 %v6377, %v6376
    %v6389 = vpack.c.b16 %v6379, %v6378
    %v6390 = vpack.c.b16 %v6381, %v6380
    %v6391 = vpack.c.b16 %v6383, %v6382
    %6400 = vmatpush.bf16.msra.mxu0 %v6391
    %6401 = vmatpush.bf16.msra.mxu0 %v6390
    %6402 = vmatpush.bf16.msra.mxu0 %v6389
    %6403 = vmatpush.bf16.msra.mxu0 %v6388
    %6404 = vmatpush.bf16.msra.mxu0 %v6387
    %6405 = vmatpush.bf16.msra.mxu0 %v6386
    %6406 = vmatpush.bf16.msra.mxu0 %v6385
    %6407 = vmatpush.bf16.msra.mxu0 %v6384
    %6408 = vmatmul.bf16.gmra.mxu0 %v6331
    %v6409 = vpop.f32.mrf.mxu0
    %v6410 = vadd.f32 0.0, %v6409
    %v6411 = vpop.f32.mrf.mxu0
    %v6412 = vadd.f32 0.0, %v6411
    %6413 = vmatmul.bf16.gmra.mxu0 %v6332
    %v6414 = vpop.f32.mrf.mxu0
    %v6415 = vadd.f32 0.0, %v6414
    %v6416 = vpop.f32.mrf.mxu0
    %v6417 = vadd.f32 0.0, %v6416
    %6418 = vmatmul.bf16.gmra.mxu0 %v6333
    %v6419 = vpop.f32.mrf.mxu0
    %v6420 = vadd.f32 0.0, %v6419
    %v6421 = vpop.f32.mrf.mxu0
    %v6422 = vadd.f32 0.0, %v6421
    %6423 = vmatmul.bf16.gmra.mxu0 %v6334
    %v6424 = vpop.f32.mrf.mxu0
    %v6425 = vadd.f32 0.0, %v6424
    %v6426 = vpop.f32.mrf.mxu0
    %v6427 = vadd.f32 0.0, %v6426
    %6428 = vdwg.mxu0
    %v6429 = vadd.f32 %v6315, %v6410
    %v6430 = vadd.f32 %v6316, %v6412
    %v6431 = vadd.f32 %v6317, %v6415
    %v6432 = vadd.f32 %v6318, %v6417
    %v6433 = vadd.f32 %v6319, %v6420
    %v6434 = vadd.f32 %v6320, %v6422
    %v6435 = vadd.f32 %v6321, %v6425
    %v6436 = vadd.f32 %v6322, %v6427
    %v6437 = vld [vmem:[%s6] sm:$0x1]
    %v6439 = vperm.slane %v6437, 0
    %v6441 = vadd.f32 %v6429, %v6439
    %v6442 = vadd.f32 %v6430, %v6439
    %v6443 = vadd.f32 %v6431, %v6439
    %v6444 = vadd.f32 %v6432, %v6439
    %v6445 = vadd.f32 %v6433, %v6439
    %v6446 = vadd.f32 %v6434, %v6439
    %v6447 = vadd.f32 %v6435, %v6439
    %v6448 = vadd.f32 %v6436, %v6439
    %v6449 = vmax.f32 %v6441, 0.0
    %v6450 = vmax.f32 %v6442, 0.0
    %v6451 = vmax.f32 %v6443, 0.0
    %v6452 = vmax.f32 %v6444, 0.0
    %v6453 = vmax.f32 %v6445, 0.0
    %v6454 = vmax.f32 %v6446, 0.0
    %v6455 = vmax.f32 %v6447, 0.0
    %v6456 = vmax.f32 %v6448, 0.0
    %v6457 = vmax.f32 %v6449, %v6450
    %v6458 = vmax.f32 %v6451, %v6452
    %v6459 = vmax.f32 %v6453, %v6454
    %v6460 = vmax.f32 %v6455, %v6456
    %v6465 = vrot.slane %v6457, 1
    %v6466 = vrot.slane %v6458, 1
    %v6467 = vrot.slane %v6459, 1
    %v6468 = vrot.slane %v6460, 1
    %v6473 = vmax.f32 %v6457, %v6465
    %v6474 = vmax.f32 %v6458, %v6466
    %v6475 = vmax.f32 %v6459, %v6467
    %v6476 = vmax.f32 %v6460, %v6468
    %6477 = vst [vmem:[#allocation4] sm:$0x1] %v6473
    %6478 = vst [vmem:[#allocation4 + $0x2] sm:$0x1] %v6474
    %6479 = vst [vmem:[#allocation4 + $0x4] sm:$0x1] %v6475
    %6480 = vst [vmem:[#allocation4 + $0x6] sm:$0x1] %v6476
    %6481 = vst [vmem:[#allocation4 - $0x1] sm:$0x4] %v6473
    %6482 = vst [vmem:[#allocation4 + $0x1] sm:$0x4] %v6474
    %6483 = vst [vmem:[#allocation4 + $0x3] sm:$0x4] %v6475
    %6484 = vst [vmem:[#allocation4 + $0x5] sm:$0x4] %v6476
    %v6485 = vld [vmem:[#allocation4] sm:$0x1]
    %v6486 = vld [vmem:[#allocation4 + $0x4] sm:$0x1]
    %v6487 = vpack.c.bf16 %v6485, %v6485
    %v6488 = vpack.c.bf16 %v6486, %v6486
    %v6489 = vld [vmem:[#allocation5] sm:$0xff]
    %v6490 = vld [vmem:[#allocation5 + $0x8] sm:$0xff]
    %v6491 = vld [vmem:[#allocation5 + $0x10] sm:$0xff]
    %v6492 = vld [vmem:[#allocation5 + $0x18] sm:$0xff]
    %v6493 = vld [vmem:[#allocation5 + $0x20] sm:$0xff]
    %v6494 = vld [vmem:[#allocation5 + $0x28] sm:$0xff]
    %v6495 = vld [vmem:[#allocation5 + $0x30] sm:$0xff]
    %v6496 = vld [vmem:[#allocation5 + $0x38] sm:$0xff]
    %v6497 = vld [vmem:[#allocation5 + $0x40] sm:$0xff]
    %v6498 = vld [vmem:[#allocation5 + $0x48] sm:$0xff]
    %v6499 = vld [vmem:[#allocation5 + $0x50] sm:$0xff]
    %v6500 = vld [vmem:[#allocation5 + $0x58] sm:$0xff]
    %v6501 = vld [vmem:[#allocation5 + $0x60] sm:$0xff]
    %v6502 = vld [vmem:[#allocation5 + $0x68] sm:$0xff]
    %v6503 = vld [vmem:[#allocation5 + $0x70] sm:$0xff]
    %v6504 = vld [vmem:[#allocation5 + $0x78] sm:$0xff]
    %v6505 = vld [vmem:[#allocation4 + $0x1] sm:$0x1]
    %v6506 = vld [vmem:[#allocation4 + $0x5] sm:$0x1]
    %v6507 = vpack.c.bf16 %v6505, %v6505
    %v6508 = vpack.c.bf16 %v6506, %v6506
    %s6509 = scalar_lea.vmem [#allocation5], 128
    %v6510 = vld [vmem:[%s6509] sm:$0xff]
    %v6511 = vld [vmem:[%s6509 + $0x8] sm:$0xff]
    %v6512 = vld [vmem:[%s6509 + $0x10] sm:$0xff]
    %v6513 = vld [vmem:[%s6509 + $0x18] sm:$0xff]
    %v6514 = vld [vmem:[%s6509 + $0x20] sm:$0xff]
    %v6515 = vld [vmem:[%s6509 + $0x28] sm:$0xff]
    %v6516 = vld [vmem:[%s6509 + $0x30] sm:$0xff]
    %v6517 = vld [vmem:[%s6509 + $0x38] sm:$0xff]
    %v6518 = vld [vmem:[%s6509 + $0x40] sm:$0xff]
    %v6519 = vld [vmem:[%s6509 + $0x48] sm:$0xff]
    %v6520 = vld [vmem:[%s6509 + $0x50] sm:$0xff]
    %v6521 = vld [vmem:[%s6509 + $0x58] sm:$0xff]
    %v6522 = vld [vmem:[%s6509 + $0x60] sm:$0xff]
    %v6523 = vld [vmem:[%s6509 + $0x68] sm:$0xff]
    %v6524 = vld [vmem:[%s6509 + $0x70] sm:$0xff]
    %v6525 = vld [vmem:[%s6509 + $0x78] sm:$0xff]
    %v6528 = vunpack.c.l.b16 %v6507
    %v6529 = vunpack.c.l.b16 %v6508
    %v6530 = vrot.slane %v6529, 7
    %vm6531 = vcmask 1041409
    %v6532 = vsel %vm6531, %v6530, %v6528
    %v6533 = vpack.c.b16 %v6532, %v6532
    %v6551 = vunpack.c.l.b16 %v6510
    %v6552 = vunpack.c.h.b16 %v6510
    %v6553 = vunpack.c.l.b16 %v6511
    %v6554 = vunpack.c.h.b16 %v6511
    %v6555 = vunpack.c.l.b16 %v6512
    %v6556 = vunpack.c.h.b16 %v6512
    %v6557 = vunpack.c.l.b16 %v6513
    %v6558 = vunpack.c.h.b16 %v6513
    %v6559 = vunpack.c.l.b16 %v6514
    %v6560 = vunpack.c.h.b16 %v6514
    %v6561 = vunpack.c.l.b16 %v6515
    %v6562 = vunpack.c.h.b16 %v6515
    %v6563 = vunpack.c.l.b16 %v6516
    %v6564 = vunpack.c.h.b16 %v6516
    %v6565 = vunpack.c.l.b16 %v6517
    %v6566 = vunpack.c.h.b16 %v6517
    %v6567 = vunpack.c.l.b16 %v6518
    %v6568 = vunpack.c.h.b16 %v6518
    %v6569 = vunpack.c.l.b16 %v6519
    %v6570 = vunpack.c.h.b16 %v6519
    %v6571 = vunpack.c.l.b16 %v6520
    %v6572 = vunpack.c.h.b16 %v6520
    %v6573 = vunpack.c.l.b16 %v6521
    %v6574 = vunpack.c.h.b16 %v6521
    %v6575 = vunpack.c.l.b16 %v6522
    %v6576 = vunpack.c.h.b16 %v6522
    %v6577 = vunpack.c.l.b16 %v6523
    %v6578 = vunpack.c.h.b16 %v6523
    %v6579 = vunpack.c.l.b16 %v6524
    %v6580 = vunpack.c.h.b16 %v6524
    %v6581 = vunpack.c.l.b16 %v6525
    %v6582 = vunpack.c.h.b16 %v6525
    %v6583 = vpack.c.b16 %v6553, %v6551
    %v6584 = vpack.c.b16 %v6554, %v6552
    %v6585 = vpack.c.b16 %v6557, %v6555
    %v6586 = vpack.c.b16 %v6558, %v6556
    %v6587 = vpack.c.b16 %v6561, %v6559
    %v6588 = vpack.c.b16 %v6562, %v6560
    %v6589 = vpack.c.b16 %v6565, %v6563
    %v6590 = vpack.c.b16 %v6566, %v6564
    %v6591 = vpack.c.b16 %v6569, %v6567
    %v6592 = vpack.c.b16 %v6570, %v6568
    %v6593 = vpack.c.b16 %v6573, %v6571
    %v6594 = vpack.c.b16 %v6574, %v6572
    %v6595 = vpack.c.b16 %v6577, %v6575
    %v6596 = vpack.c.b16 %v6578, %v6576
    %v6597 = vpack.c.b16 %v6581, %v6579
    %v6598 = vpack.c.b16 %v6582, %v6580
    %6615 = vmatpush.bf16.msra.mxu0 %v6597
    %6616 = vmatpush.bf16.msra.mxu0 %v6595
    %6617 = vmatpush.bf16.msra.mxu0 %v6593
    %6618 = vmatpush.bf16.msra.mxu0 %v6591
    %6619 = vmatpush.bf16.msra.mxu0 %v6589
    %6620 = vmatpush.bf16.msra.mxu0 %v6587
    %6621 = vmatpush.bf16.msra.mxu0 %v6585
    %6622 = vmatpush.bf16.msra.mxu0 %v6583
    %6623 = vmatmul.bf16.gmra.mxu0 %v6533
    %v6624 = vpop.f32.mrf.mxu0
    %v6625 = vadd.f32 0.0, %v6624
    %v6626 = vpop.f32.mrf.mxu0
    %6627 = vdwg.mxu0
    %6628 = vmatpush.bf16.msra.mxu0 %v6598
    %6629 = vmatpush.bf16.msra.mxu0 %v6596
    %6630 = vmatpush.bf16.msra.mxu0 %v6594
    %6631 = vmatpush.bf16.msra.mxu0 %v6592
    %6632 = vmatpush.bf16.msra.mxu0 %v6590
    %6633 = vmatpush.bf16.msra.mxu0 %v6588
    %6634 = vmatpush.bf16.msra.mxu0 %v6586
    %6635 = vmatpush.bf16.msra.mxu0 %v6584
    %6636 = vmatmul.bf16.gmra.mxu0 %v6533
    %v6637 = vpop.f32.mrf.mxu0
    %v6638 = vadd.f32 0.0, %v6637
    %v6639 = vpop.f32.mrf.mxu0
    %6640 = vdwg.mxu0
    %v6643 = vunpack.c.l.b16 %v6487
    %v6644 = vunpack.c.l.b16 %v6488
    %v6645 = vrot.slane %v6644, 7
    %v6646 = vsel %vm6531, %v6645, %v6643
    %v6647 = vpack.c.b16 %v6646, %v6646
    %v6665 = vunpack.c.l.b16 %v6489
    %v6666 = vunpack.c.h.b16 %v6489
    %v6667 = vunpack.c.l.b16 %v6490
    %v6668 = vunpack.c.h.b16 %v6490
    %v6669 = vunpack.c.l.b16 %v6491
    %v6670 = vunpack.c.h.b16 %v6491
    %v6671 = vunpack.c.l.b16 %v6492
    %v6672 = vunpack.c.h.b16 %v6492
    %v6673 = vunpack.c.l.b16 %v6493
    %v6674 = vunpack.c.h.b16 %v6493
    %v6675 = vunpack.c.l.b16 %v6494
    %v6676 = vunpack.c.h.b16 %v6494
    %v6677 = vunpack.c.l.b16 %v6495
    %v6678 = vunpack.c.h.b16 %v6495
    %v6679 = vunpack.c.l.b16 %v6496
    %v6680 = vunpack.c.h.b16 %v6496
    %v6681 = vunpack.c.l.b16 %v6497
    %v6682 = vunpack.c.h.b16 %v6497
    %v6683 = vunpack.c.l.b16 %v6498
    %v6684 = vunpack.c.h.b16 %v6498
    %v6685 = vunpack.c.l.b16 %v6499
    %v6686 = vunpack.c.h.b16 %v6499
    %v6687 = vunpack.c.l.b16 %v6500
    %v6688 = vunpack.c.h.b16 %v6500
    %v6689 = vunpack.c.l.b16 %v6501
    %v6690 = vunpack.c.h.b16 %v6501
    %v6691 = vunpack.c.l.b16 %v6502
    %v6692 = vunpack.c.h.b16 %v6502
    %v6693 = vunpack.c.l.b16 %v6503
    %v6694 = vunpack.c.h.b16 %v6503
    %v6695 = vunpack.c.l.b16 %v6504
    %v6696 = vunpack.c.h.b16 %v6504
    %v6697 = vpack.c.b16 %v6667, %v6665
    %v6698 = vpack.c.b16 %v6668, %v6666
    %v6699 = vpack.c.b16 %v6671, %v6669
    %v6700 = vpack.c.b16 %v6672, %v6670
    %v6701 = vpack.c.b16 %v6675, %v6673
    %v6702 = vpack.c.b16 %v6676, %v6674
    %v6703 = vpack.c.b16 %v6679, %v6677
    %v6704 = vpack.c.b16 %v6680, %v6678
    %v6705 = vpack.c.b16 %v6683, %v6681
    %v6706 = vpack.c.b16 %v6684, %v6682
    %v6707 = vpack.c.b16 %v6687, %v6685
    %v6708 = vpack.c.b16 %v6688, %v6686
    %v6709 = vpack.c.b16 %v6691, %v6689
    %v6710 = vpack.c.b16 %v6692, %v6690
    %v6711 = vpack.c.b16 %v6695, %v6693
    %v6712 = vpack.c.b16 %v6696, %v6694
    %6729 = vmatpush.bf16.msra.mxu0 %v6711
    %6730 = vmatpush.bf16.msra.mxu0 %v6709
    %6731 = vmatpush.bf16.msra.mxu0 %v6707
    %6732 = vmatpush.bf16.msra.mxu0 %v6705
    %6733 = vmatpush.bf16.msra.mxu0 %v6703
    %6734 = vmatpush.bf16.msra.mxu0 %v6701
    %6735 = vmatpush.bf16.msra.mxu0 %v6699
    %6736 = vmatpush.bf16.msra.mxu0 %v6697
    %6737 = vmatmul.bf16.gmra.mxu0 %v6647
    %v6738 = vpop.f32.mrf.mxu0
    %v6739 = vadd.f32 %v6625, %v6738
    %v6740 = vpop.f32.mrf.mxu0
    %6741 = vdwg.mxu0
    %6742 = vmatpush.bf16.msra.mxu0 %v6712
    %6743 = vmatpush.bf16.msra.mxu0 %v6710
    %6744 = vmatpush.bf16.msra.mxu0 %v6708
    %6745 = vmatpush.bf16.msra.mxu0 %v6706
    %6746 = vmatpush.bf16.msra.mxu0 %v6704
    %6747 = vmatpush.bf16.msra.mxu0 %v6702
    %6748 = vmatpush.bf16.msra.mxu0 %v6700
    %6749 = vmatpush.bf16.msra.mxu0 %v6698
    %6750 = vmatmul.bf16.gmra.mxu0 %v6647
    %v6751 = vpop.f32.mrf.mxu0
    %v6752 = vadd.f32 %v6638, %v6751
    %v6753 = vpop.f32.mrf.mxu0
    %6754 = vdwg.mxu0
    %s6755 = scalar_lea.vmem [#allocation4], 2
    %v6756 = vld [vmem:[%s6755] sm:$0x1]
    %v6757 = vld [vmem:[%s6755 + $0x4] sm:$0x1]
    %v6758 = vpack.c.bf16 %v6756, %v6756
    %v6759 = vpack.c.bf16 %v6757, %v6757
    %s6760 = scalar_lea.vmem [#allocation5], 256
    %v6761 = vld [vmem:[%s6760] sm:$0xff]
    %v6762 = vld [vmem:[%s6760 + $0x8] sm:$0xff]
    %v6763 = vld [vmem:[%s6760 + $0x10] sm:$0xff]
    %v6764 = vld [vmem:[%s6760 + $0x18] sm:$0xff]
    %v6765 = vld [vmem:[%s6760 + $0x20] sm:$0xff]
    %v6766 = vld [vmem:[%s6760 + $0x28] sm:$0xff]
    %v6767 = vld [vmem:[%s6760 + $0x30] sm:$0xff]
    %v6768 = vld [vmem:[%s6760 + $0x38] sm:$0xff]
    %v6769 = vld [vmem:[%s6760 + $0x40] sm:$0xff]
    %v6770 = vld [vmem:[%s6760 + $0x48] sm:$0xff]
    %v6771 = vld [vmem:[%s6760 + $0x50] sm:$0xff]
    %v6772 = vld [vmem:[%s6760 + $0x58] sm:$0xff]
    %v6773 = vld [vmem:[%s6760 + $0x60] sm:$0xff]
    %v6774 = vld [vmem:[%s6760 + $0x68] sm:$0xff]
    %v6775 = vld [vmem:[%s6760 + $0x70] sm:$0xff]
    %v6776 = vld [vmem:[%s6760 + $0x78] sm:$0xff]
    %v6779 = vunpack.c.l.b16 %v6758
    %v6780 = vunpack.c.l.b16 %v6759
    %v6781 = vrot.slane %v6780, 7
    %v6782 = vsel %vm6531, %v6781, %v6779
    %v6783 = vpack.c.b16 %v6782, %v6782
    %v6801 = vunpack.c.l.b16 %v6761
    %v6802 = vunpack.c.h.b16 %v6761
    %v6803 = vunpack.c.l.b16 %v6762
    %v6804 = vunpack.c.h.b16 %v6762
    %v6805 = vunpack.c.l.b16 %v6763
    %v6806 = vunpack.c.h.b16 %v6763
    %v6807 = vunpack.c.l.b16 %v6764
    %v6808 = vunpack.c.h.b16 %v6764
    %v6809 = vunpack.c.l.b16 %v6765
    %v6810 = vunpack.c.h.b16 %v6765
    %v6811 = vunpack.c.l.b16 %v6766
    %v6812 = vunpack.c.h.b16 %v6766
    %v6813 = vunpack.c.l.b16 %v6767
    %v6814 = vunpack.c.h.b16 %v6767
    %v6815 = vunpack.c.l.b16 %v6768
    %v6816 = vunpack.c.h.b16 %v6768
    %v6817 = vunpack.c.l.b16 %v6769
    %v6818 = vunpack.c.h.b16 %v6769
    %v6819 = vunpack.c.l.b16 %v6770
    %v6820 = vunpack.c.h.b16 %v6770
    %v6821 = vunpack.c.l.b16 %v6771
    %v6822 = vunpack.c.h.b16 %v6771
    %v6823 = vunpack.c.l.b16 %v6772
    %v6824 = vunpack.c.h.b16 %v6772
    %v6825 = vunpack.c.l.b16 %v6773
    %v6826 = vunpack.c.h.b16 %v6773
    %v6827 = vunpack.c.l.b16 %v6774
    %v6828 = vunpack.c.h.b16 %v6774
    %v6829 = vunpack.c.l.b16 %v6775
    %v6830 = vunpack.c.h.b16 %v6775
    %v6831 = vunpack.c.l.b16 %v6776
    %v6832 = vunpack.c.h.b16 %v6776
    %v6833 = vpack.c.b16 %v6803, %v6801
    %v6834 = vpack.c.b16 %v6804, %v6802
    %v6835 = vpack.c.b16 %v6807, %v6805
    %v6836 = vpack.c.b16 %v6808, %v6806
    %v6837 = vpack.c.b16 %v6811, %v6809
    %v6838 = vpack.c.b16 %v6812, %v6810
    %v6839 = vpack.c.b16 %v6815, %v6813
    %v6840 = vpack.c.b16 %v6816, %v6814
    %v6841 = vpack.c.b16 %v6819, %v6817
    %v6842 = vpack.c.b16 %v6820, %v6818
    %v6843 = vpack.c.b16 %v6823, %v6821
    %v6844 = vpack.c.b16 %v6824, %v6822
    %v6845 = vpack.c.b16 %v6827, %v6825
    %v6846 = vpack.c.b16 %v6828, %v6826
    %v6847 = vpack.c.b16 %v6831, %v6829
    %v6848 = vpack.c.b16 %v6832, %v6830
    %6865 = vmatpush.bf16.msra.mxu0 %v6847
    %6866 = vmatpush.bf16.msra.mxu0 %v6845
    %6867 = vmatpush.bf16.msra.mxu0 %v6843
    %6868 = vmatpush.bf16.msra.mxu0 %v6841
    %6869 = vmatpush.bf16.msra.mxu0 %v6839
    %6870 = vmatpush.bf16.msra.mxu0 %v6837
    %6871 = vmatpush.bf16.msra.mxu0 %v6835
    %6872 = vmatpush.bf16.msra.mxu0 %v6833
    %6873 = vmatmul.bf16.gmra.mxu0 %v6783
    %v6874 = vpop.f32.mrf.mxu0
    %v6875 = vadd.f32 0.0, %v6874
    %v6876 = vpop.f32.mrf.mxu0
    %6877 = vdwg.mxu0
    %6878 = vmatpush.bf16.msra.mxu0 %v6848
    %6879 = vmatpush.bf16.msra.mxu0 %v6846
    %6880 = vmatpush.bf16.msra.mxu0 %v6844
    %6881 = vmatpush.bf16.msra.mxu0 %v6842
    %6882 = vmatpush.bf16.msra.mxu0 %v6840
    %6883 = vmatpush.bf16.msra.mxu0 %v6838
    %6884 = vmatpush.bf16.msra.mxu0 %v6836
    %6885 = vmatpush.bf16.msra.mxu0 %v6834
    %6886 = vmatmul.bf16.gmra.mxu0 %v6783
    %v6887 = vpop.f32.mrf.mxu0
    %v6888 = vadd.f32 0.0, %v6887
    %v6889 = vpop.f32.mrf.mxu0
    %6890 = vdwg.mxu0
    %v6891 = vadd.f32 %v6739, %v6875
    %v6892 = vadd.f32 %v6752, %v6888
    %v6893 = vld [vmem:[%s6755 + $0x1] sm:$0x1]
    %v6894 = vld [vmem:[%s6755 + $0x5] sm:$0x1]
    %v6895 = vpack.c.bf16 %v6893, %v6893
    %v6896 = vpack.c.bf16 %v6894, %v6894
    %s6897 = scalar_lea.vmem [#allocation5], 384
    %v6898 = vld [vmem:[%s6897] sm:$0xff]
    %v6899 = vld [vmem:[%s6897 + $0x8] sm:$0xff]
    %v6900 = vld [vmem:[%s6897 + $0x10] sm:$0xff]
    %v6901 = vld [vmem:[%s6897 + $0x18] sm:$0xff]
    %v6902 = vld [vmem:[%s6897 + $0x20] sm:$0xff]
    %v6903 = vld [vmem:[%s6897 + $0x28] sm:$0xff]
    %v6904 = vld [vmem:[%s6897 + $0x30] sm:$0xff]
    %v6905 = vld [vmem:[%s6897 + $0x38] sm:$0xff]
    %v6906 = vld [vmem:[%s6897 + $0x40] sm:$0xff]
    %v6907 = vld [vmem:[%s6897 + $0x48] sm:$0xff]
    %v6908 = vld [vmem:[%s6897 + $0x50] sm:$0xff]
    %v6909 = vld [vmem:[%s6897 + $0x58] sm:$0xff]
    %v6910 = vld [vmem:[%s6897 + $0x60] sm:$0xff]
    %v6911 = vld [vmem:[%s6897 + $0x68] sm:$0xff]
    %v6912 = vld [vmem:[%s6897 + $0x70] sm:$0xff]
    %v6913 = vld [vmem:[%s6897 + $0x78] sm:$0xff]
    %v6916 = vunpack.c.l.b16 %v6895
    %v6917 = vunpack.c.l.b16 %v6896
    %v6918 = vrot.slane %v6917, 7
    %v6919 = vsel %vm6531, %v6918, %v6916
    %v6920 = vpack.c.b16 %v6919, %v6919
    %v6938 = vunpack.c.l.b16 %v6898
    %v6939 = vunpack.c.h.b16 %v6898
    %v6940 = vunpack.c.l.b16 %v6899
    %v6941 = vunpack.c.h.b16 %v6899
    %v6942 = vunpack.c.l.b16 %v6900
    %v6943 = vunpack.c.h.b16 %v6900
    %v6944 = vunpack.c.l.b16 %v6901
    %v6945 = vunpack.c.h.b16 %v6901
    %v6946 = vunpack.c.l.b16 %v6902
    %v6947 = vunpack.c.h.b16 %v6902
    %v6948 = vunpack.c.l.b16 %v6903
    %v6949 = vunpack.c.h.b16 %v6903
    %v6950 = vunpack.c.l.b16 %v6904
    %v6951 = vunpack.c.h.b16 %v6904
    %v6952 = vunpack.c.l.b16 %v6905
    %v6953 = vunpack.c.h.b16 %v6905
    %v6954 = vunpack.c.l.b16 %v6906
    %v6955 = vunpack.c.h.b16 %v6906
    %v6956 = vunpack.c.l.b16 %v6907
    %v6957 = vunpack.c.h.b16 %v6907
    %v6958 = vunpack.c.l.b16 %v6908
    %v6959 = vunpack.c.h.b16 %v6908
    %v6960 = vunpack.c.l.b16 %v6909
    %v6961 = vunpack.c.h.b16 %v6909
    %v6962 = vunpack.c.l.b16 %v6910
    %v6963 = vunpack.c.h.b16 %v6910
    %v6964 = vunpack.c.l.b16 %v6911
    %v6965 = vunpack.c.h.b16 %v6911
    %v6966 = vunpack.c.l.b16 %v6912
    %v6967 = vunpack.c.h.b16 %v6912
    %v6968 = vunpack.c.l.b16 %v6913
    %v6969 = vunpack.c.h.b16 %v6913
    %v6970 = vpack.c.b16 %v6940, %v6938
    %v6971 = vpack.c.b16 %v6941, %v6939
    %v6972 = vpack.c.b16 %v6944, %v6942
    %v6973 = vpack.c.b16 %v6945, %v6943
    %v6974 = vpack.c.b16 %v6948, %v6946
    %v6975 = vpack.c.b16 %v6949, %v6947
    %v6976 = vpack.c.b16 %v6952, %v6950
    %v6977 = vpack.c.b16 %v6953, %v6951
    %v6978 = vpack.c.b16 %v6956, %v6954
    %v6979 = vpack.c.b16 %v6957, %v6955
    %v6980 = vpack.c.b16 %v6960, %v6958
    %v6981 = vpack.c.b16 %v6961, %v6959
    %v6982 = vpack.c.b16 %v6964, %v6962
    %v6983 = vpack.c.b16 %v6965, %v6963
    %v6984 = vpack.c.b16 %v6968, %v6966
    %v6985 = vpack.c.b16 %v6969, %v6967
    %7002 = vmatpush.bf16.msra.mxu0 %v6984
    %7003 = vmatpush.bf16.msra.mxu0 %v6982
    %7004 = vmatpush.bf16.msra.mxu0 %v6980
    %7005 = vmatpush.bf16.msra.mxu0 %v6978
    %7006 = vmatpush.bf16.msra.mxu0 %v6976
    %7007 = vmatpush.bf16.msra.mxu0 %v6974
    %7008 = vmatpush.bf16.msra.mxu0 %v6972
    %7009 = vmatpush.bf16.msra.mxu0 %v6970
    %7010 = vmatmul.bf16.gmra.mxu0 %v6920
    %v7011 = vpop.f32.mrf.mxu0
    %v7012 = vadd.f32 0.0, %v7011
    %v7013 = vpop.f32.mrf.mxu0
    %7014 = vdwg.mxu0
    %7015 = vmatpush.bf16.msra.mxu0 %v6985
    %7016 = vmatpush.bf16.msra.mxu0 %v6983
    %7017 = vmatpush.bf16.msra.mxu0 %v6981
    %7018 = vmatpush.bf16.msra.mxu0 %v6979
    %7019 = vmatpush.bf16.msra.mxu0 %v6977
    %7020 = vmatpush.bf16.msra.mxu0 %v6975
    %7021 = vmatpush.bf16.msra.mxu0 %v6973
    %7022 = vmatpush.bf16.msra.mxu0 %v6971
    %7023 = vmatmul.bf16.gmra.mxu0 %v6920
    %v7024 = vpop.f32.mrf.mxu0
    %v7025 = vadd.f32 0.0, %v7024
    %v7026 = vpop.f32.mrf.mxu0
    %7027 = vdwg.mxu0
    %v7028 = vadd.f32 %v6891, %v7012
    %v7029 = vadd.f32 %v6892, %v7025
    %v7030 = vld [vmem:[%s8] sm:$0x3]
    %v7032 = vperm.slane %v7030, 0
    %v7033 = vperm.slane %v7030, 1
    %v7036 = vadd.f32 %v7028, %v7032
    %v7037 = vadd.f32 %v7029, %v7033
    %v7038 = vmax.f32 %v7036, 0.0
    %v7039 = vmax.f32 %v7037, 0.0
    %v7040 = vpack.c.bf16 %v7038, %v7038
    %v7041 = vpack.c.bf16 %v7039, %v7039
    %v7042 = vld [vmem:[%s9] sm:$0xf]
    %v7043 = vld [vmem:[%s9 + $0x4] sm:$0xf]
    %v7044 = vld [vmem:[%s9 + $0x8] sm:$0xf]
    %v7045 = vld [vmem:[%s9 + $0xc] sm:$0xf]
    %v7046 = vld [vmem:[%s9 + $0x10] sm:$0xf]
    %v7047 = vld [vmem:[%s9 + $0x14] sm:$0xf]
    %v7048 = vld [vmem:[%s9 + $0x18] sm:$0xf]
    %v7049 = vld [vmem:[%s9 + $0x1c] sm:$0xf]
    %v7050 = vld [vmem:[%s9 + $0x20] sm:$0xf]
    %v7051 = vld [vmem:[%s9 + $0x24] sm:$0xf]
    %v7052 = vld [vmem:[%s9 + $0x28] sm:$0xf]
    %v7053 = vld [vmem:[%s9 + $0x2c] sm:$0xf]
    %v7054 = vld [vmem:[%s9 + $0x30] sm:$0xf]
    %v7055 = vld [vmem:[%s9 + $0x34] sm:$0xf]
    %v7056 = vld [vmem:[%s9 + $0x38] sm:$0xf]
    %v7057 = vld [vmem:[%s9 + $0x3c] sm:$0xf]
    %v7058 = vld [vmem:[%s9 + $0x40] sm:$0xf]
    %v7059 = vld [vmem:[%s9 + $0x44] sm:$0xf]
    %v7060 = vld [vmem:[%s9 + $0x48] sm:$0xf]
    %v7061 = vld [vmem:[%s9 + $0x4c] sm:$0xf]
    %v7062 = vld [vmem:[%s9 + $0x50] sm:$0xf]
    %v7063 = vld [vmem:[%s9 + $0x54] sm:$0xf]
    %v7064 = vld [vmem:[%s9 + $0x58] sm:$0xf]
    %v7065 = vld [vmem:[%s9 + $0x5c] sm:$0xf]
    %v7066 = vld [vmem:[%s9 + $0x60] sm:$0xf]
    %v7067 = vld [vmem:[%s9 + $0x64] sm:$0xf]
    %v7068 = vld [vmem:[%s9 + $0x68] sm:$0xf]
    %v7069 = vld [vmem:[%s9 + $0x6c] sm:$0xf]
    %v7070 = vld [vmem:[%s9 + $0x70] sm:$0xf]
    %v7071 = vld [vmem:[%s9 + $0x74] sm:$0xf]
    %v7072 = vld [vmem:[%s9 + $0x78] sm:$0xf]
    %v7073 = vld [vmem:[%s9 + $0x7c] sm:$0xf]
    %v7074 = vld [vmem:[%s10] sm:$0x1]
    %v7076 = vperm.slane %v7074, 0
    %v7110 = vunpack.c.l.b16 %v7042
    %v7111 = vunpack.c.l.b16 %v7043
    %v7112 = vunpack.c.l.b16 %v7044
    %v7113 = vunpack.c.l.b16 %v7045
    %v7114 = vunpack.c.l.b16 %v7046
    %v7115 = vunpack.c.l.b16 %v7047
    %v7116 = vunpack.c.l.b16 %v7048
    %v7117 = vunpack.c.l.b16 %v7049
    %v7118 = vunpack.c.l.b16 %v7050
    %v7119 = vunpack.c.l.b16 %v7051
    %v7120 = vunpack.c.l.b16 %v7052
    %v7121 = vunpack.c.l.b16 %v7053
    %v7122 = vunpack.c.l.b16 %v7054
    %v7123 = vunpack.c.l.b16 %v7055
    %v7124 = vunpack.c.l.b16 %v7056
    %v7125 = vunpack.c.l.b16 %v7057
    %v7126 = vunpack.c.l.b16 %v7058
    %v7127 = vunpack.c.l.b16 %v7059
    %v7128 = vunpack.c.l.b16 %v7060
    %v7129 = vunpack.c.l.b16 %v7061
    %v7130 = vunpack.c.l.b16 %v7062
    %v7131 = vunpack.c.l.b16 %v7063
    %v7132 = vunpack.c.l.b16 %v7064
    %v7133 = vunpack.c.l.b16 %v7065
    %v7134 = vunpack.c.l.b16 %v7066
    %v7135 = vunpack.c.l.b16 %v7067
    %v7136 = vunpack.c.l.b16 %v7068
    %v7137 = vunpack.c.l.b16 %v7069
    %v7138 = vunpack.c.l.b16 %v7070
    %v7139 = vunpack.c.l.b16 %v7071
    %v7140 = vunpack.c.l.b16 %v7072
    %v7141 = vunpack.c.l.b16 %v7073
    %v7142 = vpack.c.b16 %v7111, %v7110
    %v7143 = vpack.c.b16 %v7113, %v7112
    %v7144 = vpack.c.b16 %v7115, %v7114
    %v7145 = vpack.c.b16 %v7117, %v7116
    %v7146 = vpack.c.b16 %v7119, %v7118
    %v7147 = vpack.c.b16 %v7121, %v7120
    %v7148 = vpack.c.b16 %v7123, %v7122
    %v7149 = vpack.c.b16 %v7125, %v7124
    %v7150 = vpack.c.b16 %v7127, %v7126
    %v7151 = vpack.c.b16 %v7129, %v7128
    %v7152 = vpack.c.b16 %v7131, %v7130
    %v7153 = vpack.c.b16 %v7133, %v7132
    %v7154 = vpack.c.b16 %v7135, %v7134
    %v7155 = vpack.c.b16 %v7137, %v7136
    %v7156 = vpack.c.b16 %v7139, %v7138
    %v7157 = vpack.c.b16 %v7141, %v7140
    %7174 = vmatpush.bf16.msra.mxu0 %v7149
    %7175 = vmatpush.bf16.msra.mxu0 %v7148
    %7176 = vmatpush.bf16.msra.mxu0 %v7147
    %7177 = vmatpush.bf16.msra.mxu0 %v7146
    %7178 = vmatpush.bf16.msra.mxu0 %v7145
    %7179 = vmatpush.bf16.msra.mxu0 %v7144
    %7180 = vmatpush.bf16.msra.mxu0 %v7143
    %7181 = vmatpush.bf16.msra.mxu0 %v7142
    %7182 = vmatmul.bf16.gmra.mxu0 %v7040
    %v7183 = vpop.f32.mrf.mxu0
    %v7184 = vadd.f32 %v7076, %v7183
    %v7185 = vpop.f32.mrf.mxu0
    %7186 = vdwg.mxu0
    %7187 = vmatpush.bf16.msra.mxu0 %v7157
    %7188 = vmatpush.bf16.msra.mxu0 %v7156
    %7189 = vmatpush.bf16.msra.mxu0 %v7155
    %7190 = vmatpush.bf16.msra.mxu0 %v7154
    %7191 = vmatpush.bf16.msra.mxu0 %v7153
    %7192 = vmatpush.bf16.msra.mxu0 %v7152
    %7193 = vmatpush.bf16.msra.mxu0 %v7151
    %7194 = vmatpush.bf16.msra.mxu0 %v7150
    %7195 = vmatmul.bf16.gmra.mxu0 %v7041
    %v7196 = vpop.f32.mrf.mxu0
    %v7197 = vadd.f32 %v7184, %v7196
    %v7198 = vpop.f32.mrf.mxu0
    %7199 = vdwg.mxu0
    %v7200 = vmax.f32 %v7197, 0.0
    %v7201 = vpack.c.bf16 %v7200, %v7200
    %v7202 = vld [vmem:[%s11] sm:$0xf]
    %v7203 = vld [vmem:[%s11 + $0x4] sm:$0xf]
    %v7204 = vld [vmem:[%s11 + $0x8] sm:$0xf]
    %v7205 = vld [vmem:[%s11 + $0xc] sm:$0xf]
    %v7206 = vld [vmem:[%s11 + $0x10] sm:$0xf]
    %v7207 = vld [vmem:[%s11 + $0x14] sm:$0xf]
    %v7208 = vld [vmem:[%s11 + $0x18] sm:$0xf]
    %v7209 = vld [vmem:[%s11 + $0x1c] sm:$0xf]
    %v7210 = vld [vmem:[%s11 + $0x20] sm:$0xf]
    %v7211 = vld [vmem:[%s11 + $0x24] sm:$0xf]
    %v7212 = vld [vmem:[%s11 + $0x28] sm:$0xf]
    %v7213 = vld [vmem:[%s11 + $0x2c] sm:$0xf]
    %v7214 = vld [vmem:[%s11 + $0x30] sm:$0xf]
    %v7215 = vld [vmem:[%s11 + $0x34] sm:$0xf]
    %v7216 = vld [vmem:[%s11 + $0x38] sm:$0xf]
    %v7217 = vld [vmem:[%s11 + $0x3c] sm:$0xf]
    %v7218 = vld [vmem:[%s12] sm:$0x1]
    %v7220 = vperm.slane %v7218, 0
    %v7238 = vunpack.c.l.b16 %v7202
    %v7239 = vunpack.c.l.b16 %v7203
    %v7240 = vunpack.c.l.b16 %v7204
    %v7241 = vunpack.c.l.b16 %v7205
    %v7242 = vunpack.c.l.b16 %v7206
    %v7243 = vunpack.c.l.b16 %v7207
    %v7244 = vunpack.c.l.b16 %v7208
    %v7245 = vunpack.c.l.b16 %v7209
    %v7246 = vunpack.c.l.b16 %v7210
    %v7247 = vunpack.c.l.b16 %v7211
    %v7248 = vunpack.c.l.b16 %v7212
    %v7249 = vunpack.c.l.b16 %v7213
    %v7250 = vunpack.c.l.b16 %v7214
    %v7251 = vunpack.c.l.b16 %v7215
    %v7252 = vunpack.c.l.b16 %v7216
    %v7253 = vunpack.c.l.b16 %v7217
    %v7254 = vpack.c.b16 %v7239, %v7238
    %v7255 = vpack.c.b16 %v7241, %v7240
    %v7256 = vpack.c.b16 %v7243, %v7242
    %v7257 = vpack.c.b16 %v7245, %v7244
    %v7258 = vpack.c.b16 %v7247, %v7246
    %v7259 = vpack.c.b16 %v7249, %v7248
    %v7260 = vpack.c.b16 %v7251, %v7250
    %v7261 = vpack.c.b16 %v7253, %v7252
    %7270 = vmatpush.bf16.msra.mxu0 %v7261
    %7271 = vmatpush.bf16.msra.mxu0 %v7260
    %7272 = vmatpush.bf16.msra.mxu0 %v7259
    %7273 = vmatpush.bf16.msra.mxu0 %v7258
    %7274 = vmatpush.bf16.msra.mxu0 %v7257
    %7275 = vmatpush.bf16.msra.mxu0 %v7256
    %7276 = vmatpush.bf16.msra.mxu0 %v7255
    %7277 = vmatpush.bf16.msra.mxu0 %v7254
    %7278 = vmatmul.bf16.gmra.mxu0 %v7201
    %v7279 = vpop.f32.mrf.mxu0
    %v7280 = vadd.f32 %v7220, %v7279
    %v7281 = vpop.f32.mrf.mxu0
    %7282 = vdwg.mxu0
    %vm7283 = vcmask 1024
    %7284 = vst.msk [vmem:[%s13] sm:$0x3] %vm7283, %v7280
    // Predicated region
    $region58: #{net_forward.1} parent=1 // pred_check
      _
    $region59: #{net_forward.1} parent=1 // pred_check_branch
      %7286 = sbr.rel (0) target = $region61
    $region60: #{net_forward.1} parent=1 // pred_region
      _
    $region61: #{net_forward.1} parent=1 // pred_fallthru
      _
    // Predicated region
    $region62: #{net_forward.1} parent=1 // pred_check
      _
    $region63: #{net_forward.1} parent=1 // pred_check_branch
      %7288 = sbr.rel (0) target = $region65
    $region64: #{net_forward.1} parent=1 // pred_region
      _
    $region65: #{net_forward.1} parent=1 // pred_fallthru
      _
    %7289 = vsyncpa [#allocation6], 1

</llo_original>
